<compile_context>
chip_gen: v7x
topology: tpu7x:2x2x1
jax: 0.10.0
libtpu: 0.0.40
codegen_flags: <defaults>
</compile_context>

<pallas_src>
import functools

import jax
import jax.numpy as jnp
import numpy as np
from jax import lax
from jax.experimental import pallas as pl
from jax.experimental.pallas import tpu as pltpu

# ---------------- model config (small but consistent with the module) -------
N_RX, N_SUB, N_TX = 8, 4, 2
IN_CHANNELS = 2
HIDDEN = 32
NUM_LAYERS = 2
SEQ_LEN = 8
BATCH = 2

FEATURE_DIM = IN_CHANNELS * N_RX * N_SUB * N_TX   # 128
OUT_DIM = N_RX * N_SUB * N_TX                     # 64
H1 = HIDDEN * 2                                   # hidden of *_lstm1 = 64
H2 = HIDDEN                                       # hidden of *_lstm2 = 32
N_STAGES = 2 * NUM_LAYERS                         # lstm1 layers then lstm2 layers

HP = 64            # per-tower hidden lane pitch inside the fused hidden-cat
HC = 2 * HP        # fused hidden-cat width (mag | mask) = 128 lanes = 1 vreg
GW = 4 * HC        # fused gate width (i | f | o | g), each group 128 lanes -> 512
DPAD = 128         # padded input-feature width (FEATURE_DIM == 128 already)
assert FEATURE_DIM <= DPAD and H1 <= HP and H2 <= HP

# PyTorch gate order in the raw weights is (i, f, g, o); fused column groups are
# ordered (i, f, o, g) so the three sigmoid gates form one contiguous slice.
GATE_GROUP = (0, 1, 3, 2)   # fused group index for pytorch gates (i, f, g, o)


# ---------------- fused Pallas kernel ----------------------------------------
def fused_forward_kernel(x_ref, w_ih_ref, w_hh_ref, b_ref, head_w_ref, head_b_ref,
                         out_ref, *, seq_len, batch, n_stages):
    """Whole LSTMChannelPredictor forward in one kernel.

    x_ref      : (L*B, DPAD)          bf16  time-major rows (row = t*B + b)
    w_ih_ref   : (n_stages, DPAD, GW) bf16  fused [mag|mask] input->gate weights
    w_hh_ref   : (n_stages, HC, GW)   bf16  fused block-diagonal hidden->gate weights
    b_ref      : (n_stages, 1, GW)    f32   fused (bias_ih + bias_hh)
    head_w_ref : (HC, 2*OUT_DIM)      bf16  fused [mag | mask] head weights
    head_b_ref : (1, 2*OUT_DIM)       f32
    out_ref    : (B, 2*OUT_DIM)       f32   [softplus(mag) | mask_logits]

    Fused column layout (per stage): 4 gate groups of HC=128 lanes each, ordered
    (i, f, o, g); within each group mag occupies lanes [0:HP), mask [HP:2*HP).
    Hidden/cell state layout matches one gate group: (B, HC) = [mag | mask].
    Pad lanes (only in the H=32 stages) stay exactly zero because all pad weight
    rows/cols and pad bias lanes are zero -> gates=0 -> c=h=0 in those lanes.
    """
    f32, bf16 = jnp.float32, jnp.bfloat16
    L, B = seq_len, batch
    S1, S2, S3 = HC, 2 * HC, 3 * HC   # 128 / 256 / 384 lane boundaries

    def cell(gx_t, h_prev, c_prev, w_hh_s):
        # gx_t: (B, GW) f32 = precomputed x_t @ W_ih + b for this step (both towers).
        if h_prev is None:                     # t == 0: h0 = c0 = 0 -> skip recurrence
            gates = gx_t
        else:
            gates = gx_t + jnp.dot(h_prev.astype(bf16), w_hh_s,
                                   preferred_element_type=f32)
        sig = jax.nn.sigmoid(gates[:, :S3])    # one EUP pass over i|f|o (3 vregs wide)
        g = jnp.tanh(gates[:, S3:])
        i, f, o = sig[:, :S1], sig[:, S1:S2], sig[:, S2:S3]
        c_new = i * g if c_prev is None else f * c_prev + i * g
        h_new = o * jnp.tanh(c_new)
        return h_new, c_new

    seq = x_ref[...]                           # (L*B, DPAD) bf16
    h = None
    for s in range(n_stages):
        w_hh_s = w_hh_ref[s]                   # (HC, GW) bf16
        # Hoisted input projection for the whole sequence, both towers at once.
        gx = jnp.dot(seq, w_ih_ref[s], preferred_element_type=f32) + b_ref[s]
        h = c = None
        hs = []
        last_stage = (s == n_stages - 1)
        for t in range(L):                     # fully unrolled: L is static
            h, c = cell(gx[t * B:(t + 1) * B, :], h, c, w_hh_s)
            if not last_stage:
                hs.append(h)
        if not last_stage:
            # Next stage's input stays value-resident (no scratch store/reload).
            seq = jnp.concatenate(hs, axis=0).astype(bf16)    # (L*B, HC)

    # Fused heads: one matmul, one lane-dense (B, 2*OUT_DIM) store.
    out = (jnp.dot(h.astype(bf16), head_w_ref[...], preferred_element_type=f32)
           + head_b_ref[...])
    lane = lax.broadcasted_iota(jnp.int32, out.shape, 1)
    out_ref[...] = jnp.where(lane < OUT_DIM, jax.nn.softplus(out), out)


def fused_forward(x_rows, packed, *, seq_len, batch):
    vmem = pl.BlockSpec(memory_space=pltpu.MemorySpace.VMEM)
    kernel = functools.partial(fused_forward_kernel, seq_len=seq_len, batch=batch,
                               n_stages=N_STAGES)
    return pl.pallas_call(
        kernel,
        out_shape=jax.ShapeDtypeStruct((batch, 2 * OUT_DIM), jnp.float32),
        in_specs=[vmem] * 6,
        out_specs=vmem,
    )(x_rows, packed["w_ih"], packed["w_hh"], packed["b"],
      packed["head_w"], packed["head_b"])


@jax.jit
def forward(x, packed):
    """x: (B, C, R, S, T, L) -> (mag_pred, mask_logits) each (B, R, S, T)."""
    B, C, R, S, T, L = x.shape
    F = C * R * S * T
    # permute(0,5,1,2,3,4).view(B,L,-1), then time-major rows (row = t*B + b).
    x_rows = jnp.transpose(x, (5, 0, 1, 2, 3, 4)).reshape(L * B, F)
    if F < DPAD:
        x_rows = jnp.pad(x_rows, ((0, 0), (0, DPAD - F)))
    x_rows = x_rows.astype(jnp.bfloat16)       # MXU operand; accumulation stays f32
    out = fused_forward(x_rows, packed, seq_len=L, batch=B)    # (B, 2*OUT_DIM)
    mag = out[:, :OUT_DIM].reshape(B, R, S, T)   # softplus already applied in-kernel
    mask = out[:, OUT_DIM:].reshape(B, R, S, T)
    return mag, mask


# ---------------- deterministic parameter init --------------------------------
def init_lstm_stack(key, in_dim, hidden, num_layers):
    params = []
    bound = 1.0 / float(np.sqrt(hidden))
    d = in_dim
    for _ in range(num_layers):
        key, k1, k2, k3, k4 = jax.random.split(key, 5)
        w_ih = jax.random.uniform(k1, (d, 4 * hidden), jnp.float32, -bound, bound)
        w_hh = jax.random.uniform(k2, (hidden, 4 * hidden), jnp.float32, -bound, bound)
        b_ih = jax.random.uniform(k3, (4 * hidden,), jnp.float32, -bound, bound)
        b_hh = jax.random.uniform(k4, (4 * hidden,), jnp.float32, -bound, bound)
        params.append((w_ih, w_hh, (b_ih + b_hh).reshape(1, 4 * hidden)))
        d = hidden
    return key, params


def init_params(key):
    params = {}
    key, params["mag_lstm1"] = init_lstm_stack(key, FEATURE_DIM, H1, NUM_LAYERS)
    key, params["mag_lstm2"] = init_lstm_stack(key, H1, H2, NUM_LAYERS)
    key, params["mask_lstm1"] = init_lstm_stack(key, FEATURE_DIM, H1, NUM_LAYERS)
    key, params["mask_lstm2"] = init_lstm_stack(key, H1, H2, NUM_LAYERS)
    bound = 1.0 / float(np.sqrt(H2))
    key, k1, k2, k3, k4 = jax.random.split(key, 5)
    params["head_mag_w"] = jax.random.uniform(k1, (H2, OUT_DIM), jnp.float32, -bound, bound)
    params["head_mag_b"] = jax.random.uniform(k2, (1, OUT_DIM), jnp.float32, -bound, bound)
    params["head_mask_w"] = jax.random.uniform(k3, (H2, OUT_DIM), jnp.float32, -bound, bound)
    params["head_mask_b"] = jax.random.uniform(k4, (1, OUT_DIM), jnp.float32, -bound, bound)
    return params


# ---------------- pack params into the kernel's fused, bf16 layout ------------
def pack_params(params):
    """Fuse mag/mask towers per stage, reorder gates to (i,f,o,g), zero-pad H=32
    stages to the 64-lane per-tower pitch, and cast weights to bf16.

    NOTE: any checkpoint import must go through this same packing (tower fusion,
    gate reorder, zero-padding), otherwise results silently diverge.
    """
    stage_defs = [
        # (hidden, in_dim, input mode, (mag layer params, mask layer params))
        (H1, FEATURE_DIM, "shared", (params["mag_lstm1"][0], params["mask_lstm1"][0])),
        (H1, H1,          "split",  (params["mag_lstm1"][1], params["mask_lstm1"][1])),
        (H2, H1,          "split",  (params["mag_lstm2"][0], params["mask_lstm2"][0])),
        (H2, H2,          "split",  (params["mag_lstm2"][1], params["mask_lstm2"][1])),
    ]
    assert len(stage_defs) == N_STAGES

    w_ih = np.zeros((N_STAGES, DPAD, GW), np.float32)
    w_hh = np.zeros((N_STAGES, HC, GW), np.float32)
    b = np.zeros((N_STAGES, 1, GW), np.float32)

    for s, (H, din, mode, towers) in enumerate(stage_defs):
        for tw, (wi, wh, bb) in enumerate(towers):
            wi, wh, bb = np.asarray(wi), np.asarray(wh), np.asarray(bb)
            # Input rows: stage 0 both towers read the shared x (rows [0:din));
            # later stages read the previous stage's [mag | mask] hidden-cat.
            row0 = 0 if mode == "shared" else tw * HP
            for g_pt, gr in enumerate(GATE_GROUP):      # pytorch (i,f,g,o) -> (i,f,o,g)
                col0 = gr * HC + tw * HP
                w_ih[s, row0:row0 + din, col0:col0 + H] = wi[:, g_pt * H:(g_pt + 1) * H]
                w_hh[s, tw * HP:tw * HP + H, col0:col0 + H] = wh[:, g_pt * H:(g_pt + 1) * H]
                b[s, 0, col0:col0 + H] = bb[0, g_pt * H:(g_pt + 1) * H]

    head_w = np.zeros((HC, 2 * OUT_DIM), np.float32)
    head_b = np.zeros((1, 2 * OUT_DIM), np.float32)
    head_w[0:H2, 0:OUT_DIM] = np.asarray(params["head_mag_w"])
    head_w[HP:HP + H2, OUT_DIM:] = np.asarray(params["head_mask_w"])
    head_b[0, 0:OUT_DIM] = np.asarray(params["head_mag_b"])[0]
    head_b[0, OUT_DIM:] = np.asarray(params["head_mask_b"])[0]

    return {"w_ih": jnp.asarray(w_ih, jnp.bfloat16),
            "w_hh": jnp.asarray(w_hh, jnp.bfloat16),
            "b": jnp.asarray(b, jnp.float32),
            "head_w": jnp.asarray(head_w, jnp.bfloat16),
            "head_b": jnp.asarray(head_b, jnp.float32)}


# ---------------- pure-JAX f32 reference (uses raw, unpacked params) ----------
def lstm_layer_ref(x_seq, w_ih, w_hh, b, hidden):
    B = x_seq.shape[1]

    def step(carry, x_t):
        h, c = carry
        gates = x_t @ w_ih + h @ w_hh + b
        i = jax.nn.sigmoid(gates[:, :hidden])
        f = jax.nn.sigmoid(gates[:, hidden:2 * hidden])
        g = jnp.tanh(gates[:, 2 * hidden:3 * hidden])
        o = jax.nn.sigmoid(gates[:, 3 * hidden:])
        c = f * c + i * g
        h = o * jnp.tanh(c)
        return (h, c), h

    h0 = jnp.zeros((B, hidden), jnp.float32)
    (_, _), ys = lax.scan(step, (h0, h0), x_seq)
    return ys


def forward_ref(x, params):
    B, C, R, S, T, L = x.shape
    x_flat = jnp.transpose(x, (0, 5, 1, 2, 3, 4)).reshape(B, L, C * R * S * T)
    x_seq = jnp.transpose(x_flat, (1, 0, 2))

    def stack(xs, ps, h):
        out = xs
        for (w_ih, w_hh, b) in ps:
            out = lstm_layer_ref(out, w_ih, w_hh, b, h)
        return out

    h_mag = stack(stack(x_seq, params["mag_lstm1"], H1), params["mag_lstm2"], H2)[-1]
    h_mask = stack(stack(x_seq, params["mask_lstm1"], H1), params["mask_lstm2"], H2)[-1]
    mag = jax.nn.softplus(h_mag @ params["head_mag_w"] + params["head_mag_b"])
    mask = h_mask @ params["head_mask_w"] + params["head_mask_b"]
    return mag.reshape(B, R, S, T), mask.reshape(B, R, S, T)


# ---------------- main ---------------------------------------------------------
if __name__ == "__main__":
    key = jax.random.PRNGKey(0)
    key, kx = jax.random.split(key)
    x = jax.random.normal(kx, (BATCH, IN_CHANNELS, N_RX, N_SUB, N_TX, SEQ_LEN),
                          dtype=jnp.float32)
    params = init_params(key)
    packed = pack_params(params)

    mag, mask = forward(x, packed)
    jax.block_until_ready((mag, mask))

    mag_ref, mask_ref = forward_ref(x, params)
    assert mag.shape == (BATCH, N_RX, N_SUB, N_TX)
    assert mask.shape == (BATCH, N_RX, N_SUB, N_TX)
    # Tolerance reflects bf16 MXU operands (f32 accumulation) through 4 stacked LSTM
    # layers x 8 timesteps vs. the pure-f32 reference.
    np.testing.assert_allclose(np.asarray(mag), np.asarray(mag_ref), atol=5e-2, rtol=5e-2)
    np.testing.assert_allclose(np.asarray(mask), np.asarray(mask_ref), atol=5e-2, rtol=5e-2)

    print("KERNEL_OK")
</pallas_src>

<mosaic_0001>
module attributes {stable_mosaic.version = 11 : i64} {
  func.func @fused_forward_kernel(%arg0: memref<16x128xbf16, #tpu.memory_space<vmem>>, %arg1: memref<4x128x512xbf16, #tpu.memory_space<vmem>>, %arg2: memref<4x128x512xbf16, #tpu.memory_space<vmem>>, %arg3: memref<4x1x512xf32, #tpu.memory_space<vmem>>, %arg4: memref<128x128xbf16, #tpu.memory_space<vmem>>, %arg5: memref<1x128xf32, #tpu.memory_space<vmem>>, %arg6: memref<2x128xf32, #tpu.memory_space<vmem>>) attributes {dimension_semantics = [], scalar_prefetch = 0 : i64, scratch_operands = 0 : i64, tpu.core_type = #tpu.core_type<tc>} {
    %c0 = arith.constant 0 : index
    %c0_0 = arith.constant 0 : index
    %0 = vector.load %arg0[%c0, %c0_0] : memref<16x128xbf16, #tpu.memory_space<vmem>>, vector<16x128xbf16>
    %c0_1 = arith.constant 0 : index
    %c0_2 = arith.constant 0 : index
    %c0_3 = arith.constant 0 : index
    %1 = vector.load %arg2[%c0_1, %c0_2, %c0_3] : memref<4x128x512xbf16, #tpu.memory_space<vmem>>, vector<1x128x512xbf16>
    %2 = vector.shape_cast %1 : vector<1x128x512xbf16> to vector<128x512xbf16>
    %c0_4 = arith.constant 0 : index
    %c0_5 = arith.constant 0 : index
    %c0_6 = arith.constant 0 : index
    %3 = vector.load %arg1[%c0_4, %c0_5, %c0_6] : memref<4x128x512xbf16, #tpu.memory_space<vmem>>, vector<1x128x512xbf16>
    %4 = vector.shape_cast %3 : vector<1x128x512xbf16> to vector<128x512xbf16>
    %cst = arith.constant dense<0.000000e+00> : vector<16x512xf32>
    %5 = tpu.matmul %0, %4, %cst {dimension_numbers = #tpu.dot_dimension_numbers<[1], [0], [0], [1], [0, 0, 1, 1], [], []>} : vector<16x128xbf16>, vector<128x512xbf16>, vector<16x512xf32> -> vector<16x512xf32>
    %c0_7 = arith.constant 0 : index
    %c0_8 = arith.constant 0 : index
    %c0_9 = arith.constant 0 : index
    %6 = vector.load %arg3[%c0_7, %c0_8, %c0_9] : memref<4x1x512xf32, #tpu.memory_space<vmem>>, vector<1x1x512xf32>
    %7 = vector.shape_cast %6 : vector<1x1x512xf32> to vector<1x512xf32>
    %8 = vector.broadcast %7 : vector<1x512xf32> to vector<16x512xf32>
    %9 = arith.addf %5, %8 : vector<16x512xf32>
    %10 = vector.extract_strided_slice %9 {offsets = [0, 0], sizes = [2, 512], strides = [1, 1]} : vector<16x512xf32> to vector<2x512xf32>
    %11 = vector.extract_strided_slice %10 {offsets = [0, 0], sizes = [2, 384], strides = [1, 1]} : vector<2x512xf32> to vector<2x384xf32>
    %12 = arith.negf %11 : vector<2x384xf32>
    %13 = math.exp %12 : vector<2x384xf32>
    %cst_10 = arith.constant 1.000000e+00 : f32
    %14 = vector.broadcast %cst_10 : f32 to vector<2x384xf32>
    %15 = arith.addf %14, %13 : vector<2x384xf32>
    %16 = arith.divf %14, %15 : vector<2x384xf32>
    %17 = vector.extract_strided_slice %10 {offsets = [0, 384], sizes = [2, 128], strides = [1, 1]} : vector<2x512xf32> to vector<2x128xf32>
    %18 = math.tanh %17 : vector<2x128xf32>
    %19 = vector.extract_strided_slice %16 {offsets = [0, 0], sizes = [2, 128], strides = [1, 1]} : vector<2x384xf32> to vector<2x128xf32>
    %20 = vector.extract_strided_slice %16 {offsets = [0, 256], sizes = [2, 128], strides = [1, 1]} : vector<2x384xf32> to vector<2x128xf32>
    %21 = arith.mulf %19, %18 : vector<2x128xf32>
    %22 = math.tanh %21 : vector<2x128xf32>
    %23 = arith.mulf %20, %22 : vector<2x128xf32>
    %24 = vector.extract_strided_slice %9 {offsets = [2, 0], sizes = [2, 512], strides = [1, 1]} : vector<16x512xf32> to vector<2x512xf32>
    %25 = arith.truncf %23 : vector<2x128xf32> to vector<2x128xbf16>
    %cst_11 = arith.constant dense<0.000000e+00> : vector<2x512xf32>
    %26 = tpu.matmul %25, %2, %cst_11 {dimension_numbers = #tpu.dot_dimension_numbers<[1], [0], [0], [1], [0, 0, 1, 1], [], []>} : vector<2x128xbf16>, vector<128x512xbf16>, vector<2x512xf32> -> vector<2x512xf32>
    %27 = arith.addf %24, %26 : vector<2x512xf32>
    %28 = vector.extract_strided_slice %27 {offsets = [0, 0], sizes = [2, 384], strides = [1, 1]} : vector<2x512xf32> to vector<2x384xf32>
    %29 = arith.negf %28 : vector<2x384xf32>
    %30 = math.exp %29 : vector<2x384xf32>
    %cst_12 = arith.constant 1.000000e+00 : f32
    %31 = vector.broadcast %cst_12 : f32 to vector<2x384xf32>
    %32 = arith.addf %31, %30 : vector<2x384xf32>
    %33 = arith.divf %31, %32 : vector<2x384xf32>
    %34 = vector.extract_strided_slice %27 {offsets = [0, 384], sizes = [2, 128], strides = [1, 1]} : vector<2x512xf32> to vector<2x128xf32>
    %35 = math.tanh %34 : vector<2x128xf32>
    %36 = vector.extract_strided_slice %33 {offsets = [0, 0], sizes = [2, 128], strides = [1, 1]} : vector<2x384xf32> to vector<2x128xf32>
    %37 = vector.extract_strided_slice %33 {offsets = [0, 128], sizes = [2, 128], strides = [1, 1]} : vector<2x384xf32> to vector<2x128xf32>
    %38 = vector.extract_strided_slice %33 {offsets = [0, 256], sizes = [2, 128], strides = [1, 1]} : vector<2x384xf32> to vector<2x128xf32>
    %39 = arith.mulf %37, %21 : vector<2x128xf32>
    %40 = arith.mulf %36, %35 : vector<2x128xf32>
    %41 = arith.addf %39, %40 : vector<2x128xf32>
    %42 = math.tanh %41 : vector<2x128xf32>
    %43 = arith.mulf %38, %42 : vector<2x128xf32>
    %44 = vector.extract_strided_slice %9 {offsets = [4, 0], sizes = [2, 512], strides = [1, 1]} : vector<16x512xf32> to vector<2x512xf32>
    %45 = arith.truncf %43 : vector<2x128xf32> to vector<2x128xbf16>
    %cst_13 = arith.constant dense<0.000000e+00> : vector<2x512xf32>
    %46 = tpu.matmul %45, %2, %cst_13 {dimension_numbers = #tpu.dot_dimension_numbers<[1], [0], [0], [1], [0, 0, 1, 1], [], []>} : vector<2x128xbf16>, vector<128x512xbf16>, vector<2x512xf32> -> vector<2x512xf32>
    %47 = arith.addf %44, %46 : vector<2x512xf32>
    %48 = vector.extract_strided_slice %47 {offsets = [0, 0], sizes = [2, 384], strides = [1, 1]} : vector<2x512xf32> to vector<2x384xf32>
    %49 = arith.negf %48 : vector<2x384xf32>
    %50 = math.exp %49 : vector<2x384xf32>
    %cst_14 = arith.constant 1.000000e+00 : f32
    %51 = vector.broadcast %cst_14 : f32 to vector<2x384xf32>
    %52 = arith.addf %51, %50 : vector<2x384xf32>
    %53 = arith.divf %51, %52 : vector<2x384xf32>
    %54 = vector.extract_strided_slice %47 {offsets = [0, 384], sizes = [2, 128], strides = [1, 1]} : vector<2x512xf32> to vector<2x128xf32>
    %55 = math.tanh %54 : vector<2x128xf32>
    %56 = vector.extract_strided_slice %53 {offsets = [0, 0], sizes = [2, 128], strides = [1, 1]} : vector<2x384xf32> to vector<2x128xf32>
    %57 = vector.extract_strided_slice %53 {offsets = [0, 128], sizes = [2, 128], strides = [1, 1]} : vector<2x384xf32> to vector<2x128xf32>
    %58 = vector.extract_strided_slice %53 {offsets = [0, 256], sizes = [2, 128], strides = [1, 1]} : vector<2x384xf32> to vector<2x128xf32>
    %59 = arith.mulf %57, %41 : vector<2x128xf32>
    %60 = arith.mulf %56, %55 : vector<2x128xf32>
    %61 = arith.addf %59, %60 : vector<2x128xf32>
    %62 = math.tanh %61 : vector<2x128xf32>
    %63 = arith.mulf %58, %62 : vector<2x128xf32>
    %64 = vector.extract_strided_slice %9 {offsets = [6, 0], sizes = [2, 512], strides = [1, 1]} : vector<16x512xf32> to vector<2x512xf32>
    %65 = arith.truncf %63 : vector<2x128xf32> to vector<2x128xbf16>
    %cst_15 = arith.constant dense<0.000000e+00> : vector<2x512xf32>
    %66 = tpu.matmul %65, %2, %cst_15 {dimension_numbers = #tpu.dot_dimension_numbers<[1], [0], [0], [1], [0, 0, 1, 1], [], []>} : vector<2x128xbf16>, vector<128x512xbf16>, vector<2x512xf32> -> vector<2x512xf32>
    %67 = arith.addf %64, %66 : vector<2x512xf32>
    %68 = vector.extract_strided_slice %67 {offsets = [0, 0], sizes = [2, 384], strides = [1, 1]} : vector<2x512xf32> to vector<2x384xf32>
    %69 = arith.negf %68 : vector<2x384xf32>
    %70 = math.exp %69 : vector<2x384xf32>
    %cst_16 = arith.constant 1.000000e+00 : f32
    %71 = vector.broadcast %cst_16 : f32 to vector<2x384xf32>
    %72 = arith.addf %71, %70 : vector<2x384xf32>
    %73 = arith.divf %71, %72 : vector<2x384xf32>
    %74 = vector.extract_strided_slice %67 {offsets = [0, 384], sizes = [2, 128], strides = [1, 1]} : vector<2x512xf32> to vector<2x128xf32>
    %75 = math.tanh %74 : vector<2x128xf32>
    %76 = vector.extract_strided_slice %73 {offsets = [0, 0], sizes = [2, 128], strides = [1, 1]} : vector<2x384xf32> to vector<2x128xf32>
    %77 = vector.extract_strided_slice %73 {offsets = [0, 128], sizes = [2, 128], strides = [1, 1]} : vector<2x384xf32> to vector<2x128xf32>
    %78 = vector.extract_strided_slice %73 {offsets = [0, 256], sizes = [2, 128], strides = [1, 1]} : vector<2x384xf32> to vector<2x128xf32>
    %79 = arith.mulf %77, %61 : vector<2x128xf32>
    %80 = arith.mulf %76, %75 : vector<2x128xf32>
    %81 = arith.addf %79, %80 : vector<2x128xf32>
    %82 = math.tanh %81 : vector<2x128xf32>
    %83 = arith.mulf %78, %82 : vector<2x128xf32>
    %84 = vector.extract_strided_slice %9 {offsets = [8, 0], sizes = [2, 512], strides = [1, 1]} : vector<16x512xf32> to vector<2x512xf32>
    %85 = arith.truncf %83 : vector<2x128xf32> to vector<2x128xbf16>
    %cst_17 = arith.constant dense<0.000000e+00> : vector<2x512xf32>
    %86 = tpu.matmul %85, %2, %cst_17 {dimension_numbers = #tpu.dot_dimension_numbers<[1], [0], [0], [1], [0, 0, 1, 1], [], []>} : vector<2x128xbf16>, vector<128x512xbf16>, vector<2x512xf32> -> vector<2x512xf32>
    %87 = arith.addf %84, %86 : vector<2x512xf32>
    %88 = vector.extract_strided_slice %87 {offsets = [0, 0], sizes = [2, 384], strides = [1, 1]} : vector<2x512xf32> to vector<2x384xf32>
    %89 = arith.negf %88 : vector<2x384xf32>
    %90 = math.exp %89 : vector<2x384xf32>
    %cst_18 = arith.constant 1.000000e+00 : f32
    %91 = vector.broadcast %cst_18 : f32 to vector<2x384xf32>
    %92 = arith.addf %91, %90 : vector<2x384xf32>
    %93 = arith.divf %91, %92 : vector<2x384xf32>
    %94 = vector.extract_strided_slice %87 {offsets = [0, 384], sizes = [2, 128], strides = [1, 1]} : vector<2x512xf32> to vector<2x128xf32>
    %95 = math.tanh %94 : vector<2x128xf32>
    %96 = vector.extract_strided_slice %93 {offsets = [0, 0], sizes = [2, 128], strides = [1, 1]} : vector<2x384xf32> to vector<2x128xf32>
    %97 = vector.extract_strided_slice %93 {offsets = [0, 128], sizes = [2, 128], strides = [1, 1]} : vector<2x384xf32> to vector<2x128xf32>
    %98 = vector.extract_strided_slice %93 {offsets = [0, 256], sizes = [2, 128], strides = [1, 1]} : vector<2x384xf32> to vector<2x128xf32>
    %99 = arith.mulf %97, %81 : vector<2x128xf32>
    %100 = arith.mulf %96, %95 : vector<2x128xf32>
    %101 = arith.addf %99, %100 : vector<2x128xf32>
    %102 = math.tanh %101 : vector<2x128xf32>
    %103 = arith.mulf %98, %102 : vector<2x128xf32>
    %104 = vector.extract_strided_slice %9 {offsets = [10, 0], sizes = [2, 512], strides = [1, 1]} : vector<16x512xf32> to vector<2x512xf32>
    %105 = arith.truncf %103 : vector<2x128xf32> to vector<2x128xbf16>
    %cst_19 = arith.constant dense<0.000000e+00> : vector<2x512xf32>
    %106 = tpu.matmul %105, %2, %cst_19 {dimension_numbers = #tpu.dot_dimension_numbers<[1], [0], [0], [1], [0, 0, 1, 1], [], []>} : vector<2x128xbf16>, vector<128x512xbf16>, vector<2x512xf32> -> vector<2x512xf32>
    %107 = arith.addf %104, %106 : vector<2x512xf32>
    %108 = vector.extract_strided_slice %107 {offsets = [0, 0], sizes = [2, 384], strides = [1, 1]} : vector<2x512xf32> to vector<2x384xf32>
    %109 = arith.negf %108 : vector<2x384xf32>
    %110 = math.exp %109 : vector<2x384xf32>
    %cst_20 = arith.constant 1.000000e+00 : f32
    %111 = vector.broadcast %cst_20 : f32 to vector<2x384xf32>
    %112 = arith.addf %111, %110 : vector<2x384xf32>
    %113 = arith.divf %111, %112 : vector<2x384xf32>
    %114 = vector.extract_strided_slice %107 {offsets = [0, 384], sizes = [2, 128], strides = [1, 1]} : vector<2x512xf32> to vector<2x128xf32>
    %115 = math.tanh %114 : vector<2x128xf32>
    %116 = vector.extract_strided_slice %113 {offsets = [0, 0], sizes = [2, 128], strides = [1, 1]} : vector<2x384xf32> to vector<2x128xf32>
    %117 = vector.extract_strided_slice %113 {offsets = [0, 128], sizes = [2, 128], strides = [1, 1]} : vector<2x384xf32> to vector<2x128xf32>
    %118 = vector.extract_strided_slice %113 {offsets = [0, 256], sizes = [2, 128], strides = [1, 1]} : vector<2x384xf32> to vector<2x128xf32>
    %119 = arith.mulf %117, %101 : vector<2x128xf32>
    %120 = arith.mulf %116, %115 : vector<2x128xf32>
    %121 = arith.addf %119, %120 : vector<2x128xf32>
    %122 = math.tanh %121 : vector<2x128xf32>
    %123 = arith.mulf %118, %122 : vector<2x128xf32>
    %124 = vector.extract_strided_slice %9 {offsets = [12, 0], sizes = [2, 512], strides = [1, 1]} : vector<16x512xf32> to vector<2x512xf32>
    %125 = arith.truncf %123 : vector<2x128xf32> to vector<2x128xbf16>
    %cst_21 = arith.constant dense<0.000000e+00> : vector<2x512xf32>
    %126 = tpu.matmul %125, %2, %cst_21 {dimension_numbers = #tpu.dot_dimension_numbers<[1], [0], [0], [1], [0, 0, 1, 1], [], []>} : vector<2x128xbf16>, vector<128x512xbf16>, vector<2x512xf32> -> vector<2x512xf32>
    %127 = arith.addf %124, %126 : vector<2x512xf32>
    %128 = vector.extract_strided_slice %127 {offsets = [0, 0], sizes = [2, 384], strides = [1, 1]} : vector<2x512xf32> to vector<2x384xf32>
    %129 = arith.negf %128 : vector<2x384xf32>
    %130 = math.exp %129 : vector<2x384xf32>
    %cst_22 = arith.constant 1.000000e+00 : f32
    %131 = vector.broadcast %cst_22 : f32 to vector<2x384xf32>
    %132 = arith.addf %131, %130 : vector<2x384xf32>
    %133 = arith.divf %131, %132 : vector<2x384xf32>
    %134 = vector.extract_strided_slice %127 {offsets = [0, 384], sizes = [2, 128], strides = [1, 1]} : vector<2x512xf32> to vector<2x128xf32>
    %135 = math.tanh %134 : vector<2x128xf32>
    %136 = vector.extract_strided_slice %133 {offsets = [0, 0], sizes = [2, 128], strides = [1, 1]} : vector<2x384xf32> to vector<2x128xf32>
    %137 = vector.extract_strided_slice %133 {offsets = [0, 128], sizes = [2, 128], strides = [1, 1]} : vector<2x384xf32> to vector<2x128xf32>
    %138 = vector.extract_strided_slice %133 {offsets = [0, 256], sizes = [2, 128], strides = [1, 1]} : vector<2x384xf32> to vector<2x128xf32>
    %139 = arith.mulf %137, %121 : vector<2x128xf32>
    %140 = arith.mulf %136, %135 : vector<2x128xf32>
    %141 = arith.addf %139, %140 : vector<2x128xf32>
    %142 = math.tanh %141 : vector<2x128xf32>
    %143 = arith.mulf %138, %142 : vector<2x128xf32>
    %144 = vector.extract_strided_slice %9 {offsets = [14, 0], sizes = [2, 512], strides = [1, 1]} : vector<16x512xf32> to vector<2x512xf32>
    %145 = arith.truncf %143 : vector<2x128xf32> to vector<2x128xbf16>
    %cst_23 = arith.constant dense<0.000000e+00> : vector<2x512xf32>
    %146 = tpu.matmul %145, %2, %cst_23 {dimension_numbers = #tpu.dot_dimension_numbers<[1], [0], [0], [1], [0, 0, 1, 1], [], []>} : vector<2x128xbf16>, vector<128x512xbf16>, vector<2x512xf32> -> vector<2x512xf32>
    %147 = arith.addf %144, %146 : vector<2x512xf32>
    %148 = vector.extract_strided_slice %147 {offsets = [0, 0], sizes = [2, 384], strides = [1, 1]} : vector<2x512xf32> to vector<2x384xf32>
    %149 = arith.negf %148 : vector<2x384xf32>
    %150 = math.exp %149 : vector<2x384xf32>
    %cst_24 = arith.constant 1.000000e+00 : f32
    %151 = vector.broadcast %cst_24 : f32 to vector<2x384xf32>
    %152 = arith.addf %151, %150 : vector<2x384xf32>
    %153 = arith.divf %151, %152 : vector<2x384xf32>
    %154 = vector.extract_strided_slice %147 {offsets = [0, 384], sizes = [2, 128], strides = [1, 1]} : vector<2x512xf32> to vector<2x128xf32>
    %155 = math.tanh %154 : vector<2x128xf32>
    %156 = vector.extract_strided_slice %153 {offsets = [0, 0], sizes = [2, 128], strides = [1, 1]} : vector<2x384xf32> to vector<2x128xf32>
    %157 = vector.extract_strided_slice %153 {offsets = [0, 128], sizes = [2, 128], strides = [1, 1]} : vector<2x384xf32> to vector<2x128xf32>
    %158 = vector.extract_strided_slice %153 {offsets = [0, 256], sizes = [2, 128], strides = [1, 1]} : vector<2x384xf32> to vector<2x128xf32>
    %159 = arith.mulf %157, %141 : vector<2x128xf32>
    %160 = arith.mulf %156, %155 : vector<2x128xf32>
    %161 = arith.addf %159, %160 : vector<2x128xf32>
    %162 = math.tanh %161 : vector<2x128xf32>
    %163 = arith.mulf %158, %162 : vector<2x128xf32>
    %164 = tpu.concatenate %23, %43, %63, %83, %103, %123, %143, %163 in 0 : vector<2x128xf32>, vector<2x128xf32>, vector<2x128xf32>, vector<2x128xf32>, vector<2x128xf32>, vector<2x128xf32>, vector<2x128xf32>, vector<2x128xf32> -> vector<16x128xf32>
    %165 = arith.truncf %164 : vector<16x128xf32> to vector<16x128xbf16>
    %c1 = arith.constant 1 : index
    %c0_25 = arith.constant 0 : index
    %c0_26 = arith.constant 0 : index
    %166 = vector.load %arg2[%c1, %c0_25, %c0_26] : memref<4x128x512xbf16, #tpu.memory_space<vmem>>, vector<1x128x512xbf16>
    %167 = vector.shape_cast %166 : vector<1x128x512xbf16> to vector<128x512xbf16>
    %c1_27 = arith.constant 1 : index
    %c0_28 = arith.constant 0 : index
    %c0_29 = arith.constant 0 : index
    %168 = vector.load %arg1[%c1_27, %c0_28, %c0_29] : memref<4x128x512xbf16, #tpu.memory_space<vmem>>, vector<1x128x512xbf16>
    %169 = vector.shape_cast %168 : vector<1x128x512xbf16> to vector<128x512xbf16>
    %cst_30 = arith.constant dense<0.000000e+00> : vector<16x512xf32>
    %170 = tpu.matmul %165, %169, %cst_30 {dimension_numbers = #tpu.dot_dimension_numbers<[1], [0], [0], [1], [0, 0, 1, 1], [], []>} : vector<16x128xbf16>, vector<128x512xbf16>, vector<16x512xf32> -> vector<16x512xf32>
    %c1_31 = arith.constant 1 : index
    %c0_32 = arith.constant 0 : index
    %c0_33 = arith.constant 0 : index
    %171 = vector.load %arg3[%c1_31, %c0_32, %c0_33] : memref<4x1x512xf32, #tpu.memory_space<vmem>>, vector<1x1x512xf32>
    %172 = vector.shape_cast %171 : vector<1x1x512xf32> to vector<1x512xf32>
    %173 = vector.broadcast %172 : vector<1x512xf32> to vector<16x512xf32>
    %174 = arith.addf %170, %173 : vector<16x512xf32>
    %175 = vector.extract_strided_slice %174 {offsets = [0, 0], sizes = [2, 512], strides = [1, 1]} : vector<16x512xf32> to vector<2x512xf32>
    %176 = vector.extract_strided_slice %175 {offsets = [0, 0], sizes = [2, 384], strides = [1, 1]} : vector<2x512xf32> to vector<2x384xf32>
    %177 = arith.negf %176 : vector<2x384xf32>
    %178 = math.exp %177 : vector<2x384xf32>
    %cst_34 = arith.constant 1.000000e+00 : f32
    %179 = vector.broadcast %cst_34 : f32 to vector<2x384xf32>
    %180 = arith.addf %179, %178 : vector<2x384xf32>
    %181 = arith.divf %179, %180 : vector<2x384xf32>
    %182 = vector.extract_strided_slice %175 {offsets = [0, 384], sizes = [2, 128], strides = [1, 1]} : vector<2x512xf32> to vector<2x128xf32>
    %183 = math.tanh %182 : vector<2x128xf32>
    %184 = vector.extract_strided_slice %181 {offsets = [0, 0], sizes = [2, 128], strides = [1, 1]} : vector<2x384xf32> to vector<2x128xf32>
    %185 = vector.extract_strided_slice %181 {offsets = [0, 256], sizes = [2, 128], strides = [1, 1]} : vector<2x384xf32> to vector<2x128xf32>
    %186 = arith.mulf %184, %183 : vector<2x128xf32>
    %187 = math.tanh %186 : vector<2x128xf32>
    %188 = arith.mulf %185, %187 : vector<2x128xf32>
    %189 = vector.extract_strided_slice %174 {offsets = [2, 0], sizes = [2, 512], strides = [1, 1]} : vector<16x512xf32> to vector<2x512xf32>
    %190 = arith.truncf %188 : vector<2x128xf32> to vector<2x128xbf16>
    %cst_35 = arith.constant dense<0.000000e+00> : vector<2x512xf32>
    %191 = tpu.matmul %190, %167, %cst_35 {dimension_numbers = #tpu.dot_dimension_numbers<[1], [0], [0], [1], [0, 0, 1, 1], [], []>} : vector<2x128xbf16>, vector<128x512xbf16>, vector<2x512xf32> -> vector<2x512xf32>
    %192 = arith.addf %189, %191 : vector<2x512xf32>
    %193 = vector.extract_strided_slice %192 {offsets = [0, 0], sizes = [2, 384], strides = [1, 1]} : vector<2x512xf32> to vector<2x384xf32>
    %194 = arith.negf %193 : vector<2x384xf32>
    %195 = math.exp %194 : vector<2x384xf32>
    %cst_36 = arith.constant 1.000000e+00 : f32
    %196 = vector.broadcast %cst_36 : f32 to vector<2x384xf32>
    %197 = arith.addf %196, %195 : vector<2x384xf32>
    %198 = arith.divf %196, %197 : vector<2x384xf32>
    %199 = vector.extract_strided_slice %192 {offsets = [0, 384], sizes = [2, 128], strides = [1, 1]} : vector<2x512xf32> to vector<2x128xf32>
    %200 = math.tanh %199 : vector<2x128xf32>
    %201 = vector.extract_strided_slice %198 {offsets = [0, 0], sizes = [2, 128], strides = [1, 1]} : vector<2x384xf32> to vector<2x128xf32>
    %202 = vector.extract_strided_slice %198 {offsets = [0, 128], sizes = [2, 128], strides = [1, 1]} : vector<2x384xf32> to vector<2x128xf32>
    %203 = vector.extract_strided_slice %198 {offsets = [0, 256], sizes = [2, 128], strides = [1, 1]} : vector<2x384xf32> to vector<2x128xf32>
    %204 = arith.mulf %202, %186 : vector<2x128xf32>
    %205 = arith.mulf %201, %200 : vector<2x128xf32>
    %206 = arith.addf %204, %205 : vector<2x128xf32>
    %207 = math.tanh %206 : vector<2x128xf32>
    %208 = arith.mulf %203, %207 : vector<2x128xf32>
    %209 = vector.extract_strided_slice %174 {offsets = [4, 0], sizes = [2, 512], strides = [1, 1]} : vector<16x512xf32> to vector<2x512xf32>
    %210 = arith.truncf %208 : vector<2x128xf32> to vector<2x128xbf16>
    %cst_37 = arith.constant dense<0.000000e+00> : vector<2x512xf32>
    %211 = tpu.matmul %210, %167, %cst_37 {dimension_numbers = #tpu.dot_dimension_numbers<[1], [0], [0], [1], [0, 0, 1, 1], [], []>} : vector<2x128xbf16>, vector<128x512xbf16>, vector<2x512xf32> -> vector<2x512xf32>
    %212 = arith.addf %209, %211 : vector<2x512xf32>
    %213 = vector.extract_strided_slice %212 {offsets = [0, 0], sizes = [2, 384], strides = [1, 1]} : vector<2x512xf32> to vector<2x384xf32>
    %214 = arith.negf %213 : vector<2x384xf32>
    %215 = math.exp %214 : vector<2x384xf32>
    %cst_38 = arith.constant 1.000000e+00 : f32
    %216 = vector.broadcast %cst_38 : f32 to vector<2x384xf32>
    %217 = arith.addf %216, %215 : vector<2x384xf32>
    %218 = arith.divf %216, %217 : vector<2x384xf32>
    %219 = vector.extract_strided_slice %212 {offsets = [0, 384], sizes = [2, 128], strides = [1, 1]} : vector<2x512xf32> to vector<2x128xf32>
    %220 = math.tanh %219 : vector<2x128xf32>
    %221 = vector.extract_strided_slice %218 {offsets = [0, 0], sizes = [2, 128], strides = [1, 1]} : vector<2x384xf32> to vector<2x128xf32>
    %222 = vector.extract_strided_slice %218 {offsets = [0, 128], sizes = [2, 128], strides = [1, 1]} : vector<2x384xf32> to vector<2x128xf32>
    %223 = vector.extract_strided_slice %218 {offsets = [0, 256], sizes = [2, 128], strides = [1, 1]} : vector<2x384xf32> to vector<2x128xf32>
    %224 = arith.mulf %222, %206 : vector<2x128xf32>
    %225 = arith.mulf %221, %220 : vector<2x128xf32>
    %226 = arith.addf %224, %225 : vector<2x128xf32>
    %227 = math.tanh %226 : vector<2x128xf32>
    %228 = arith.mulf %223, %227 : vector<2x128xf32>
    %229 = vector.extract_strided_slice %174 {offsets = [6, 0], sizes = [2, 512], strides = [1, 1]} : vector<16x512xf32> to vector<2x512xf32>
    %230 = arith.truncf %228 : vector<2x128xf32> to vector<2x128xbf16>
    %cst_39 = arith.constant dense<0.000000e+00> : vector<2x512xf32>
    %231 = tpu.matmul %230, %167, %cst_39 {dimension_numbers = #tpu.dot_dimension_numbers<[1], [0], [0], [1], [0, 0, 1, 1], [], []>} : vector<2x128xbf16>, vector<128x512xbf16>, vector<2x512xf32> -> vector<2x512xf32>
    %232 = arith.addf %229, %231 : vector<2x512xf32>
    %233 = vector.extract_strided_slice %232 {offsets = [0, 0], sizes = [2, 384], strides = [1, 1]} : vector<2x512xf32> to vector<2x384xf32>
    %234 = arith.negf %233 : vector<2x384xf32>
    %235 = math.exp %234 : vector<2x384xf32>
    %cst_40 = arith.constant 1.000000e+00 : f32
    %236 = vector.broadcast %cst_40 : f32 to vector<2x384xf32>
    %237 = arith.addf %236, %235 : vector<2x384xf32>
    %238 = arith.divf %236, %237 : vector<2x384xf32>
    %239 = vector.extract_strided_slice %232 {offsets = [0, 384], sizes = [2, 128], strides = [1, 1]} : vector<2x512xf32> to vector<2x128xf32>
    %240 = math.tanh %239 : vector<2x128xf32>
    %241 = vector.extract_strided_slice %238 {offsets = [0, 0], sizes = [2, 128], strides = [1, 1]} : vector<2x384xf32> to vector<2x128xf32>
    %242 = vector.extract_strided_slice %238 {offsets = [0, 128], sizes = [2, 128], strides = [1, 1]} : vector<2x384xf32> to vector<2x128xf32>
    %243 = vector.extract_strided_slice %238 {offsets = [0, 256], sizes = [2, 128], strides = [1, 1]} : vector<2x384xf32> to vector<2x128xf32>
    %244 = arith.mulf %242, %226 : vector<2x128xf32>
    %245 = arith.mulf %241, %240 : vector<2x128xf32>
    %246 = arith.addf %244, %245 : vector<2x128xf32>
    %247 = math.tanh %246 : vector<2x128xf32>
    %248 = arith.mulf %243, %247 : vector<2x128xf32>
    %249 = vector.extract_strided_slice %174 {offsets = [8, 0], sizes = [2, 512], strides = [1, 1]} : vector<16x512xf32> to vector<2x512xf32>
    %250 = arith.truncf %248 : vector<2x128xf32> to vector<2x128xbf16>
    %cst_41 = arith.constant dense<0.000000e+00> : vector<2x512xf32>
    %251 = tpu.matmul %250, %167, %cst_41 {dimension_numbers = #tpu.dot_dimension_numbers<[1], [0], [0], [1], [0, 0, 1, 1], [], []>} : vector<2x128xbf16>, vector<128x512xbf16>, vector<2x512xf32> -> vector<2x512xf32>
    %252 = arith.addf %249, %251 : vector<2x512xf32>
    %253 = vector.extract_strided_slice %252 {offsets = [0, 0], sizes = [2, 384], strides = [1, 1]} : vector<2x512xf32> to vector<2x384xf32>
    %254 = arith.negf %253 : vector<2x384xf32>
    %255 = math.exp %254 : vector<2x384xf32>
    %cst_42 = arith.constant 1.000000e+00 : f32
    %256 = vector.broadcast %cst_42 : f32 to vector<2x384xf32>
    %257 = arith.addf %256, %255 : vector<2x384xf32>
    %258 = arith.divf %256, %257 : vector<2x384xf32>
    %259 = vector.extract_strided_slice %252 {offsets = [0, 384], sizes = [2, 128], strides = [1, 1]} : vector<2x512xf32> to vector<2x128xf32>
    %260 = math.tanh %259 : vector<2x128xf32>
    %261 = vector.extract_strided_slice %258 {offsets = [0, 0], sizes = [2, 128], strides = [1, 1]} : vector<2x384xf32> to vector<2x128xf32>
    %262 = vector.extract_strided_slice %258 {offsets = [0, 128], sizes = [2, 128], strides = [1, 1]} : vector<2x384xf32> to vector<2x128xf32>
    %263 = vector.extract_strided_slice %258 {offsets = [0, 256], sizes = [2, 128], strides = [1, 1]} : vector<2x384xf32> to vector<2x128xf32>
    %264 = arith.mulf %262, %246 : vector<2x128xf32>
    %265 = arith.mulf %261, %260 : vector<2x128xf32>
    %266 = arith.addf %264, %265 : vector<2x128xf32>
    %267 = math.tanh %266 : vector<2x128xf32>
    %268 = arith.mulf %263, %267 : vector<2x128xf32>
    %269 = vector.extract_strided_slice %174 {offsets = [10, 0], sizes = [2, 512], strides = [1, 1]} : vector<16x512xf32> to vector<2x512xf32>
    %270 = arith.truncf %268 : vector<2x128xf32> to vector<2x128xbf16>
    %cst_43 = arith.constant dense<0.000000e+00> : vector<2x512xf32>
    %271 = tpu.matmul %270, %167, %cst_43 {dimension_numbers = #tpu.dot_dimension_numbers<[1], [0], [0], [1], [0, 0, 1, 1], [], []>} : vector<2x128xbf16>, vector<128x512xbf16>, vector<2x512xf32> -> vector<2x512xf32>
    %272 = arith.addf %269, %271 : vector<2x512xf32>
    %273 = vector.extract_strided_slice %272 {offsets = [0, 0], sizes = [2, 384], strides = [1, 1]} : vector<2x512xf32> to vector<2x384xf32>
    %274 = arith.negf %273 : vector<2x384xf32>
    %275 = math.exp %274 : vector<2x384xf32>
    %cst_44 = arith.constant 1.000000e+00 : f32
    %276 = vector.broadcast %cst_44 : f32 to vector<2x384xf32>
    %277 = arith.addf %276, %275 : vector<2x384xf32>
    %278 = arith.divf %276, %277 : vector<2x384xf32>
    %279 = vector.extract_strided_slice %272 {offsets = [0, 384], sizes = [2, 128], strides = [1, 1]} : vector<2x512xf32> to vector<2x128xf32>
    %280 = math.tanh %279 : vector<2x128xf32>
    %281 = vector.extract_strided_slice %278 {offsets = [0, 0], sizes = [2, 128], strides = [1, 1]} : vector<2x384xf32> to vector<2x128xf32>
    %282 = vector.extract_strided_slice %278 {offsets = [0, 128], sizes = [2, 128], strides = [1, 1]} : vector<2x384xf32> to vector<2x128xf32>
    %283 = vector.extract_strided_slice %278 {offsets = [0, 256], sizes = [2, 128], strides = [1, 1]} : vector<2x384xf32> to vector<2x128xf32>
    %284 = arith.mulf %282, %266 : vector<2x128xf32>
    %285 = arith.mulf %281, %280 : vector<2x128xf32>
    %286 = arith.addf %284, %285 : vector<2x128xf32>
    %287 = math.tanh %286 : vector<2x128xf32>
    %288 = arith.mulf %283, %287 : vector<2x128xf32>
    %289 = vector.extract_strided_slice %174 {offsets = [12, 0], sizes = [2, 512], strides = [1, 1]} : vector<16x512xf32> to vector<2x512xf32>
    %290 = arith.truncf %288 : vector<2x128xf32> to vector<2x128xbf16>
    %cst_45 = arith.constant dense<0.000000e+00> : vector<2x512xf32>
    %291 = tpu.matmul %290, %167, %cst_45 {dimension_numbers = #tpu.dot_dimension_numbers<[1], [0], [0], [1], [0, 0, 1, 1], [], []>} : vector<2x128xbf16>, vector<128x512xbf16>, vector<2x512xf32> -> vector<2x512xf32>
    %292 = arith.addf %289, %291 : vector<2x512xf32>
    %293 = vector.extract_strided_slice %292 {offsets = [0, 0], sizes = [2, 384], strides = [1, 1]} : vector<2x512xf32> to vector<2x384xf32>
    %294 = arith.negf %293 : vector<2x384xf32>
    %295 = math.exp %294 : vector<2x384xf32>
    %cst_46 = arith.constant 1.000000e+00 : f32
    %296 = vector.broadcast %cst_46 : f32 to vector<2x384xf32>
    %297 = arith.addf %296, %295 : vector<2x384xf32>
    %298 = arith.divf %296, %297 : vector<2x384xf32>
    %299 = vector.extract_strided_slice %292 {offsets = [0, 384], sizes = [2, 128], strides = [1, 1]} : vector<2x512xf32> to vector<2x128xf32>
    %300 = math.tanh %299 : vector<2x128xf32>
    %301 = vector.extract_strided_slice %298 {offsets = [0, 0], sizes = [2, 128], strides = [1, 1]} : vector<2x384xf32> to vector<2x128xf32>
    %302 = vector.extract_strided_slice %298 {offsets = [0, 128], sizes = [2, 128], strides = [1, 1]} : vector<2x384xf32> to vector<2x128xf32>
    %303 = vector.extract_strided_slice %298 {offsets = [0, 256], sizes = [2, 128], strides = [1, 1]} : vector<2x384xf32> to vector<2x128xf32>
    %304 = arith.mulf %302, %286 : vector<2x128xf32>
    %305 = arith.mulf %301, %300 : vector<2x128xf32>
    %306 = arith.addf %304, %305 : vector<2x128xf32>
    %307 = math.tanh %306 : vector<2x128xf32>
    %308 = arith.mulf %303, %307 : vector<2x128xf32>
    %309 = vector.extract_strided_slice %174 {offsets = [14, 0], sizes = [2, 512], strides = [1, 1]} : vector<16x512xf32> to vector<2x512xf32>
    %310 = arith.truncf %308 : vector<2x128xf32> to vector<2x128xbf16>
    %cst_47 = arith.constant dense<0.000000e+00> : vector<2x512xf32>
    %311 = tpu.matmul %310, %167, %cst_47 {dimension_numbers = #tpu.dot_dimension_numbers<[1], [0], [0], [1], [0, 0, 1, 1], [], []>} : vector<2x128xbf16>, vector<128x512xbf16>, vector<2x512xf32> -> vector<2x512xf32>
    %312 = arith.addf %309, %311 : vector<2x512xf32>
    %313 = vector.extract_strided_slice %312 {offsets = [0, 0], sizes = [2, 384], strides = [1, 1]} : vector<2x512xf32> to vector<2x384xf32>
    %314 = arith.negf %313 : vector<2x384xf32>
    %315 = math.exp %314 : vector<2x384xf32>
    %cst_48 = arith.constant 1.000000e+00 : f32
    %316 = vector.broadcast %cst_48 : f32 to vector<2x384xf32>
    %317 = arith.addf %316, %315 : vector<2x384xf32>
    %318 = arith.divf %316, %317 : vector<2x384xf32>
    %319 = vector.extract_strided_slice %312 {offsets = [0, 384], sizes = [2, 128], strides = [1, 1]} : vector<2x512xf32> to vector<2x128xf32>
    %320 = math.tanh %319 : vector<2x128xf32>
    %321 = vector.extract_strided_slice %318 {offsets = [0, 0], sizes = [2, 128], strides = [1, 1]} : vector<2x384xf32> to vector<2x128xf32>
    %322 = vector.extract_strided_slice %318 {offsets = [0, 128], sizes = [2, 128], strides = [1, 1]} : vector<2x384xf32> to vector<2x128xf32>
    %323 = vector.extract_strided_slice %318 {offsets = [0, 256], sizes = [2, 128], strides = [1, 1]} : vector<2x384xf32> to vector<2x128xf32>
    %324 = arith.mulf %322, %306 : vector<2x128xf32>
    %325 = arith.mulf %321, %320 : vector<2x128xf32>
    %326 = arith.addf %324, %325 : vector<2x128xf32>
    %327 = math.tanh %326 : vector<2x128xf32>
    %328 = arith.mulf %323, %327 : vector<2x128xf32>
    %329 = tpu.concatenate %188, %208, %228, %248, %268, %288, %308, %328 in 0 : vector<2x128xf32>, vector<2x128xf32>, vector<2x128xf32>, vector<2x128xf32>, vector<2x128xf32>, vector<2x128xf32>, vector<2x128xf32>, vector<2x128xf32> -> vector<16x128xf32>
    %330 = arith.truncf %329 : vector<16x128xf32> to vector<16x128xbf16>
    %c2 = arith.constant 2 : index
    %c0_49 = arith.constant 0 : index
    %c0_50 = arith.constant 0 : index
    %331 = vector.load %arg2[%c2, %c0_49, %c0_50] : memref<4x128x512xbf16, #tpu.memory_space<vmem>>, vector<1x128x512xbf16>
    %332 = vector.shape_cast %331 : vector<1x128x512xbf16> to vector<128x512xbf16>
    %c2_51 = arith.constant 2 : index
    %c0_52 = arith.constant 0 : index
    %c0_53 = arith.constant 0 : index
    %333 = vector.load %arg1[%c2_51, %c0_52, %c0_53] : memref<4x128x512xbf16, #tpu.memory_space<vmem>>, vector<1x128x512xbf16>
    %334 = vector.shape_cast %333 : vector<1x128x512xbf16> to vector<128x512xbf16>
    %cst_54 = arith.constant dense<0.000000e+00> : vector<16x512xf32>
    %335 = tpu.matmul %330, %334, %cst_54 {dimension_numbers = #tpu.dot_dimension_numbers<[1], [0], [0], [1], [0, 0, 1, 1], [], []>} : vector<16x128xbf16>, vector<128x512xbf16>, vector<16x512xf32> -> vector<16x512xf32>
    %c2_55 = arith.constant 2 : index
    %c0_56 = arith.constant 0 : index
    %c0_57 = arith.constant 0 : index
    %336 = vector.load %arg3[%c2_55, %c0_56, %c0_57] : memref<4x1x512xf32, #tpu.memory_space<vmem>>, vector<1x1x512xf32>
    %337 = vector.shape_cast %336 : vector<1x1x512xf32> to vector<1x512xf32>
    %338 = vector.broadcast %337 : vector<1x512xf32> to vector<16x512xf32>
    %339 = arith.addf %335, %338 : vector<16x512xf32>
    %340 = vector.extract_strided_slice %339 {offsets = [0, 0], sizes = [2, 512], strides = [1, 1]} : vector<16x512xf32> to vector<2x512xf32>
    %341 = vector.extract_strided_slice %340 {offsets = [0, 0], sizes = [2, 384], strides = [1, 1]} : vector<2x512xf32> to vector<2x384xf32>
    %342 = arith.negf %341 : vector<2x384xf32>
    %343 = math.exp %342 : vector<2x384xf32>
    %cst_58 = arith.constant 1.000000e+00 : f32
    %344 = vector.broadcast %cst_58 : f32 to vector<2x384xf32>
    %345 = arith.addf %344, %343 : vector<2x384xf32>
    %346 = arith.divf %344, %345 : vector<2x384xf32>
    %347 = vector.extract_strided_slice %340 {offsets = [0, 384], sizes = [2, 128], strides = [1, 1]} : vector<2x512xf32> to vector<2x128xf32>
    %348 = math.tanh %347 : vector<2x128xf32>
    %349 = vector.extract_strided_slice %346 {offsets = [0, 0], sizes = [2, 128], strides = [1, 1]} : vector<2x384xf32> to vector<2x128xf32>
    %350 = vector.extract_strided_slice %346 {offsets = [0, 256], sizes = [2, 128], strides = [1, 1]} : vector<2x384xf32> to vector<2x128xf32>
    %351 = arith.mulf %349, %348 : vector<2x128xf32>
    %352 = math.tanh %351 : vector<2x128xf32>
    %353 = arith.mulf %350, %352 : vector<2x128xf32>
    %354 = vector.extract_strided_slice %339 {offsets = [2, 0], sizes = [2, 512], strides = [1, 1]} : vector<16x512xf32> to vector<2x512xf32>
    %355 = arith.truncf %353 : vector<2x128xf32> to vector<2x128xbf16>
    %cst_59 = arith.constant dense<0.000000e+00> : vector<2x512xf32>
    %356 = tpu.matmul %355, %332, %cst_59 {dimension_numbers = #tpu.dot_dimension_numbers<[1], [0], [0], [1], [0, 0, 1, 1], [], []>} : vector<2x128xbf16>, vector<128x512xbf16>, vector<2x512xf32> -> vector<2x512xf32>
    %357 = arith.addf %354, %356 : vector<2x512xf32>
    %358 = vector.extract_strided_slice %357 {offsets = [0, 0], sizes = [2, 384], strides = [1, 1]} : vector<2x512xf32> to vector<2x384xf32>
    %359 = arith.negf %358 : vector<2x384xf32>
    %360 = math.exp %359 : vector<2x384xf32>
    %cst_60 = arith.constant 1.000000e+00 : f32
    %361 = vector.broadcast %cst_60 : f32 to vector<2x384xf32>
    %362 = arith.addf %361, %360 : vector<2x384xf32>
    %363 = arith.divf %361, %362 : vector<2x384xf32>
    %364 = vector.extract_strided_slice %357 {offsets = [0, 384], sizes = [2, 128], strides = [1, 1]} : vector<2x512xf32> to vector<2x128xf32>
    %365 = math.tanh %364 : vector<2x128xf32>
    %366 = vector.extract_strided_slice %363 {offsets = [0, 0], sizes = [2, 128], strides = [1, 1]} : vector<2x384xf32> to vector<2x128xf32>
    %367 = vector.extract_strided_slice %363 {offsets = [0, 128], sizes = [2, 128], strides = [1, 1]} : vector<2x384xf32> to vector<2x128xf32>
    %368 = vector.extract_strided_slice %363 {offsets = [0, 256], sizes = [2, 128], strides = [1, 1]} : vector<2x384xf32> to vector<2x128xf32>
    %369 = arith.mulf %367, %351 : vector<2x128xf32>
    %370 = arith.mulf %366, %365 : vector<2x128xf32>
    %371 = arith.addf %369, %370 : vector<2x128xf32>
    %372 = math.tanh %371 : vector<2x128xf32>
    %373 = arith.mulf %368, %372 : vector<2x128xf32>
    %374 = vector.extract_strided_slice %339 {offsets = [4, 0], sizes = [2, 512], strides = [1, 1]} : vector<16x512xf32> to vector<2x512xf32>
    %375 = arith.truncf %373 : vector<2x128xf32> to vector<2x128xbf16>
    %cst_61 = arith.constant dense<0.000000e+00> : vector<2x512xf32>
    %376 = tpu.matmul %375, %332, %cst_61 {dimension_numbers = #tpu.dot_dimension_numbers<[1], [0], [0], [1], [0, 0, 1, 1], [], []>} : vector<2x128xbf16>, vector<128x512xbf16>, vector<2x512xf32> -> vector<2x512xf32>
    %377 = arith.addf %374, %376 : vector<2x512xf32>
    %378 = vector.extract_strided_slice %377 {offsets = [0, 0], sizes = [2, 384], strides = [1, 1]} : vector<2x512xf32> to vector<2x384xf32>
    %379 = arith.negf %378 : vector<2x384xf32>
    %380 = math.exp %379 : vector<2x384xf32>
    %cst_62 = arith.constant 1.000000e+00 : f32
    %381 = vector.broadcast %cst_62 : f32 to vector<2x384xf32>
    %382 = arith.addf %381, %380 : vector<2x384xf32>
    %383 = arith.divf %381, %382 : vector<2x384xf32>
    %384 = vector.extract_strided_slice %377 {offsets = [0, 384], sizes = [2, 128], strides = [1, 1]} : vector<2x512xf32> to vector<2x128xf32>
    %385 = math.tanh %384 : vector<2x128xf32>
    %386 = vector.extract_strided_slice %383 {offsets = [0, 0], sizes = [2, 128], strides = [1, 1]} : vector<2x384xf32> to vector<2x128xf32>
    %387 = vector.extract_strided_slice %383 {offsets = [0, 128], sizes = [2, 128], strides = [1, 1]} : vector<2x384xf32> to vector<2x128xf32>
    %388 = vector.extract_strided_slice %383 {offsets = [0, 256], sizes = [2, 128], strides = [1, 1]} : vector<2x384xf32> to vector<2x128xf32>
    %389 = arith.mulf %387, %371 : vector<2x128xf32>
    %390 = arith.mulf %386, %385 : vector<2x128xf32>
    %391 = arith.addf %389, %390 : vector<2x128xf32>
    %392 = math.tanh %391 : vector<2x128xf32>
    %393 = arith.mulf %388, %392 : vector<2x128xf32>
    %394 = vector.extract_strided_slice %339 {offsets = [6, 0], sizes = [2, 512], strides = [1, 1]} : vector<16x512xf32> to vector<2x512xf32>
    %395 = arith.truncf %393 : vector<2x128xf32> to vector<2x128xbf16>
    %cst_63 = arith.constant dense<0.000000e+00> : vector<2x512xf32>
    %396 = tpu.matmul %395, %332, %cst_63 {dimension_numbers = #tpu.dot_dimension_numbers<[1], [0], [0], [1], [0, 0, 1, 1], [], []>} : vector<2x128xbf16>, vector<128x512xbf16>, vector<2x512xf32> -> vector<2x512xf32>
    %397 = arith.addf %394, %396 : vector<2x512xf32>
    %398 = vector.extract_strided_slice %397 {offsets = [0, 0], sizes = [2, 384], strides = [1, 1]} : vector<2x512xf32> to vector<2x384xf32>
    %399 = arith.negf %398 : vector<2x384xf32>
    %400 = math.exp %399 : vector<2x384xf32>
    %cst_64 = arith.constant 1.000000e+00 : f32
    %401 = vector.broadcast %cst_64 : f32 to vector<2x384xf32>
    %402 = arith.addf %401, %400 : vector<2x384xf32>
    %403 = arith.divf %401, %402 : vector<2x384xf32>
    %404 = vector.extract_strided_slice %397 {offsets = [0, 384], sizes = [2, 128], strides = [1, 1]} : vector<2x512xf32> to vector<2x128xf32>
    %405 = math.tanh %404 : vector<2x128xf32>
    %406 = vector.extract_strided_slice %403 {offsets = [0, 0], sizes = [2, 128], strides = [1, 1]} : vector<2x384xf32> to vector<2x128xf32>
    %407 = vector.extract_strided_slice %403 {offsets = [0, 128], sizes = [2, 128], strides = [1, 1]} : vector<2x384xf32> to vector<2x128xf32>
    %408 = vector.extract_strided_slice %403 {offsets = [0, 256], sizes = [2, 128], strides = [1, 1]} : vector<2x384xf32> to vector<2x128xf32>
    %409 = arith.mulf %407, %391 : vector<2x128xf32>
    %410 = arith.mulf %406, %405 : vector<2x128xf32>
    %411 = arith.addf %409, %410 : vector<2x128xf32>
    %412 = math.tanh %411 : vector<2x128xf32>
    %413 = arith.mulf %408, %412 : vector<2x128xf32>
    %414 = vector.extract_strided_slice %339 {offsets = [8, 0], sizes = [2, 512], strides = [1, 1]} : vector<16x512xf32> to vector<2x512xf32>
    %415 = arith.truncf %413 : vector<2x128xf32> to vector<2x128xbf16>
    %cst_65 = arith.constant dense<0.000000e+00> : vector<2x512xf32>
    %416 = tpu.matmul %415, %332, %cst_65 {dimension_numbers = #tpu.dot_dimension_numbers<[1], [0], [0], [1], [0, 0, 1, 1], [], []>} : vector<2x128xbf16>, vector<128x512xbf16>, vector<2x512xf32> -> vector<2x512xf32>
    %417 = arith.addf %414, %416 : vector<2x512xf32>
    %418 = vector.extract_strided_slice %417 {offsets = [0, 0], sizes = [2, 384], strides = [1, 1]} : vector<2x512xf32> to vector<2x384xf32>
    %419 = arith.negf %418 : vector<2x384xf32>
    %420 = math.exp %419 : vector<2x384xf32>
    %cst_66 = arith.constant 1.000000e+00 : f32
    %421 = vector.broadcast %cst_66 : f32 to vector<2x384xf32>
    %422 = arith.addf %421, %420 : vector<2x384xf32>
    %423 = arith.divf %421, %422 : vector<2x384xf32>
    %424 = vector.extract_strided_slice %417 {offsets = [0, 384], sizes = [2, 128], strides = [1, 1]} : vector<2x512xf32> to vector<2x128xf32>
    %425 = math.tanh %424 : vector<2x128xf32>
    %426 = vector.extract_strided_slice %423 {offsets = [0, 0], sizes = [2, 128], strides = [1, 1]} : vector<2x384xf32> to vector<2x128xf32>
    %427 = vector.extract_strided_slice %423 {offsets = [0, 128], sizes = [2, 128], strides = [1, 1]} : vector<2x384xf32> to vector<2x128xf32>
    %428 = vector.extract_strided_slice %423 {offsets = [0, 256], sizes = [2, 128], strides = [1, 1]} : vector<2x384xf32> to vector<2x128xf32>
    %429 = arith.mulf %427, %411 : vector<2x128xf32>
    %430 = arith.mulf %426, %425 : vector<2x128xf32>
    %431 = arith.addf %429, %430 : vector<2x128xf32>
    %432 = math.tanh %431 : vector<2x128xf32>
    %433 = arith.mulf %428, %432 : vector<2x128xf32>
    %434 = vector.extract_strided_slice %339 {offsets = [10, 0], sizes = [2, 512], strides = [1, 1]} : vector<16x512xf32> to vector<2x512xf32>
    %435 = arith.truncf %433 : vector<2x128xf32> to vector<2x128xbf16>
    %cst_67 = arith.constant dense<0.000000e+00> : vector<2x512xf32>
    %436 = tpu.matmul %435, %332, %cst_67 {dimension_numbers = #tpu.dot_dimension_numbers<[1], [0], [0], [1], [0, 0, 1, 1], [], []>} : vector<2x128xbf16>, vector<128x512xbf16>, vector<2x512xf32> -> vector<2x512xf32>
    %437 = arith.addf %434, %436 : vector<2x512xf32>
    %438 = vector.extract_strided_slice %437 {offsets = [0, 0], sizes = [2, 384], strides = [1, 1]} : vector<2x512xf32> to vector<2x384xf32>
    %439 = arith.negf %438 : vector<2x384xf32>
    %440 = math.exp %439 : vector<2x384xf32>
    %cst_68 = arith.constant 1.000000e+00 : f32
    %441 = vector.broadcast %cst_68 : f32 to vector<2x384xf32>
    %442 = arith.addf %441, %440 : vector<2x384xf32>
    %443 = arith.divf %441, %442 : vector<2x384xf32>
    %444 = vector.extract_strided_slice %437 {offsets = [0, 384], sizes = [2, 128], strides = [1, 1]} : vector<2x512xf32> to vector<2x128xf32>
    %445 = math.tanh %444 : vector<2x128xf32>
    %446 = vector.extract_strided_slice %443 {offsets = [0, 0], sizes = [2, 128], strides = [1, 1]} : vector<2x384xf32> to vector<2x128xf32>
    %447 = vector.extract_strided_slice %443 {offsets = [0, 128], sizes = [2, 128], strides = [1, 1]} : vector<2x384xf32> to vector<2x128xf32>
    %448 = vector.extract_strided_slice %443 {offsets = [0, 256], sizes = [2, 128], strides = [1, 1]} : vector<2x384xf32> to vector<2x128xf32>
    %449 = arith.mulf %447, %431 : vector<2x128xf32>
    %450 = arith.mulf %446, %445 : vector<2x128xf32>
    %451 = arith.addf %449, %450 : vector<2x128xf32>
    %452 = math.tanh %451 : vector<2x128xf32>
    %453 = arith.mulf %448, %452 : vector<2x128xf32>
    %454 = vector.extract_strided_slice %339 {offsets = [12, 0], sizes = [2, 512], strides = [1, 1]} : vector<16x512xf32> to vector<2x512xf32>
    %455 = arith.truncf %453 : vector<2x128xf32> to vector<2x128xbf16>
    %cst_69 = arith.constant dense<0.000000e+00> : vector<2x512xf32>
    %456 = tpu.matmul %455, %332, %cst_69 {dimension_numbers = #tpu.dot_dimension_numbers<[1], [0], [0], [1], [0, 0, 1, 1], [], []>} : vector<2x128xbf16>, vector<128x512xbf16>, vector<2x512xf32> -> vector<2x512xf32>
    %457 = arith.addf %454, %456 : vector<2x512xf32>
    %458 = vector.extract_strided_slice %457 {offsets = [0, 0], sizes = [2, 384], strides = [1, 1]} : vector<2x512xf32> to vector<2x384xf32>
    %459 = arith.negf %458 : vector<2x384xf32>
    %460 = math.exp %459 : vector<2x384xf32>
    %cst_70 = arith.constant 1.000000e+00 : f32
    %461 = vector.broadcast %cst_70 : f32 to vector<2x384xf32>
    %462 = arith.addf %461, %460 : vector<2x384xf32>
    %463 = arith.divf %461, %462 : vector<2x384xf32>
    %464 = vector.extract_strided_slice %457 {offsets = [0, 384], sizes = [2, 128], strides = [1, 1]} : vector<2x512xf32> to vector<2x128xf32>
    %465 = math.tanh %464 : vector<2x128xf32>
    %466 = vector.extract_strided_slice %463 {offsets = [0, 0], sizes = [2, 128], strides = [1, 1]} : vector<2x384xf32> to vector<2x128xf32>
    %467 = vector.extract_strided_slice %463 {offsets = [0, 128], sizes = [2, 128], strides = [1, 1]} : vector<2x384xf32> to vector<2x128xf32>
    %468 = vector.extract_strided_slice %463 {offsets = [0, 256], sizes = [2, 128], strides = [1, 1]} : vector<2x384xf32> to vector<2x128xf32>
    %469 = arith.mulf %467, %451 : vector<2x128xf32>
    %470 = arith.mulf %466, %465 : vector<2x128xf32>
    %471 = arith.addf %469, %470 : vector<2x128xf32>
    %472 = math.tanh %471 : vector<2x128xf32>
    %473 = arith.mulf %468, %472 : vector<2x128xf32>
    %474 = vector.extract_strided_slice %339 {offsets = [14, 0], sizes = [2, 512], strides = [1, 1]} : vector<16x512xf32> to vector<2x512xf32>
    %475 = arith.truncf %473 : vector<2x128xf32> to vector<2x128xbf16>
    %cst_71 = arith.constant dense<0.000000e+00> : vector<2x512xf32>
    %476 = tpu.matmul %475, %332, %cst_71 {dimension_numbers = #tpu.dot_dimension_numbers<[1], [0], [0], [1], [0, 0, 1, 1], [], []>} : vector<2x128xbf16>, vector<128x512xbf16>, vector<2x512xf32> -> vector<2x512xf32>
    %477 = arith.addf %474, %476 : vector<2x512xf32>
    %478 = vector.extract_strided_slice %477 {offsets = [0, 0], sizes = [2, 384], strides = [1, 1]} : vector<2x512xf32> to vector<2x384xf32>
    %479 = arith.negf %478 : vector<2x384xf32>
    %480 = math.exp %479 : vector<2x384xf32>
    %cst_72 = arith.constant 1.000000e+00 : f32
    %481 = vector.broadcast %cst_72 : f32 to vector<2x384xf32>
    %482 = arith.addf %481, %480 : vector<2x384xf32>
    %483 = arith.divf %481, %482 : vector<2x384xf32>
    %484 = vector.extract_strided_slice %477 {offsets = [0, 384], sizes = [2, 128], strides = [1, 1]} : vector<2x512xf32> to vector<2x128xf32>
    %485 = math.tanh %484 : vector<2x128xf32>
    %486 = vector.extract_strided_slice %483 {offsets = [0, 0], sizes = [2, 128], strides = [1, 1]} : vector<2x384xf32> to vector<2x128xf32>
    %487 = vector.extract_strided_slice %483 {offsets = [0, 128], sizes = [2, 128], strides = [1, 1]} : vector<2x384xf32> to vector<2x128xf32>
    %488 = vector.extract_strided_slice %483 {offsets = [0, 256], sizes = [2, 128], strides = [1, 1]} : vector<2x384xf32> to vector<2x128xf32>
    %489 = arith.mulf %487, %471 : vector<2x128xf32>
    %490 = arith.mulf %486, %485 : vector<2x128xf32>
    %491 = arith.addf %489, %490 : vector<2x128xf32>
    %492 = math.tanh %491 : vector<2x128xf32>
    %493 = arith.mulf %488, %492 : vector<2x128xf32>
    %494 = tpu.concatenate %353, %373, %393, %413, %433, %453, %473, %493 in 0 : vector<2x128xf32>, vector<2x128xf32>, vector<2x128xf32>, vector<2x128xf32>, vector<2x128xf32>, vector<2x128xf32>, vector<2x128xf32>, vector<2x128xf32> -> vector<16x128xf32>
    %495 = arith.truncf %494 : vector<16x128xf32> to vector<16x128xbf16>
    %c3 = arith.constant 3 : index
    %c0_73 = arith.constant 0 : index
    %c0_74 = arith.constant 0 : index
    %496 = vector.load %arg2[%c3, %c0_73, %c0_74] : memref<4x128x512xbf16, #tpu.memory_space<vmem>>, vector<1x128x512xbf16>
    %497 = vector.shape_cast %496 : vector<1x128x512xbf16> to vector<128x512xbf16>
    %c3_75 = arith.constant 3 : index
    %c0_76 = arith.constant 0 : index
    %c0_77 = arith.constant 0 : index
    %498 = vector.load %arg1[%c3_75, %c0_76, %c0_77] : memref<4x128x512xbf16, #tpu.memory_space<vmem>>, vector<1x128x512xbf16>
    %499 = vector.shape_cast %498 : vector<1x128x512xbf16> to vector<128x512xbf16>
    %cst_78 = arith.constant dense<0.000000e+00> : vector<16x512xf32>
    %500 = tpu.matmul %495, %499, %cst_78 {dimension_numbers = #tpu.dot_dimension_numbers<[1], [0], [0], [1], [0, 0, 1, 1], [], []>} : vector<16x128xbf16>, vector<128x512xbf16>, vector<16x512xf32> -> vector<16x512xf32>
    %c3_79 = arith.constant 3 : index
    %c0_80 = arith.constant 0 : index
    %c0_81 = arith.constant 0 : index
    %501 = vector.load %arg3[%c3_79, %c0_80, %c0_81] : memref<4x1x512xf32, #tpu.memory_space<vmem>>, vector<1x1x512xf32>
    %502 = vector.shape_cast %501 : vector<1x1x512xf32> to vector<1x512xf32>
    %503 = vector.broadcast %502 : vector<1x512xf32> to vector<16x512xf32>
    %504 = arith.addf %500, %503 : vector<16x512xf32>
    %505 = vector.extract_strided_slice %504 {offsets = [0, 0], sizes = [2, 512], strides = [1, 1]} : vector<16x512xf32> to vector<2x512xf32>
    %506 = vector.extract_strided_slice %505 {offsets = [0, 0], sizes = [2, 384], strides = [1, 1]} : vector<2x512xf32> to vector<2x384xf32>
    %507 = arith.negf %506 : vector<2x384xf32>
    %508 = math.exp %507 : vector<2x384xf32>
    %cst_82 = arith.constant 1.000000e+00 : f32
    %509 = vector.broadcast %cst_82 : f32 to vector<2x384xf32>
    %510 = arith.addf %509, %508 : vector<2x384xf32>
    %511 = arith.divf %509, %510 : vector<2x384xf32>
    %512 = vector.extract_strided_slice %505 {offsets = [0, 384], sizes = [2, 128], strides = [1, 1]} : vector<2x512xf32> to vector<2x128xf32>
    %513 = math.tanh %512 : vector<2x128xf32>
    %514 = vector.extract_strided_slice %511 {offsets = [0, 0], sizes = [2, 128], strides = [1, 1]} : vector<2x384xf32> to vector<2x128xf32>
    %515 = vector.extract_strided_slice %511 {offsets = [0, 256], sizes = [2, 128], strides = [1, 1]} : vector<2x384xf32> to vector<2x128xf32>
    %516 = arith.mulf %514, %513 : vector<2x128xf32>
    %517 = math.tanh %516 : vector<2x128xf32>
    %518 = arith.mulf %515, %517 : vector<2x128xf32>
    %519 = vector.extract_strided_slice %504 {offsets = [2, 0], sizes = [2, 512], strides = [1, 1]} : vector<16x512xf32> to vector<2x512xf32>
    %520 = arith.truncf %518 : vector<2x128xf32> to vector<2x128xbf16>
    %cst_83 = arith.constant dense<0.000000e+00> : vector<2x512xf32>
    %521 = tpu.matmul %520, %497, %cst_83 {dimension_numbers = #tpu.dot_dimension_numbers<[1], [0], [0], [1], [0, 0, 1, 1], [], []>} : vector<2x128xbf16>, vector<128x512xbf16>, vector<2x512xf32> -> vector<2x512xf32>
    %522 = arith.addf %519, %521 : vector<2x512xf32>
    %523 = vector.extract_strided_slice %522 {offsets = [0, 0], sizes = [2, 384], strides = [1, 1]} : vector<2x512xf32> to vector<2x384xf32>
    %524 = arith.negf %523 : vector<2x384xf32>
    %525 = math.exp %524 : vector<2x384xf32>
    %cst_84 = arith.constant 1.000000e+00 : f32
    %526 = vector.broadcast %cst_84 : f32 to vector<2x384xf32>
    %527 = arith.addf %526, %525 : vector<2x384xf32>
    %528 = arith.divf %526, %527 : vector<2x384xf32>
    %529 = vector.extract_strided_slice %522 {offsets = [0, 384], sizes = [2, 128], strides = [1, 1]} : vector<2x512xf32> to vector<2x128xf32>
    %530 = math.tanh %529 : vector<2x128xf32>
    %531 = vector.extract_strided_slice %528 {offsets = [0, 0], sizes = [2, 128], strides = [1, 1]} : vector<2x384xf32> to vector<2x128xf32>
    %532 = vector.extract_strided_slice %528 {offsets = [0, 128], sizes = [2, 128], strides = [1, 1]} : vector<2x384xf32> to vector<2x128xf32>
    %533 = vector.extract_strided_slice %528 {offsets = [0, 256], sizes = [2, 128], strides = [1, 1]} : vector<2x384xf32> to vector<2x128xf32>
    %534 = arith.mulf %532, %516 : vector<2x128xf32>
    %535 = arith.mulf %531, %530 : vector<2x128xf32>
    %536 = arith.addf %534, %535 : vector<2x128xf32>
    %537 = math.tanh %536 : vector<2x128xf32>
    %538 = arith.mulf %533, %537 : vector<2x128xf32>
    %539 = vector.extract_strided_slice %504 {offsets = [4, 0], sizes = [2, 512], strides = [1, 1]} : vector<16x512xf32> to vector<2x512xf32>
    %540 = arith.truncf %538 : vector<2x128xf32> to vector<2x128xbf16>
    %cst_85 = arith.constant dense<0.000000e+00> : vector<2x512xf32>
    %541 = tpu.matmul %540, %497, %cst_85 {dimension_numbers = #tpu.dot_dimension_numbers<[1], [0], [0], [1], [0, 0, 1, 1], [], []>} : vector<2x128xbf16>, vector<128x512xbf16>, vector<2x512xf32> -> vector<2x512xf32>
    %542 = arith.addf %539, %541 : vector<2x512xf32>
    %543 = vector.extract_strided_slice %542 {offsets = [0, 0], sizes = [2, 384], strides = [1, 1]} : vector<2x512xf32> to vector<2x384xf32>
    %544 = arith.negf %543 : vector<2x384xf32>
    %545 = math.exp %544 : vector<2x384xf32>
    %cst_86 = arith.constant 1.000000e+00 : f32
    %546 = vector.broadcast %cst_86 : f32 to vector<2x384xf32>
    %547 = arith.addf %546, %545 : vector<2x384xf32>
    %548 = arith.divf %546, %547 : vector<2x384xf32>
    %549 = vector.extract_strided_slice %542 {offsets = [0, 384], sizes = [2, 128], strides = [1, 1]} : vector<2x512xf32> to vector<2x128xf32>
    %550 = math.tanh %549 : vector<2x128xf32>
    %551 = vector.extract_strided_slice %548 {offsets = [0, 0], sizes = [2, 128], strides = [1, 1]} : vector<2x384xf32> to vector<2x128xf32>
    %552 = vector.extract_strided_slice %548 {offsets = [0, 128], sizes = [2, 128], strides = [1, 1]} : vector<2x384xf32> to vector<2x128xf32>
    %553 = vector.extract_strided_slice %548 {offsets = [0, 256], sizes = [2, 128], strides = [1, 1]} : vector<2x384xf32> to vector<2x128xf32>
    %554 = arith.mulf %552, %536 : vector<2x128xf32>
    %555 = arith.mulf %551, %550 : vector<2x128xf32>
    %556 = arith.addf %554, %555 : vector<2x128xf32>
    %557 = math.tanh %556 : vector<2x128xf32>
    %558 = arith.mulf %553, %557 : vector<2x128xf32>
    %559 = vector.extract_strided_slice %504 {offsets = [6, 0], sizes = [2, 512], strides = [1, 1]} : vector<16x512xf32> to vector<2x512xf32>
    %560 = arith.truncf %558 : vector<2x128xf32> to vector<2x128xbf16>
    %cst_87 = arith.constant dense<0.000000e+00> : vector<2x512xf32>
    %561 = tpu.matmul %560, %497, %cst_87 {dimension_numbers = #tpu.dot_dimension_numbers<[1], [0], [0], [1], [0, 0, 1, 1], [], []>} : vector<2x128xbf16>, vector<128x512xbf16>, vector<2x512xf32> -> vector<2x512xf32>
    %562 = arith.addf %559, %561 : vector<2x512xf32>
    %563 = vector.extract_strided_slice %562 {offsets = [0, 0], sizes = [2, 384], strides = [1, 1]} : vector<2x512xf32> to vector<2x384xf32>
    %564 = arith.negf %563 : vector<2x384xf32>
    %565 = math.exp %564 : vector<2x384xf32>
    %cst_88 = arith.constant 1.000000e+00 : f32
    %566 = vector.broadcast %cst_88 : f32 to vector<2x384xf32>
    %567 = arith.addf %566, %565 : vector<2x384xf32>
    %568 = arith.divf %566, %567 : vector<2x384xf32>
    %569 = vector.extract_strided_slice %562 {offsets = [0, 384], sizes = [2, 128], strides = [1, 1]} : vector<2x512xf32> to vector<2x128xf32>
    %570 = math.tanh %569 : vector<2x128xf32>
    %571 = vector.extract_strided_slice %568 {offsets = [0, 0], sizes = [2, 128], strides = [1, 1]} : vector<2x384xf32> to vector<2x128xf32>
    %572 = vector.extract_strided_slice %568 {offsets = [0, 128], sizes = [2, 128], strides = [1, 1]} : vector<2x384xf32> to vector<2x128xf32>
    %573 = vector.extract_strided_slice %568 {offsets = [0, 256], sizes = [2, 128], strides = [1, 1]} : vector<2x384xf32> to vector<2x128xf32>
    %574 = arith.mulf %572, %556 : vector<2x128xf32>
    %575 = arith.mulf %571, %570 : vector<2x128xf32>
    %576 = arith.addf %574, %575 : vector<2x128xf32>
    %577 = math.tanh %576 : vector<2x128xf32>
    %578 = arith.mulf %573, %577 : vector<2x128xf32>
    %579 = vector.extract_strided_slice %504 {offsets = [8, 0], sizes = [2, 512], strides = [1, 1]} : vector<16x512xf32> to vector<2x512xf32>
    %580 = arith.truncf %578 : vector<2x128xf32> to vector<2x128xbf16>
    %cst_89 = arith.constant dense<0.000000e+00> : vector<2x512xf32>
    %581 = tpu.matmul %580, %497, %cst_89 {dimension_numbers = #tpu.dot_dimension_numbers<[1], [0], [0], [1], [0, 0, 1, 1], [], []>} : vector<2x128xbf16>, vector<128x512xbf16>, vector<2x512xf32> -> vector<2x512xf32>
    %582 = arith.addf %579, %581 : vector<2x512xf32>
    %583 = vector.extract_strided_slice %582 {offsets = [0, 0], sizes = [2, 384], strides = [1, 1]} : vector<2x512xf32> to vector<2x384xf32>
    %584 = arith.negf %583 : vector<2x384xf32>
    %585 = math.exp %584 : vector<2x384xf32>
    %cst_90 = arith.constant 1.000000e+00 : f32
    %586 = vector.broadcast %cst_90 : f32 to vector<2x384xf32>
    %587 = arith.addf %586, %585 : vector<2x384xf32>
    %588 = arith.divf %586, %587 : vector<2x384xf32>
    %589 = vector.extract_strided_slice %582 {offsets = [0, 384], sizes = [2, 128], strides = [1, 1]} : vector<2x512xf32> to vector<2x128xf32>
    %590 = math.tanh %589 : vector<2x128xf32>
    %591 = vector.extract_strided_slice %588 {offsets = [0, 0], sizes = [2, 128], strides = [1, 1]} : vector<2x384xf32> to vector<2x128xf32>
    %592 = vector.extract_strided_slice %588 {offsets = [0, 128], sizes = [2, 128], strides = [1, 1]} : vector<2x384xf32> to vector<2x128xf32>
    %593 = vector.extract_strided_slice %588 {offsets = [0, 256], sizes = [2, 128], strides = [1, 1]} : vector<2x384xf32> to vector<2x128xf32>
    %594 = arith.mulf %592, %576 : vector<2x128xf32>
    %595 = arith.mulf %591, %590 : vector<2x128xf32>
    %596 = arith.addf %594, %595 : vector<2x128xf32>
    %597 = math.tanh %596 : vector<2x128xf32>
    %598 = arith.mulf %593, %597 : vector<2x128xf32>
    %599 = vector.extract_strided_slice %504 {offsets = [10, 0], sizes = [2, 512], strides = [1, 1]} : vector<16x512xf32> to vector<2x512xf32>
    %600 = arith.truncf %598 : vector<2x128xf32> to vector<2x128xbf16>
    %cst_91 = arith.constant dense<0.000000e+00> : vector<2x512xf32>
    %601 = tpu.matmul %600, %497, %cst_91 {dimension_numbers = #tpu.dot_dimension_numbers<[1], [0], [0], [1], [0, 0, 1, 1], [], []>} : vector<2x128xbf16>, vector<128x512xbf16>, vector<2x512xf32> -> vector<2x512xf32>
    %602 = arith.addf %599, %601 : vector<2x512xf32>
    %603 = vector.extract_strided_slice %602 {offsets = [0, 0], sizes = [2, 384], strides = [1, 1]} : vector<2x512xf32> to vector<2x384xf32>
    %604 = arith.negf %603 : vector<2x384xf32>
    %605 = math.exp %604 : vector<2x384xf32>
    %cst_92 = arith.constant 1.000000e+00 : f32
    %606 = vector.broadcast %cst_92 : f32 to vector<2x384xf32>
    %607 = arith.addf %606, %605 : vector<2x384xf32>
    %608 = arith.divf %606, %607 : vector<2x384xf32>
    %609 = vector.extract_strided_slice %602 {offsets = [0, 384], sizes = [2, 128], strides = [1, 1]} : vector<2x512xf32> to vector<2x128xf32>
    %610 = math.tanh %609 : vector<2x128xf32>
    %611 = vector.extract_strided_slice %608 {offsets = [0, 0], sizes = [2, 128], strides = [1, 1]} : vector<2x384xf32> to vector<2x128xf32>
    %612 = vector.extract_strided_slice %608 {offsets = [0, 128], sizes = [2, 128], strides = [1, 1]} : vector<2x384xf32> to vector<2x128xf32>
    %613 = vector.extract_strided_slice %608 {offsets = [0, 256], sizes = [2, 128], strides = [1, 1]} : vector<2x384xf32> to vector<2x128xf32>
    %614 = arith.mulf %612, %596 : vector<2x128xf32>
    %615 = arith.mulf %611, %610 : vector<2x128xf32>
    %616 = arith.addf %614, %615 : vector<2x128xf32>
    %617 = math.tanh %616 : vector<2x128xf32>
    %618 = arith.mulf %613, %617 : vector<2x128xf32>
    %619 = vector.extract_strided_slice %504 {offsets = [12, 0], sizes = [2, 512], strides = [1, 1]} : vector<16x512xf32> to vector<2x512xf32>
    %620 = arith.truncf %618 : vector<2x128xf32> to vector<2x128xbf16>
    %cst_93 = arith.constant dense<0.000000e+00> : vector<2x512xf32>
    %621 = tpu.matmul %620, %497, %cst_93 {dimension_numbers = #tpu.dot_dimension_numbers<[1], [0], [0], [1], [0, 0, 1, 1], [], []>} : vector<2x128xbf16>, vector<128x512xbf16>, vector<2x512xf32> -> vector<2x512xf32>
    %622 = arith.addf %619, %621 : vector<2x512xf32>
    %623 = vector.extract_strided_slice %622 {offsets = [0, 0], sizes = [2, 384], strides = [1, 1]} : vector<2x512xf32> to vector<2x384xf32>
    %624 = arith.negf %623 : vector<2x384xf32>
    %625 = math.exp %624 : vector<2x384xf32>
    %cst_94 = arith.constant 1.000000e+00 : f32
    %626 = vector.broadcast %cst_94 : f32 to vector<2x384xf32>
    %627 = arith.addf %626, %625 : vector<2x384xf32>
    %628 = arith.divf %626, %627 : vector<2x384xf32>
    %629 = vector.extract_strided_slice %622 {offsets = [0, 384], sizes = [2, 128], strides = [1, 1]} : vector<2x512xf32> to vector<2x128xf32>
    %630 = math.tanh %629 : vector<2x128xf32>
    %631 = vector.extract_strided_slice %628 {offsets = [0, 0], sizes = [2, 128], strides = [1, 1]} : vector<2x384xf32> to vector<2x128xf32>
    %632 = vector.extract_strided_slice %628 {offsets = [0, 128], sizes = [2, 128], strides = [1, 1]} : vector<2x384xf32> to vector<2x128xf32>
    %633 = vector.extract_strided_slice %628 {offsets = [0, 256], sizes = [2, 128], strides = [1, 1]} : vector<2x384xf32> to vector<2x128xf32>
    %634 = arith.mulf %632, %616 : vector<2x128xf32>
    %635 = arith.mulf %631, %630 : vector<2x128xf32>
    %636 = arith.addf %634, %635 : vector<2x128xf32>
    %637 = math.tanh %636 : vector<2x128xf32>
    %638 = arith.mulf %633, %637 : vector<2x128xf32>
    %639 = vector.extract_strided_slice %504 {offsets = [14, 0], sizes = [2, 512], strides = [1, 1]} : vector<16x512xf32> to vector<2x512xf32>
    %640 = arith.truncf %638 : vector<2x128xf32> to vector<2x128xbf16>
    %cst_95 = arith.constant dense<0.000000e+00> : vector<2x512xf32>
    %641 = tpu.matmul %640, %497, %cst_95 {dimension_numbers = #tpu.dot_dimension_numbers<[1], [0], [0], [1], [0, 0, 1, 1], [], []>} : vector<2x128xbf16>, vector<128x512xbf16>, vector<2x512xf32> -> vector<2x512xf32>
    %642 = arith.addf %639, %641 : vector<2x512xf32>
    %643 = vector.extract_strided_slice %642 {offsets = [0, 0], sizes = [2, 384], strides = [1, 1]} : vector<2x512xf32> to vector<2x384xf32>
    %644 = arith.negf %643 : vector<2x384xf32>
    %645 = math.exp %644 : vector<2x384xf32>
    %cst_96 = arith.constant 1.000000e+00 : f32
    %646 = vector.broadcast %cst_96 : f32 to vector<2x384xf32>
    %647 = arith.addf %646, %645 : vector<2x384xf32>
    %648 = arith.divf %646, %647 : vector<2x384xf32>
    %649 = vector.extract_strided_slice %642 {offsets = [0, 384], sizes = [2, 128], strides = [1, 1]} : vector<2x512xf32> to vector<2x128xf32>
    %650 = math.tanh %649 : vector<2x128xf32>
    %651 = vector.extract_strided_slice %648 {offsets = [0, 0], sizes = [2, 128], strides = [1, 1]} : vector<2x384xf32> to vector<2x128xf32>
    %652 = vector.extract_strided_slice %648 {offsets = [0, 128], sizes = [2, 128], strides = [1, 1]} : vector<2x384xf32> to vector<2x128xf32>
    %653 = vector.extract_strided_slice %648 {offsets = [0, 256], sizes = [2, 128], strides = [1, 1]} : vector<2x384xf32> to vector<2x128xf32>
    %654 = arith.mulf %652, %636 : vector<2x128xf32>
    %655 = arith.mulf %651, %650 : vector<2x128xf32>
    %656 = arith.addf %654, %655 : vector<2x128xf32>
    %657 = math.tanh %656 : vector<2x128xf32>
    %658 = arith.mulf %653, %657 : vector<2x128xf32>
    %659 = arith.truncf %658 : vector<2x128xf32> to vector<2x128xbf16>
    %c0_97 = arith.constant 0 : index
    %c0_98 = arith.constant 0 : index
    %660 = vector.load %arg4[%c0_97, %c0_98] : memref<128x128xbf16, #tpu.memory_space<vmem>>, vector<128x128xbf16>
    %cst_99 = arith.constant dense<0.000000e+00> : vector<2x128xf32>
    %661 = tpu.matmul %659, %660, %cst_99 {dimension_numbers = #tpu.dot_dimension_numbers<[1], [0], [0], [1], [0, 0, 1, 1], [], []>} : vector<2x128xbf16>, vector<128x128xbf16>, vector<2x128xf32> -> vector<2x128xf32>
    %c0_100 = arith.constant 0 : index
    %c0_101 = arith.constant 0 : index
    %662 = vector.load %arg5[%c0_100, %c0_101] : memref<1x128xf32, #tpu.memory_space<vmem>>, vector<1x128xf32>
    %663 = vector.broadcast %662 : vector<1x128xf32> to vector<2x128xf32>
    %664 = arith.addf %661, %663 : vector<2x128xf32>
    %665 = tpu.iota {dimensions = array<i32: 1>} : vector<2x128xi32>
    %c64_i32 = arith.constant 64 : i32
    %666 = vector.broadcast %c64_i32 : i32 to vector<2x128xi32>
    %667 = arith.cmpi slt, %665, %666 : vector<2x128xi32>
    %cst_102 = arith.constant 0.000000e+00 : f32
    %668 = vector.broadcast %cst_102 : f32 to vector<2x128xf32>
    %669 = arith.maximumf %664, %668 : vector<2x128xf32>
    %670 = vector.broadcast %cst_102 : f32 to vector<2x128xf32>
    %671 = arith.subf %664, %670 : vector<2x128xf32>
    %672 = arith.cmpf one, %671, %671 : vector<2x128xf32>
    %673 = vector.broadcast %cst_102 : f32 to vector<2x128xf32>
    %674 = arith.addf %664, %673 : vector<2x128xf32>
    %675 = math.absf %671 : vector<2x128xf32>
    %cst_103 = arith.constant 0.000000e+00 : f32
    %676 = vector.broadcast %cst_103 : f32 to vector<2x128xf32>
    %677 = arith.subf %676, %675 : vector<2x128xf32>
    %678 = math.exp %677 : vector<2x128xf32>
    %679 = math.log1p %678 : vector<2x128xf32>
    %680 = arith.addf %669, %679 : vector<2x128xf32>
    %681 = arith.select %672, %674, %680 : vector<2x128xi1>, vector<2x128xf32>
    %682 = arith.select %667, %681, %664 : vector<2x128xi1>, vector<2x128xf32>
    %c0_104 = arith.constant 0 : index
    %c0_105 = arith.constant 0 : index
    %683 = vector.load %arg6[%c0_104, %c0_105] : memref<2x128xf32, #tpu.memory_space<vmem>>, vector<2x128xf32>
    tpu.vector_store %arg6[%c0_104, %c0_105], %682 {strides = array<i32>} : memref<2x128xf32, #tpu.memory_space<vmem>>, vector<2x128xf32>,
    return
  }
}

</mosaic_0001>

<llo_original>
// kernel: forward.1
$region0: #{forward.1}
  #allocation0 [shape = 'u32[]', space=smem, size = 0x4, offset = 0x4, fixed_abs, tag = 'smem constant byte address 0x4 - core index']
  #allocation1 [shape = 'u32[144,128]{1,0:T(1,128)}', space=vmem, size = 0x12000, scoped, tag = 'internal scratch']
  %s0 = inlined_call_operand.vmem [shape: bf16[16,128], index: 0, kind: input, shape index: {}]
  %s1 = inlined_call_operand.vmem [shape: bf16[4,128,512], index: 1, kind: input, shape index: {}]
  %s2 = inlined_call_operand.hbm [shape: bf16[4,128,512], index: 2, kind: input, shape index: {}]
  %s3 = inlined_call_operand.vmem [shape: f32[4,1,512], index: 3, kind: input, shape index: {}]
  %s4 = inlined_call_operand.vmem [shape: bf16[128,128], index: 4, kind: input, shape index: {}]
  %s5 = inlined_call_operand.vmem [shape: f32[1,128], index: 5, kind: input, shape index: {}]
  %s6 = inlined_call_operand.vmem [shape: f32[2,128], index: 6, kind: output, shape index: {}]
  %s7 = sld [smem:[#allocation0]]
  $region38: #{forward.1} parent=0
    _
  %s9 = ssub.s32 1, %s7
  %s10 = scalar_select 0, %s9, %s7
  $region1: #{forward.1} parent=0
    #allocation2 [shape = 'u8[524288]{0}', space=vmem, size = 0x80000, scoped, tag = 'input window, operand 2, single buffered']
    #allocation3 [shape = 's32[1]{0}', space=sflag, size = 0x4, scoped, tag = 'scoped memory for forward.1']
    %11 = vsyncpa [#allocation3], 0
    // Predicated region
    $region2: #{forward.1} parent=1 // pred_check
      _
    $region3: #{forward.1} parent=1 // pred_check_branch
      %13 = sbr.rel (0) target = $region5
    $region4: #{forward.1} parent=1 // pred_region
      _
    $region5: #{forward.1} parent=1 // pred_fallthru
      _
    // Predicated region
    $region6: #{forward.1} parent=1 // pred_check
      _
    $region7: #{forward.1} parent=1 // pred_check_branch
      %15 = sbr.rel (0) target = $region9
    $region8: #{forward.1} parent=1 // pred_region
      _
    $region9: #{forward.1} parent=1 // pred_fallthru
      _
    // Predicated region
    $region10: #{forward.1} parent=1 // pred_check
      _
    $region11: #{forward.1} parent=1 // pred_check_branch
      %17 = sbr.rel (0) target = $region13
    $region12: #{forward.1} parent=1 // pred_region
      %s19 = ssub.s32 16384, 16384
      %20 = vsyncadd [#allocation3], %s19
      %s21 = sshll.u32 [#allocation2], 4
      %s22 = int_to_ptr.vmem [resolvable:$true] %s21
      %27 = dma.hbm_to_vmem [thread:$0]  %s2, 16384, %s22, [#allocation3], 256, 256, 16
    $region13: #{forward.1} parent=1 // pred_fallthru
      _
    // Predicated region
    $region14: #{forward.1} parent=1 // pred_check
      _
    $region15: #{forward.1} parent=1 // pred_check_branch
      %29 = sbr.rel (0) target = $region17
    $region16: #{forward.1} parent=1 // pred_region
      _
    $region17: #{forward.1} parent=1 // pred_fallthru
      _
    // Predicated region
    $region18: #{forward.1} parent=1 // pred_check
      _
    $region19: #{forward.1} parent=1 // pred_check_branch
      %31 = sbr.rel (0) target = $region21
    $region20: #{forward.1} parent=1 // pred_region
      _
    $region21: #{forward.1} parent=1 // pred_fallthru
      _
    // Predicated region
    $region22: #{forward.1} parent=1 // pred_check
      _
    $region23: #{forward.1} parent=1 // pred_check_branch
      %33 = sbr.rel (0) target = $region25
    $region24: #{forward.1} parent=1 // pred_region
      _
    $region25: #{forward.1} parent=1 // pred_fallthru
      _
    // Predicated region
    $region26: #{forward.1} parent=1 // pred_check
      _
    $region27: #{forward.1} parent=1 // pred_check_branch
      %35 = sbr.rel (0) target = $region29
    $region28: #{forward.1} parent=1 // pred_region
      %36 = dma.done [#allocation3], 16384
    $region29: #{forward.1} parent=1 // pred_fallthru
      _
    %v38 = vld [vmem:[%s0] sm:$0xf]
    %v39 = vld [vmem:[%s0 + $0x4] sm:$0xf]
    %v40 = vld [vmem:[#allocation2] sm:$0xff]
    %v41 = vld [vmem:[#allocation2 + $0x8] sm:$0xff]
    %v42 = vld [vmem:[#allocation2 + $0x10] sm:$0xff]
    %v43 = vld [vmem:[#allocation2 + $0x18] sm:$0xff]
    %v44 = vld [vmem:[#allocation2 + $0x20] sm:$0xff]
    %v45 = vld [vmem:[#allocation2 + $0x28] sm:$0xff]
    %v46 = vld [vmem:[#allocation2 + $0x30] sm:$0xff]
    %v47 = vld [vmem:[#allocation2 + $0x38] sm:$0xff]
    %v48 = vld [vmem:[#allocation2 + $0x40] sm:$0xff]
    %v49 = vld [vmem:[#allocation2 + $0x48] sm:$0xff]
    %v50 = vld [vmem:[#allocation2 + $0x50] sm:$0xff]
    %v51 = vld [vmem:[#allocation2 + $0x58] sm:$0xff]
    %v52 = vld [vmem:[#allocation2 + $0x60] sm:$0xff]
    %v53 = vld [vmem:[#allocation2 + $0x68] sm:$0xff]
    %v54 = vld [vmem:[#allocation2 + $0x70] sm:$0xff]
    %v55 = vld [vmem:[#allocation2 + $0x78] sm:$0xff]
    %v56 = vld [vmem:[#allocation2 + $0x80] sm:$0xff]
    %v57 = vld [vmem:[#allocation2 + $0x88] sm:$0xff]
    %v58 = vld [vmem:[#allocation2 + $0x90] sm:$0xff]
    %v59 = vld [vmem:[#allocation2 + $0x98] sm:$0xff]
    %v60 = vld [vmem:[#allocation2 + $0xa0] sm:$0xff]
    %v61 = vld [vmem:[#allocation2 + $0xa8] sm:$0xff]
    %v62 = vld [vmem:[#allocation2 + $0xb0] sm:$0xff]
    %v63 = vld [vmem:[#allocation2 + $0xb8] sm:$0xff]
    %v64 = vld [vmem:[#allocation2 + $0xc0] sm:$0xff]
    %v65 = vld [vmem:[#allocation2 + $0xc8] sm:$0xff]
    %v66 = vld [vmem:[#allocation2 + $0xd0] sm:$0xff]
    %v67 = vld [vmem:[#allocation2 + $0xd8] sm:$0xff]
    %v68 = vld [vmem:[#allocation2 + $0xe0] sm:$0xff]
    %v69 = vld [vmem:[#allocation2 + $0xe8] sm:$0xff]
    %v70 = vld [vmem:[#allocation2 + $0xf0] sm:$0xff]
    %v71 = vld [vmem:[#allocation2 + $0xf8] sm:$0xff]
    %v72 = vld [vmem:[%s1] sm:$0xff]
    %v73 = vld [vmem:[%s1 + $0x8] sm:$0xff]
    %v74 = vld [vmem:[%s1 + $0x10] sm:$0xff]
    %v75 = vld [vmem:[%s1 + $0x18] sm:$0xff]
    %v76 = vld [vmem:[%s1 + $0x20] sm:$0xff]
    %v77 = vld [vmem:[%s1 + $0x28] sm:$0xff]
    %v78 = vld [vmem:[%s1 + $0x30] sm:$0xff]
    %v79 = vld [vmem:[%s1 + $0x38] sm:$0xff]
    %v80 = vld [vmem:[%s1 + $0x40] sm:$0xff]
    %v81 = vld [vmem:[%s1 + $0x48] sm:$0xff]
    %v82 = vld [vmem:[%s1 + $0x50] sm:$0xff]
    %v83 = vld [vmem:[%s1 + $0x58] sm:$0xff]
    %v84 = vld [vmem:[%s1 + $0x60] sm:$0xff]
    %v85 = vld [vmem:[%s1 + $0x68] sm:$0xff]
    %v86 = vld [vmem:[%s1 + $0x70] sm:$0xff]
    %v87 = vld [vmem:[%s1 + $0x78] sm:$0xff]
    %v88 = vld [vmem:[%s1 + $0x80] sm:$0xff]
    %v89 = vld [vmem:[%s1 + $0x88] sm:$0xff]
    %v90 = vld [vmem:[%s1 + $0x90] sm:$0xff]
    %v91 = vld [vmem:[%s1 + $0x98] sm:$0xff]
    %v92 = vld [vmem:[%s1 + $0xa0] sm:$0xff]
    %v93 = vld [vmem:[%s1 + $0xa8] sm:$0xff]
    %v94 = vld [vmem:[%s1 + $0xb0] sm:$0xff]
    %v95 = vld [vmem:[%s1 + $0xb8] sm:$0xff]
    %v96 = vld [vmem:[%s1 + $0xc0] sm:$0xff]
    %v97 = vld [vmem:[%s1 + $0xc8] sm:$0xff]
    %v98 = vld [vmem:[%s1 + $0xd0] sm:$0xff]
    %v99 = vld [vmem:[%s1 + $0xd8] sm:$0xff]
    %v100 = vld [vmem:[%s1 + $0xe0] sm:$0xff]
    %v101 = vld [vmem:[%s1 + $0xe8] sm:$0xff]
    %v102 = vld [vmem:[%s1 + $0xf0] sm:$0xff]
    %v103 = vld [vmem:[%s1 + $0xf8] sm:$0xff]
    %v104 = vld [vmem:[%s3] sm:$0xf]
    %v106 = vlaneseq
    %v107 = vshrl.u32 %v106, 7
    %v108 = vsub.s32 0, %v107
    %v109 = vrot.slane %v104, %v108
    %v110 = vlaneseq
    %v111 = vshrl.u32 %v110, 7
    %v112 = vsub.s32 1, %v111
    %v113 = vrot.slane %v104, %v112
    %v114 = vlaneseq
    %v115 = vshrl.u32 %v114, 7
    %v116 = vsub.s32 2, %v115
    %v117 = vrot.slane %v104, %v116
    %v118 = vlaneseq
    %v119 = vshrl.u32 %v118, 7
    %v120 = vsub.s32 3, %v119
    %v121 = vrot.slane %v104, %v120
    %v128 = vunpack.c.l.b16 %v38
    %v129 = vunpack.c.l.b16 %v39
    %v130 = vpack.c.b16 %v129, %v128
    %v164 = vunpack.c.l.b16 %v72
    %v165 = vunpack.c.h.b16 %v72
    %v166 = vunpack.c.l.b16 %v73
    %v167 = vunpack.c.h.b16 %v73
    %v168 = vunpack.c.l.b16 %v74
    %v169 = vunpack.c.h.b16 %v74
    %v170 = vunpack.c.l.b16 %v75
    %v171 = vunpack.c.h.b16 %v75
    %v172 = vunpack.c.l.b16 %v76
    %v173 = vunpack.c.h.b16 %v76
    %v174 = vunpack.c.l.b16 %v77
    %v175 = vunpack.c.h.b16 %v77
    %v176 = vunpack.c.l.b16 %v78
    %v177 = vunpack.c.h.b16 %v78
    %v178 = vunpack.c.l.b16 %v79
    %v179 = vunpack.c.h.b16 %v79
    %v180 = vunpack.c.l.b16 %v80
    %v181 = vunpack.c.h.b16 %v80
    %v182 = vunpack.c.l.b16 %v81
    %v183 = vunpack.c.h.b16 %v81
    %v184 = vunpack.c.l.b16 %v82
    %v185 = vunpack.c.h.b16 %v82
    %v186 = vunpack.c.l.b16 %v83
    %v187 = vunpack.c.h.b16 %v83
    %v188 = vunpack.c.l.b16 %v84
    %v189 = vunpack.c.h.b16 %v84
    %v190 = vunpack.c.l.b16 %v85
    %v191 = vunpack.c.h.b16 %v85
    %v192 = vunpack.c.l.b16 %v86
    %v193 = vunpack.c.h.b16 %v86
    %v194 = vunpack.c.l.b16 %v87
    %v195 = vunpack.c.h.b16 %v87
    %v196 = vunpack.c.l.b16 %v88
    %v197 = vunpack.c.h.b16 %v88
    %v198 = vunpack.c.l.b16 %v89
    %v199 = vunpack.c.h.b16 %v89
    %v200 = vunpack.c.l.b16 %v90
    %v201 = vunpack.c.h.b16 %v90
    %v202 = vunpack.c.l.b16 %v91
    %v203 = vunpack.c.h.b16 %v91
    %v204 = vunpack.c.l.b16 %v92
    %v205 = vunpack.c.h.b16 %v92
    %v206 = vunpack.c.l.b16 %v93
    %v207 = vunpack.c.h.b16 %v93
    %v208 = vunpack.c.l.b16 %v94
    %v209 = vunpack.c.h.b16 %v94
    %v210 = vunpack.c.l.b16 %v95
    %v211 = vunpack.c.h.b16 %v95
    %v212 = vunpack.c.l.b16 %v96
    %v213 = vunpack.c.h.b16 %v96
    %v214 = vunpack.c.l.b16 %v97
    %v215 = vunpack.c.h.b16 %v97
    %v216 = vunpack.c.l.b16 %v98
    %v217 = vunpack.c.h.b16 %v98
    %v218 = vunpack.c.l.b16 %v99
    %v219 = vunpack.c.h.b16 %v99
    %v220 = vunpack.c.l.b16 %v100
    %v221 = vunpack.c.h.b16 %v100
    %v222 = vunpack.c.l.b16 %v101
    %v223 = vunpack.c.h.b16 %v101
    %v224 = vunpack.c.l.b16 %v102
    %v225 = vunpack.c.h.b16 %v102
    %v226 = vunpack.c.l.b16 %v103
    %v227 = vunpack.c.h.b16 %v103
    %v228 = vpack.c.b16 %v168, %v164
    %v229 = vpack.c.b16 %v169, %v165
    %v230 = vpack.c.b16 %v170, %v166
    %v231 = vpack.c.b16 %v171, %v167
    %v232 = vpack.c.b16 %v176, %v172
    %v233 = vpack.c.b16 %v177, %v173
    %v234 = vpack.c.b16 %v178, %v174
    %v235 = vpack.c.b16 %v179, %v175
    %v236 = vpack.c.b16 %v184, %v180
    %v237 = vpack.c.b16 %v185, %v181
    %v238 = vpack.c.b16 %v186, %v182
    %v239 = vpack.c.b16 %v187, %v183
    %v240 = vpack.c.b16 %v192, %v188
    %v241 = vpack.c.b16 %v193, %v189
    %v242 = vpack.c.b16 %v194, %v190
    %v243 = vpack.c.b16 %v195, %v191
    %v244 = vpack.c.b16 %v200, %v196
    %v245 = vpack.c.b16 %v201, %v197
    %v246 = vpack.c.b16 %v202, %v198
    %v247 = vpack.c.b16 %v203, %v199
    %v248 = vpack.c.b16 %v208, %v204
    %v249 = vpack.c.b16 %v209, %v205
    %v250 = vpack.c.b16 %v210, %v206
    %v251 = vpack.c.b16 %v211, %v207
    %v252 = vpack.c.b16 %v216, %v212
    %v253 = vpack.c.b16 %v217, %v213
    %v254 = vpack.c.b16 %v218, %v214
    %v255 = vpack.c.b16 %v219, %v215
    %v256 = vpack.c.b16 %v224, %v220
    %v257 = vpack.c.b16 %v225, %v221
    %v258 = vpack.c.b16 %v226, %v222
    %v259 = vpack.c.b16 %v227, %v223
    %292 = vmatprep.subr.bf16.mxu0 %v229
    %293 = vmatpush1.bf16.msra.mxu0 %v228
    %294 = vmatprep.subr.bf16.mxu0 %v233
    %295 = vmatpush1.bf16.msra.mxu0 %v232
    %296 = vmatprep.subr.bf16.mxu0 %v237
    %297 = vmatpush1.bf16.msra.mxu0 %v236
    %298 = vmatprep.subr.bf16.mxu0 %v241
    %299 = vmatpush1.bf16.msra.mxu0 %v240
    %300 = vmatprep.subr.bf16.mxu0 %v245
    %301 = vmatpush1.bf16.msra.mxu0 %v244
    %302 = vmatprep.subr.bf16.mxu0 %v249
    %303 = vmatpush1.bf16.msra.mxu0 %v248
    %304 = vmatprep.subr.bf16.mxu0 %v253
    %305 = vmatpush1.bf16.msra.mxu0 %v252
    %306 = vmatprep.subr.bf16.mxu0 %v257
    %307 = vmatpush1.bf16.msra.mxu0 %v256
    %308 = vmatprep.subr.bf16.mxu0 0
    %309 = vmatpush1.bf16.msra.mxu0 0
    %310 = vmatprep.subr.bf16.mxu0 0
    %311 = vmatpush1.bf16.msra.mxu0 0
    %312 = vmatprep.subr.bf16.mxu0 0
    %313 = vmatpush1.bf16.msra.mxu0 0
    %314 = vmatprep.subr.bf16.mxu0 0
    %315 = vmatpush1.bf16.msra.mxu0 0
    %316 = vmatprep.subr.bf16.mxu0 0
    %317 = vmatpush1.bf16.msra.mxu0 0
    %318 = vmatprep.subr.bf16.mxu0 0
    %319 = vmatpush1.bf16.msra.mxu0 0
    %320 = vmatprep.subr.bf16.mxu0 0
    %321 = vmatpush1.bf16.msra.mxu0 0
    %322 = vmatprep.subr.bf16.mxu0 0
    %323 = vmatpush1.bf16.msra.mxu0 0
    %324 = vmatprep.mubr.bf16.mxu0 0
    %325 = vmatmul.mubr.bf16.gmra.mrb[0].mxu0 %v130
    %v326 = vpop.f32.mrb[0].mxu0
    %v327 = vadd.f32 %v109, %v326
    %v328 = vpop.f32.mrb[0].mxu0
    %v329 = vadd.f32 %v113, %v328
    %v330 = vpop.f32.mrb[0].mxu0
    %v331 = vadd.f32 %v109, %v330
    %v332 = vpop.f32.mrb[0].mxu0
    %v333 = vadd.f32 %v113, %v332
    %334 = vdwg.mxu0
    %335 = vmatprep.subr.bf16.mxu0 %v231
    %336 = vmatpush1.bf16.msra.mxu0 %v230
    %337 = vmatprep.subr.bf16.mxu0 %v235
    %338 = vmatpush1.bf16.msra.mxu0 %v234
    %339 = vmatprep.subr.bf16.mxu0 %v239
    %340 = vmatpush1.bf16.msra.mxu0 %v238
    %341 = vmatprep.subr.bf16.mxu0 %v243
    %342 = vmatpush1.bf16.msra.mxu0 %v242
    %343 = vmatprep.subr.bf16.mxu0 %v247
    %344 = vmatpush1.bf16.msra.mxu0 %v246
    %345 = vmatprep.subr.bf16.mxu0 %v251
    %346 = vmatpush1.bf16.msra.mxu0 %v250
    %347 = vmatprep.subr.bf16.mxu0 %v255
    %348 = vmatpush1.bf16.msra.mxu0 %v254
    %349 = vmatprep.subr.bf16.mxu0 %v259
    %350 = vmatpush1.bf16.msra.mxu0 %v258
    %351 = vmatprep.subr.bf16.mxu0 0
    %352 = vmatpush1.bf16.msra.mxu0 0
    %353 = vmatprep.subr.bf16.mxu0 0
    %354 = vmatpush1.bf16.msra.mxu0 0
    %355 = vmatprep.subr.bf16.mxu0 0
    %356 = vmatpush1.bf16.msra.mxu0 0
    %357 = vmatprep.subr.bf16.mxu0 0
    %358 = vmatpush1.bf16.msra.mxu0 0
    %359 = vmatprep.subr.bf16.mxu0 0
    %360 = vmatpush1.bf16.msra.mxu0 0
    %361 = vmatprep.subr.bf16.mxu0 0
    %362 = vmatpush1.bf16.msra.mxu0 0
    %363 = vmatprep.subr.bf16.mxu0 0
    %364 = vmatpush1.bf16.msra.mxu0 0
    %365 = vmatprep.subr.bf16.mxu0 0
    %366 = vmatpush1.bf16.msra.mxu0 0
    %367 = vmatprep.mubr.bf16.mxu0 0
    %368 = vmatmul.mubr.bf16.gmra.mrb[0].mxu0 %v130
    %v369 = vpop.f32.mrb[0].mxu0
    %v370 = vadd.f32 %v117, %v369
    %v371 = vpop.f32.mrb[0].mxu0
    %v372 = vadd.f32 %v121, %v371
    %v373 = vpop.f32.mrb[0].mxu0
    %v374 = vadd.f32 %v117, %v373
    %v375 = vpop.f32.mrb[0].mxu0
    %v376 = vadd.f32 %v121, %v375
    %377 = vdwg.mxu0
    %v378 = vxor.u32 %v327, 2147483648
    %v379 = vxor.u32 %v370, 2147483648
    %v380 = vmul.f32 %v378, 1.442695
    %v381 = vpow.pop %v380
    %v382 = vmul.f32 %v379, 1.442695
    %v383 = vpow.pop %v382
    %v384 = vadd.f32 %v381, 1.0
    %v385 = vadd.f32 %v383, 1.0
    %v386 = vrcp.pop %v384
    %v387 = vmul.f32 1.0, %v386
    %v388 = vrcp.pop %v385
    %v389 = vmul.f32 1.0, %v388
    %v390 = vtanh.pop %v372
    %v391 = vmul.f32 %v387, %v390
    %v392 = vtanh.pop %v391
    %v393 = vmul.f32 %v389, %v392
    %v394 = vpack.c.bf16 %v393, %v393
    %v427 = vunpack.c.l.b16 %v40
    %v428 = vunpack.c.h.b16 %v40
    %v429 = vunpack.c.l.b16 %v41
    %v430 = vunpack.c.h.b16 %v41
    %v431 = vunpack.c.l.b16 %v42
    %v432 = vunpack.c.h.b16 %v42
    %v433 = vunpack.c.l.b16 %v43
    %v434 = vunpack.c.h.b16 %v43
    %v435 = vunpack.c.l.b16 %v44
    %v436 = vunpack.c.h.b16 %v44
    %v437 = vunpack.c.l.b16 %v45
    %v438 = vunpack.c.h.b16 %v45
    %v439 = vunpack.c.l.b16 %v46
    %v440 = vunpack.c.h.b16 %v46
    %v441 = vunpack.c.l.b16 %v47
    %v442 = vunpack.c.h.b16 %v47
    %v443 = vunpack.c.l.b16 %v48
    %v444 = vunpack.c.h.b16 %v48
    %v445 = vunpack.c.l.b16 %v49
    %v446 = vunpack.c.h.b16 %v49
    %v447 = vunpack.c.l.b16 %v50
    %v448 = vunpack.c.h.b16 %v50
    %v449 = vunpack.c.l.b16 %v51
    %v450 = vunpack.c.h.b16 %v51
    %v451 = vunpack.c.l.b16 %v52
    %v452 = vunpack.c.h.b16 %v52
    %v453 = vunpack.c.l.b16 %v53
    %v454 = vunpack.c.h.b16 %v53
    %v455 = vunpack.c.l.b16 %v54
    %v456 = vunpack.c.h.b16 %v54
    %v457 = vunpack.c.l.b16 %v55
    %v458 = vunpack.c.h.b16 %v55
    %v459 = vunpack.c.l.b16 %v56
    %v460 = vunpack.c.h.b16 %v56
    %v461 = vunpack.c.l.b16 %v57
    %v462 = vunpack.c.h.b16 %v57
    %v463 = vunpack.c.l.b16 %v58
    %v464 = vunpack.c.h.b16 %v58
    %v465 = vunpack.c.l.b16 %v59
    %v466 = vunpack.c.h.b16 %v59
    %v467 = vunpack.c.l.b16 %v60
    %v468 = vunpack.c.h.b16 %v60
    %v469 = vunpack.c.l.b16 %v61
    %v470 = vunpack.c.h.b16 %v61
    %v471 = vunpack.c.l.b16 %v62
    %v472 = vunpack.c.h.b16 %v62
    %v473 = vunpack.c.l.b16 %v63
    %v474 = vunpack.c.h.b16 %v63
    %v475 = vunpack.c.l.b16 %v64
    %v476 = vunpack.c.h.b16 %v64
    %v477 = vunpack.c.l.b16 %v65
    %v478 = vunpack.c.h.b16 %v65
    %v479 = vunpack.c.l.b16 %v66
    %v480 = vunpack.c.h.b16 %v66
    %v481 = vunpack.c.l.b16 %v67
    %v482 = vunpack.c.h.b16 %v67
    %v483 = vunpack.c.l.b16 %v68
    %v484 = vunpack.c.h.b16 %v68
    %v485 = vunpack.c.l.b16 %v69
    %v486 = vunpack.c.h.b16 %v69
    %v487 = vunpack.c.l.b16 %v70
    %v488 = vunpack.c.h.b16 %v70
    %v489 = vunpack.c.l.b16 %v71
    %v490 = vunpack.c.h.b16 %v71
    %v491 = vpack.c.b16 %v431, %v427
    %v492 = vpack.c.b16 %v432, %v428
    %v493 = vpack.c.b16 %v433, %v429
    %v494 = vpack.c.b16 %v434, %v430
    %v495 = vpack.c.b16 %v439, %v435
    %v496 = vpack.c.b16 %v440, %v436
    %v497 = vpack.c.b16 %v441, %v437
    %v498 = vpack.c.b16 %v442, %v438
    %v499 = vpack.c.b16 %v447, %v443
    %v500 = vpack.c.b16 %v448, %v444
    %v501 = vpack.c.b16 %v449, %v445
    %v502 = vpack.c.b16 %v450, %v446
    %v503 = vpack.c.b16 %v455, %v451
    %v504 = vpack.c.b16 %v456, %v452
    %v505 = vpack.c.b16 %v457, %v453
    %v506 = vpack.c.b16 %v458, %v454
    %v507 = vpack.c.b16 %v463, %v459
    %v508 = vpack.c.b16 %v464, %v460
    %v509 = vpack.c.b16 %v465, %v461
    %v510 = vpack.c.b16 %v466, %v462
    %v511 = vpack.c.b16 %v471, %v467
    %v512 = vpack.c.b16 %v472, %v468
    %v513 = vpack.c.b16 %v473, %v469
    %v514 = vpack.c.b16 %v474, %v470
    %v515 = vpack.c.b16 %v479, %v475
    %v516 = vpack.c.b16 %v480, %v476
    %v517 = vpack.c.b16 %v481, %v477
    %v518 = vpack.c.b16 %v482, %v478
    %v519 = vpack.c.b16 %v487, %v483
    %v520 = vpack.c.b16 %v488, %v484
    %v521 = vpack.c.b16 %v489, %v485
    %v522 = vpack.c.b16 %v490, %v486
    %555 = vmatprep.subr.bf16.mxu0 %v492
    %556 = vmatpush1.bf16.msra.mxu0 %v491
    %557 = vmatprep.subr.bf16.mxu0 %v496
    %558 = vmatpush1.bf16.msra.mxu0 %v495
    %559 = vmatprep.subr.bf16.mxu0 %v500
    %560 = vmatpush1.bf16.msra.mxu0 %v499
    %561 = vmatprep.subr.bf16.mxu0 %v504
    %562 = vmatpush1.bf16.msra.mxu0 %v503
    %563 = vmatprep.subr.bf16.mxu0 %v508
    %564 = vmatpush1.bf16.msra.mxu0 %v507
    %565 = vmatprep.subr.bf16.mxu0 %v512
    %566 = vmatpush1.bf16.msra.mxu0 %v511
    %567 = vmatprep.subr.bf16.mxu0 %v516
    %568 = vmatpush1.bf16.msra.mxu0 %v515
    %569 = vmatprep.subr.bf16.mxu0 %v520
    %570 = vmatpush1.bf16.msra.mxu0 %v519
    %571 = vmatprep.subr.bf16.mxu0 0
    %572 = vmatpush1.bf16.msra.mxu0 0
    %573 = vmatprep.subr.bf16.mxu0 0
    %574 = vmatpush1.bf16.msra.mxu0 0
    %575 = vmatprep.subr.bf16.mxu0 0
    %576 = vmatpush1.bf16.msra.mxu0 0
    %577 = vmatprep.subr.bf16.mxu0 0
    %578 = vmatpush1.bf16.msra.mxu0 0
    %579 = vmatprep.subr.bf16.mxu0 0
    %580 = vmatpush1.bf16.msra.mxu0 0
    %581 = vmatprep.subr.bf16.mxu0 0
    %582 = vmatpush1.bf16.msra.mxu0 0
    %583 = vmatprep.subr.bf16.mxu0 0
    %584 = vmatpush1.bf16.msra.mxu0 0
    %585 = vmatprep.subr.bf16.mxu0 0
    %586 = vmatpush1.bf16.msra.mxu0 0
    %587 = vmatprep.mubr.bf16.mxu0 0
    %588 = vmatmul.mubr.bf16.gmra.mrb[0].mxu0 %v394
    %v589 = vpop.f32.mrb[0].mxu0
    %v590 = vadd.f32 0.0, %v589
    %v591 = vpop.f32.mrb[0].mxu0
    %v592 = vadd.f32 0.0, %v591
    %v593 = vpop.f32.mrb[0].mxu0
    %v594 = vpop.f32.mrb[0].mxu0
    %595 = vdwg.mxu0
    %596 = vmatprep.subr.bf16.mxu0 %v494
    %597 = vmatpush1.bf16.msra.mxu0 %v493
    %598 = vmatprep.subr.bf16.mxu0 %v498
    %599 = vmatpush1.bf16.msra.mxu0 %v497
    %600 = vmatprep.subr.bf16.mxu0 %v502
    %601 = vmatpush1.bf16.msra.mxu0 %v501
    %602 = vmatprep.subr.bf16.mxu0 %v506
    %603 = vmatpush1.bf16.msra.mxu0 %v505
    %604 = vmatprep.subr.bf16.mxu0 %v510
    %605 = vmatpush1.bf16.msra.mxu0 %v509
    %606 = vmatprep.subr.bf16.mxu0 %v514
    %607 = vmatpush1.bf16.msra.mxu0 %v513
    %608 = vmatprep.subr.bf16.mxu0 %v518
    %609 = vmatpush1.bf16.msra.mxu0 %v517
    %610 = vmatprep.subr.bf16.mxu0 %v522
    %611 = vmatpush1.bf16.msra.mxu0 %v521
    %612 = vmatprep.subr.bf16.mxu0 0
    %613 = vmatpush1.bf16.msra.mxu0 0
    %614 = vmatprep.subr.bf16.mxu0 0
    %615 = vmatpush1.bf16.msra.mxu0 0
    %616 = vmatprep.subr.bf16.mxu0 0
    %617 = vmatpush1.bf16.msra.mxu0 0
    %618 = vmatprep.subr.bf16.mxu0 0
    %619 = vmatpush1.bf16.msra.mxu0 0
    %620 = vmatprep.subr.bf16.mxu0 0
    %621 = vmatpush1.bf16.msra.mxu0 0
    %622 = vmatprep.subr.bf16.mxu0 0
    %623 = vmatpush1.bf16.msra.mxu0 0
    %624 = vmatprep.subr.bf16.mxu0 0
    %625 = vmatpush1.bf16.msra.mxu0 0
    %626 = vmatprep.subr.bf16.mxu0 0
    %627 = vmatpush1.bf16.msra.mxu0 0
    %628 = vmatprep.mubr.bf16.mxu0 0
    %629 = vmatmul.mubr.bf16.gmra.mrb[0].mxu0 %v394
    %v630 = vpop.f32.mrb[0].mxu0
    %v631 = vadd.f32 0.0, %v630
    %v632 = vpop.f32.mrb[0].mxu0
    %v633 = vadd.f32 0.0, %v632
    %v634 = vpop.f32.mrb[0].mxu0
    %v635 = vpop.f32.mrb[0].mxu0
    %636 = vdwg.mxu0
    %v641 = vrot.slane %v590, 6
    %v642 = vrot.slane %v592, 6
    %v643 = vrot.slane %v631, 6
    %v644 = vrot.slane %v633, 6
    %v649 = vadd.f32 %v327, %v641
    %v650 = vadd.f32 %v329, %v642
    %v651 = vadd.f32 %v370, %v643
    %v652 = vadd.f32 %v372, %v644
    %v653 = vxor.u32 %v649, 2147483648
    %v654 = vxor.u32 %v650, 2147483648
    %v655 = vxor.u32 %v651, 2147483648
    %v656 = vmul.f32 %v653, 1.442695
    %v657 = vpow.pop %v656
    %v658 = vmul.f32 %v654, 1.442695
    %v659 = vpow.pop %v658
    %v660 = vmul.f32 %v655, 1.442695
    %v661 = vpow.pop %v660
    %v662 = vadd.f32 %v657, 1.0
    %v663 = vadd.f32 %v659, 1.0
    %v664 = vadd.f32 %v661, 1.0
    %v665 = vrcp.pop %v662
    %v666 = vmul.f32 1.0, %v665
    %v667 = vrcp.pop %v663
    %v668 = vmul.f32 1.0, %v667
    %v669 = vrcp.pop %v664
    %v670 = vmul.f32 1.0, %v669
    %v671 = vtanh.pop %v652
    %v673 = vrot.slane %v391, 6
    %v675 = vmul.f32 %v668, %v673
    %v676 = vmul.f32 %v666, %v671
    %v677 = vadd.f32 %v675, %v676
    %v678 = vtanh.pop %v677
    %v679 = vmul.f32 %v670, %v678
    %v680 = vpack.c.bf16 %v679, %v679
    %v682 = vrot.slane %v680, 1
    %684 = vmatprep.subr.bf16.mxu0 %v492
    %685 = vmatpush1.bf16.msra.mxu0 %v491
    %686 = vmatprep.subr.bf16.mxu0 %v496
    %687 = vmatpush1.bf16.msra.mxu0 %v495
    %688 = vmatprep.subr.bf16.mxu0 %v500
    %689 = vmatpush1.bf16.msra.mxu0 %v499
    %690 = vmatprep.subr.bf16.mxu0 %v504
    %691 = vmatpush1.bf16.msra.mxu0 %v503
    %692 = vmatprep.subr.bf16.mxu0 %v508
    %693 = vmatpush1.bf16.msra.mxu0 %v507
    %694 = vmatprep.subr.bf16.mxu0 %v512
    %695 = vmatpush1.bf16.msra.mxu0 %v511
    %696 = vmatprep.subr.bf16.mxu0 %v516
    %697 = vmatpush1.bf16.msra.mxu0 %v515
    %698 = vmatprep.subr.bf16.mxu0 %v520
    %699 = vmatpush1.bf16.msra.mxu0 %v519
    %700 = vmatprep.subr.bf16.mxu0 0
    %701 = vmatpush1.bf16.msra.mxu0 0
    %702 = vmatprep.subr.bf16.mxu0 0
    %703 = vmatpush1.bf16.msra.mxu0 0
    %704 = vmatprep.subr.bf16.mxu0 0
    %705 = vmatpush1.bf16.msra.mxu0 0
    %706 = vmatprep.subr.bf16.mxu0 0
    %707 = vmatpush1.bf16.msra.mxu0 0
    %708 = vmatprep.subr.bf16.mxu0 0
    %709 = vmatpush1.bf16.msra.mxu0 0
    %710 = vmatprep.subr.bf16.mxu0 0
    %711 = vmatpush1.bf16.msra.mxu0 0
    %712 = vmatprep.subr.bf16.mxu0 0
    %713 = vmatpush1.bf16.msra.mxu0 0
    %714 = vmatprep.subr.bf16.mxu0 0
    %715 = vmatpush1.bf16.msra.mxu0 0
    %716 = vmatprep.mubr.bf16.mxu0 0
    %717 = vmatmul.mubr.bf16.gmra.mrb[0].mxu0 %v682
    %v718 = vpop.f32.mrb[0].mxu0
    %v719 = vadd.f32 0.0, %v718
    %v720 = vpop.f32.mrb[0].mxu0
    %v721 = vadd.f32 0.0, %v720
    %v722 = vpop.f32.mrb[0].mxu0
    %v723 = vpop.f32.mrb[0].mxu0
    %724 = vdwg.mxu0
    %725 = vmatprep.subr.bf16.mxu0 %v494
    %726 = vmatpush1.bf16.msra.mxu0 %v493
    %727 = vmatprep.subr.bf16.mxu0 %v498
    %728 = vmatpush1.bf16.msra.mxu0 %v497
    %729 = vmatprep.subr.bf16.mxu0 %v502
    %730 = vmatpush1.bf16.msra.mxu0 %v501
    %731 = vmatprep.subr.bf16.mxu0 %v506
    %732 = vmatpush1.bf16.msra.mxu0 %v505
    %733 = vmatprep.subr.bf16.mxu0 %v510
    %734 = vmatpush1.bf16.msra.mxu0 %v509
    %735 = vmatprep.subr.bf16.mxu0 %v514
    %736 = vmatpush1.bf16.msra.mxu0 %v513
    %737 = vmatprep.subr.bf16.mxu0 %v518
    %738 = vmatpush1.bf16.msra.mxu0 %v517
    %739 = vmatprep.subr.bf16.mxu0 %v522
    %740 = vmatpush1.bf16.msra.mxu0 %v521
    %741 = vmatprep.subr.bf16.mxu0 0
    %742 = vmatpush1.bf16.msra.mxu0 0
    %743 = vmatprep.subr.bf16.mxu0 0
    %744 = vmatpush1.bf16.msra.mxu0 0
    %745 = vmatprep.subr.bf16.mxu0 0
    %746 = vmatpush1.bf16.msra.mxu0 0
    %747 = vmatprep.subr.bf16.mxu0 0
    %748 = vmatpush1.bf16.msra.mxu0 0
    %749 = vmatprep.subr.bf16.mxu0 0
    %750 = vmatpush1.bf16.msra.mxu0 0
    %751 = vmatprep.subr.bf16.mxu0 0
    %752 = vmatpush1.bf16.msra.mxu0 0
    %753 = vmatprep.subr.bf16.mxu0 0
    %754 = vmatpush1.bf16.msra.mxu0 0
    %755 = vmatprep.subr.bf16.mxu0 0
    %756 = vmatpush1.bf16.msra.mxu0 0
    %757 = vmatprep.mubr.bf16.mxu0 0
    %758 = vmatmul.mubr.bf16.gmra.mrb[0].mxu0 %v682
    %v759 = vpop.f32.mrb[0].mxu0
    %v760 = vadd.f32 0.0, %v759
    %v761 = vpop.f32.mrb[0].mxu0
    %v762 = vadd.f32 0.0, %v761
    %v763 = vpop.f32.mrb[0].mxu0
    %v764 = vpop.f32.mrb[0].mxu0
    %765 = vdwg.mxu0
    %v770 = vrot.slane %v719, 4
    %v771 = vrot.slane %v721, 4
    %v772 = vrot.slane %v760, 4
    %v773 = vrot.slane %v762, 4
    %v778 = vadd.f32 %v327, %v770
    %v779 = vadd.f32 %v329, %v771
    %v780 = vadd.f32 %v370, %v772
    %v781 = vadd.f32 %v372, %v773
    %v782 = vxor.u32 %v778, 2147483648
    %v783 = vxor.u32 %v779, 2147483648
    %v784 = vxor.u32 %v780, 2147483648
    %v785 = vmul.f32 %v782, 1.442695
    %v786 = vpow.pop %v785
    %v787 = vmul.f32 %v783, 1.442695
    %v788 = vpow.pop %v787
    %v789 = vmul.f32 %v784, 1.442695
    %v790 = vpow.pop %v789
    %v791 = vadd.f32 %v786, 1.0
    %v792 = vadd.f32 %v788, 1.0
    %v793 = vadd.f32 %v790, 1.0
    %v794 = vrcp.pop %v791
    %v795 = vmul.f32 1.0, %v794
    %v796 = vrcp.pop %v792
    %v797 = vmul.f32 1.0, %v796
    %v798 = vrcp.pop %v793
    %v799 = vmul.f32 1.0, %v798
    %v800 = vtanh.pop %v781
    %v802 = vrot.slane %v677, 6
    %v804 = vmul.f32 %v797, %v802
    %v805 = vmul.f32 %v795, %v800
    %v806 = vadd.f32 %v804, %v805
    %v807 = vtanh.pop %v806
    %v808 = vmul.f32 %v799, %v807
    %v809 = vpack.c.bf16 %v808, %v808
    %v811 = vrot.slane %v809, 2
    %813 = vmatprep.subr.bf16.mxu0 %v492
    %814 = vmatpush1.bf16.msra.mxu0 %v491
    %815 = vmatprep.subr.bf16.mxu0 %v496
    %816 = vmatpush1.bf16.msra.mxu0 %v495
    %817 = vmatprep.subr.bf16.mxu0 %v500
    %818 = vmatpush1.bf16.msra.mxu0 %v499
    %819 = vmatprep.subr.bf16.mxu0 %v504
    %820 = vmatpush1.bf16.msra.mxu0 %v503
    %821 = vmatprep.subr.bf16.mxu0 %v508
    %822 = vmatpush1.bf16.msra.mxu0 %v507
    %823 = vmatprep.subr.bf16.mxu0 %v512
    %824 = vmatpush1.bf16.msra.mxu0 %v511
    %825 = vmatprep.subr.bf16.mxu0 %v516
    %826 = vmatpush1.bf16.msra.mxu0 %v515
    %827 = vmatprep.subr.bf16.mxu0 %v520
    %828 = vmatpush1.bf16.msra.mxu0 %v519
    %829 = vmatprep.subr.bf16.mxu0 0
    %830 = vmatpush1.bf16.msra.mxu0 0
    %831 = vmatprep.subr.bf16.mxu0 0
    %832 = vmatpush1.bf16.msra.mxu0 0
    %833 = vmatprep.subr.bf16.mxu0 0
    %834 = vmatpush1.bf16.msra.mxu0 0
    %835 = vmatprep.subr.bf16.mxu0 0
    %836 = vmatpush1.bf16.msra.mxu0 0
    %837 = vmatprep.subr.bf16.mxu0 0
    %838 = vmatpush1.bf16.msra.mxu0 0
    %839 = vmatprep.subr.bf16.mxu0 0
    %840 = vmatpush1.bf16.msra.mxu0 0
    %841 = vmatprep.subr.bf16.mxu0 0
    %842 = vmatpush1.bf16.msra.mxu0 0
    %843 = vmatprep.subr.bf16.mxu0 0
    %844 = vmatpush1.bf16.msra.mxu0 0
    %845 = vmatprep.mubr.bf16.mxu0 0
    %846 = vmatmul.mubr.bf16.gmra.mrb[0].mxu0 %v811
    %v847 = vpop.f32.mrb[0].mxu0
    %v848 = vadd.f32 0.0, %v847
    %v849 = vpop.f32.mrb[0].mxu0
    %v850 = vadd.f32 0.0, %v849
    %v851 = vpop.f32.mrb[0].mxu0
    %v852 = vpop.f32.mrb[0].mxu0
    %853 = vdwg.mxu0
    %854 = vmatprep.subr.bf16.mxu0 %v494
    %855 = vmatpush1.bf16.msra.mxu0 %v493
    %856 = vmatprep.subr.bf16.mxu0 %v498
    %857 = vmatpush1.bf16.msra.mxu0 %v497
    %858 = vmatprep.subr.bf16.mxu0 %v502
    %859 = vmatpush1.bf16.msra.mxu0 %v501
    %860 = vmatprep.subr.bf16.mxu0 %v506
    %861 = vmatpush1.bf16.msra.mxu0 %v505
    %862 = vmatprep.subr.bf16.mxu0 %v510
    %863 = vmatpush1.bf16.msra.mxu0 %v509
    %864 = vmatprep.subr.bf16.mxu0 %v514
    %865 = vmatpush1.bf16.msra.mxu0 %v513
    %866 = vmatprep.subr.bf16.mxu0 %v518
    %867 = vmatpush1.bf16.msra.mxu0 %v517
    %868 = vmatprep.subr.bf16.mxu0 %v522
    %869 = vmatpush1.bf16.msra.mxu0 %v521
    %870 = vmatprep.subr.bf16.mxu0 0
    %871 = vmatpush1.bf16.msra.mxu0 0
    %872 = vmatprep.subr.bf16.mxu0 0
    %873 = vmatpush1.bf16.msra.mxu0 0
    %874 = vmatprep.subr.bf16.mxu0 0
    %875 = vmatpush1.bf16.msra.mxu0 0
    %876 = vmatprep.subr.bf16.mxu0 0
    %877 = vmatpush1.bf16.msra.mxu0 0
    %878 = vmatprep.subr.bf16.mxu0 0
    %879 = vmatpush1.bf16.msra.mxu0 0
    %880 = vmatprep.subr.bf16.mxu0 0
    %881 = vmatpush1.bf16.msra.mxu0 0
    %882 = vmatprep.subr.bf16.mxu0 0
    %883 = vmatpush1.bf16.msra.mxu0 0
    %884 = vmatprep.subr.bf16.mxu0 0
    %885 = vmatpush1.bf16.msra.mxu0 0
    %886 = vmatprep.mubr.bf16.mxu0 0
    %887 = vmatmul.mubr.bf16.gmra.mrb[0].mxu0 %v811
    %v888 = vpop.f32.mrb[0].mxu0
    %v889 = vadd.f32 0.0, %v888
    %v890 = vpop.f32.mrb[0].mxu0
    %v891 = vadd.f32 0.0, %v890
    %v892 = vpop.f32.mrb[0].mxu0
    %v893 = vpop.f32.mrb[0].mxu0
    %894 = vdwg.mxu0
    %v899 = vrot.slane %v848, 2
    %v900 = vrot.slane %v850, 2
    %v901 = vrot.slane %v889, 2
    %v902 = vrot.slane %v891, 2
    %v907 = vadd.f32 %v327, %v899
    %v908 = vadd.f32 %v329, %v900
    %v909 = vadd.f32 %v370, %v901
    %v910 = vadd.f32 %v372, %v902
    %v911 = vxor.u32 %v907, 2147483648
    %v912 = vxor.u32 %v908, 2147483648
    %v913 = vxor.u32 %v909, 2147483648
    %v914 = vmul.f32 %v911, 1.442695
    %v915 = vpow.pop %v914
    %v916 = vmul.f32 %v912, 1.442695
    %v917 = vpow.pop %v916
    %v918 = vmul.f32 %v913, 1.442695
    %v919 = vpow.pop %v918
    %v920 = vadd.f32 %v915, 1.0
    %v921 = vadd.f32 %v917, 1.0
    %v922 = vadd.f32 %v919, 1.0
    %v923 = vrcp.pop %v920
    %v924 = vmul.f32 1.0, %v923
    %v925 = vrcp.pop %v921
    %v926 = vmul.f32 1.0, %v925
    %v927 = vrcp.pop %v922
    %v928 = vmul.f32 1.0, %v927
    %v929 = vtanh.pop %v910
    %v931 = vrot.slane %v806, 6
    %v933 = vmul.f32 %v926, %v931
    %v934 = vmul.f32 %v924, %v929
    %v935 = vadd.f32 %v933, %v934
    %v936 = vtanh.pop %v935
    %v937 = vmul.f32 %v928, %v936
    %v938 = vpack.c.bf16 %v937, %v937
    %v940 = vrot.slane %v938, 3
    %942 = vmatprep.subr.bf16.mxu0 %v492
    %943 = vmatpush1.bf16.msra.mxu0 %v491
    %944 = vmatprep.subr.bf16.mxu0 %v496
    %945 = vmatpush1.bf16.msra.mxu0 %v495
    %946 = vmatprep.subr.bf16.mxu0 %v500
    %947 = vmatpush1.bf16.msra.mxu0 %v499
    %948 = vmatprep.subr.bf16.mxu0 %v504
    %949 = vmatpush1.bf16.msra.mxu0 %v503
    %950 = vmatprep.subr.bf16.mxu0 %v508
    %951 = vmatpush1.bf16.msra.mxu0 %v507
    %952 = vmatprep.subr.bf16.mxu0 %v512
    %953 = vmatpush1.bf16.msra.mxu0 %v511
    %954 = vmatprep.subr.bf16.mxu0 %v516
    %955 = vmatpush1.bf16.msra.mxu0 %v515
    %956 = vmatprep.subr.bf16.mxu0 %v520
    %957 = vmatpush1.bf16.msra.mxu0 %v519
    %958 = vmatprep.subr.bf16.mxu0 0
    %959 = vmatpush1.bf16.msra.mxu0 0
    %960 = vmatprep.subr.bf16.mxu0 0
    %961 = vmatpush1.bf16.msra.mxu0 0
    %962 = vmatprep.subr.bf16.mxu0 0
    %963 = vmatpush1.bf16.msra.mxu0 0
    %964 = vmatprep.subr.bf16.mxu0 0
    %965 = vmatpush1.bf16.msra.mxu0 0
    %966 = vmatprep.subr.bf16.mxu0 0
    %967 = vmatpush1.bf16.msra.mxu0 0
    %968 = vmatprep.subr.bf16.mxu0 0
    %969 = vmatpush1.bf16.msra.mxu0 0
    %970 = vmatprep.subr.bf16.mxu0 0
    %971 = vmatpush1.bf16.msra.mxu0 0
    %972 = vmatprep.subr.bf16.mxu0 0
    %973 = vmatpush1.bf16.msra.mxu0 0
    %974 = vmatprep.mubr.bf16.mxu0 0
    %975 = vmatmul.mubr.bf16.gmra.mrb[0].mxu0 %v940
    %v976 = vpop.f32.mrb[0].mxu0
    %v977 = vadd.f32 0.0, %v976
    %v978 = vpop.f32.mrb[0].mxu0
    %v979 = vadd.f32 0.0, %v978
    %v980 = vpop.f32.mrb[0].mxu0
    %v981 = vpop.f32.mrb[0].mxu0
    %982 = vdwg.mxu0
    %983 = vmatprep.subr.bf16.mxu0 %v494
    %984 = vmatpush1.bf16.msra.mxu0 %v493
    %985 = vmatprep.subr.bf16.mxu0 %v498
    %986 = vmatpush1.bf16.msra.mxu0 %v497
    %987 = vmatprep.subr.bf16.mxu0 %v502
    %988 = vmatpush1.bf16.msra.mxu0 %v501
    %989 = vmatprep.subr.bf16.mxu0 %v506
    %990 = vmatpush1.bf16.msra.mxu0 %v505
    %991 = vmatprep.subr.bf16.mxu0 %v510
    %992 = vmatpush1.bf16.msra.mxu0 %v509
    %993 = vmatprep.subr.bf16.mxu0 %v514
    %994 = vmatpush1.bf16.msra.mxu0 %v513
    %995 = vmatprep.subr.bf16.mxu0 %v518
    %996 = vmatpush1.bf16.msra.mxu0 %v517
    %997 = vmatprep.subr.bf16.mxu0 %v522
    %998 = vmatpush1.bf16.msra.mxu0 %v521
    %999 = vmatprep.subr.bf16.mxu0 0
    %1000 = vmatpush1.bf16.msra.mxu0 0
    %1001 = vmatprep.subr.bf16.mxu0 0
    %1002 = vmatpush1.bf16.msra.mxu0 0
    %1003 = vmatprep.subr.bf16.mxu0 0
    %1004 = vmatpush1.bf16.msra.mxu0 0
    %1005 = vmatprep.subr.bf16.mxu0 0
    %1006 = vmatpush1.bf16.msra.mxu0 0
    %1007 = vmatprep.subr.bf16.mxu0 0
    %1008 = vmatpush1.bf16.msra.mxu0 0
    %1009 = vmatprep.subr.bf16.mxu0 0
    %1010 = vmatpush1.bf16.msra.mxu0 0
    %1011 = vmatprep.subr.bf16.mxu0 0
    %1012 = vmatpush1.bf16.msra.mxu0 0
    %1013 = vmatprep.subr.bf16.mxu0 0
    %1014 = vmatpush1.bf16.msra.mxu0 0
    %1015 = vmatprep.mubr.bf16.mxu0 0
    %1016 = vmatmul.mubr.bf16.gmra.mrb[0].mxu0 %v940
    %v1017 = vpop.f32.mrb[0].mxu0
    %v1018 = vadd.f32 0.0, %v1017
    %v1019 = vpop.f32.mrb[0].mxu0
    %v1020 = vadd.f32 0.0, %v1019
    %v1021 = vpop.f32.mrb[0].mxu0
    %v1022 = vpop.f32.mrb[0].mxu0
    %1023 = vdwg.mxu0
    %v1024 = vadd.f32 %v331, %v977
    %v1025 = vadd.f32 %v333, %v979
    %v1026 = vadd.f32 %v374, %v1018
    %v1027 = vadd.f32 %v376, %v1020
    %v1028 = vxor.u32 %v1024, 2147483648
    %v1029 = vxor.u32 %v1025, 2147483648
    %v1030 = vxor.u32 %v1026, 2147483648
    %v1031 = vmul.f32 %v1028, 1.442695
    %v1032 = vpow.pop %v1031
    %v1033 = vmul.f32 %v1029, 1.442695
    %v1034 = vpow.pop %v1033
    %v1035 = vmul.f32 %v1030, 1.442695
    %v1036 = vpow.pop %v1035
    %v1037 = vadd.f32 %v1032, 1.0
    %v1038 = vadd.f32 %v1034, 1.0
    %v1039 = vadd.f32 %v1036, 1.0
    %v1040 = vrcp.pop %v1037
    %v1041 = vmul.f32 1.0, %v1040
    %v1042 = vrcp.pop %v1038
    %v1043 = vmul.f32 1.0, %v1042
    %v1044 = vrcp.pop %v1039
    %v1045 = vmul.f32 1.0, %v1044
    %v1046 = vtanh.pop %v1027
    %v1048 = vrot.slane %v935, 6
    %v1050 = vmul.f32 %v1043, %v1048
    %v1051 = vmul.f32 %v1041, %v1046
    %v1052 = vadd.f32 %v1050, %v1051
    %v1053 = vtanh.pop %v1052
    %v1054 = vmul.f32 %v1045, %v1053
    %v1055 = vpack.c.bf16 %v1054, %v1054
    %1056 = vmatprep.subr.bf16.mxu0 %v492
    %1057 = vmatpush1.bf16.msra.mxu0 %v491
    %1058 = vmatprep.subr.bf16.mxu0 %v496
    %1059 = vmatpush1.bf16.msra.mxu0 %v495
    %1060 = vmatprep.subr.bf16.mxu0 %v500
    %1061 = vmatpush1.bf16.msra.mxu0 %v499
    %1062 = vmatprep.subr.bf16.mxu0 %v504
    %1063 = vmatpush1.bf16.msra.mxu0 %v503
    %1064 = vmatprep.subr.bf16.mxu0 %v508
    %1065 = vmatpush1.bf16.msra.mxu0 %v507
    %1066 = vmatprep.subr.bf16.mxu0 %v512
    %1067 = vmatpush1.bf16.msra.mxu0 %v511
    %1068 = vmatprep.subr.bf16.mxu0 %v516
    %1069 = vmatpush1.bf16.msra.mxu0 %v515
    %1070 = vmatprep.subr.bf16.mxu0 %v520
    %1071 = vmatpush1.bf16.msra.mxu0 %v519
    %1072 = vmatprep.subr.bf16.mxu0 0
    %1073 = vmatpush1.bf16.msra.mxu0 0
    %1074 = vmatprep.subr.bf16.mxu0 0
    %1075 = vmatpush1.bf16.msra.mxu0 0
    %1076 = vmatprep.subr.bf16.mxu0 0
    %1077 = vmatpush1.bf16.msra.mxu0 0
    %1078 = vmatprep.subr.bf16.mxu0 0
    %1079 = vmatpush1.bf16.msra.mxu0 0
    %1080 = vmatprep.subr.bf16.mxu0 0
    %1081 = vmatpush1.bf16.msra.mxu0 0
    %1082 = vmatprep.subr.bf16.mxu0 0
    %1083 = vmatpush1.bf16.msra.mxu0 0
    %1084 = vmatprep.subr.bf16.mxu0 0
    %1085 = vmatpush1.bf16.msra.mxu0 0
    %1086 = vmatprep.subr.bf16.mxu0 0
    %1087 = vmatpush1.bf16.msra.mxu0 0
    %1088 = vmatprep.mubr.bf16.mxu0 0
    %1089 = vmatmul.mubr.bf16.gmra.mrb[0].mxu0 %v1055
    %v1090 = vpop.f32.mrb[0].mxu0
    %v1091 = vadd.f32 0.0, %v1090
    %v1092 = vpop.f32.mrb[0].mxu0
    %v1093 = vadd.f32 0.0, %v1092
    %v1094 = vpop.f32.mrb[0].mxu0
    %v1095 = vpop.f32.mrb[0].mxu0
    %1096 = vdwg.mxu0
    %1097 = vmatprep.subr.bf16.mxu0 %v494
    %1098 = vmatpush1.bf16.msra.mxu0 %v493
    %1099 = vmatprep.subr.bf16.mxu0 %v498
    %1100 = vmatpush1.bf16.msra.mxu0 %v497
    %1101 = vmatprep.subr.bf16.mxu0 %v502
    %1102 = vmatpush1.bf16.msra.mxu0 %v501
    %1103 = vmatprep.subr.bf16.mxu0 %v506
    %1104 = vmatpush1.bf16.msra.mxu0 %v505
    %1105 = vmatprep.subr.bf16.mxu0 %v510
    %1106 = vmatpush1.bf16.msra.mxu0 %v509
    %1107 = vmatprep.subr.bf16.mxu0 %v514
    %1108 = vmatpush1.bf16.msra.mxu0 %v513
    %1109 = vmatprep.subr.bf16.mxu0 %v518
    %1110 = vmatpush1.bf16.msra.mxu0 %v517
    %1111 = vmatprep.subr.bf16.mxu0 %v522
    %1112 = vmatpush1.bf16.msra.mxu0 %v521
    %1113 = vmatprep.subr.bf16.mxu0 0
    %1114 = vmatpush1.bf16.msra.mxu0 0
    %1115 = vmatprep.subr.bf16.mxu0 0
    %1116 = vmatpush1.bf16.msra.mxu0 0
    %1117 = vmatprep.subr.bf16.mxu0 0
    %1118 = vmatpush1.bf16.msra.mxu0 0
    %1119 = vmatprep.subr.bf16.mxu0 0
    %1120 = vmatpush1.bf16.msra.mxu0 0
    %1121 = vmatprep.subr.bf16.mxu0 0
    %1122 = vmatpush1.bf16.msra.mxu0 0
    %1123 = vmatprep.subr.bf16.mxu0 0
    %1124 = vmatpush1.bf16.msra.mxu0 0
    %1125 = vmatprep.subr.bf16.mxu0 0
    %1126 = vmatpush1.bf16.msra.mxu0 0
    %1127 = vmatprep.subr.bf16.mxu0 0
    %1128 = vmatpush1.bf16.msra.mxu0 0
    %1129 = vmatprep.mubr.bf16.mxu0 0
    %1130 = vmatmul.mubr.bf16.gmra.mrb[0].mxu0 %v1055
    %v1131 = vpop.f32.mrb[0].mxu0
    %v1132 = vadd.f32 0.0, %v1131
    %v1133 = vpop.f32.mrb[0].mxu0
    %v1134 = vadd.f32 0.0, %v1133
    %v1135 = vpop.f32.mrb[0].mxu0
    %v1136 = vpop.f32.mrb[0].mxu0
    %1137 = vdwg.mxu0
    %v1142 = vrot.slane %v1091, 6
    %v1143 = vrot.slane %v1093, 6
    %v1144 = vrot.slane %v1132, 6
    %v1145 = vrot.slane %v1134, 6
    %v1150 = vadd.f32 %v331, %v1142
    %v1151 = vadd.f32 %v333, %v1143
    %v1152 = vadd.f32 %v374, %v1144
    %v1153 = vadd.f32 %v376, %v1145
    %v1154 = vxor.u32 %v1150, 2147483648
    %v1155 = vxor.u32 %v1151, 2147483648
    %v1156 = vxor.u32 %v1152, 2147483648
    %v1157 = vmul.f32 %v1154, 1.442695
    %v1158 = vpow.pop %v1157
    %v1159 = vmul.f32 %v1155, 1.442695
    %v1160 = vpow.pop %v1159
    %v1161 = vmul.f32 %v1156, 1.442695
    %v1162 = vpow.pop %v1161
    %v1163 = vadd.f32 %v1158, 1.0
    %v1164 = vadd.f32 %v1160, 1.0
    %v1165 = vadd.f32 %v1162, 1.0
    %v1166 = vrcp.pop %v1163
    %v1167 = vmul.f32 1.0, %v1166
    %v1168 = vrcp.pop %v1164
    %v1169 = vmul.f32 1.0, %v1168
    %v1170 = vrcp.pop %v1165
    %v1171 = vmul.f32 1.0, %v1170
    %v1172 = vtanh.pop %v1153
    %v1174 = vrot.slane %v1052, 6
    %v1176 = vmul.f32 %v1169, %v1174
    %v1177 = vmul.f32 %v1167, %v1172
    %v1178 = vadd.f32 %v1176, %v1177
    %v1179 = vtanh.pop %v1178
    %v1180 = vmul.f32 %v1171, %v1179
    %v1181 = vpack.c.bf16 %v1180, %v1180
    %v1183 = vrot.slane %v1181, 1
    %1185 = vmatprep.subr.bf16.mxu0 %v492
    %1186 = vmatpush1.bf16.msra.mxu0 %v491
    %1187 = vmatprep.subr.bf16.mxu0 %v496
    %1188 = vmatpush1.bf16.msra.mxu0 %v495
    %1189 = vmatprep.subr.bf16.mxu0 %v500
    %1190 = vmatpush1.bf16.msra.mxu0 %v499
    %1191 = vmatprep.subr.bf16.mxu0 %v504
    %1192 = vmatpush1.bf16.msra.mxu0 %v503
    %1193 = vmatprep.subr.bf16.mxu0 %v508
    %1194 = vmatpush1.bf16.msra.mxu0 %v507
    %1195 = vmatprep.subr.bf16.mxu0 %v512
    %1196 = vmatpush1.bf16.msra.mxu0 %v511
    %1197 = vmatprep.subr.bf16.mxu0 %v516
    %1198 = vmatpush1.bf16.msra.mxu0 %v515
    %1199 = vmatprep.subr.bf16.mxu0 %v520
    %1200 = vmatpush1.bf16.msra.mxu0 %v519
    %1201 = vmatprep.subr.bf16.mxu0 0
    %1202 = vmatpush1.bf16.msra.mxu0 0
    %1203 = vmatprep.subr.bf16.mxu0 0
    %1204 = vmatpush1.bf16.msra.mxu0 0
    %1205 = vmatprep.subr.bf16.mxu0 0
    %1206 = vmatpush1.bf16.msra.mxu0 0
    %1207 = vmatprep.subr.bf16.mxu0 0
    %1208 = vmatpush1.bf16.msra.mxu0 0
    %1209 = vmatprep.subr.bf16.mxu0 0
    %1210 = vmatpush1.bf16.msra.mxu0 0
    %1211 = vmatprep.subr.bf16.mxu0 0
    %1212 = vmatpush1.bf16.msra.mxu0 0
    %1213 = vmatprep.subr.bf16.mxu0 0
    %1214 = vmatpush1.bf16.msra.mxu0 0
    %1215 = vmatprep.subr.bf16.mxu0 0
    %1216 = vmatpush1.bf16.msra.mxu0 0
    %1217 = vmatprep.mubr.bf16.mxu0 0
    %1218 = vmatmul.mubr.bf16.gmra.mrb[0].mxu0 %v1183
    %v1219 = vpop.f32.mrb[0].mxu0
    %v1220 = vadd.f32 0.0, %v1219
    %v1221 = vpop.f32.mrb[0].mxu0
    %v1222 = vadd.f32 0.0, %v1221
    %v1223 = vpop.f32.mrb[0].mxu0
    %v1224 = vpop.f32.mrb[0].mxu0
    %1225 = vdwg.mxu0
    %1226 = vmatprep.subr.bf16.mxu0 %v494
    %1227 = vmatpush1.bf16.msra.mxu0 %v493
    %1228 = vmatprep.subr.bf16.mxu0 %v498
    %1229 = vmatpush1.bf16.msra.mxu0 %v497
    %1230 = vmatprep.subr.bf16.mxu0 %v502
    %1231 = vmatpush1.bf16.msra.mxu0 %v501
    %1232 = vmatprep.subr.bf16.mxu0 %v506
    %1233 = vmatpush1.bf16.msra.mxu0 %v505
    %1234 = vmatprep.subr.bf16.mxu0 %v510
    %1235 = vmatpush1.bf16.msra.mxu0 %v509
    %1236 = vmatprep.subr.bf16.mxu0 %v514
    %1237 = vmatpush1.bf16.msra.mxu0 %v513
    %1238 = vmatprep.subr.bf16.mxu0 %v518
    %1239 = vmatpush1.bf16.msra.mxu0 %v517
    %1240 = vmatprep.subr.bf16.mxu0 %v522
    %1241 = vmatpush1.bf16.msra.mxu0 %v521
    %1242 = vmatprep.subr.bf16.mxu0 0
    %1243 = vmatpush1.bf16.msra.mxu0 0
    %1244 = vmatprep.subr.bf16.mxu0 0
    %1245 = vmatpush1.bf16.msra.mxu0 0
    %1246 = vmatprep.subr.bf16.mxu0 0
    %1247 = vmatpush1.bf16.msra.mxu0 0
    %1248 = vmatprep.subr.bf16.mxu0 0
    %1249 = vmatpush1.bf16.msra.mxu0 0
    %1250 = vmatprep.subr.bf16.mxu0 0
    %1251 = vmatpush1.bf16.msra.mxu0 0
    %1252 = vmatprep.subr.bf16.mxu0 0
    %1253 = vmatpush1.bf16.msra.mxu0 0
    %1254 = vmatprep.subr.bf16.mxu0 0
    %1255 = vmatpush1.bf16.msra.mxu0 0
    %1256 = vmatprep.subr.bf16.mxu0 0
    %1257 = vmatpush1.bf16.msra.mxu0 0
    %1258 = vmatprep.mubr.bf16.mxu0 0
    %1259 = vmatmul.mubr.bf16.gmra.mrb[0].mxu0 %v1183
    %v1260 = vpop.f32.mrb[0].mxu0
    %v1261 = vadd.f32 0.0, %v1260
    %v1262 = vpop.f32.mrb[0].mxu0
    %v1263 = vadd.f32 0.0, %v1262
    %v1264 = vpop.f32.mrb[0].mxu0
    %v1265 = vpop.f32.mrb[0].mxu0
    %1266 = vdwg.mxu0
    %v1271 = vrot.slane %v1220, 4
    %v1272 = vrot.slane %v1222, 4
    %v1273 = vrot.slane %v1261, 4
    %v1274 = vrot.slane %v1263, 4
    %v1279 = vadd.f32 %v331, %v1271
    %v1280 = vadd.f32 %v333, %v1272
    %v1281 = vadd.f32 %v374, %v1273
    %v1282 = vadd.f32 %v376, %v1274
    %v1283 = vxor.u32 %v1279, 2147483648
    %v1284 = vxor.u32 %v1280, 2147483648
    %v1285 = vxor.u32 %v1281, 2147483648
    %v1286 = vmul.f32 %v1283, 1.442695
    %v1287 = vpow.pop %v1286
    %v1288 = vmul.f32 %v1284, 1.442695
    %v1289 = vpow.pop %v1288
    %v1290 = vmul.f32 %v1285, 1.442695
    %v1291 = vpow.pop %v1290
    %v1292 = vadd.f32 %v1287, 1.0
    %v1293 = vadd.f32 %v1289, 1.0
    %v1294 = vadd.f32 %v1291, 1.0
    %v1295 = vrcp.pop %v1292
    %v1296 = vmul.f32 1.0, %v1295
    %v1297 = vrcp.pop %v1293
    %v1298 = vmul.f32 1.0, %v1297
    %v1299 = vrcp.pop %v1294
    %v1300 = vmul.f32 1.0, %v1299
    %v1301 = vtanh.pop %v1282
    %v1303 = vrot.slane %v1178, 6
    %v1305 = vmul.f32 %v1298, %v1303
    %v1306 = vmul.f32 %v1296, %v1301
    %v1307 = vadd.f32 %v1305, %v1306
    %v1308 = vtanh.pop %v1307
    %v1309 = vmul.f32 %v1300, %v1308
    %v1310 = vpack.c.bf16 %v1309, %v1309
    %v1312 = vrot.slane %v1310, 2
    %1314 = vmatprep.subr.bf16.mxu0 %v492
    %1315 = vmatpush1.bf16.msra.mxu0 %v491
    %1316 = vmatprep.subr.bf16.mxu0 %v496
    %1317 = vmatpush1.bf16.msra.mxu0 %v495
    %1318 = vmatprep.subr.bf16.mxu0 %v500
    %1319 = vmatpush1.bf16.msra.mxu0 %v499
    %1320 = vmatprep.subr.bf16.mxu0 %v504
    %1321 = vmatpush1.bf16.msra.mxu0 %v503
    %1322 = vmatprep.subr.bf16.mxu0 %v508
    %1323 = vmatpush1.bf16.msra.mxu0 %v507
    %1324 = vmatprep.subr.bf16.mxu0 %v512
    %1325 = vmatpush1.bf16.msra.mxu0 %v511
    %1326 = vmatprep.subr.bf16.mxu0 %v516
    %1327 = vmatpush1.bf16.msra.mxu0 %v515
    %1328 = vmatprep.subr.bf16.mxu0 %v520
    %1329 = vmatpush1.bf16.msra.mxu0 %v519
    %1330 = vmatprep.subr.bf16.mxu0 0
    %1331 = vmatpush1.bf16.msra.mxu0 0
    %1332 = vmatprep.subr.bf16.mxu0 0
    %1333 = vmatpush1.bf16.msra.mxu0 0
    %1334 = vmatprep.subr.bf16.mxu0 0
    %1335 = vmatpush1.bf16.msra.mxu0 0
    %1336 = vmatprep.subr.bf16.mxu0 0
    %1337 = vmatpush1.bf16.msra.mxu0 0
    %1338 = vmatprep.subr.bf16.mxu0 0
    %1339 = vmatpush1.bf16.msra.mxu0 0
    %1340 = vmatprep.subr.bf16.mxu0 0
    %1341 = vmatpush1.bf16.msra.mxu0 0
    %1342 = vmatprep.subr.bf16.mxu0 0
    %1343 = vmatpush1.bf16.msra.mxu0 0
    %1344 = vmatprep.subr.bf16.mxu0 0
    %1345 = vmatpush1.bf16.msra.mxu0 0
    %1346 = vmatprep.mubr.bf16.mxu0 0
    %1347 = vmatmul.mubr.bf16.gmra.mrb[0].mxu0 %v1312
    %v1348 = vpop.f32.mrb[0].mxu0
    %v1349 = vadd.f32 0.0, %v1348
    %v1350 = vpop.f32.mrb[0].mxu0
    %v1351 = vadd.f32 0.0, %v1350
    %v1352 = vpop.f32.mrb[0].mxu0
    %v1353 = vpop.f32.mrb[0].mxu0
    %1354 = vdwg.mxu0
    %1355 = vmatprep.subr.bf16.mxu0 %v494
    %1356 = vmatpush1.bf16.msra.mxu0 %v493
    %1357 = vmatprep.subr.bf16.mxu0 %v498
    %1358 = vmatpush1.bf16.msra.mxu0 %v497
    %1359 = vmatprep.subr.bf16.mxu0 %v502
    %1360 = vmatpush1.bf16.msra.mxu0 %v501
    %1361 = vmatprep.subr.bf16.mxu0 %v506
    %1362 = vmatpush1.bf16.msra.mxu0 %v505
    %1363 = vmatprep.subr.bf16.mxu0 %v510
    %1364 = vmatpush1.bf16.msra.mxu0 %v509
    %1365 = vmatprep.subr.bf16.mxu0 %v514
    %1366 = vmatpush1.bf16.msra.mxu0 %v513
    %1367 = vmatprep.subr.bf16.mxu0 %v518
    %1368 = vmatpush1.bf16.msra.mxu0 %v517
    %1369 = vmatprep.subr.bf16.mxu0 %v522
    %1370 = vmatpush1.bf16.msra.mxu0 %v521
    %1371 = vmatprep.subr.bf16.mxu0 0
    %1372 = vmatpush1.bf16.msra.mxu0 0
    %1373 = vmatprep.subr.bf16.mxu0 0
    %1374 = vmatpush1.bf16.msra.mxu0 0
    %1375 = vmatprep.subr.bf16.mxu0 0
    %1376 = vmatpush1.bf16.msra.mxu0 0
    %1377 = vmatprep.subr.bf16.mxu0 0
    %1378 = vmatpush1.bf16.msra.mxu0 0
    %1379 = vmatprep.subr.bf16.mxu0 0
    %1380 = vmatpush1.bf16.msra.mxu0 0
    %1381 = vmatprep.subr.bf16.mxu0 0
    %1382 = vmatpush1.bf16.msra.mxu0 0
    %1383 = vmatprep.subr.bf16.mxu0 0
    %1384 = vmatpush1.bf16.msra.mxu0 0
    %1385 = vmatprep.subr.bf16.mxu0 0
    %1386 = vmatpush1.bf16.msra.mxu0 0
    %1387 = vmatprep.mubr.bf16.mxu0 0
    %1388 = vmatmul.mubr.bf16.gmra.mrb[0].mxu0 %v1312
    %v1389 = vpop.f32.mrb[0].mxu0
    %v1390 = vadd.f32 0.0, %v1389
    %v1391 = vpop.f32.mrb[0].mxu0
    %v1392 = vadd.f32 0.0, %v1391
    %v1393 = vpop.f32.mrb[0].mxu0
    %v1394 = vpop.f32.mrb[0].mxu0
    %1395 = vdwg.mxu0
    %v1400 = vrot.slane %v1349, 2
    %v1401 = vrot.slane %v1351, 2
    %v1402 = vrot.slane %v1390, 2
    %v1403 = vrot.slane %v1392, 2
    %v1408 = vadd.f32 %v331, %v1400
    %v1409 = vadd.f32 %v333, %v1401
    %v1410 = vadd.f32 %v374, %v1402
    %v1411 = vadd.f32 %v376, %v1403
    %v1412 = vxor.u32 %v1408, 2147483648
    %v1413 = vxor.u32 %v1409, 2147483648
    %v1414 = vxor.u32 %v1410, 2147483648
    %v1415 = vmul.f32 %v1412, 1.442695
    %v1416 = vpow.pop %v1415
    %v1417 = vmul.f32 %v1413, 1.442695
    %v1418 = vpow.pop %v1417
    %v1419 = vmul.f32 %v1414, 1.442695
    %v1420 = vpow.pop %v1419
    %v1421 = vadd.f32 %v1416, 1.0
    %v1422 = vadd.f32 %v1418, 1.0
    %v1423 = vadd.f32 %v1420, 1.0
    %v1424 = vrcp.pop %v1421
    %v1425 = vmul.f32 1.0, %v1424
    %v1426 = vrcp.pop %v1422
    %v1427 = vmul.f32 1.0, %v1426
    %v1428 = vrcp.pop %v1423
    %v1429 = vmul.f32 1.0, %v1428
    %v1430 = vtanh.pop %v1411
    %v1432 = vrot.slane %v1307, 6
    %v1434 = vmul.f32 %v1427, %v1432
    %v1435 = vmul.f32 %v1425, %v1430
    %v1436 = vadd.f32 %v1434, %v1435
    %v1437 = vtanh.pop %v1436
    %v1438 = vmul.f32 %v1429, %v1437
    %vm1439 = vcmask 1041408
    %v1440 = vsel %vm1439, %v393, %v679
    %vm1441 = vcmask 1043456
    %v1442 = vsel %vm1441, %v1440, %v808
    %vm1443 = vcmask 1045504
    %v1444 = vsel %vm1443, %v1442, %v937
    %v1445 = vsel %vm1439, %v1054, %v1180
    %v1446 = vsel %vm1441, %v1445, %v1309
    %v1447 = vsel %vm1443, %v1446, %v1438
    %v1448 = vpack.c.bf16 %v1447, %v1444
    %s1449 = scalar_lea.vmem [#allocation2], 256
    %v1450 = vld [vmem:[%s1449] sm:$0xff]
    %v1451 = vld [vmem:[%s1449 + $0x8] sm:$0xff]
    %v1452 = vld [vmem:[%s1449 + $0x10] sm:$0xff]
    %v1453 = vld [vmem:[%s1449 + $0x18] sm:$0xff]
    %v1454 = vld [vmem:[%s1449 + $0x20] sm:$0xff]
    %v1455 = vld [vmem:[%s1449 + $0x28] sm:$0xff]
    %v1456 = vld [vmem:[%s1449 + $0x30] sm:$0xff]
    %v1457 = vld [vmem:[%s1449 + $0x38] sm:$0xff]
    %v1458 = vld [vmem:[%s1449 + $0x40] sm:$0xff]
    %v1459 = vld [vmem:[%s1449 + $0x48] sm:$0xff]
    %v1460 = vld [vmem:[%s1449 + $0x50] sm:$0xff]
    %v1461 = vld [vmem:[%s1449 + $0x58] sm:$0xff]
    %v1462 = vld [vmem:[%s1449 + $0x60] sm:$0xff]
    %v1463 = vld [vmem:[%s1449 + $0x68] sm:$0xff]
    %v1464 = vld [vmem:[%s1449 + $0x70] sm:$0xff]
    %v1465 = vld [vmem:[%s1449 + $0x78] sm:$0xff]
    %v1466 = vld [vmem:[%s1449 + $0x80] sm:$0xff]
    %v1467 = vld [vmem:[%s1449 + $0x88] sm:$0xff]
    %v1468 = vld [vmem:[%s1449 + $0x90] sm:$0xff]
    %v1469 = vld [vmem:[%s1449 + $0x98] sm:$0xff]
    %v1470 = vld [vmem:[%s1449 + $0xa0] sm:$0xff]
    %v1471 = vld [vmem:[%s1449 + $0xa8] sm:$0xff]
    %v1472 = vld [vmem:[%s1449 + $0xb0] sm:$0xff]
    %v1473 = vld [vmem:[%s1449 + $0xb8] sm:$0xff]
    %v1474 = vld [vmem:[%s1449 + $0xc0] sm:$0xff]
    %v1475 = vld [vmem:[%s1449 + $0xc8] sm:$0xff]
    %v1476 = vld [vmem:[%s1449 + $0xd0] sm:$0xff]
    %v1477 = vld [vmem:[%s1449 + $0xd8] sm:$0xff]
    %v1478 = vld [vmem:[%s1449 + $0xe0] sm:$0xff]
    %v1479 = vld [vmem:[%s1449 + $0xe8] sm:$0xff]
    %v1480 = vld [vmem:[%s1449 + $0xf0] sm:$0xff]
    %v1481 = vld [vmem:[%s1449 + $0xf8] sm:$0xff]
    %s1482 = scalar_lea.vmem %s1, 256
    %v1483 = vld [vmem:[%s1482] sm:$0xff]
    %v1484 = vld [vmem:[%s1482 + $0x8] sm:$0xff]
    %v1485 = vld [vmem:[%s1482 + $0x10] sm:$0xff]
    %v1486 = vld [vmem:[%s1482 + $0x18] sm:$0xff]
    %v1487 = vld [vmem:[%s1482 + $0x20] sm:$0xff]
    %v1488 = vld [vmem:[%s1482 + $0x28] sm:$0xff]
    %v1489 = vld [vmem:[%s1482 + $0x30] sm:$0xff]
    %v1490 = vld [vmem:[%s1482 + $0x38] sm:$0xff]
    %v1491 = vld [vmem:[%s1482 + $0x40] sm:$0xff]
    %v1492 = vld [vmem:[%s1482 + $0x48] sm:$0xff]
    %v1493 = vld [vmem:[%s1482 + $0x50] sm:$0xff]
    %v1494 = vld [vmem:[%s1482 + $0x58] sm:$0xff]
    %v1495 = vld [vmem:[%s1482 + $0x60] sm:$0xff]
    %v1496 = vld [vmem:[%s1482 + $0x68] sm:$0xff]
    %v1497 = vld [vmem:[%s1482 + $0x70] sm:$0xff]
    %v1498 = vld [vmem:[%s1482 + $0x78] sm:$0xff]
    %v1499 = vld [vmem:[%s1482 + $0x80] sm:$0xff]
    %v1500 = vld [vmem:[%s1482 + $0x88] sm:$0xff]
    %v1501 = vld [vmem:[%s1482 + $0x90] sm:$0xff]
    %v1502 = vld [vmem:[%s1482 + $0x98] sm:$0xff]
    %v1503 = vld [vmem:[%s1482 + $0xa0] sm:$0xff]
    %v1504 = vld [vmem:[%s1482 + $0xa8] sm:$0xff]
    %v1505 = vld [vmem:[%s1482 + $0xb0] sm:$0xff]
    %v1506 = vld [vmem:[%s1482 + $0xb8] sm:$0xff]
    %v1507 = vld [vmem:[%s1482 + $0xc0] sm:$0xff]
    %v1508 = vld [vmem:[%s1482 + $0xc8] sm:$0xff]
    %v1509 = vld [vmem:[%s1482 + $0xd0] sm:$0xff]
    %v1510 = vld [vmem:[%s1482 + $0xd8] sm:$0xff]
    %v1511 = vld [vmem:[%s1482 + $0xe0] sm:$0xff]
    %v1512 = vld [vmem:[%s1482 + $0xe8] sm:$0xff]
    %v1513 = vld [vmem:[%s1482 + $0xf0] sm:$0xff]
    %v1514 = vld [vmem:[%s1482 + $0xf8] sm:$0xff]
    %s1515 = scalar_lea.vmem %s3, 4
    %v1516 = vld [vmem:[%s1515] sm:$0xf]
    %v1518 = vlaneseq
    %v1519 = vshrl.u32 %v1518, 7
    %v1520 = vsub.s32 0, %v1519
    %v1521 = vrot.slane %v1516, %v1520
    %v1522 = vlaneseq
    %v1523 = vshrl.u32 %v1522, 7
    %v1524 = vsub.s32 1, %v1523
    %v1525 = vrot.slane %v1516, %v1524
    %v1526 = vlaneseq
    %v1527 = vshrl.u32 %v1526, 7
    %v1528 = vsub.s32 2, %v1527
    %v1529 = vrot.slane %v1516, %v1528
    %v1530 = vlaneseq
    %v1531 = vshrl.u32 %v1530, 7
    %v1532 = vsub.s32 3, %v1531
    %v1533 = vrot.slane %v1516, %v1532
    %v1570 = vunpack.c.l.b16 %v1483
    %v1571 = vunpack.c.h.b16 %v1483
    %v1572 = vunpack.c.l.b16 %v1484
    %v1573 = vunpack.c.h.b16 %v1484
    %v1574 = vunpack.c.l.b16 %v1485
    %v1575 = vunpack.c.h.b16 %v1485
    %v1576 = vunpack.c.l.b16 %v1486
    %v1577 = vunpack.c.h.b16 %v1486
    %v1578 = vunpack.c.l.b16 %v1487
    %v1579 = vunpack.c.h.b16 %v1487
    %v1580 = vunpack.c.l.b16 %v1488
    %v1581 = vunpack.c.h.b16 %v1488
    %v1582 = vunpack.c.l.b16 %v1489
    %v1583 = vunpack.c.h.b16 %v1489
    %v1584 = vunpack.c.l.b16 %v1490
    %v1585 = vunpack.c.h.b16 %v1490
    %v1586 = vunpack.c.l.b16 %v1491
    %v1587 = vunpack.c.h.b16 %v1491
    %v1588 = vunpack.c.l.b16 %v1492
    %v1589 = vunpack.c.h.b16 %v1492
    %v1590 = vunpack.c.l.b16 %v1493
    %v1591 = vunpack.c.h.b16 %v1493
    %v1592 = vunpack.c.l.b16 %v1494
    %v1593 = vunpack.c.h.b16 %v1494
    %v1594 = vunpack.c.l.b16 %v1495
    %v1595 = vunpack.c.h.b16 %v1495
    %v1596 = vunpack.c.l.b16 %v1496
    %v1597 = vunpack.c.h.b16 %v1496
    %v1598 = vunpack.c.l.b16 %v1497
    %v1599 = vunpack.c.h.b16 %v1497
    %v1600 = vunpack.c.l.b16 %v1498
    %v1601 = vunpack.c.h.b16 %v1498
    %v1602 = vunpack.c.l.b16 %v1499
    %v1603 = vunpack.c.h.b16 %v1499
    %v1604 = vunpack.c.l.b16 %v1500
    %v1605 = vunpack.c.h.b16 %v1500
    %v1606 = vunpack.c.l.b16 %v1501
    %v1607 = vunpack.c.h.b16 %v1501
    %v1608 = vunpack.c.l.b16 %v1502
    %v1609 = vunpack.c.h.b16 %v1502
    %v1610 = vunpack.c.l.b16 %v1503
    %v1611 = vunpack.c.h.b16 %v1503
    %v1612 = vunpack.c.l.b16 %v1504
    %v1613 = vunpack.c.h.b16 %v1504
    %v1614 = vunpack.c.l.b16 %v1505
    %v1615 = vunpack.c.h.b16 %v1505
    %v1616 = vunpack.c.l.b16 %v1506
    %v1617 = vunpack.c.h.b16 %v1506
    %v1618 = vunpack.c.l.b16 %v1507
    %v1619 = vunpack.c.h.b16 %v1507
    %v1620 = vunpack.c.l.b16 %v1508
    %v1621 = vunpack.c.h.b16 %v1508
    %v1622 = vunpack.c.l.b16 %v1509
    %v1623 = vunpack.c.h.b16 %v1509
    %v1624 = vunpack.c.l.b16 %v1510
    %v1625 = vunpack.c.h.b16 %v1510
    %v1626 = vunpack.c.l.b16 %v1511
    %v1627 = vunpack.c.h.b16 %v1511
    %v1628 = vunpack.c.l.b16 %v1512
    %v1629 = vunpack.c.h.b16 %v1512
    %v1630 = vunpack.c.l.b16 %v1513
    %v1631 = vunpack.c.h.b16 %v1513
    %v1632 = vunpack.c.l.b16 %v1514
    %v1633 = vunpack.c.h.b16 %v1514
    %v1634 = vpack.c.b16 %v1574, %v1570
    %v1635 = vpack.c.b16 %v1575, %v1571
    %v1636 = vpack.c.b16 %v1576, %v1572
    %v1637 = vpack.c.b16 %v1577, %v1573
    %v1638 = vpack.c.b16 %v1582, %v1578
    %v1639 = vpack.c.b16 %v1583, %v1579
    %v1640 = vpack.c.b16 %v1584, %v1580
    %v1641 = vpack.c.b16 %v1585, %v1581
    %v1642 = vpack.c.b16 %v1590, %v1586
    %v1643 = vpack.c.b16 %v1591, %v1587
    %v1644 = vpack.c.b16 %v1592, %v1588
    %v1645 = vpack.c.b16 %v1593, %v1589
    %v1646 = vpack.c.b16 %v1598, %v1594
    %v1647 = vpack.c.b16 %v1599, %v1595
    %v1648 = vpack.c.b16 %v1600, %v1596
    %v1649 = vpack.c.b16 %v1601, %v1597
    %v1650 = vpack.c.b16 %v1606, %v1602
    %v1651 = vpack.c.b16 %v1607, %v1603
    %v1652 = vpack.c.b16 %v1608, %v1604
    %v1653 = vpack.c.b16 %v1609, %v1605
    %v1654 = vpack.c.b16 %v1614, %v1610
    %v1655 = vpack.c.b16 %v1615, %v1611
    %v1656 = vpack.c.b16 %v1616, %v1612
    %v1657 = vpack.c.b16 %v1617, %v1613
    %v1658 = vpack.c.b16 %v1622, %v1618
    %v1659 = vpack.c.b16 %v1623, %v1619
    %v1660 = vpack.c.b16 %v1624, %v1620
    %v1661 = vpack.c.b16 %v1625, %v1621
    %v1662 = vpack.c.b16 %v1630, %v1626
    %v1663 = vpack.c.b16 %v1631, %v1627
    %v1664 = vpack.c.b16 %v1632, %v1628
    %v1665 = vpack.c.b16 %v1633, %v1629
    %1698 = vmatprep.subr.bf16.mxu0 %v1635
    %1699 = vmatpush1.bf16.msra.mxu0 %v1634
    %1700 = vmatprep.subr.bf16.mxu0 %v1639
    %1701 = vmatpush1.bf16.msra.mxu0 %v1638
    %1702 = vmatprep.subr.bf16.mxu0 %v1643
    %1703 = vmatpush1.bf16.msra.mxu0 %v1642
    %1704 = vmatprep.subr.bf16.mxu0 %v1647
    %1705 = vmatpush1.bf16.msra.mxu0 %v1646
    %1706 = vmatprep.subr.bf16.mxu0 %v1651
    %1707 = vmatpush1.bf16.msra.mxu0 %v1650
    %1708 = vmatprep.subr.bf16.mxu0 %v1655
    %1709 = vmatpush1.bf16.msra.mxu0 %v1654
    %1710 = vmatprep.subr.bf16.mxu0 %v1659
    %1711 = vmatpush1.bf16.msra.mxu0 %v1658
    %1712 = vmatprep.subr.bf16.mxu0 %v1663
    %1713 = vmatpush1.bf16.msra.mxu0 %v1662
    %1714 = vmatprep.subr.bf16.mxu0 0
    %1715 = vmatpush1.bf16.msra.mxu0 0
    %1716 = vmatprep.subr.bf16.mxu0 0
    %1717 = vmatpush1.bf16.msra.mxu0 0
    %1718 = vmatprep.subr.bf16.mxu0 0
    %1719 = vmatpush1.bf16.msra.mxu0 0
    %1720 = vmatprep.subr.bf16.mxu0 0
    %1721 = vmatpush1.bf16.msra.mxu0 0
    %1722 = vmatprep.subr.bf16.mxu0 0
    %1723 = vmatpush1.bf16.msra.mxu0 0
    %1724 = vmatprep.subr.bf16.mxu0 0
    %1725 = vmatpush1.bf16.msra.mxu0 0
    %1726 = vmatprep.subr.bf16.mxu0 0
    %1727 = vmatpush1.bf16.msra.mxu0 0
    %1728 = vmatprep.subr.bf16.mxu0 0
    %1729 = vmatpush1.bf16.msra.mxu0 0
    %1730 = vmatprep.mubr.bf16.mxu0 0
    %1731 = vmatmul.mubr.bf16.gmra.mrb[0].mxu0 %v1448
    %v1732 = vpop.f32.mrb[0].mxu0
    %v1733 = vadd.f32 %v1521, %v1732
    %v1734 = vpop.f32.mrb[0].mxu0
    %v1735 = vadd.f32 %v1525, %v1734
    %v1736 = vpop.f32.mrb[0].mxu0
    %v1737 = vadd.f32 %v1521, %v1736
    %v1738 = vpop.f32.mrb[0].mxu0
    %v1739 = vadd.f32 %v1525, %v1738
    %1740 = vdwg.mxu0
    %1741 = vmatprep.subr.bf16.mxu0 %v1637
    %1742 = vmatpush1.bf16.msra.mxu0 %v1636
    %1743 = vmatprep.subr.bf16.mxu0 %v1641
    %1744 = vmatpush1.bf16.msra.mxu0 %v1640
    %1745 = vmatprep.subr.bf16.mxu0 %v1645
    %1746 = vmatpush1.bf16.msra.mxu0 %v1644
    %1747 = vmatprep.subr.bf16.mxu0 %v1649
    %1748 = vmatpush1.bf16.msra.mxu0 %v1648
    %1749 = vmatprep.subr.bf16.mxu0 %v1653
    %1750 = vmatpush1.bf16.msra.mxu0 %v1652
    %1751 = vmatprep.subr.bf16.mxu0 %v1657
    %1752 = vmatpush1.bf16.msra.mxu0 %v1656
    %1753 = vmatprep.subr.bf16.mxu0 %v1661
    %1754 = vmatpush1.bf16.msra.mxu0 %v1660
    %1755 = vmatprep.subr.bf16.mxu0 %v1665
    %1756 = vmatpush1.bf16.msra.mxu0 %v1664
    %1757 = vmatprep.subr.bf16.mxu0 0
    %1758 = vmatpush1.bf16.msra.mxu0 0
    %1759 = vmatprep.subr.bf16.mxu0 0
    %1760 = vmatpush1.bf16.msra.mxu0 0
    %1761 = vmatprep.subr.bf16.mxu0 0
    %1762 = vmatpush1.bf16.msra.mxu0 0
    %1763 = vmatprep.subr.bf16.mxu0 0
    %1764 = vmatpush1.bf16.msra.mxu0 0
    %1765 = vmatprep.subr.bf16.mxu0 0
    %1766 = vmatpush1.bf16.msra.mxu0 0
    %1767 = vmatprep.subr.bf16.mxu0 0
    %1768 = vmatpush1.bf16.msra.mxu0 0
    %1769 = vmatprep.subr.bf16.mxu0 0
    %1770 = vmatpush1.bf16.msra.mxu0 0
    %1771 = vmatprep.subr.bf16.mxu0 0
    %1772 = vmatpush1.bf16.msra.mxu0 0
    %1773 = vmatprep.mubr.bf16.mxu0 0
    %1774 = vmatmul.mubr.bf16.gmra.mrb[0].mxu0 %v1448
    %v1775 = vpop.f32.mrb[0].mxu0
    %v1776 = vadd.f32 %v1529, %v1775
    %v1777 = vpop.f32.mrb[0].mxu0
    %v1778 = vadd.f32 %v1533, %v1777
    %v1779 = vpop.f32.mrb[0].mxu0
    %v1780 = vadd.f32 %v1529, %v1779
    %v1781 = vpop.f32.mrb[0].mxu0
    %v1782 = vadd.f32 %v1533, %v1781
    %1783 = vdwg.mxu0
    %v1784 = vxor.u32 %v1733, 2147483648
    %v1785 = vxor.u32 %v1776, 2147483648
    %v1786 = vmul.f32 %v1784, 1.442695
    %v1787 = vpow.pop %v1786
    %v1788 = vmul.f32 %v1785, 1.442695
    %v1789 = vpow.pop %v1788
    %v1790 = vadd.f32 %v1787, 1.0
    %v1791 = vadd.f32 %v1789, 1.0
    %v1792 = vrcp.pop %v1790
    %v1793 = vmul.f32 1.0, %v1792
    %v1794 = vrcp.pop %v1791
    %v1795 = vmul.f32 1.0, %v1794
    %v1796 = vtanh.pop %v1778
    %v1797 = vmul.f32 %v1793, %v1796
    %v1798 = vtanh.pop %v1797
    %v1799 = vmul.f32 %v1795, %v1798
    %v1800 = vpack.c.bf16 %v1799, %v1799
    %v1833 = vunpack.c.l.b16 %v1450
    %v1834 = vunpack.c.h.b16 %v1450
    %v1835 = vunpack.c.l.b16 %v1451
    %v1836 = vunpack.c.h.b16 %v1451
    %v1837 = vunpack.c.l.b16 %v1452
    %v1838 = vunpack.c.h.b16 %v1452
    %v1839 = vunpack.c.l.b16 %v1453
    %v1840 = vunpack.c.h.b16 %v1453
    %v1841 = vunpack.c.l.b16 %v1454
    %v1842 = vunpack.c.h.b16 %v1454
    %v1843 = vunpack.c.l.b16 %v1455
    %v1844 = vunpack.c.h.b16 %v1455
    %v1845 = vunpack.c.l.b16 %v1456
    %v1846 = vunpack.c.h.b16 %v1456
    %v1847 = vunpack.c.l.b16 %v1457
    %v1848 = vunpack.c.h.b16 %v1457
    %v1849 = vunpack.c.l.b16 %v1458
    %v1850 = vunpack.c.h.b16 %v1458
    %v1851 = vunpack.c.l.b16 %v1459
    %v1852 = vunpack.c.h.b16 %v1459
    %v1853 = vunpack.c.l.b16 %v1460
    %v1854 = vunpack.c.h.b16 %v1460
    %v1855 = vunpack.c.l.b16 %v1461
    %v1856 = vunpack.c.h.b16 %v1461
    %v1857 = vunpack.c.l.b16 %v1462
    %v1858 = vunpack.c.h.b16 %v1462
    %v1859 = vunpack.c.l.b16 %v1463
    %v1860 = vunpack.c.h.b16 %v1463
    %v1861 = vunpack.c.l.b16 %v1464
    %v1862 = vunpack.c.h.b16 %v1464
    %v1863 = vunpack.c.l.b16 %v1465
    %v1864 = vunpack.c.h.b16 %v1465
    %v1865 = vunpack.c.l.b16 %v1466
    %v1866 = vunpack.c.h.b16 %v1466
    %v1867 = vunpack.c.l.b16 %v1467
    %v1868 = vunpack.c.h.b16 %v1467
    %v1869 = vunpack.c.l.b16 %v1468
    %v1870 = vunpack.c.h.b16 %v1468
    %v1871 = vunpack.c.l.b16 %v1469
    %v1872 = vunpack.c.h.b16 %v1469
    %v1873 = vunpack.c.l.b16 %v1470
    %v1874 = vunpack.c.h.b16 %v1470
    %v1875 = vunpack.c.l.b16 %v1471
    %v1876 = vunpack.c.h.b16 %v1471
    %v1877 = vunpack.c.l.b16 %v1472
    %v1878 = vunpack.c.h.b16 %v1472
    %v1879 = vunpack.c.l.b16 %v1473
    %v1880 = vunpack.c.h.b16 %v1473
    %v1881 = vunpack.c.l.b16 %v1474
    %v1882 = vunpack.c.h.b16 %v1474
    %v1883 = vunpack.c.l.b16 %v1475
    %v1884 = vunpack.c.h.b16 %v1475
    %v1885 = vunpack.c.l.b16 %v1476
    %v1886 = vunpack.c.h.b16 %v1476
    %v1887 = vunpack.c.l.b16 %v1477
    %v1888 = vunpack.c.h.b16 %v1477
    %v1889 = vunpack.c.l.b16 %v1478
    %v1890 = vunpack.c.h.b16 %v1478
    %v1891 = vunpack.c.l.b16 %v1479
    %v1892 = vunpack.c.h.b16 %v1479
    %v1893 = vunpack.c.l.b16 %v1480
    %v1894 = vunpack.c.h.b16 %v1480
    %v1895 = vunpack.c.l.b16 %v1481
    %v1896 = vunpack.c.h.b16 %v1481
    %v1897 = vpack.c.b16 %v1837, %v1833
    %v1898 = vpack.c.b16 %v1838, %v1834
    %v1899 = vpack.c.b16 %v1839, %v1835
    %v1900 = vpack.c.b16 %v1840, %v1836
    %v1901 = vpack.c.b16 %v1845, %v1841
    %v1902 = vpack.c.b16 %v1846, %v1842
    %v1903 = vpack.c.b16 %v1847, %v1843
    %v1904 = vpack.c.b16 %v1848, %v1844
    %v1905 = vpack.c.b16 %v1853, %v1849
    %v1906 = vpack.c.b16 %v1854, %v1850
    %v1907 = vpack.c.b16 %v1855, %v1851
    %v1908 = vpack.c.b16 %v1856, %v1852
    %v1909 = vpack.c.b16 %v1861, %v1857
    %v1910 = vpack.c.b16 %v1862, %v1858
    %v1911 = vpack.c.b16 %v1863, %v1859
    %v1912 = vpack.c.b16 %v1864, %v1860
    %v1913 = vpack.c.b16 %v1869, %v1865
    %v1914 = vpack.c.b16 %v1870, %v1866
    %v1915 = vpack.c.b16 %v1871, %v1867
    %v1916 = vpack.c.b16 %v1872, %v1868
    %v1917 = vpack.c.b16 %v1877, %v1873
    %v1918 = vpack.c.b16 %v1878, %v1874
    %v1919 = vpack.c.b16 %v1879, %v1875
    %v1920 = vpack.c.b16 %v1880, %v1876
    %v1921 = vpack.c.b16 %v1885, %v1881
    %v1922 = vpack.c.b16 %v1886, %v1882
    %v1923 = vpack.c.b16 %v1887, %v1883
    %v1924 = vpack.c.b16 %v1888, %v1884
    %v1925 = vpack.c.b16 %v1893, %v1889
    %v1926 = vpack.c.b16 %v1894, %v1890
    %v1927 = vpack.c.b16 %v1895, %v1891
    %v1928 = vpack.c.b16 %v1896, %v1892
    %1961 = vmatprep.subr.bf16.mxu0 %v1898
    %1962 = vmatpush1.bf16.msra.mxu0 %v1897
    %1963 = vmatprep.subr.bf16.mxu0 %v1902
    %1964 = vmatpush1.bf16.msra.mxu0 %v1901
    %1965 = vmatprep.subr.bf16.mxu0 %v1906
    %1966 = vmatpush1.bf16.msra.mxu0 %v1905
    %1967 = vmatprep.subr.bf16.mxu0 %v1910
    %1968 = vmatpush1.bf16.msra.mxu0 %v1909
    %1969 = vmatprep.subr.bf16.mxu0 %v1914
    %1970 = vmatpush1.bf16.msra.mxu0 %v1913
    %1971 = vmatprep.subr.bf16.mxu0 %v1918
    %1972 = vmatpush1.bf16.msra.mxu0 %v1917
    %1973 = vmatprep.subr.bf16.mxu0 %v1922
    %1974 = vmatpush1.bf16.msra.mxu0 %v1921
    %1975 = vmatprep.subr.bf16.mxu0 %v1926
    %1976 = vmatpush1.bf16.msra.mxu0 %v1925
    %1977 = vmatprep.subr.bf16.mxu0 0
    %1978 = vmatpush1.bf16.msra.mxu0 0
    %1979 = vmatprep.subr.bf16.mxu0 0
    %1980 = vmatpush1.bf16.msra.mxu0 0
    %1981 = vmatprep.subr.bf16.mxu0 0
    %1982 = vmatpush1.bf16.msra.mxu0 0
    %1983 = vmatprep.subr.bf16.mxu0 0
    %1984 = vmatpush1.bf16.msra.mxu0 0
    %1985 = vmatprep.subr.bf16.mxu0 0
    %1986 = vmatpush1.bf16.msra.mxu0 0
    %1987 = vmatprep.subr.bf16.mxu0 0
    %1988 = vmatpush1.bf16.msra.mxu0 0
    %1989 = vmatprep.subr.bf16.mxu0 0
    %1990 = vmatpush1.bf16.msra.mxu0 0
    %1991 = vmatprep.subr.bf16.mxu0 0
    %1992 = vmatpush1.bf16.msra.mxu0 0
    %1993 = vmatprep.mubr.bf16.mxu0 0
    %1994 = vmatmul.mubr.bf16.gmra.mrb[0].mxu0 %v1800
    %v1995 = vpop.f32.mrb[0].mxu0
    %v1996 = vadd.f32 0.0, %v1995
    %v1997 = vpop.f32.mrb[0].mxu0
    %v1998 = vadd.f32 0.0, %v1997
    %v1999 = vpop.f32.mrb[0].mxu0
    %v2000 = vpop.f32.mrb[0].mxu0
    %2001 = vdwg.mxu0
    %2002 = vmatprep.subr.bf16.mxu0 %v1900
    %2003 = vmatpush1.bf16.msra.mxu0 %v1899
    %2004 = vmatprep.subr.bf16.mxu0 %v1904
    %2005 = vmatpush1.bf16.msra.mxu0 %v1903
    %2006 = vmatprep.subr.bf16.mxu0 %v1908
    %2007 = vmatpush1.bf16.msra.mxu0 %v1907
    %2008 = vmatprep.subr.bf16.mxu0 %v1912
    %2009 = vmatpush1.bf16.msra.mxu0 %v1911
    %2010 = vmatprep.subr.bf16.mxu0 %v1916
    %2011 = vmatpush1.bf16.msra.mxu0 %v1915
    %2012 = vmatprep.subr.bf16.mxu0 %v1920
    %2013 = vmatpush1.bf16.msra.mxu0 %v1919
    %2014 = vmatprep.subr.bf16.mxu0 %v1924
    %2015 = vmatpush1.bf16.msra.mxu0 %v1923
    %2016 = vmatprep.subr.bf16.mxu0 %v1928
    %2017 = vmatpush1.bf16.msra.mxu0 %v1927
    %2018 = vmatprep.subr.bf16.mxu0 0
    %2019 = vmatpush1.bf16.msra.mxu0 0
    %2020 = vmatprep.subr.bf16.mxu0 0
    %2021 = vmatpush1.bf16.msra.mxu0 0
    %2022 = vmatprep.subr.bf16.mxu0 0
    %2023 = vmatpush1.bf16.msra.mxu0 0
    %2024 = vmatprep.subr.bf16.mxu0 0
    %2025 = vmatpush1.bf16.msra.mxu0 0
    %2026 = vmatprep.subr.bf16.mxu0 0
    %2027 = vmatpush1.bf16.msra.mxu0 0
    %2028 = vmatprep.subr.bf16.mxu0 0
    %2029 = vmatpush1.bf16.msra.mxu0 0
    %2030 = vmatprep.subr.bf16.mxu0 0
    %2031 = vmatpush1.bf16.msra.mxu0 0
    %2032 = vmatprep.subr.bf16.mxu0 0
    %2033 = vmatpush1.bf16.msra.mxu0 0
    %2034 = vmatprep.mubr.bf16.mxu0 0
    %2035 = vmatmul.mubr.bf16.gmra.mrb[0].mxu0 %v1800
    %v2036 = vpop.f32.mrb[0].mxu0
    %v2037 = vadd.f32 0.0, %v2036
    %v2038 = vpop.f32.mrb[0].mxu0
    %v2039 = vadd.f32 0.0, %v2038
    %v2040 = vpop.f32.mrb[0].mxu0
    %v2041 = vpop.f32.mrb[0].mxu0
    %2042 = vdwg.mxu0
    %v2047 = vrot.slane %v1996, 6
    %v2048 = vrot.slane %v1998, 6
    %v2049 = vrot.slane %v2037, 6
    %v2050 = vrot.slane %v2039, 6
    %v2055 = vadd.f32 %v1733, %v2047
    %v2056 = vadd.f32 %v1735, %v2048
    %v2057 = vadd.f32 %v1776, %v2049
    %v2058 = vadd.f32 %v1778, %v2050
    %v2059 = vxor.u32 %v2055, 2147483648
    %v2060 = vxor.u32 %v2056, 2147483648
    %v2061 = vxor.u32 %v2057, 2147483648
    %v2062 = vmul.f32 %v2059, 1.442695
    %v2063 = vpow.pop %v2062
    %v2064 = vmul.f32 %v2060, 1.442695
    %v2065 = vpow.pop %v2064
    %v2066 = vmul.f32 %v2061, 1.442695
    %v2067 = vpow.pop %v2066
    %v2068 = vadd.f32 %v2063, 1.0
    %v2069 = vadd.f32 %v2065, 1.0
    %v2070 = vadd.f32 %v2067, 1.0
    %v2071 = vrcp.pop %v2068
    %v2072 = vmul.f32 1.0, %v2071
    %v2073 = vrcp.pop %v2069
    %v2074 = vmul.f32 1.0, %v2073
    %v2075 = vrcp.pop %v2070
    %v2076 = vmul.f32 1.0, %v2075
    %v2077 = vtanh.pop %v2058
    %v2079 = vrot.slane %v1797, 6
    %v2081 = vmul.f32 %v2074, %v2079
    %v2082 = vmul.f32 %v2072, %v2077
    %v2083 = vadd.f32 %v2081, %v2082
    %v2084 = vtanh.pop %v2083
    %v2085 = vmul.f32 %v2076, %v2084
    %v2086 = vpack.c.bf16 %v2085, %v2085
    %v2088 = vrot.slane %v2086, 1
    %2090 = vmatprep.subr.bf16.mxu0 %v1898
    %2091 = vmatpush1.bf16.msra.mxu0 %v1897
    %2092 = vmatprep.subr.bf16.mxu0 %v1902
    %2093 = vmatpush1.bf16.msra.mxu0 %v1901
    %2094 = vmatprep.subr.bf16.mxu0 %v1906
    %2095 = vmatpush1.bf16.msra.mxu0 %v1905
    %2096 = vmatprep.subr.bf16.mxu0 %v1910
    %2097 = vmatpush1.bf16.msra.mxu0 %v1909
    %2098 = vmatprep.subr.bf16.mxu0 %v1914
    %2099 = vmatpush1.bf16.msra.mxu0 %v1913
    %2100 = vmatprep.subr.bf16.mxu0 %v1918
    %2101 = vmatpush1.bf16.msra.mxu0 %v1917
    %2102 = vmatprep.subr.bf16.mxu0 %v1922
    %2103 = vmatpush1.bf16.msra.mxu0 %v1921
    %2104 = vmatprep.subr.bf16.mxu0 %v1926
    %2105 = vmatpush1.bf16.msra.mxu0 %v1925
    %2106 = vmatprep.subr.bf16.mxu0 0
    %2107 = vmatpush1.bf16.msra.mxu0 0
    %2108 = vmatprep.subr.bf16.mxu0 0
    %2109 = vmatpush1.bf16.msra.mxu0 0
    %2110 = vmatprep.subr.bf16.mxu0 0
    %2111 = vmatpush1.bf16.msra.mxu0 0
    %2112 = vmatprep.subr.bf16.mxu0 0
    %2113 = vmatpush1.bf16.msra.mxu0 0
    %2114 = vmatprep.subr.bf16.mxu0 0
    %2115 = vmatpush1.bf16.msra.mxu0 0
    %2116 = vmatprep.subr.bf16.mxu0 0
    %2117 = vmatpush1.bf16.msra.mxu0 0
    %2118 = vmatprep.subr.bf16.mxu0 0
    %2119 = vmatpush1.bf16.msra.mxu0 0
    %2120 = vmatprep.subr.bf16.mxu0 0
    %2121 = vmatpush1.bf16.msra.mxu0 0
    %2122 = vmatprep.mubr.bf16.mxu0 0
    %2123 = vmatmul.mubr.bf16.gmra.mrb[0].mxu0 %v2088
    %v2124 = vpop.f32.mrb[0].mxu0
    %v2125 = vadd.f32 0.0, %v2124
    %v2126 = vpop.f32.mrb[0].mxu0
    %v2127 = vadd.f32 0.0, %v2126
    %v2128 = vpop.f32.mrb[0].mxu0
    %v2129 = vpop.f32.mrb[0].mxu0
    %2130 = vdwg.mxu0
    %2131 = vmatprep.subr.bf16.mxu0 %v1900
    %2132 = vmatpush1.bf16.msra.mxu0 %v1899
    %2133 = vmatprep.subr.bf16.mxu0 %v1904
    %2134 = vmatpush1.bf16.msra.mxu0 %v1903
    %2135 = vmatprep.subr.bf16.mxu0 %v1908
    %2136 = vmatpush1.bf16.msra.mxu0 %v1907
    %2137 = vmatprep.subr.bf16.mxu0 %v1912
    %2138 = vmatpush1.bf16.msra.mxu0 %v1911
    %2139 = vmatprep.subr.bf16.mxu0 %v1916
    %2140 = vmatpush1.bf16.msra.mxu0 %v1915
    %2141 = vmatprep.subr.bf16.mxu0 %v1920
    %2142 = vmatpush1.bf16.msra.mxu0 %v1919
    %2143 = vmatprep.subr.bf16.mxu0 %v1924
    %2144 = vmatpush1.bf16.msra.mxu0 %v1923
    %2145 = vmatprep.subr.bf16.mxu0 %v1928
    %2146 = vmatpush1.bf16.msra.mxu0 %v1927
    %2147 = vmatprep.subr.bf16.mxu0 0
    %2148 = vmatpush1.bf16.msra.mxu0 0
    %2149 = vmatprep.subr.bf16.mxu0 0
    %2150 = vmatpush1.bf16.msra.mxu0 0
    %2151 = vmatprep.subr.bf16.mxu0 0
    %2152 = vmatpush1.bf16.msra.mxu0 0
    %2153 = vmatprep.subr.bf16.mxu0 0
    %2154 = vmatpush1.bf16.msra.mxu0 0
    %2155 = vmatprep.subr.bf16.mxu0 0
    %2156 = vmatpush1.bf16.msra.mxu0 0
    %2157 = vmatprep.subr.bf16.mxu0 0
    %2158 = vmatpush1.bf16.msra.mxu0 0
    %2159 = vmatprep.subr.bf16.mxu0 0
    %2160 = vmatpush1.bf16.msra.mxu0 0
    %2161 = vmatprep.subr.bf16.mxu0 0
    %2162 = vmatpush1.bf16.msra.mxu0 0
    %2163 = vmatprep.mubr.bf16.mxu0 0
    %2164 = vmatmul.mubr.bf16.gmra.mrb[0].mxu0 %v2088
    %v2165 = vpop.f32.mrb[0].mxu0
    %v2166 = vadd.f32 0.0, %v2165
    %v2167 = vpop.f32.mrb[0].mxu0
    %v2168 = vadd.f32 0.0, %v2167
    %v2169 = vpop.f32.mrb[0].mxu0
    %v2170 = vpop.f32.mrb[0].mxu0
    %2171 = vdwg.mxu0
    %v2176 = vrot.slane %v2125, 4
    %v2177 = vrot.slane %v2127, 4
    %v2178 = vrot.slane %v2166, 4
    %v2179 = vrot.slane %v2168, 4
    %v2184 = vadd.f32 %v1733, %v2176
    %v2185 = vadd.f32 %v1735, %v2177
    %v2186 = vadd.f32 %v1776, %v2178
    %v2187 = vadd.f32 %v1778, %v2179
    %v2188 = vxor.u32 %v2184, 2147483648
    %v2189 = vxor.u32 %v2185, 2147483648
    %v2190 = vxor.u32 %v2186, 2147483648
    %v2191 = vmul.f32 %v2188, 1.442695
    %v2192 = vpow.pop %v2191
    %v2193 = vmul.f32 %v2189, 1.442695
    %v2194 = vpow.pop %v2193
    %v2195 = vmul.f32 %v2190, 1.442695
    %v2196 = vpow.pop %v2195
    %v2197 = vadd.f32 %v2192, 1.0
    %v2198 = vadd.f32 %v2194, 1.0
    %v2199 = vadd.f32 %v2196, 1.0
    %v2200 = vrcp.pop %v2197
    %v2201 = vmul.f32 1.0, %v2200
    %v2202 = vrcp.pop %v2198
    %v2203 = vmul.f32 1.0, %v2202
    %v2204 = vrcp.pop %v2199
    %v2205 = vmul.f32 1.0, %v2204
    %v2206 = vtanh.pop %v2187
    %v2208 = vrot.slane %v2083, 6
    %v2210 = vmul.f32 %v2203, %v2208
    %v2211 = vmul.f32 %v2201, %v2206
    %v2212 = vadd.f32 %v2210, %v2211
    %v2213 = vtanh.pop %v2212
    %v2214 = vmul.f32 %v2205, %v2213
    %v2215 = vpack.c.bf16 %v2214, %v2214
    %v2217 = vrot.slane %v2215, 2
    %2219 = vmatprep.subr.bf16.mxu0 %v1898
    %2220 = vmatpush1.bf16.msra.mxu0 %v1897
    %2221 = vmatprep.subr.bf16.mxu0 %v1902
    %2222 = vmatpush1.bf16.msra.mxu0 %v1901
    %2223 = vmatprep.subr.bf16.mxu0 %v1906
    %2224 = vmatpush1.bf16.msra.mxu0 %v1905
    %2225 = vmatprep.subr.bf16.mxu0 %v1910
    %2226 = vmatpush1.bf16.msra.mxu0 %v1909
    %2227 = vmatprep.subr.bf16.mxu0 %v1914
    %2228 = vmatpush1.bf16.msra.mxu0 %v1913
    %2229 = vmatprep.subr.bf16.mxu0 %v1918
    %2230 = vmatpush1.bf16.msra.mxu0 %v1917
    %2231 = vmatprep.subr.bf16.mxu0 %v1922
    %2232 = vmatpush1.bf16.msra.mxu0 %v1921
    %2233 = vmatprep.subr.bf16.mxu0 %v1926
    %2234 = vmatpush1.bf16.msra.mxu0 %v1925
    %2235 = vmatprep.subr.bf16.mxu0 0
    %2236 = vmatpush1.bf16.msra.mxu0 0
    %2237 = vmatprep.subr.bf16.mxu0 0
    %2238 = vmatpush1.bf16.msra.mxu0 0
    %2239 = vmatprep.subr.bf16.mxu0 0
    %2240 = vmatpush1.bf16.msra.mxu0 0
    %2241 = vmatprep.subr.bf16.mxu0 0
    %2242 = vmatpush1.bf16.msra.mxu0 0
    %2243 = vmatprep.subr.bf16.mxu0 0
    %2244 = vmatpush1.bf16.msra.mxu0 0
    %2245 = vmatprep.subr.bf16.mxu0 0
    %2246 = vmatpush1.bf16.msra.mxu0 0
    %2247 = vmatprep.subr.bf16.mxu0 0
    %2248 = vmatpush1.bf16.msra.mxu0 0
    %2249 = vmatprep.subr.bf16.mxu0 0
    %2250 = vmatpush1.bf16.msra.mxu0 0
    %2251 = vmatprep.mubr.bf16.mxu0 0
    %2252 = vmatmul.mubr.bf16.gmra.mrb[0].mxu0 %v2217
    %v2253 = vpop.f32.mrb[0].mxu0
    %v2254 = vadd.f32 0.0, %v2253
    %v2255 = vpop.f32.mrb[0].mxu0
    %v2256 = vadd.f32 0.0, %v2255
    %v2257 = vpop.f32.mrb[0].mxu0
    %v2258 = vpop.f32.mrb[0].mxu0
    %2259 = vdwg.mxu0
    %2260 = vmatprep.subr.bf16.mxu0 %v1900
    %2261 = vmatpush1.bf16.msra.mxu0 %v1899
    %2262 = vmatprep.subr.bf16.mxu0 %v1904
    %2263 = vmatpush1.bf16.msra.mxu0 %v1903
    %2264 = vmatprep.subr.bf16.mxu0 %v1908
    %2265 = vmatpush1.bf16.msra.mxu0 %v1907
    %2266 = vmatprep.subr.bf16.mxu0 %v1912
    %2267 = vmatpush1.bf16.msra.mxu0 %v1911
    %2268 = vmatprep.subr.bf16.mxu0 %v1916
    %2269 = vmatpush1.bf16.msra.mxu0 %v1915
    %2270 = vmatprep.subr.bf16.mxu0 %v1920
    %2271 = vmatpush1.bf16.msra.mxu0 %v1919
    %2272 = vmatprep.subr.bf16.mxu0 %v1924
    %2273 = vmatpush1.bf16.msra.mxu0 %v1923
    %2274 = vmatprep.subr.bf16.mxu0 %v1928
    %2275 = vmatpush1.bf16.msra.mxu0 %v1927
    %2276 = vmatprep.subr.bf16.mxu0 0
    %2277 = vmatpush1.bf16.msra.mxu0 0
    %2278 = vmatprep.subr.bf16.mxu0 0
    %2279 = vmatpush1.bf16.msra.mxu0 0
    %2280 = vmatprep.subr.bf16.mxu0 0
    %2281 = vmatpush1.bf16.msra.mxu0 0
    %2282 = vmatprep.subr.bf16.mxu0 0
    %2283 = vmatpush1.bf16.msra.mxu0 0
    %2284 = vmatprep.subr.bf16.mxu0 0
    %2285 = vmatpush1.bf16.msra.mxu0 0
    %2286 = vmatprep.subr.bf16.mxu0 0
    %2287 = vmatpush1.bf16.msra.mxu0 0
    %2288 = vmatprep.subr.bf16.mxu0 0
    %2289 = vmatpush1.bf16.msra.mxu0 0
    %2290 = vmatprep.subr.bf16.mxu0 0
    %2291 = vmatpush1.bf16.msra.mxu0 0
    %2292 = vmatprep.mubr.bf16.mxu0 0
    %2293 = vmatmul.mubr.bf16.gmra.mrb[0].mxu0 %v2217
    %v2294 = vpop.f32.mrb[0].mxu0
    %v2295 = vadd.f32 0.0, %v2294
    %v2296 = vpop.f32.mrb[0].mxu0
    %v2297 = vadd.f32 0.0, %v2296
    %v2298 = vpop.f32.mrb[0].mxu0
    %v2299 = vpop.f32.mrb[0].mxu0
    %2300 = vdwg.mxu0
    %v2305 = vrot.slane %v2254, 2
    %v2306 = vrot.slane %v2256, 2
    %v2307 = vrot.slane %v2295, 2
    %v2308 = vrot.slane %v2297, 2
    %v2313 = vadd.f32 %v1733, %v2305
    %v2314 = vadd.f32 %v1735, %v2306
    %v2315 = vadd.f32 %v1776, %v2307
    %v2316 = vadd.f32 %v1778, %v2308
    %v2317 = vxor.u32 %v2313, 2147483648
    %v2318 = vxor.u32 %v2314, 2147483648
    %v2319 = vxor.u32 %v2315, 2147483648
    %v2320 = vmul.f32 %v2317, 1.442695
    %v2321 = vpow.pop %v2320
    %v2322 = vmul.f32 %v2318, 1.442695
    %v2323 = vpow.pop %v2322
    %v2324 = vmul.f32 %v2319, 1.442695
    %v2325 = vpow.pop %v2324
    %v2326 = vadd.f32 %v2321, 1.0
    %v2327 = vadd.f32 %v2323, 1.0
    %v2328 = vadd.f32 %v2325, 1.0
    %v2329 = vrcp.pop %v2326
    %v2330 = vmul.f32 1.0, %v2329
    %v2331 = vrcp.pop %v2327
    %v2332 = vmul.f32 1.0, %v2331
    %v2333 = vrcp.pop %v2328
    %v2334 = vmul.f32 1.0, %v2333
    %v2335 = vtanh.pop %v2316
    %v2337 = vrot.slane %v2212, 6
    %v2339 = vmul.f32 %v2332, %v2337
    %v2340 = vmul.f32 %v2330, %v2335
    %v2341 = vadd.f32 %v2339, %v2340
    %v2342 = vtanh.pop %v2341
    %v2343 = vmul.f32 %v2334, %v2342
    %v2344 = vpack.c.bf16 %v2343, %v2343
    %v2346 = vrot.slane %v2344, 3
    %2348 = vmatprep.subr.bf16.mxu0 %v1898
    %2349 = vmatpush1.bf16.msra.mxu0 %v1897
    %2350 = vmatprep.subr.bf16.mxu0 %v1902
    %2351 = vmatpush1.bf16.msra.mxu0 %v1901
    %2352 = vmatprep.subr.bf16.mxu0 %v1906
    %2353 = vmatpush1.bf16.msra.mxu0 %v1905
    %2354 = vmatprep.subr.bf16.mxu0 %v1910
    %2355 = vmatpush1.bf16.msra.mxu0 %v1909
    %2356 = vmatprep.subr.bf16.mxu0 %v1914
    %2357 = vmatpush1.bf16.msra.mxu0 %v1913
    %2358 = vmatprep.subr.bf16.mxu0 %v1918
    %2359 = vmatpush1.bf16.msra.mxu0 %v1917
    %2360 = vmatprep.subr.bf16.mxu0 %v1922
    %2361 = vmatpush1.bf16.msra.mxu0 %v1921
    %2362 = vmatprep.subr.bf16.mxu0 %v1926
    %2363 = vmatpush1.bf16.msra.mxu0 %v1925
    %2364 = vmatprep.subr.bf16.mxu0 0
    %2365 = vmatpush1.bf16.msra.mxu0 0
    %2366 = vmatprep.subr.bf16.mxu0 0
    %2367 = vmatpush1.bf16.msra.mxu0 0
    %2368 = vmatprep.subr.bf16.mxu0 0
    %2369 = vmatpush1.bf16.msra.mxu0 0
    %2370 = vmatprep.subr.bf16.mxu0 0
    %2371 = vmatpush1.bf16.msra.mxu0 0
    %2372 = vmatprep.subr.bf16.mxu0 0
    %2373 = vmatpush1.bf16.msra.mxu0 0
    %2374 = vmatprep.subr.bf16.mxu0 0
    %2375 = vmatpush1.bf16.msra.mxu0 0
    %2376 = vmatprep.subr.bf16.mxu0 0
    %2377 = vmatpush1.bf16.msra.mxu0 0
    %2378 = vmatprep.subr.bf16.mxu0 0
    %2379 = vmatpush1.bf16.msra.mxu0 0
    %2380 = vmatprep.mubr.bf16.mxu0 0
    %2381 = vmatmul.mubr.bf16.gmra.mrb[0].mxu0 %v2346
    %v2382 = vpop.f32.mrb[0].mxu0
    %v2383 = vadd.f32 0.0, %v2382
    %v2384 = vpop.f32.mrb[0].mxu0
    %v2385 = vadd.f32 0.0, %v2384
    %v2386 = vpop.f32.mrb[0].mxu0
    %v2387 = vpop.f32.mrb[0].mxu0
    %2388 = vdwg.mxu0
    %2389 = vmatprep.subr.bf16.mxu0 %v1900
    %2390 = vmatpush1.bf16.msra.mxu0 %v1899
    %2391 = vmatprep.subr.bf16.mxu0 %v1904
    %2392 = vmatpush1.bf16.msra.mxu0 %v1903
    %2393 = vmatprep.subr.bf16.mxu0 %v1908
    %2394 = vmatpush1.bf16.msra.mxu0 %v1907
    %2395 = vmatprep.subr.bf16.mxu0 %v1912
    %2396 = vmatpush1.bf16.msra.mxu0 %v1911
    %2397 = vmatprep.subr.bf16.mxu0 %v1916
    %2398 = vmatpush1.bf16.msra.mxu0 %v1915
    %2399 = vmatprep.subr.bf16.mxu0 %v1920
    %2400 = vmatpush1.bf16.msra.mxu0 %v1919
    %2401 = vmatprep.subr.bf16.mxu0 %v1924
    %2402 = vmatpush1.bf16.msra.mxu0 %v1923
    %2403 = vmatprep.subr.bf16.mxu0 %v1928
    %2404 = vmatpush1.bf16.msra.mxu0 %v1927
    %2405 = vmatprep.subr.bf16.mxu0 0
    %2406 = vmatpush1.bf16.msra.mxu0 0
    %2407 = vmatprep.subr.bf16.mxu0 0
    %2408 = vmatpush1.bf16.msra.mxu0 0
    %2409 = vmatprep.subr.bf16.mxu0 0
    %2410 = vmatpush1.bf16.msra.mxu0 0
    %2411 = vmatprep.subr.bf16.mxu0 0
    %2412 = vmatpush1.bf16.msra.mxu0 0
    %2413 = vmatprep.subr.bf16.mxu0 0
    %2414 = vmatpush1.bf16.msra.mxu0 0
    %2415 = vmatprep.subr.bf16.mxu0 0
    %2416 = vmatpush1.bf16.msra.mxu0 0
    %2417 = vmatprep.subr.bf16.mxu0 0
    %2418 = vmatpush1.bf16.msra.mxu0 0
    %2419 = vmatprep.subr.bf16.mxu0 0
    %2420 = vmatpush1.bf16.msra.mxu0 0
    %2421 = vmatprep.mubr.bf16.mxu0 0
    %2422 = vmatmul.mubr.bf16.gmra.mrb[0].mxu0 %v2346
    %v2423 = vpop.f32.mrb[0].mxu0
    %v2424 = vadd.f32 0.0, %v2423
    %v2425 = vpop.f32.mrb[0].mxu0
    %v2426 = vadd.f32 0.0, %v2425
    %v2427 = vpop.f32.mrb[0].mxu0
    %v2428 = vpop.f32.mrb[0].mxu0
    %2429 = vdwg.mxu0
    %v2430 = vadd.f32 %v1737, %v2383
    %v2431 = vadd.f32 %v1739, %v2385
    %v2432 = vadd.f32 %v1780, %v2424
    %v2433 = vadd.f32 %v1782, %v2426
    %v2434 = vxor.u32 %v2430, 2147483648
    %v2435 = vxor.u32 %v2431, 2147483648
    %v2436 = vxor.u32 %v2432, 2147483648
    %v2437 = vmul.f32 %v2434, 1.442695
    %v2438 = vpow.pop %v2437
    %v2439 = vmul.f32 %v2435, 1.442695
    %v2440 = vpow.pop %v2439
    %v2441 = vmul.f32 %v2436, 1.442695
    %v2442 = vpow.pop %v2441
    %v2443 = vadd.f32 %v2438, 1.0
    %v2444 = vadd.f32 %v2440, 1.0
    %v2445 = vadd.f32 %v2442, 1.0
    %v2446 = vrcp.pop %v2443
    %v2447 = vmul.f32 1.0, %v2446
    %v2448 = vrcp.pop %v2444
    %v2449 = vmul.f32 1.0, %v2448
    %v2450 = vrcp.pop %v2445
    %v2451 = vmul.f32 1.0, %v2450
    %v2452 = vtanh.pop %v2433
    %v2454 = vrot.slane %v2341, 6
    %v2456 = vmul.f32 %v2449, %v2454
    %v2457 = vmul.f32 %v2447, %v2452
    %v2458 = vadd.f32 %v2456, %v2457
    %v2459 = vtanh.pop %v2458
    %v2460 = vmul.f32 %v2451, %v2459
    %v2461 = vpack.c.bf16 %v2460, %v2460
    %2462 = vmatprep.subr.bf16.mxu0 %v1898
    %2463 = vmatpush1.bf16.msra.mxu0 %v1897
    %2464 = vmatprep.subr.bf16.mxu0 %v1902
    %2465 = vmatpush1.bf16.msra.mxu0 %v1901
    %2466 = vmatprep.subr.bf16.mxu0 %v1906
    %2467 = vmatpush1.bf16.msra.mxu0 %v1905
    %2468 = vmatprep.subr.bf16.mxu0 %v1910
    %2469 = vmatpush1.bf16.msra.mxu0 %v1909
    %2470 = vmatprep.subr.bf16.mxu0 %v1914
    %2471 = vmatpush1.bf16.msra.mxu0 %v1913
    %2472 = vmatprep.subr.bf16.mxu0 %v1918
    %2473 = vmatpush1.bf16.msra.mxu0 %v1917
    %2474 = vmatprep.subr.bf16.mxu0 %v1922
    %2475 = vmatpush1.bf16.msra.mxu0 %v1921
    %2476 = vmatprep.subr.bf16.mxu0 %v1926
    %2477 = vmatpush1.bf16.msra.mxu0 %v1925
    %2478 = vmatprep.subr.bf16.mxu0 0
    %2479 = vmatpush1.bf16.msra.mxu0 0
    %2480 = vmatprep.subr.bf16.mxu0 0
    %2481 = vmatpush1.bf16.msra.mxu0 0
    %2482 = vmatprep.subr.bf16.mxu0 0
    %2483 = vmatpush1.bf16.msra.mxu0 0
    %2484 = vmatprep.subr.bf16.mxu0 0
    %2485 = vmatpush1.bf16.msra.mxu0 0
    %2486 = vmatprep.subr.bf16.mxu0 0
    %2487 = vmatpush1.bf16.msra.mxu0 0
    %2488 = vmatprep.subr.bf16.mxu0 0
    %2489 = vmatpush1.bf16.msra.mxu0 0
    %2490 = vmatprep.subr.bf16.mxu0 0
    %2491 = vmatpush1.bf16.msra.mxu0 0
    %2492 = vmatprep.subr.bf16.mxu0 0
    %2493 = vmatpush1.bf16.msra.mxu0 0
    %2494 = vmatprep.mubr.bf16.mxu0 0
    %2495 = vmatmul.mubr.bf16.gmra.mrb[0].mxu0 %v2461
    %v2496 = vpop.f32.mrb[0].mxu0
    %v2497 = vadd.f32 0.0, %v2496
    %v2498 = vpop.f32.mrb[0].mxu0
    %v2499 = vadd.f32 0.0, %v2498
    %v2500 = vpop.f32.mrb[0].mxu0
    %v2501 = vpop.f32.mrb[0].mxu0
    %2502 = vdwg.mxu0
    %2503 = vmatprep.subr.bf16.mxu0 %v1900
    %2504 = vmatpush1.bf16.msra.mxu0 %v1899
    %2505 = vmatprep.subr.bf16.mxu0 %v1904
    %2506 = vmatpush1.bf16.msra.mxu0 %v1903
    %2507 = vmatprep.subr.bf16.mxu0 %v1908
    %2508 = vmatpush1.bf16.msra.mxu0 %v1907
    %2509 = vmatprep.subr.bf16.mxu0 %v1912
    %2510 = vmatpush1.bf16.msra.mxu0 %v1911
    %2511 = vmatprep.subr.bf16.mxu0 %v1916
    %2512 = vmatpush1.bf16.msra.mxu0 %v1915
    %2513 = vmatprep.subr.bf16.mxu0 %v1920
    %2514 = vmatpush1.bf16.msra.mxu0 %v1919
    %2515 = vmatprep.subr.bf16.mxu0 %v1924
    %2516 = vmatpush1.bf16.msra.mxu0 %v1923
    %2517 = vmatprep.subr.bf16.mxu0 %v1928
    %2518 = vmatpush1.bf16.msra.mxu0 %v1927
    %2519 = vmatprep.subr.bf16.mxu0 0
    %2520 = vmatpush1.bf16.msra.mxu0 0
    %2521 = vmatprep.subr.bf16.mxu0 0
    %2522 = vmatpush1.bf16.msra.mxu0 0
    %2523 = vmatprep.subr.bf16.mxu0 0
    %2524 = vmatpush1.bf16.msra.mxu0 0
    %2525 = vmatprep.subr.bf16.mxu0 0
    %2526 = vmatpush1.bf16.msra.mxu0 0
    %2527 = vmatprep.subr.bf16.mxu0 0
    %2528 = vmatpush1.bf16.msra.mxu0 0
    %2529 = vmatprep.subr.bf16.mxu0 0
    %2530 = vmatpush1.bf16.msra.mxu0 0
    %2531 = vmatprep.subr.bf16.mxu0 0
    %2532 = vmatpush1.bf16.msra.mxu0 0
    %2533 = vmatprep.subr.bf16.mxu0 0
    %2534 = vmatpush1.bf16.msra.mxu0 0
    %2535 = vmatprep.mubr.bf16.mxu0 0
    %2536 = vmatmul.mubr.bf16.gmra.mrb[0].mxu0 %v2461
    %v2537 = vpop.f32.mrb[0].mxu0
    %v2538 = vadd.f32 0.0, %v2537
    %v2539 = vpop.f32.mrb[0].mxu0
    %v2540 = vadd.f32 0.0, %v2539
    %v2541 = vpop.f32.mrb[0].mxu0
    %v2542 = vpop.f32.mrb[0].mxu0
    %2543 = vdwg.mxu0
    %v2548 = vrot.slane %v2497, 6
    %v2549 = vrot.slane %v2499, 6
    %v2550 = vrot.slane %v2538, 6
    %v2551 = vrot.slane %v2540, 6
    %v2556 = vadd.f32 %v1737, %v2548
    %v2557 = vadd.f32 %v1739, %v2549
    %v2558 = vadd.f32 %v1780, %v2550
    %v2559 = vadd.f32 %v1782, %v2551
    %v2560 = vxor.u32 %v2556, 2147483648
    %v2561 = vxor.u32 %v2557, 2147483648
    %v2562 = vxor.u32 %v2558, 2147483648
    %v2563 = vmul.f32 %v2560, 1.442695
    %v2564 = vpow.pop %v2563
    %v2565 = vmul.f32 %v2561, 1.442695
    %v2566 = vpow.pop %v2565
    %v2567 = vmul.f32 %v2562, 1.442695
    %v2568 = vpow.pop %v2567
    %v2569 = vadd.f32 %v2564, 1.0
    %v2570 = vadd.f32 %v2566, 1.0
    %v2571 = vadd.f32 %v2568, 1.0
    %v2572 = vrcp.pop %v2569
    %v2573 = vmul.f32 1.0, %v2572
    %v2574 = vrcp.pop %v2570
    %v2575 = vmul.f32 1.0, %v2574
    %v2576 = vrcp.pop %v2571
    %v2577 = vmul.f32 1.0, %v2576
    %v2578 = vtanh.pop %v2559
    %v2580 = vrot.slane %v2458, 6
    %v2582 = vmul.f32 %v2575, %v2580
    %v2583 = vmul.f32 %v2573, %v2578
    %v2584 = vadd.f32 %v2582, %v2583
    %v2585 = vtanh.pop %v2584
    %v2586 = vmul.f32 %v2577, %v2585
    %v2587 = vpack.c.bf16 %v2586, %v2586
    %v2589 = vrot.slane %v2587, 1
    %2591 = vmatprep.subr.bf16.mxu0 %v1898
    %2592 = vmatpush1.bf16.msra.mxu0 %v1897
    %2593 = vmatprep.subr.bf16.mxu0 %v1902
    %2594 = vmatpush1.bf16.msra.mxu0 %v1901
    %2595 = vmatprep.subr.bf16.mxu0 %v1906
    %2596 = vmatpush1.bf16.msra.mxu0 %v1905
    %2597 = vmatprep.subr.bf16.mxu0 %v1910
    %2598 = vmatpush1.bf16.msra.mxu0 %v1909
    %2599 = vmatprep.subr.bf16.mxu0 %v1914
    %2600 = vmatpush1.bf16.msra.mxu0 %v1913
    %2601 = vmatprep.subr.bf16.mxu0 %v1918
    %2602 = vmatpush1.bf16.msra.mxu0 %v1917
    %2603 = vmatprep.subr.bf16.mxu0 %v1922
    %2604 = vmatpush1.bf16.msra.mxu0 %v1921
    %2605 = vmatprep.subr.bf16.mxu0 %v1926
    %2606 = vmatpush1.bf16.msra.mxu0 %v1925
    %2607 = vmatprep.subr.bf16.mxu0 0
    %2608 = vmatpush1.bf16.msra.mxu0 0
    %2609 = vmatprep.subr.bf16.mxu0 0
    %2610 = vmatpush1.bf16.msra.mxu0 0
    %2611 = vmatprep.subr.bf16.mxu0 0
    %2612 = vmatpush1.bf16.msra.mxu0 0
    %2613 = vmatprep.subr.bf16.mxu0 0
    %2614 = vmatpush1.bf16.msra.mxu0 0
    %2615 = vmatprep.subr.bf16.mxu0 0
    %2616 = vmatpush1.bf16.msra.mxu0 0
    %2617 = vmatprep.subr.bf16.mxu0 0
    %2618 = vmatpush1.bf16.msra.mxu0 0
    %2619 = vmatprep.subr.bf16.mxu0 0
    %2620 = vmatpush1.bf16.msra.mxu0 0
    %2621 = vmatprep.subr.bf16.mxu0 0
    %2622 = vmatpush1.bf16.msra.mxu0 0
    %2623 = vmatprep.mubr.bf16.mxu0 0
    %2624 = vmatmul.mubr.bf16.gmra.mrb[0].mxu0 %v2589
    %v2625 = vpop.f32.mrb[0].mxu0
    %v2626 = vadd.f32 0.0, %v2625
    %v2627 = vpop.f32.mrb[0].mxu0
    %v2628 = vadd.f32 0.0, %v2627
    %v2629 = vpop.f32.mrb[0].mxu0
    %v2630 = vpop.f32.mrb[0].mxu0
    %2631 = vdwg.mxu0
    %2632 = vmatprep.subr.bf16.mxu0 %v1900
    %2633 = vmatpush1.bf16.msra.mxu0 %v1899
    %2634 = vmatprep.subr.bf16.mxu0 %v1904
    %2635 = vmatpush1.bf16.msra.mxu0 %v1903
    %2636 = vmatprep.subr.bf16.mxu0 %v1908
    %2637 = vmatpush1.bf16.msra.mxu0 %v1907
    %2638 = vmatprep.subr.bf16.mxu0 %v1912
    %2639 = vmatpush1.bf16.msra.mxu0 %v1911
    %2640 = vmatprep.subr.bf16.mxu0 %v1916
    %2641 = vmatpush1.bf16.msra.mxu0 %v1915
    %2642 = vmatprep.subr.bf16.mxu0 %v1920
    %2643 = vmatpush1.bf16.msra.mxu0 %v1919
    %2644 = vmatprep.subr.bf16.mxu0 %v1924
    %2645 = vmatpush1.bf16.msra.mxu0 %v1923
    %2646 = vmatprep.subr.bf16.mxu0 %v1928
    %2647 = vmatpush1.bf16.msra.mxu0 %v1927
    %2648 = vmatprep.subr.bf16.mxu0 0
    %2649 = vmatpush1.bf16.msra.mxu0 0
    %2650 = vmatprep.subr.bf16.mxu0 0
    %2651 = vmatpush1.bf16.msra.mxu0 0
    %2652 = vmatprep.subr.bf16.mxu0 0
    %2653 = vmatpush1.bf16.msra.mxu0 0
    %2654 = vmatprep.subr.bf16.mxu0 0
    %2655 = vmatpush1.bf16.msra.mxu0 0
    %2656 = vmatprep.subr.bf16.mxu0 0
    %2657 = vmatpush1.bf16.msra.mxu0 0
    %2658 = vmatprep.subr.bf16.mxu0 0
    %2659 = vmatpush1.bf16.msra.mxu0 0
    %2660 = vmatprep.subr.bf16.mxu0 0
    %2661 = vmatpush1.bf16.msra.mxu0 0
    %2662 = vmatprep.subr.bf16.mxu0 0
    %2663 = vmatpush1.bf16.msra.mxu0 0
    %2664 = vmatprep.mubr.bf16.mxu0 0
    %2665 = vmatmul.mubr.bf16.gmra.mrb[0].mxu0 %v2589
    %v2666 = vpop.f32.mrb[0].mxu0
    %v2667 = vadd.f32 0.0, %v2666
    %v2668 = vpop.f32.mrb[0].mxu0
    %v2669 = vadd.f32 0.0, %v2668
    %v2670 = vpop.f32.mrb[0].mxu0
    %v2671 = vpop.f32.mrb[0].mxu0
    %2672 = vdwg.mxu0
    %v2677 = vrot.slane %v2626, 4
    %v2678 = vrot.slane %v2628, 4
    %v2679 = vrot.slane %v2667, 4
    %v2680 = vrot.slane %v2669, 4
    %v2685 = vadd.f32 %v1737, %v2677
    %v2686 = vadd.f32 %v1739, %v2678
    %v2687 = vadd.f32 %v1780, %v2679
    %v2688 = vadd.f32 %v1782, %v2680
    %v2689 = vxor.u32 %v2685, 2147483648
    %v2690 = vxor.u32 %v2686, 2147483648
    %v2691 = vxor.u32 %v2687, 2147483648
    %v2692 = vmul.f32 %v2689, 1.442695
    %v2693 = vpow.pop %v2692
    %v2694 = vmul.f32 %v2690, 1.442695
    %v2695 = vpow.pop %v2694
    %v2696 = vmul.f32 %v2691, 1.442695
    %v2697 = vpow.pop %v2696
    %v2698 = vadd.f32 %v2693, 1.0
    %v2699 = vadd.f32 %v2695, 1.0
    %v2700 = vadd.f32 %v2697, 1.0
    %v2701 = vrcp.pop %v2698
    %v2702 = vmul.f32 1.0, %v2701
    %v2703 = vrcp.pop %v2699
    %v2704 = vmul.f32 1.0, %v2703
    %v2705 = vrcp.pop %v2700
    %v2706 = vmul.f32 1.0, %v2705
    %v2707 = vtanh.pop %v2688
    %v2709 = vrot.slane %v2584, 6
    %v2711 = vmul.f32 %v2704, %v2709
    %v2712 = vmul.f32 %v2702, %v2707
    %v2713 = vadd.f32 %v2711, %v2712
    %v2714 = vtanh.pop %v2713
    %v2715 = vmul.f32 %v2706, %v2714
    %v2716 = vpack.c.bf16 %v2715, %v2715
    %v2718 = vrot.slane %v2716, 2
    %2720 = vmatprep.subr.bf16.mxu0 %v1898
    %2721 = vmatpush1.bf16.msra.mxu0 %v1897
    %2722 = vmatprep.subr.bf16.mxu0 %v1902
    %2723 = vmatpush1.bf16.msra.mxu0 %v1901
    %2724 = vmatprep.subr.bf16.mxu0 %v1906
    %2725 = vmatpush1.bf16.msra.mxu0 %v1905
    %2726 = vmatprep.subr.bf16.mxu0 %v1910
    %2727 = vmatpush1.bf16.msra.mxu0 %v1909
    %2728 = vmatprep.subr.bf16.mxu0 %v1914
    %2729 = vmatpush1.bf16.msra.mxu0 %v1913
    %2730 = vmatprep.subr.bf16.mxu0 %v1918
    %2731 = vmatpush1.bf16.msra.mxu0 %v1917
    %2732 = vmatprep.subr.bf16.mxu0 %v1922
    %2733 = vmatpush1.bf16.msra.mxu0 %v1921
    %2734 = vmatprep.subr.bf16.mxu0 %v1926
    %2735 = vmatpush1.bf16.msra.mxu0 %v1925
    %2736 = vmatprep.subr.bf16.mxu0 0
    %2737 = vmatpush1.bf16.msra.mxu0 0
    %2738 = vmatprep.subr.bf16.mxu0 0
    %2739 = vmatpush1.bf16.msra.mxu0 0
    %2740 = vmatprep.subr.bf16.mxu0 0
    %2741 = vmatpush1.bf16.msra.mxu0 0
    %2742 = vmatprep.subr.bf16.mxu0 0
    %2743 = vmatpush1.bf16.msra.mxu0 0
    %2744 = vmatprep.subr.bf16.mxu0 0
    %2745 = vmatpush1.bf16.msra.mxu0 0
    %2746 = vmatprep.subr.bf16.mxu0 0
    %2747 = vmatpush1.bf16.msra.mxu0 0
    %2748 = vmatprep.subr.bf16.mxu0 0
    %2749 = vmatpush1.bf16.msra.mxu0 0
    %2750 = vmatprep.subr.bf16.mxu0 0
    %2751 = vmatpush1.bf16.msra.mxu0 0
    %2752 = vmatprep.mubr.bf16.mxu0 0
    %2753 = vmatmul.mubr.bf16.gmra.mrb[0].mxu0 %v2718
    %v2754 = vpop.f32.mrb[0].mxu0
    %v2755 = vadd.f32 0.0, %v2754
    %v2756 = vpop.f32.mrb[0].mxu0
    %v2757 = vadd.f32 0.0, %v2756
    %v2758 = vpop.f32.mrb[0].mxu0
    %v2759 = vpop.f32.mrb[0].mxu0
    %2760 = vdwg.mxu0
    %2761 = vmatprep.subr.bf16.mxu0 %v1900
    %2762 = vmatpush1.bf16.msra.mxu0 %v1899
    %2763 = vmatprep.subr.bf16.mxu0 %v1904
    %2764 = vmatpush1.bf16.msra.mxu0 %v1903
    %2765 = vmatprep.subr.bf16.mxu0 %v1908
    %2766 = vmatpush1.bf16.msra.mxu0 %v1907
    %2767 = vmatprep.subr.bf16.mxu0 %v1912
    %2768 = vmatpush1.bf16.msra.mxu0 %v1911
    %2769 = vmatprep.subr.bf16.mxu0 %v1916
    %2770 = vmatpush1.bf16.msra.mxu0 %v1915
    %2771 = vmatprep.subr.bf16.mxu0 %v1920
    %2772 = vmatpush1.bf16.msra.mxu0 %v1919
    %2773 = vmatprep.subr.bf16.mxu0 %v1924
    %2774 = vmatpush1.bf16.msra.mxu0 %v1923
    %2775 = vmatprep.subr.bf16.mxu0 %v1928
    %2776 = vmatpush1.bf16.msra.mxu0 %v1927
    %2777 = vmatprep.subr.bf16.mxu0 0
    %2778 = vmatpush1.bf16.msra.mxu0 0
    %2779 = vmatprep.subr.bf16.mxu0 0
    %2780 = vmatpush1.bf16.msra.mxu0 0
    %2781 = vmatprep.subr.bf16.mxu0 0
    %2782 = vmatpush1.bf16.msra.mxu0 0
    %2783 = vmatprep.subr.bf16.mxu0 0
    %2784 = vmatpush1.bf16.msra.mxu0 0
    %2785 = vmatprep.subr.bf16.mxu0 0
    %2786 = vmatpush1.bf16.msra.mxu0 0
    %2787 = vmatprep.subr.bf16.mxu0 0
    %2788 = vmatpush1.bf16.msra.mxu0 0
    %2789 = vmatprep.subr.bf16.mxu0 0
    %2790 = vmatpush1.bf16.msra.mxu0 0
    %2791 = vmatprep.subr.bf16.mxu0 0
    %2792 = vmatpush1.bf16.msra.mxu0 0
    %2793 = vmatprep.mubr.bf16.mxu0 0
    %2794 = vmatmul.mubr.bf16.gmra.mrb[0].mxu0 %v2718
    %v2795 = vpop.f32.mrb[0].mxu0
    %v2796 = vadd.f32 0.0, %v2795
    %v2797 = vpop.f32.mrb[0].mxu0
    %v2798 = vadd.f32 0.0, %v2797
    %v2799 = vpop.f32.mrb[0].mxu0
    %v2800 = vpop.f32.mrb[0].mxu0
    %2801 = vdwg.mxu0
    %v2806 = vrot.slane %v2755, 2
    %v2807 = vrot.slane %v2757, 2
    %v2808 = vrot.slane %v2796, 2
    %v2809 = vrot.slane %v2798, 2
    %v2814 = vadd.f32 %v1737, %v2806
    %v2815 = vadd.f32 %v1739, %v2807
    %v2816 = vadd.f32 %v1780, %v2808
    %v2817 = vadd.f32 %v1782, %v2809
    %v2818 = vxor.u32 %v2814, 2147483648
    %v2819 = vxor.u32 %v2815, 2147483648
    %v2820 = vxor.u32 %v2816, 2147483648
    %v2821 = vmul.f32 %v2818, 1.442695
    %v2822 = vpow.pop %v2821
    %v2823 = vmul.f32 %v2819, 1.442695
    %v2824 = vpow.pop %v2823
    %v2825 = vmul.f32 %v2820, 1.442695
    %v2826 = vpow.pop %v2825
    %v2827 = vadd.f32 %v2822, 1.0
    %v2828 = vadd.f32 %v2824, 1.0
    %v2829 = vadd.f32 %v2826, 1.0
    %v2830 = vrcp.pop %v2827
    %v2831 = vmul.f32 1.0, %v2830
    %v2832 = vrcp.pop %v2828
    %v2833 = vmul.f32 1.0, %v2832
    %v2834 = vrcp.pop %v2829
    %v2835 = vmul.f32 1.0, %v2834
    %v2836 = vtanh.pop %v2817
    %v2838 = vrot.slane %v2713, 6
    %v2840 = vmul.f32 %v2833, %v2838
    %v2841 = vmul.f32 %v2831, %v2836
    %v2842 = vadd.f32 %v2840, %v2841
    %v2843 = vtanh.pop %v2842
    %v2844 = vmul.f32 %v2835, %v2843
    %v2845 = vsel %vm1439, %v1799, %v2085
    %v2846 = vsel %vm1441, %v2845, %v2214
    %v2847 = vsel %vm1443, %v2846, %v2343
    %v2848 = vsel %vm1439, %v2460, %v2586
    %v2849 = vsel %vm1441, %v2848, %v2715
    %v2850 = vsel %vm1443, %v2849, %v2844
    %v2851 = vpack.c.bf16 %v2850, %v2847
    %s2852 = scalar_lea.vmem [#allocation2], 512
    %v2853 = vld [vmem:[%s2852] sm:$0xff]
    %v2854 = vld [vmem:[%s2852 + $0x8] sm:$0xff]
    %v2855 = vld [vmem:[%s2852 + $0x10] sm:$0xff]
    %v2856 = vld [vmem:[%s2852 + $0x18] sm:$0xff]
    %v2857 = vld [vmem:[%s2852 + $0x20] sm:$0xff]
    %v2858 = vld [vmem:[%s2852 + $0x28] sm:$0xff]
    %v2859 = vld [vmem:[%s2852 + $0x30] sm:$0xff]
    %v2860 = vld [vmem:[%s2852 + $0x38] sm:$0xff]
    %v2861 = vld [vmem:[%s2852 + $0x40] sm:$0xff]
    %v2862 = vld [vmem:[%s2852 + $0x48] sm:$0xff]
    %v2863 = vld [vmem:[%s2852 + $0x50] sm:$0xff]
    %v2864 = vld [vmem:[%s2852 + $0x58] sm:$0xff]
    %v2865 = vld [vmem:[%s2852 + $0x60] sm:$0xff]
    %v2866 = vld [vmem:[%s2852 + $0x68] sm:$0xff]
    %v2867 = vld [vmem:[%s2852 + $0x70] sm:$0xff]
    %v2868 = vld [vmem:[%s2852 + $0x78] sm:$0xff]
    %v2869 = vld [vmem:[%s2852 + $0x80] sm:$0xff]
    %v2870 = vld [vmem:[%s2852 + $0x88] sm:$0xff]
    %v2871 = vld [vmem:[%s2852 + $0x90] sm:$0xff]
    %v2872 = vld [vmem:[%s2852 + $0x98] sm:$0xff]
    %v2873 = vld [vmem:[%s2852 + $0xa0] sm:$0xff]
    %v2874 = vld [vmem:[%s2852 + $0xa8] sm:$0xff]
    %v2875 = vld [vmem:[%s2852 + $0xb0] sm:$0xff]
    %v2876 = vld [vmem:[%s2852 + $0xb8] sm:$0xff]
    %v2877 = vld [vmem:[%s2852 + $0xc0] sm:$0xff]
    %v2878 = vld [vmem:[%s2852 + $0xc8] sm:$0xff]
    %v2879 = vld [vmem:[%s2852 + $0xd0] sm:$0xff]
    %v2880 = vld [vmem:[%s2852 + $0xd8] sm:$0xff]
    %v2881 = vld [vmem:[%s2852 + $0xe0] sm:$0xff]
    %v2882 = vld [vmem:[%s2852 + $0xe8] sm:$0xff]
    %v2883 = vld [vmem:[%s2852 + $0xf0] sm:$0xff]
    %v2884 = vld [vmem:[%s2852 + $0xf8] sm:$0xff]
    %s2885 = scalar_lea.vmem %s1, 512
    %v2886 = vld [vmem:[%s2885] sm:$0xff]
    %v2887 = vld [vmem:[%s2885 + $0x8] sm:$0xff]
    %v2888 = vld [vmem:[%s2885 + $0x10] sm:$0xff]
    %v2889 = vld [vmem:[%s2885 + $0x18] sm:$0xff]
    %v2890 = vld [vmem:[%s2885 + $0x20] sm:$0xff]
    %v2891 = vld [vmem:[%s2885 + $0x28] sm:$0xff]
    %v2892 = vld [vmem:[%s2885 + $0x30] sm:$0xff]
    %v2893 = vld [vmem:[%s2885 + $0x38] sm:$0xff]
    %v2894 = vld [vmem:[%s2885 + $0x40] sm:$0xff]
    %v2895 = vld [vmem:[%s2885 + $0x48] sm:$0xff]
    %v2896 = vld [vmem:[%s2885 + $0x50] sm:$0xff]
    %v2897 = vld [vmem:[%s2885 + $0x58] sm:$0xff]
    %v2898 = vld [vmem:[%s2885 + $0x60] sm:$0xff]
    %v2899 = vld [vmem:[%s2885 + $0x68] sm:$0xff]
    %v2900 = vld [vmem:[%s2885 + $0x70] sm:$0xff]
    %v2901 = vld [vmem:[%s2885 + $0x78] sm:$0xff]
    %v2902 = vld [vmem:[%s2885 + $0x80] sm:$0xff]
    %v2903 = vld [vmem:[%s2885 + $0x88] sm:$0xff]
    %v2904 = vld [vmem:[%s2885 + $0x90] sm:$0xff]
    %v2905 = vld [vmem:[%s2885 + $0x98] sm:$0xff]
    %v2906 = vld [vmem:[%s2885 + $0xa0] sm:$0xff]
    %v2907 = vld [vmem:[%s2885 + $0xa8] sm:$0xff]
    %v2908 = vld [vmem:[%s2885 + $0xb0] sm:$0xff]
    %v2909 = vld [vmem:[%s2885 + $0xb8] sm:$0xff]
    %v2910 = vld [vmem:[%s2885 + $0xc0] sm:$0xff]
    %v2911 = vld [vmem:[%s2885 + $0xc8] sm:$0xff]
    %v2912 = vld [vmem:[%s2885 + $0xd0] sm:$0xff]
    %v2913 = vld [vmem:[%s2885 + $0xd8] sm:$0xff]
    %v2914 = vld [vmem:[%s2885 + $0xe0] sm:$0xff]
    %v2915 = vld [vmem:[%s2885 + $0xe8] sm:$0xff]
    %v2916 = vld [vmem:[%s2885 + $0xf0] sm:$0xff]
    %v2917 = vld [vmem:[%s2885 + $0xf8] sm:$0xff]
    %s2918 = scalar_lea.vmem %s3, 8
    %v2919 = vld [vmem:[%s2918] sm:$0xf]
    %v2921 = vlaneseq
    %v2922 = vshrl.u32 %v2921, 7
    %v2923 = vsub.s32 0, %v2922
    %v2924 = vrot.slane %v2919, %v2923
    %v2925 = vlaneseq
    %v2926 = vshrl.u32 %v2925, 7
    %v2927 = vsub.s32 1, %v2926
    %v2928 = vrot.slane %v2919, %v2927
    %v2929 = vlaneseq
    %v2930 = vshrl.u32 %v2929, 7
    %v2931 = vsub.s32 2, %v2930
    %v2932 = vrot.slane %v2919, %v2931
    %v2933 = vlaneseq
    %v2934 = vshrl.u32 %v2933, 7
    %v2935 = vsub.s32 3, %v2934
    %v2936 = vrot.slane %v2919, %v2935
    %v2973 = vunpack.c.l.b16 %v2886
    %v2974 = vunpack.c.h.b16 %v2886
    %v2975 = vunpack.c.l.b16 %v2887
    %v2976 = vunpack.c.h.b16 %v2887
    %v2977 = vunpack.c.l.b16 %v2888
    %v2978 = vunpack.c.h.b16 %v2888
    %v2979 = vunpack.c.l.b16 %v2889
    %v2980 = vunpack.c.h.b16 %v2889
    %v2981 = vunpack.c.l.b16 %v2890
    %v2982 = vunpack.c.h.b16 %v2890
    %v2983 = vunpack.c.l.b16 %v2891
    %v2984 = vunpack.c.h.b16 %v2891
    %v2985 = vunpack.c.l.b16 %v2892
    %v2986 = vunpack.c.h.b16 %v2892
    %v2987 = vunpack.c.l.b16 %v2893
    %v2988 = vunpack.c.h.b16 %v2893
    %v2989 = vunpack.c.l.b16 %v2894
    %v2990 = vunpack.c.h.b16 %v2894
    %v2991 = vunpack.c.l.b16 %v2895
    %v2992 = vunpack.c.h.b16 %v2895
    %v2993 = vunpack.c.l.b16 %v2896
    %v2994 = vunpack.c.h.b16 %v2896
    %v2995 = vunpack.c.l.b16 %v2897
    %v2996 = vunpack.c.h.b16 %v2897
    %v2997 = vunpack.c.l.b16 %v2898
    %v2998 = vunpack.c.h.b16 %v2898
    %v2999 = vunpack.c.l.b16 %v2899
    %v3000 = vunpack.c.h.b16 %v2899
    %v3001 = vunpack.c.l.b16 %v2900
    %v3002 = vunpack.c.h.b16 %v2900
    %v3003 = vunpack.c.l.b16 %v2901
    %v3004 = vunpack.c.h.b16 %v2901
    %v3005 = vunpack.c.l.b16 %v2902
    %v3006 = vunpack.c.h.b16 %v2902
    %v3007 = vunpack.c.l.b16 %v2903
    %v3008 = vunpack.c.h.b16 %v2903
    %v3009 = vunpack.c.l.b16 %v2904
    %v3010 = vunpack.c.h.b16 %v2904
    %v3011 = vunpack.c.l.b16 %v2905
    %v3012 = vunpack.c.h.b16 %v2905
    %v3013 = vunpack.c.l.b16 %v2906
    %v3014 = vunpack.c.h.b16 %v2906
    %v3015 = vunpack.c.l.b16 %v2907
    %v3016 = vunpack.c.h.b16 %v2907
    %v3017 = vunpack.c.l.b16 %v2908
    %v3018 = vunpack.c.h.b16 %v2908
    %v3019 = vunpack.c.l.b16 %v2909
    %v3020 = vunpack.c.h.b16 %v2909
    %v3021 = vunpack.c.l.b16 %v2910
    %v3022 = vunpack.c.h.b16 %v2910
    %v3023 = vunpack.c.l.b16 %v2911
    %v3024 = vunpack.c.h.b16 %v2911
    %v3025 = vunpack.c.l.b16 %v2912
    %v3026 = vunpack.c.h.b16 %v2912
    %v3027 = vunpack.c.l.b16 %v2913
    %v3028 = vunpack.c.h.b16 %v2913
    %v3029 = vunpack.c.l.b16 %v2914
    %v3030 = vunpack.c.h.b16 %v2914
    %v3031 = vunpack.c.l.b16 %v2915
    %v3032 = vunpack.c.h.b16 %v2915
    %v3033 = vunpack.c.l.b16 %v2916
    %v3034 = vunpack.c.h.b16 %v2916
    %v3035 = vunpack.c.l.b16 %v2917
    %v3036 = vunpack.c.h.b16 %v2917
    %v3037 = vpack.c.b16 %v2977, %v2973
    %v3038 = vpack.c.b16 %v2978, %v2974
    %v3039 = vpack.c.b16 %v2979, %v2975
    %v3040 = vpack.c.b16 %v2980, %v2976
    %v3041 = vpack.c.b16 %v2985, %v2981
    %v3042 = vpack.c.b16 %v2986, %v2982
    %v3043 = vpack.c.b16 %v2987, %v2983
    %v3044 = vpack.c.b16 %v2988, %v2984
    %v3045 = vpack.c.b16 %v2993, %v2989
    %v3046 = vpack.c.b16 %v2994, %v2990
    %v3047 = vpack.c.b16 %v2995, %v2991
    %v3048 = vpack.c.b16 %v2996, %v2992
    %v3049 = vpack.c.b16 %v3001, %v2997
    %v3050 = vpack.c.b16 %v3002, %v2998
    %v3051 = vpack.c.b16 %v3003, %v2999
    %v3052 = vpack.c.b16 %v3004, %v3000
    %v3053 = vpack.c.b16 %v3009, %v3005
    %v3054 = vpack.c.b16 %v3010, %v3006
    %v3055 = vpack.c.b16 %v3011, %v3007
    %v3056 = vpack.c.b16 %v3012, %v3008
    %v3057 = vpack.c.b16 %v3017, %v3013
    %v3058 = vpack.c.b16 %v3018, %v3014
    %v3059 = vpack.c.b16 %v3019, %v3015
    %v3060 = vpack.c.b16 %v3020, %v3016
    %v3061 = vpack.c.b16 %v3025, %v3021
    %v3062 = vpack.c.b16 %v3026, %v3022
    %v3063 = vpack.c.b16 %v3027, %v3023
    %v3064 = vpack.c.b16 %v3028, %v3024
    %v3065 = vpack.c.b16 %v3033, %v3029
    %v3066 = vpack.c.b16 %v3034, %v3030
    %v3067 = vpack.c.b16 %v3035, %v3031
    %v3068 = vpack.c.b16 %v3036, %v3032
    %3101 = vmatprep.subr.bf16.mxu0 %v3038
    %3102 = vmatpush1.bf16.msra.mxu0 %v3037
    %3103 = vmatprep.subr.bf16.mxu0 %v3042
    %3104 = vmatpush1.bf16.msra.mxu0 %v3041
    %3105 = vmatprep.subr.bf16.mxu0 %v3046
    %3106 = vmatpush1.bf16.msra.mxu0 %v3045
    %3107 = vmatprep.subr.bf16.mxu0 %v3050
    %3108 = vmatpush1.bf16.msra.mxu0 %v3049
    %3109 = vmatprep.subr.bf16.mxu0 %v3054
    %3110 = vmatpush1.bf16.msra.mxu0 %v3053
    %3111 = vmatprep.subr.bf16.mxu0 %v3058
    %3112 = vmatpush1.bf16.msra.mxu0 %v3057
    %3113 = vmatprep.subr.bf16.mxu0 %v3062
    %3114 = vmatpush1.bf16.msra.mxu0 %v3061
    %3115 = vmatprep.subr.bf16.mxu0 %v3066
    %3116 = vmatpush1.bf16.msra.mxu0 %v3065
    %3117 = vmatprep.subr.bf16.mxu0 0
    %3118 = vmatpush1.bf16.msra.mxu0 0
    %3119 = vmatprep.subr.bf16.mxu0 0
    %3120 = vmatpush1.bf16.msra.mxu0 0
    %3121 = vmatprep.subr.bf16.mxu0 0
    %3122 = vmatpush1.bf16.msra.mxu0 0
    %3123 = vmatprep.subr.bf16.mxu0 0
    %3124 = vmatpush1.bf16.msra.mxu0 0
    %3125 = vmatprep.subr.bf16.mxu0 0
    %3126 = vmatpush1.bf16.msra.mxu0 0
    %3127 = vmatprep.subr.bf16.mxu0 0
    %3128 = vmatpush1.bf16.msra.mxu0 0
    %3129 = vmatprep.subr.bf16.mxu0 0
    %3130 = vmatpush1.bf16.msra.mxu0 0
    %3131 = vmatprep.subr.bf16.mxu0 0
    %3132 = vmatpush1.bf16.msra.mxu0 0
    %3133 = vmatprep.mubr.bf16.mxu0 0
    %3134 = vmatmul.mubr.bf16.gmra.mrb[0].mxu0 %v2851
    %v3135 = vpop.f32.mrb[0].mxu0
    %v3136 = vadd.f32 %v2924, %v3135
    %v3137 = vpop.f32.mrb[0].mxu0
    %v3138 = vadd.f32 %v2928, %v3137
    %v3139 = vpop.f32.mrb[0].mxu0
    %v3140 = vadd.f32 %v2924, %v3139
    %v3141 = vpop.f32.mrb[0].mxu0
    %v3142 = vadd.f32 %v2928, %v3141
    %3143 = vdwg.mxu0
    %3144 = vmatprep.subr.bf16.mxu0 %v3040
    %3145 = vmatpush1.bf16.msra.mxu0 %v3039
    %3146 = vmatprep.subr.bf16.mxu0 %v3044
    %3147 = vmatpush1.bf16.msra.mxu0 %v3043
    %3148 = vmatprep.subr.bf16.mxu0 %v3048
    %3149 = vmatpush1.bf16.msra.mxu0 %v3047
    %3150 = vmatprep.subr.bf16.mxu0 %v3052
    %3151 = vmatpush1.bf16.msra.mxu0 %v3051
    %3152 = vmatprep.subr.bf16.mxu0 %v3056
    %3153 = vmatpush1.bf16.msra.mxu0 %v3055
    %3154 = vmatprep.subr.bf16.mxu0 %v3060
    %3155 = vmatpush1.bf16.msra.mxu0 %v3059
    %3156 = vmatprep.subr.bf16.mxu0 %v3064
    %3157 = vmatpush1.bf16.msra.mxu0 %v3063
    %3158 = vmatprep.subr.bf16.mxu0 %v3068
    %3159 = vmatpush1.bf16.msra.mxu0 %v3067
    %3160 = vmatprep.subr.bf16.mxu0 0
    %3161 = vmatpush1.bf16.msra.mxu0 0
    %3162 = vmatprep.subr.bf16.mxu0 0
    %3163 = vmatpush1.bf16.msra.mxu0 0
    %3164 = vmatprep.subr.bf16.mxu0 0
    %3165 = vmatpush1.bf16.msra.mxu0 0
    %3166 = vmatprep.subr.bf16.mxu0 0
    %3167 = vmatpush1.bf16.msra.mxu0 0
    %3168 = vmatprep.subr.bf16.mxu0 0
    %3169 = vmatpush1.bf16.msra.mxu0 0
    %3170 = vmatprep.subr.bf16.mxu0 0
    %3171 = vmatpush1.bf16.msra.mxu0 0
    %3172 = vmatprep.subr.bf16.mxu0 0
    %3173 = vmatpush1.bf16.msra.mxu0 0
    %3174 = vmatprep.subr.bf16.mxu0 0
    %3175 = vmatpush1.bf16.msra.mxu0 0
    %3176 = vmatprep.mubr.bf16.mxu0 0
    %3177 = vmatmul.mubr.bf16.gmra.mrb[0].mxu0 %v2851
    %v3178 = vpop.f32.mrb[0].mxu0
    %v3179 = vadd.f32 %v2932, %v3178
    %v3180 = vpop.f32.mrb[0].mxu0
    %v3181 = vadd.f32 %v2936, %v3180
    %v3182 = vpop.f32.mrb[0].mxu0
    %v3183 = vadd.f32 %v2932, %v3182
    %v3184 = vpop.f32.mrb[0].mxu0
    %v3185 = vadd.f32 %v2936, %v3184
    %3186 = vdwg.mxu0
    %v3187 = vxor.u32 %v3136, 2147483648
    %v3188 = vxor.u32 %v3179, 2147483648
    %v3189 = vmul.f32 %v3187, 1.442695
    %v3190 = vpow.pop %v3189
    %v3191 = vmul.f32 %v3188, 1.442695
    %v3192 = vpow.pop %v3191
    %v3193 = vadd.f32 %v3190, 1.0
    %v3194 = vadd.f32 %v3192, 1.0
    %v3195 = vrcp.pop %v3193
    %v3196 = vmul.f32 1.0, %v3195
    %v3197 = vrcp.pop %v3194
    %v3198 = vmul.f32 1.0, %v3197
    %v3199 = vtanh.pop %v3181
    %v3200 = vmul.f32 %v3196, %v3199
    %v3201 = vtanh.pop %v3200
    %v3202 = vmul.f32 %v3198, %v3201
    %v3203 = vpack.c.bf16 %v3202, %v3202
    %v3236 = vunpack.c.l.b16 %v2853
    %v3237 = vunpack.c.h.b16 %v2853
    %v3238 = vunpack.c.l.b16 %v2854
    %v3239 = vunpack.c.h.b16 %v2854
    %v3240 = vunpack.c.l.b16 %v2855
    %v3241 = vunpack.c.h.b16 %v2855
    %v3242 = vunpack.c.l.b16 %v2856
    %v3243 = vunpack.c.h.b16 %v2856
    %v3244 = vunpack.c.l.b16 %v2857
    %v3245 = vunpack.c.h.b16 %v2857
    %v3246 = vunpack.c.l.b16 %v2858
    %v3247 = vunpack.c.h.b16 %v2858
    %v3248 = vunpack.c.l.b16 %v2859
    %v3249 = vunpack.c.h.b16 %v2859
    %v3250 = vunpack.c.l.b16 %v2860
    %v3251 = vunpack.c.h.b16 %v2860
    %v3252 = vunpack.c.l.b16 %v2861
    %v3253 = vunpack.c.h.b16 %v2861
    %v3254 = vunpack.c.l.b16 %v2862
    %v3255 = vunpack.c.h.b16 %v2862
    %v3256 = vunpack.c.l.b16 %v2863
    %v3257 = vunpack.c.h.b16 %v2863
    %v3258 = vunpack.c.l.b16 %v2864
    %v3259 = vunpack.c.h.b16 %v2864
    %v3260 = vunpack.c.l.b16 %v2865
    %v3261 = vunpack.c.h.b16 %v2865
    %v3262 = vunpack.c.l.b16 %v2866
    %v3263 = vunpack.c.h.b16 %v2866
    %v3264 = vunpack.c.l.b16 %v2867
    %v3265 = vunpack.c.h.b16 %v2867
    %v3266 = vunpack.c.l.b16 %v2868
    %v3267 = vunpack.c.h.b16 %v2868
    %v3268 = vunpack.c.l.b16 %v2869
    %v3269 = vunpack.c.h.b16 %v2869
    %v3270 = vunpack.c.l.b16 %v2870
    %v3271 = vunpack.c.h.b16 %v2870
    %v3272 = vunpack.c.l.b16 %v2871
    %v3273 = vunpack.c.h.b16 %v2871
    %v3274 = vunpack.c.l.b16 %v2872
    %v3275 = vunpack.c.h.b16 %v2872
    %v3276 = vunpack.c.l.b16 %v2873
    %v3277 = vunpack.c.h.b16 %v2873
    %v3278 = vunpack.c.l.b16 %v2874
    %v3279 = vunpack.c.h.b16 %v2874
    %v3280 = vunpack.c.l.b16 %v2875
    %v3281 = vunpack.c.h.b16 %v2875
    %v3282 = vunpack.c.l.b16 %v2876
    %v3283 = vunpack.c.h.b16 %v2876
    %v3284 = vunpack.c.l.b16 %v2877
    %v3285 = vunpack.c.h.b16 %v2877
    %v3286 = vunpack.c.l.b16 %v2878
    %v3287 = vunpack.c.h.b16 %v2878
    %v3288 = vunpack.c.l.b16 %v2879
    %v3289 = vunpack.c.h.b16 %v2879
    %v3290 = vunpack.c.l.b16 %v2880
    %v3291 = vunpack.c.h.b16 %v2880
    %v3292 = vunpack.c.l.b16 %v2881
    %v3293 = vunpack.c.h.b16 %v2881
    %v3294 = vunpack.c.l.b16 %v2882
    %v3295 = vunpack.c.h.b16 %v2882
    %v3296 = vunpack.c.l.b16 %v2883
    %v3297 = vunpack.c.h.b16 %v2883
    %v3298 = vunpack.c.l.b16 %v2884
    %v3299 = vunpack.c.h.b16 %v2884
    %v3300 = vpack.c.b16 %v3240, %v3236
    %v3301 = vpack.c.b16 %v3241, %v3237
    %v3302 = vpack.c.b16 %v3242, %v3238
    %v3303 = vpack.c.b16 %v3243, %v3239
    %v3304 = vpack.c.b16 %v3248, %v3244
    %v3305 = vpack.c.b16 %v3249, %v3245
    %v3306 = vpack.c.b16 %v3250, %v3246
    %v3307 = vpack.c.b16 %v3251, %v3247
    %v3308 = vpack.c.b16 %v3256, %v3252
    %v3309 = vpack.c.b16 %v3257, %v3253
    %v3310 = vpack.c.b16 %v3258, %v3254
    %v3311 = vpack.c.b16 %v3259, %v3255
    %v3312 = vpack.c.b16 %v3264, %v3260
    %v3313 = vpack.c.b16 %v3265, %v3261
    %v3314 = vpack.c.b16 %v3266, %v3262
    %v3315 = vpack.c.b16 %v3267, %v3263
    %v3316 = vpack.c.b16 %v3272, %v3268
    %v3317 = vpack.c.b16 %v3273, %v3269
    %v3318 = vpack.c.b16 %v3274, %v3270
    %v3319 = vpack.c.b16 %v3275, %v3271
    %v3320 = vpack.c.b16 %v3280, %v3276
    %v3321 = vpack.c.b16 %v3281, %v3277
    %v3322 = vpack.c.b16 %v3282, %v3278
    %v3323 = vpack.c.b16 %v3283, %v3279
    %v3324 = vpack.c.b16 %v3288, %v3284
    %v3325 = vpack.c.b16 %v3289, %v3285
    %v3326 = vpack.c.b16 %v3290, %v3286
    %v3327 = vpack.c.b16 %v3291, %v3287
    %v3328 = vpack.c.b16 %v3296, %v3292
    %v3329 = vpack.c.b16 %v3297, %v3293
    %v3330 = vpack.c.b16 %v3298, %v3294
    %v3331 = vpack.c.b16 %v3299, %v3295
    %3364 = vmatprep.subr.bf16.mxu0 %v3301
    %3365 = vmatpush1.bf16.msra.mxu0 %v3300
    %3366 = vmatprep.subr.bf16.mxu0 %v3305
    %3367 = vmatpush1.bf16.msra.mxu0 %v3304
    %3368 = vmatprep.subr.bf16.mxu0 %v3309
    %3369 = vmatpush1.bf16.msra.mxu0 %v3308
    %3370 = vmatprep.subr.bf16.mxu0 %v3313
    %3371 = vmatpush1.bf16.msra.mxu0 %v3312
    %3372 = vmatprep.subr.bf16.mxu0 %v3317
    %3373 = vmatpush1.bf16.msra.mxu0 %v3316
    %3374 = vmatprep.subr.bf16.mxu0 %v3321
    %3375 = vmatpush1.bf16.msra.mxu0 %v3320
    %3376 = vmatprep.subr.bf16.mxu0 %v3325
    %3377 = vmatpush1.bf16.msra.mxu0 %v3324
    %3378 = vmatprep.subr.bf16.mxu0 %v3329
    %3379 = vmatpush1.bf16.msra.mxu0 %v3328
    %3380 = vmatprep.subr.bf16.mxu0 0
    %3381 = vmatpush1.bf16.msra.mxu0 0
    %3382 = vmatprep.subr.bf16.mxu0 0
    %3383 = vmatpush1.bf16.msra.mxu0 0
    %3384 = vmatprep.subr.bf16.mxu0 0
    %3385 = vmatpush1.bf16.msra.mxu0 0
    %3386 = vmatprep.subr.bf16.mxu0 0
    %3387 = vmatpush1.bf16.msra.mxu0 0
    %3388 = vmatprep.subr.bf16.mxu0 0
    %3389 = vmatpush1.bf16.msra.mxu0 0
    %3390 = vmatprep.subr.bf16.mxu0 0
    %3391 = vmatpush1.bf16.msra.mxu0 0
    %3392 = vmatprep.subr.bf16.mxu0 0
    %3393 = vmatpush1.bf16.msra.mxu0 0
    %3394 = vmatprep.subr.bf16.mxu0 0
    %3395 = vmatpush1.bf16.msra.mxu0 0
    %3396 = vmatprep.mubr.bf16.mxu0 0
    %3397 = vmatmul.mubr.bf16.gmra.mrb[0].mxu0 %v3203
    %v3398 = vpop.f32.mrb[0].mxu0
    %v3399 = vadd.f32 0.0, %v3398
    %v3400 = vpop.f32.mrb[0].mxu0
    %v3401 = vadd.f32 0.0, %v3400
    %v3402 = vpop.f32.mrb[0].mxu0
    %v3403 = vpop.f32.mrb[0].mxu0
    %3404 = vdwg.mxu0
    %3405 = vmatprep.subr.bf16.mxu0 %v3303
    %3406 = vmatpush1.bf16.msra.mxu0 %v3302
    %3407 = vmatprep.subr.bf16.mxu0 %v3307
    %3408 = vmatpush1.bf16.msra.mxu0 %v3306
    %3409 = vmatprep.subr.bf16.mxu0 %v3311
    %3410 = vmatpush1.bf16.msra.mxu0 %v3310
    %3411 = vmatprep.subr.bf16.mxu0 %v3315
    %3412 = vmatpush1.bf16.msra.mxu0 %v3314
    %3413 = vmatprep.subr.bf16.mxu0 %v3319
    %3414 = vmatpush1.bf16.msra.mxu0 %v3318
    %3415 = vmatprep.subr.bf16.mxu0 %v3323
    %3416 = vmatpush1.bf16.msra.mxu0 %v3322
    %3417 = vmatprep.subr.bf16.mxu0 %v3327
    %3418 = vmatpush1.bf16.msra.mxu0 %v3326
    %3419 = vmatprep.subr.bf16.mxu0 %v3331
    %3420 = vmatpush1.bf16.msra.mxu0 %v3330
    %3421 = vmatprep.subr.bf16.mxu0 0
    %3422 = vmatpush1.bf16.msra.mxu0 0
    %3423 = vmatprep.subr.bf16.mxu0 0
    %3424 = vmatpush1.bf16.msra.mxu0 0
    %3425 = vmatprep.subr.bf16.mxu0 0
    %3426 = vmatpush1.bf16.msra.mxu0 0
    %3427 = vmatprep.subr.bf16.mxu0 0
    %3428 = vmatpush1.bf16.msra.mxu0 0
    %3429 = vmatprep.subr.bf16.mxu0 0
    %3430 = vmatpush1.bf16.msra.mxu0 0
    %3431 = vmatprep.subr.bf16.mxu0 0
    %3432 = vmatpush1.bf16.msra.mxu0 0
    %3433 = vmatprep.subr.bf16.mxu0 0
    %3434 = vmatpush1.bf16.msra.mxu0 0
    %3435 = vmatprep.subr.bf16.mxu0 0
    %3436 = vmatpush1.bf16.msra.mxu0 0
    %3437 = vmatprep.mubr.bf16.mxu0 0
    %3438 = vmatmul.mubr.bf16.gmra.mrb[0].mxu0 %v3203
    %v3439 = vpop.f32.mrb[0].mxu0
    %v3440 = vadd.f32 0.0, %v3439
    %v3441 = vpop.f32.mrb[0].mxu0
    %v3442 = vadd.f32 0.0, %v3441
    %v3443 = vpop.f32.mrb[0].mxu0
    %v3444 = vpop.f32.mrb[0].mxu0
    %3445 = vdwg.mxu0
    %v3450 = vrot.slane %v3399, 6
    %v3451 = vrot.slane %v3401, 6
    %v3452 = vrot.slane %v3440, 6
    %v3453 = vrot.slane %v3442, 6
    %v3458 = vadd.f32 %v3136, %v3450
    %v3459 = vadd.f32 %v3138, %v3451
    %v3460 = vadd.f32 %v3179, %v3452
    %v3461 = vadd.f32 %v3181, %v3453
    %v3462 = vxor.u32 %v3458, 2147483648
    %v3463 = vxor.u32 %v3459, 2147483648
    %v3464 = vxor.u32 %v3460, 2147483648
    %v3465 = vmul.f32 %v3462, 1.442695
    %v3466 = vpow.pop %v3465
    %v3467 = vmul.f32 %v3463, 1.442695
    %v3468 = vpow.pop %v3467
    %v3469 = vmul.f32 %v3464, 1.442695
    %v3470 = vpow.pop %v3469
    %v3471 = vadd.f32 %v3466, 1.0
    %v3472 = vadd.f32 %v3468, 1.0
    %v3473 = vadd.f32 %v3470, 1.0
    %v3474 = vrcp.pop %v3471
    %v3475 = vmul.f32 1.0, %v3474
    %v3476 = vrcp.pop %v3472
    %v3477 = vmul.f32 1.0, %v3476
    %v3478 = vrcp.pop %v3473
    %v3479 = vmul.f32 1.0, %v3478
    %v3480 = vtanh.pop %v3461
    %v3482 = vrot.slane %v3200, 6
    %v3484 = vmul.f32 %v3477, %v3482
    %v3485 = vmul.f32 %v3475, %v3480
    %v3486 = vadd.f32 %v3484, %v3485
    %v3487 = vtanh.pop %v3486
    %v3488 = vmul.f32 %v3479, %v3487
    %v3489 = vpack.c.bf16 %v3488, %v3488
    %v3491 = vrot.slane %v3489, 1
    %3493 = vmatprep.subr.bf16.mxu0 %v3301
    %3494 = vmatpush1.bf16.msra.mxu0 %v3300
    %3495 = vmatprep.subr.bf16.mxu0 %v3305
    %3496 = vmatpush1.bf16.msra.mxu0 %v3304
    %3497 = vmatprep.subr.bf16.mxu0 %v3309
    %3498 = vmatpush1.bf16.msra.mxu0 %v3308
    %3499 = vmatprep.subr.bf16.mxu0 %v3313
    %3500 = vmatpush1.bf16.msra.mxu0 %v3312
    %3501 = vmatprep.subr.bf16.mxu0 %v3317
    %3502 = vmatpush1.bf16.msra.mxu0 %v3316
    %3503 = vmatprep.subr.bf16.mxu0 %v3321
    %3504 = vmatpush1.bf16.msra.mxu0 %v3320
    %3505 = vmatprep.subr.bf16.mxu0 %v3325
    %3506 = vmatpush1.bf16.msra.mxu0 %v3324
    %3507 = vmatprep.subr.bf16.mxu0 %v3329
    %3508 = vmatpush1.bf16.msra.mxu0 %v3328
    %3509 = vmatprep.subr.bf16.mxu0 0
    %3510 = vmatpush1.bf16.msra.mxu0 0
    %3511 = vmatprep.subr.bf16.mxu0 0
    %3512 = vmatpush1.bf16.msra.mxu0 0
    %3513 = vmatprep.subr.bf16.mxu0 0
    %3514 = vmatpush1.bf16.msra.mxu0 0
    %3515 = vmatprep.subr.bf16.mxu0 0
    %3516 = vmatpush1.bf16.msra.mxu0 0
    %3517 = vmatprep.subr.bf16.mxu0 0
    %3518 = vmatpush1.bf16.msra.mxu0 0
    %3519 = vmatprep.subr.bf16.mxu0 0
    %3520 = vmatpush1.bf16.msra.mxu0 0
    %3521 = vmatprep.subr.bf16.mxu0 0
    %3522 = vmatpush1.bf16.msra.mxu0 0
    %3523 = vmatprep.subr.bf16.mxu0 0
    %3524 = vmatpush1.bf16.msra.mxu0 0
    %3525 = vmatprep.mubr.bf16.mxu0 0
    %3526 = vmatmul.mubr.bf16.gmra.mrb[0].mxu0 %v3491
    %v3527 = vpop.f32.mrb[0].mxu0
    %v3528 = vadd.f32 0.0, %v3527
    %v3529 = vpop.f32.mrb[0].mxu0
    %v3530 = vadd.f32 0.0, %v3529
    %v3531 = vpop.f32.mrb[0].mxu0
    %v3532 = vpop.f32.mrb[0].mxu0
    %3533 = vdwg.mxu0
    %3534 = vmatprep.subr.bf16.mxu0 %v3303
    %3535 = vmatpush1.bf16.msra.mxu0 %v3302
    %3536 = vmatprep.subr.bf16.mxu0 %v3307
    %3537 = vmatpush1.bf16.msra.mxu0 %v3306
    %3538 = vmatprep.subr.bf16.mxu0 %v3311
    %3539 = vmatpush1.bf16.msra.mxu0 %v3310
    %3540 = vmatprep.subr.bf16.mxu0 %v3315
    %3541 = vmatpush1.bf16.msra.mxu0 %v3314
    %3542 = vmatprep.subr.bf16.mxu0 %v3319
    %3543 = vmatpush1.bf16.msra.mxu0 %v3318
    %3544 = vmatprep.subr.bf16.mxu0 %v3323
    %3545 = vmatpush1.bf16.msra.mxu0 %v3322
    %3546 = vmatprep.subr.bf16.mxu0 %v3327
    %3547 = vmatpush1.bf16.msra.mxu0 %v3326
    %3548 = vmatprep.subr.bf16.mxu0 %v3331
    %3549 = vmatpush1.bf16.msra.mxu0 %v3330
    %3550 = vmatprep.subr.bf16.mxu0 0
    %3551 = vmatpush1.bf16.msra.mxu0 0
    %3552 = vmatprep.subr.bf16.mxu0 0
    %3553 = vmatpush1.bf16.msra.mxu0 0
    %3554 = vmatprep.subr.bf16.mxu0 0
    %3555 = vmatpush1.bf16.msra.mxu0 0
    %3556 = vmatprep.subr.bf16.mxu0 0
    %3557 = vmatpush1.bf16.msra.mxu0 0
    %3558 = vmatprep.subr.bf16.mxu0 0
    %3559 = vmatpush1.bf16.msra.mxu0 0
    %3560 = vmatprep.subr.bf16.mxu0 0
    %3561 = vmatpush1.bf16.msra.mxu0 0
    %3562 = vmatprep.subr.bf16.mxu0 0
    %3563 = vmatpush1.bf16.msra.mxu0 0
    %3564 = vmatprep.subr.bf16.mxu0 0
    %3565 = vmatpush1.bf16.msra.mxu0 0
    %3566 = vmatprep.mubr.bf16.mxu0 0
    %3567 = vmatmul.mubr.bf16.gmra.mrb[0].mxu0 %v3491
    %v3568 = vpop.f32.mrb[0].mxu0
    %v3569 = vadd.f32 0.0, %v3568
    %v3570 = vpop.f32.mrb[0].mxu0
    %v3571 = vadd.f32 0.0, %v3570
    %v3572 = vpop.f32.mrb[0].mxu0
    %v3573 = vpop.f32.mrb[0].mxu0
    %3574 = vdwg.mxu0
    %v3579 = vrot.slane %v3528, 4
    %v3580 = vrot.slane %v3530, 4
    %v3581 = vrot.slane %v3569, 4
    %v3582 = vrot.slane %v3571, 4
    %v3587 = vadd.f32 %v3136, %v3579
    %v3588 = vadd.f32 %v3138, %v3580
    %v3589 = vadd.f32 %v3179, %v3581
    %v3590 = vadd.f32 %v3181, %v3582
    %v3591 = vxor.u32 %v3587, 2147483648
    %v3592 = vxor.u32 %v3588, 2147483648
    %v3593 = vxor.u32 %v3589, 2147483648
    %v3594 = vmul.f32 %v3591, 1.442695
    %v3595 = vpow.pop %v3594
    %v3596 = vmul.f32 %v3592, 1.442695
    %v3597 = vpow.pop %v3596
    %v3598 = vmul.f32 %v3593, 1.442695
    %v3599 = vpow.pop %v3598
    %v3600 = vadd.f32 %v3595, 1.0
    %v3601 = vadd.f32 %v3597, 1.0
    %v3602 = vadd.f32 %v3599, 1.0
    %v3603 = vrcp.pop %v3600
    %v3604 = vmul.f32 1.0, %v3603
    %v3605 = vrcp.pop %v3601
    %v3606 = vmul.f32 1.0, %v3605
    %v3607 = vrcp.pop %v3602
    %v3608 = vmul.f32 1.0, %v3607
    %v3609 = vtanh.pop %v3590
    %v3611 = vrot.slane %v3486, 6
    %v3613 = vmul.f32 %v3606, %v3611
    %v3614 = vmul.f32 %v3604, %v3609
    %v3615 = vadd.f32 %v3613, %v3614
    %v3616 = vtanh.pop %v3615
    %v3617 = vmul.f32 %v3608, %v3616
    %v3618 = vpack.c.bf16 %v3617, %v3617
    %v3620 = vrot.slane %v3618, 2
    %3622 = vmatprep.subr.bf16.mxu0 %v3301
    %3623 = vmatpush1.bf16.msra.mxu0 %v3300
    %3624 = vmatprep.subr.bf16.mxu0 %v3305
    %3625 = vmatpush1.bf16.msra.mxu0 %v3304
    %3626 = vmatprep.subr.bf16.mxu0 %v3309
    %3627 = vmatpush1.bf16.msra.mxu0 %v3308
    %3628 = vmatprep.subr.bf16.mxu0 %v3313
    %3629 = vmatpush1.bf16.msra.mxu0 %v3312
    %3630 = vmatprep.subr.bf16.mxu0 %v3317
    %3631 = vmatpush1.bf16.msra.mxu0 %v3316
    %3632 = vmatprep.subr.bf16.mxu0 %v3321
    %3633 = vmatpush1.bf16.msra.mxu0 %v3320
    %3634 = vmatprep.subr.bf16.mxu0 %v3325
    %3635 = vmatpush1.bf16.msra.mxu0 %v3324
    %3636 = vmatprep.subr.bf16.mxu0 %v3329
    %3637 = vmatpush1.bf16.msra.mxu0 %v3328
    %3638 = vmatprep.subr.bf16.mxu0 0
    %3639 = vmatpush1.bf16.msra.mxu0 0
    %3640 = vmatprep.subr.bf16.mxu0 0
    %3641 = vmatpush1.bf16.msra.mxu0 0
    %3642 = vmatprep.subr.bf16.mxu0 0
    %3643 = vmatpush1.bf16.msra.mxu0 0
    %3644 = vmatprep.subr.bf16.mxu0 0
    %3645 = vmatpush1.bf16.msra.mxu0 0
    %3646 = vmatprep.subr.bf16.mxu0 0
    %3647 = vmatpush1.bf16.msra.mxu0 0
    %3648 = vmatprep.subr.bf16.mxu0 0
    %3649 = vmatpush1.bf16.msra.mxu0 0
    %3650 = vmatprep.subr.bf16.mxu0 0
    %3651 = vmatpush1.bf16.msra.mxu0 0
    %3652 = vmatprep.subr.bf16.mxu0 0
    %3653 = vmatpush1.bf16.msra.mxu0 0
    %3654 = vmatprep.mubr.bf16.mxu0 0
    %3655 = vmatmul.mubr.bf16.gmra.mrb[0].mxu0 %v3620
    %v3656 = vpop.f32.mrb[0].mxu0
    %v3657 = vadd.f32 0.0, %v3656
    %v3658 = vpop.f32.mrb[0].mxu0
    %v3659 = vadd.f32 0.0, %v3658
    %v3660 = vpop.f32.mrb[0].mxu0
    %v3661 = vpop.f32.mrb[0].mxu0
    %3662 = vdwg.mxu0
    %3663 = vmatprep.subr.bf16.mxu0 %v3303
    %3664 = vmatpush1.bf16.msra.mxu0 %v3302
    %3665 = vmatprep.subr.bf16.mxu0 %v3307
    %3666 = vmatpush1.bf16.msra.mxu0 %v3306
    %3667 = vmatprep.subr.bf16.mxu0 %v3311
    %3668 = vmatpush1.bf16.msra.mxu0 %v3310
    %3669 = vmatprep.subr.bf16.mxu0 %v3315
    %3670 = vmatpush1.bf16.msra.mxu0 %v3314
    %3671 = vmatprep.subr.bf16.mxu0 %v3319
    %3672 = vmatpush1.bf16.msra.mxu0 %v3318
    %3673 = vmatprep.subr.bf16.mxu0 %v3323
    %3674 = vmatpush1.bf16.msra.mxu0 %v3322
    %3675 = vmatprep.subr.bf16.mxu0 %v3327
    %3676 = vmatpush1.bf16.msra.mxu0 %v3326
    %3677 = vmatprep.subr.bf16.mxu0 %v3331
    %3678 = vmatpush1.bf16.msra.mxu0 %v3330
    %3679 = vmatprep.subr.bf16.mxu0 0
    %3680 = vmatpush1.bf16.msra.mxu0 0
    %3681 = vmatprep.subr.bf16.mxu0 0
    %3682 = vmatpush1.bf16.msra.mxu0 0
    %3683 = vmatprep.subr.bf16.mxu0 0
    %3684 = vmatpush1.bf16.msra.mxu0 0
    %3685 = vmatprep.subr.bf16.mxu0 0
    %3686 = vmatpush1.bf16.msra.mxu0 0
    %3687 = vmatprep.subr.bf16.mxu0 0
    %3688 = vmatpush1.bf16.msra.mxu0 0
    %3689 = vmatprep.subr.bf16.mxu0 0
    %3690 = vmatpush1.bf16.msra.mxu0 0
    %3691 = vmatprep.subr.bf16.mxu0 0
    %3692 = vmatpush1.bf16.msra.mxu0 0
    %3693 = vmatprep.subr.bf16.mxu0 0
    %3694 = vmatpush1.bf16.msra.mxu0 0
    %3695 = vmatprep.mubr.bf16.mxu0 0
    %3696 = vmatmul.mubr.bf16.gmra.mrb[0].mxu0 %v3620
    %v3697 = vpop.f32.mrb[0].mxu0
    %v3698 = vadd.f32 0.0, %v3697
    %v3699 = vpop.f32.mrb[0].mxu0
    %v3700 = vadd.f32 0.0, %v3699
    %v3701 = vpop.f32.mrb[0].mxu0
    %v3702 = vpop.f32.mrb[0].mxu0
    %3703 = vdwg.mxu0
    %v3708 = vrot.slane %v3657, 2
    %v3709 = vrot.slane %v3659, 2
    %v3710 = vrot.slane %v3698, 2
    %v3711 = vrot.slane %v3700, 2
    %v3716 = vadd.f32 %v3136, %v3708
    %v3717 = vadd.f32 %v3138, %v3709
    %v3718 = vadd.f32 %v3179, %v3710
    %v3719 = vadd.f32 %v3181, %v3711
    %v3720 = vxor.u32 %v3716, 2147483648
    %v3721 = vxor.u32 %v3717, 2147483648
    %v3722 = vxor.u32 %v3718, 2147483648
    %v3723 = vmul.f32 %v3720, 1.442695
    %v3724 = vpow.pop %v3723
    %v3725 = vmul.f32 %v3721, 1.442695
    %v3726 = vpow.pop %v3725
    %v3727 = vmul.f32 %v3722, 1.442695
    %v3728 = vpow.pop %v3727
    %v3729 = vadd.f32 %v3724, 1.0
    %v3730 = vadd.f32 %v3726, 1.0
    %v3731 = vadd.f32 %v3728, 1.0
    %v3732 = vrcp.pop %v3729
    %v3733 = vmul.f32 1.0, %v3732
    %v3734 = vrcp.pop %v3730
    %v3735 = vmul.f32 1.0, %v3734
    %v3736 = vrcp.pop %v3731
    %v3737 = vmul.f32 1.0, %v3736
    %v3738 = vtanh.pop %v3719
    %v3740 = vrot.slane %v3615, 6
    %v3742 = vmul.f32 %v3735, %v3740
    %v3743 = vmul.f32 %v3733, %v3738
    %v3744 = vadd.f32 %v3742, %v3743
    %v3745 = vtanh.pop %v3744
    %v3746 = vmul.f32 %v3737, %v3745
    %v3747 = vpack.c.bf16 %v3746, %v3746
    %v3749 = vrot.slane %v3747, 3
    %3751 = vmatprep.subr.bf16.mxu0 %v3301
    %3752 = vmatpush1.bf16.msra.mxu0 %v3300
    %3753 = vmatprep.subr.bf16.mxu0 %v3305
    %3754 = vmatpush1.bf16.msra.mxu0 %v3304
    %3755 = vmatprep.subr.bf16.mxu0 %v3309
    %3756 = vmatpush1.bf16.msra.mxu0 %v3308
    %3757 = vmatprep.subr.bf16.mxu0 %v3313
    %3758 = vmatpush1.bf16.msra.mxu0 %v3312
    %3759 = vmatprep.subr.bf16.mxu0 %v3317
    %3760 = vmatpush1.bf16.msra.mxu0 %v3316
    %3761 = vmatprep.subr.bf16.mxu0 %v3321
    %3762 = vmatpush1.bf16.msra.mxu0 %v3320
    %3763 = vmatprep.subr.bf16.mxu0 %v3325
    %3764 = vmatpush1.bf16.msra.mxu0 %v3324
    %3765 = vmatprep.subr.bf16.mxu0 %v3329
    %3766 = vmatpush1.bf16.msra.mxu0 %v3328
    %3767 = vmatprep.subr.bf16.mxu0 0
    %3768 = vmatpush1.bf16.msra.mxu0 0
    %3769 = vmatprep.subr.bf16.mxu0 0
    %3770 = vmatpush1.bf16.msra.mxu0 0
    %3771 = vmatprep.subr.bf16.mxu0 0
    %3772 = vmatpush1.bf16.msra.mxu0 0
    %3773 = vmatprep.subr.bf16.mxu0 0
    %3774 = vmatpush1.bf16.msra.mxu0 0
    %3775 = vmatprep.subr.bf16.mxu0 0
    %3776 = vmatpush1.bf16.msra.mxu0 0
    %3777 = vmatprep.subr.bf16.mxu0 0
    %3778 = vmatpush1.bf16.msra.mxu0 0
    %3779 = vmatprep.subr.bf16.mxu0 0
    %3780 = vmatpush1.bf16.msra.mxu0 0
    %3781 = vmatprep.subr.bf16.mxu0 0
    %3782 = vmatpush1.bf16.msra.mxu0 0
    %3783 = vmatprep.mubr.bf16.mxu0 0
    %3784 = vmatmul.mubr.bf16.gmra.mrb[0].mxu0 %v3749
    %v3785 = vpop.f32.mrb[0].mxu0
    %v3786 = vadd.f32 0.0, %v3785
    %v3787 = vpop.f32.mrb[0].mxu0
    %v3788 = vadd.f32 0.0, %v3787
    %v3789 = vpop.f32.mrb[0].mxu0
    %v3790 = vpop.f32.mrb[0].mxu0
    %3791 = vdwg.mxu0
    %3792 = vmatprep.subr.bf16.mxu0 %v3303
    %3793 = vmatpush1.bf16.msra.mxu0 %v3302
    %3794 = vmatprep.subr.bf16.mxu0 %v3307
    %3795 = vmatpush1.bf16.msra.mxu0 %v3306
    %3796 = vmatprep.subr.bf16.mxu0 %v3311
    %3797 = vmatpush1.bf16.msra.mxu0 %v3310
    %3798 = vmatprep.subr.bf16.mxu0 %v3315
    %3799 = vmatpush1.bf16.msra.mxu0 %v3314
    %3800 = vmatprep.subr.bf16.mxu0 %v3319
    %3801 = vmatpush1.bf16.msra.mxu0 %v3318
    %3802 = vmatprep.subr.bf16.mxu0 %v3323
    %3803 = vmatpush1.bf16.msra.mxu0 %v3322
    %3804 = vmatprep.subr.bf16.mxu0 %v3327
    %3805 = vmatpush1.bf16.msra.mxu0 %v3326
    %3806 = vmatprep.subr.bf16.mxu0 %v3331
    %3807 = vmatpush1.bf16.msra.mxu0 %v3330
    %3808 = vmatprep.subr.bf16.mxu0 0
    %3809 = vmatpush1.bf16.msra.mxu0 0
    %3810 = vmatprep.subr.bf16.mxu0 0
    %3811 = vmatpush1.bf16.msra.mxu0 0
    %3812 = vmatprep.subr.bf16.mxu0 0
    %3813 = vmatpush1.bf16.msra.mxu0 0
    %3814 = vmatprep.subr.bf16.mxu0 0
    %3815 = vmatpush1.bf16.msra.mxu0 0
    %3816 = vmatprep.subr.bf16.mxu0 0
    %3817 = vmatpush1.bf16.msra.mxu0 0
    %3818 = vmatprep.subr.bf16.mxu0 0
    %3819 = vmatpush1.bf16.msra.mxu0 0
    %3820 = vmatprep.subr.bf16.mxu0 0
    %3821 = vmatpush1.bf16.msra.mxu0 0
    %3822 = vmatprep.subr.bf16.mxu0 0
    %3823 = vmatpush1.bf16.msra.mxu0 0
    %3824 = vmatprep.mubr.bf16.mxu0 0
    %3825 = vmatmul.mubr.bf16.gmra.mrb[0].mxu0 %v3749
    %v3826 = vpop.f32.mrb[0].mxu0
    %v3827 = vadd.f32 0.0, %v3826
    %v3828 = vpop.f32.mrb[0].mxu0
    %v3829 = vadd.f32 0.0, %v3828
    %v3830 = vpop.f32.mrb[0].mxu0
    %v3831 = vpop.f32.mrb[0].mxu0
    %3832 = vdwg.mxu0
    %v3833 = vadd.f32 %v3140, %v3786
    %v3834 = vadd.f32 %v3142, %v3788
    %v3835 = vadd.f32 %v3183, %v3827
    %v3836 = vadd.f32 %v3185, %v3829
    %v3837 = vxor.u32 %v3833, 2147483648
    %v3838 = vxor.u32 %v3834, 2147483648
    %v3839 = vxor.u32 %v3835, 2147483648
    %v3840 = vmul.f32 %v3837, 1.442695
    %v3841 = vpow.pop %v3840
    %v3842 = vmul.f32 %v3838, 1.442695
    %v3843 = vpow.pop %v3842
    %v3844 = vmul.f32 %v3839, 1.442695
    %v3845 = vpow.pop %v3844
    %v3846 = vadd.f32 %v3841, 1.0
    %v3847 = vadd.f32 %v3843, 1.0
    %v3848 = vadd.f32 %v3845, 1.0
    %v3849 = vrcp.pop %v3846
    %v3850 = vmul.f32 1.0, %v3849
    %v3851 = vrcp.pop %v3847
    %v3852 = vmul.f32 1.0, %v3851
    %v3853 = vrcp.pop %v3848
    %v3854 = vmul.f32 1.0, %v3853
    %v3855 = vtanh.pop %v3836
    %v3857 = vrot.slane %v3744, 6
    %v3859 = vmul.f32 %v3852, %v3857
    %v3860 = vmul.f32 %v3850, %v3855
    %v3861 = vadd.f32 %v3859, %v3860
    %v3862 = vtanh.pop %v3861
    %v3863 = vmul.f32 %v3854, %v3862
    %v3864 = vpack.c.bf16 %v3863, %v3863
    %3865 = vmatprep.subr.bf16.mxu0 %v3301
    %3866 = vmatpush1.bf16.msra.mxu0 %v3300
    %3867 = vmatprep.subr.bf16.mxu0 %v3305
    %3868 = vmatpush1.bf16.msra.mxu0 %v3304
    %3869 = vmatprep.subr.bf16.mxu0 %v3309
    %3870 = vmatpush1.bf16.msra.mxu0 %v3308
    %3871 = vmatprep.subr.bf16.mxu0 %v3313
    %3872 = vmatpush1.bf16.msra.mxu0 %v3312
    %3873 = vmatprep.subr.bf16.mxu0 %v3317
    %3874 = vmatpush1.bf16.msra.mxu0 %v3316
    %3875 = vmatprep.subr.bf16.mxu0 %v3321
    %3876 = vmatpush1.bf16.msra.mxu0 %v3320
    %3877 = vmatprep.subr.bf16.mxu0 %v3325
    %3878 = vmatpush1.bf16.msra.mxu0 %v3324
    %3879 = vmatprep.subr.bf16.mxu0 %v3329
    %3880 = vmatpush1.bf16.msra.mxu0 %v3328
    %3881 = vmatprep.subr.bf16.mxu0 0
    %3882 = vmatpush1.bf16.msra.mxu0 0
    %3883 = vmatprep.subr.bf16.mxu0 0
    %3884 = vmatpush1.bf16.msra.mxu0 0
    %3885 = vmatprep.subr.bf16.mxu0 0
    %3886 = vmatpush1.bf16.msra.mxu0 0
    %3887 = vmatprep.subr.bf16.mxu0 0
    %3888 = vmatpush1.bf16.msra.mxu0 0
    %3889 = vmatprep.subr.bf16.mxu0 0
    %3890 = vmatpush1.bf16.msra.mxu0 0
    %3891 = vmatprep.subr.bf16.mxu0 0
    %3892 = vmatpush1.bf16.msra.mxu0 0
    %3893 = vmatprep.subr.bf16.mxu0 0
    %3894 = vmatpush1.bf16.msra.mxu0 0
    %3895 = vmatprep.subr.bf16.mxu0 0
    %3896 = vmatpush1.bf16.msra.mxu0 0
    %3897 = vmatprep.mubr.bf16.mxu0 0
    %3898 = vmatmul.mubr.bf16.gmra.mrb[0].mxu0 %v3864
    %v3899 = vpop.f32.mrb[0].mxu0
    %v3900 = vadd.f32 0.0, %v3899
    %v3901 = vpop.f32.mrb[0].mxu0
    %v3902 = vadd.f32 0.0, %v3901
    %v3903 = vpop.f32.mrb[0].mxu0
    %v3904 = vpop.f32.mrb[0].mxu0
    %3905 = vdwg.mxu0
    %3906 = vmatprep.subr.bf16.mxu0 %v3303
    %3907 = vmatpush1.bf16.msra.mxu0 %v3302
    %3908 = vmatprep.subr.bf16.mxu0 %v3307
    %3909 = vmatpush1.bf16.msra.mxu0 %v3306
    %3910 = vmatprep.subr.bf16.mxu0 %v3311
    %3911 = vmatpush1.bf16.msra.mxu0 %v3310
    %3912 = vmatprep.subr.bf16.mxu0 %v3315
    %3913 = vmatpush1.bf16.msra.mxu0 %v3314
    %3914 = vmatprep.subr.bf16.mxu0 %v3319
    %3915 = vmatpush1.bf16.msra.mxu0 %v3318
    %3916 = vmatprep.subr.bf16.mxu0 %v3323
    %3917 = vmatpush1.bf16.msra.mxu0 %v3322
    %3918 = vmatprep.subr.bf16.mxu0 %v3327
    %3919 = vmatpush1.bf16.msra.mxu0 %v3326
    %3920 = vmatprep.subr.bf16.mxu0 %v3331
    %3921 = vmatpush1.bf16.msra.mxu0 %v3330
    %3922 = vmatprep.subr.bf16.mxu0 0
    %3923 = vmatpush1.bf16.msra.mxu0 0
    %3924 = vmatprep.subr.bf16.mxu0 0
    %3925 = vmatpush1.bf16.msra.mxu0 0
    %3926 = vmatprep.subr.bf16.mxu0 0
    %3927 = vmatpush1.bf16.msra.mxu0 0
    %3928 = vmatprep.subr.bf16.mxu0 0
    %3929 = vmatpush1.bf16.msra.mxu0 0
    %3930 = vmatprep.subr.bf16.mxu0 0
    %3931 = vmatpush1.bf16.msra.mxu0 0
    %3932 = vmatprep.subr.bf16.mxu0 0
    %3933 = vmatpush1.bf16.msra.mxu0 0
    %3934 = vmatprep.subr.bf16.mxu0 0
    %3935 = vmatpush1.bf16.msra.mxu0 0
    %3936 = vmatprep.subr.bf16.mxu0 0
    %3937 = vmatpush1.bf16.msra.mxu0 0
    %3938 = vmatprep.mubr.bf16.mxu0 0
    %3939 = vmatmul.mubr.bf16.gmra.mrb[0].mxu0 %v3864
    %v3940 = vpop.f32.mrb[0].mxu0
    %v3941 = vadd.f32 0.0, %v3940
    %v3942 = vpop.f32.mrb[0].mxu0
    %v3943 = vadd.f32 0.0, %v3942
    %v3944 = vpop.f32.mrb[0].mxu0
    %v3945 = vpop.f32.mrb[0].mxu0
    %3946 = vdwg.mxu0
    %v3951 = vrot.slane %v3900, 6
    %v3952 = vrot.slane %v3902, 6
    %v3953 = vrot.slane %v3941, 6
    %v3954 = vrot.slane %v3943, 6
    %v3959 = vadd.f32 %v3140, %v3951
    %v3960 = vadd.f32 %v3142, %v3952
    %v3961 = vadd.f32 %v3183, %v3953
    %v3962 = vadd.f32 %v3185, %v3954
    %v3963 = vxor.u32 %v3959, 2147483648
    %v3964 = vxor.u32 %v3960, 2147483648
    %v3965 = vxor.u32 %v3961, 2147483648
    %v3966 = vmul.f32 %v3963, 1.442695
    %v3967 = vpow.pop %v3966
    %v3968 = vmul.f32 %v3964, 1.442695
    %v3969 = vpow.pop %v3968
    %v3970 = vmul.f32 %v3965, 1.442695
    %v3971 = vpow.pop %v3970
    %v3972 = vadd.f32 %v3967, 1.0
    %v3973 = vadd.f32 %v3969, 1.0
    %v3974 = vadd.f32 %v3971, 1.0
    %v3975 = vrcp.pop %v3972
    %v3976 = vmul.f32 1.0, %v3975
    %v3977 = vrcp.pop %v3973
    %v3978 = vmul.f32 1.0, %v3977
    %v3979 = vrcp.pop %v3974
    %v3980 = vmul.f32 1.0, %v3979
    %v3981 = vtanh.pop %v3962
    %v3983 = vrot.slane %v3861, 6
    %v3985 = vmul.f32 %v3978, %v3983
    %v3986 = vmul.f32 %v3976, %v3981
    %v3987 = vadd.f32 %v3985, %v3986
    %v3988 = vtanh.pop %v3987
    %v3989 = vmul.f32 %v3980, %v3988
    %v3990 = vpack.c.bf16 %v3989, %v3989
    %v3992 = vrot.slane %v3990, 1
    %3994 = vmatprep.subr.bf16.mxu0 %v3301
    %3995 = vmatpush1.bf16.msra.mxu0 %v3300
    %3996 = vmatprep.subr.bf16.mxu0 %v3305
    %3997 = vmatpush1.bf16.msra.mxu0 %v3304
    %3998 = vmatprep.subr.bf16.mxu0 %v3309
    %3999 = vmatpush1.bf16.msra.mxu0 %v3308
    %4000 = vmatprep.subr.bf16.mxu0 %v3313
    %4001 = vmatpush1.bf16.msra.mxu0 %v3312
    %4002 = vmatprep.subr.bf16.mxu0 %v3317
    %4003 = vmatpush1.bf16.msra.mxu0 %v3316
    %4004 = vmatprep.subr.bf16.mxu0 %v3321
    %4005 = vmatpush1.bf16.msra.mxu0 %v3320
    %4006 = vmatprep.subr.bf16.mxu0 %v3325
    %4007 = vmatpush1.bf16.msra.mxu0 %v3324
    %4008 = vmatprep.subr.bf16.mxu0 %v3329
    %4009 = vmatpush1.bf16.msra.mxu0 %v3328
    %4010 = vmatprep.subr.bf16.mxu0 0
    %4011 = vmatpush1.bf16.msra.mxu0 0
    %4012 = vmatprep.subr.bf16.mxu0 0
    %4013 = vmatpush1.bf16.msra.mxu0 0
    %4014 = vmatprep.subr.bf16.mxu0 0
    %4015 = vmatpush1.bf16.msra.mxu0 0
    %4016 = vmatprep.subr.bf16.mxu0 0
    %4017 = vmatpush1.bf16.msra.mxu0 0
    %4018 = vmatprep.subr.bf16.mxu0 0
    %4019 = vmatpush1.bf16.msra.mxu0 0
    %4020 = vmatprep.subr.bf16.mxu0 0
    %4021 = vmatpush1.bf16.msra.mxu0 0
    %4022 = vmatprep.subr.bf16.mxu0 0
    %4023 = vmatpush1.bf16.msra.mxu0 0
    %4024 = vmatprep.subr.bf16.mxu0 0
    %4025 = vmatpush1.bf16.msra.mxu0 0
    %4026 = vmatprep.mubr.bf16.mxu0 0
    %4027 = vmatmul.mubr.bf16.gmra.mrb[0].mxu0 %v3992
    %v4028 = vpop.f32.mrb[0].mxu0
    %v4029 = vadd.f32 0.0, %v4028
    %v4030 = vpop.f32.mrb[0].mxu0
    %v4031 = vadd.f32 0.0, %v4030
    %v4032 = vpop.f32.mrb[0].mxu0
    %v4033 = vpop.f32.mrb[0].mxu0
    %4034 = vdwg.mxu0
    %4035 = vmatprep.subr.bf16.mxu0 %v3303
    %4036 = vmatpush1.bf16.msra.mxu0 %v3302
    %4037 = vmatprep.subr.bf16.mxu0 %v3307
    %4038 = vmatpush1.bf16.msra.mxu0 %v3306
    %4039 = vmatprep.subr.bf16.mxu0 %v3311
    %4040 = vmatpush1.bf16.msra.mxu0 %v3310
    %4041 = vmatprep.subr.bf16.mxu0 %v3315
    %4042 = vmatpush1.bf16.msra.mxu0 %v3314
    %4043 = vmatprep.subr.bf16.mxu0 %v3319
    %4044 = vmatpush1.bf16.msra.mxu0 %v3318
    %4045 = vmatprep.subr.bf16.mxu0 %v3323
    %4046 = vmatpush1.bf16.msra.mxu0 %v3322
    %4047 = vmatprep.subr.bf16.mxu0 %v3327
    %4048 = vmatpush1.bf16.msra.mxu0 %v3326
    %4049 = vmatprep.subr.bf16.mxu0 %v3331
    %4050 = vmatpush1.bf16.msra.mxu0 %v3330
    %4051 = vmatprep.subr.bf16.mxu0 0
    %4052 = vmatpush1.bf16.msra.mxu0 0
    %4053 = vmatprep.subr.bf16.mxu0 0
    %4054 = vmatpush1.bf16.msra.mxu0 0
    %4055 = vmatprep.subr.bf16.mxu0 0
    %4056 = vmatpush1.bf16.msra.mxu0 0
    %4057 = vmatprep.subr.bf16.mxu0 0
    %4058 = vmatpush1.bf16.msra.mxu0 0
    %4059 = vmatprep.subr.bf16.mxu0 0
    %4060 = vmatpush1.bf16.msra.mxu0 0
    %4061 = vmatprep.subr.bf16.mxu0 0
    %4062 = vmatpush1.bf16.msra.mxu0 0
    %4063 = vmatprep.subr.bf16.mxu0 0
    %4064 = vmatpush1.bf16.msra.mxu0 0
    %4065 = vmatprep.subr.bf16.mxu0 0
    %4066 = vmatpush1.bf16.msra.mxu0 0
    %4067 = vmatprep.mubr.bf16.mxu0 0
    %4068 = vmatmul.mubr.bf16.gmra.mrb[0].mxu0 %v3992
    %v4069 = vpop.f32.mrb[0].mxu0
    %v4070 = vadd.f32 0.0, %v4069
    %v4071 = vpop.f32.mrb[0].mxu0
    %v4072 = vadd.f32 0.0, %v4071
    %v4073 = vpop.f32.mrb[0].mxu0
    %v4074 = vpop.f32.mrb[0].mxu0
    %4075 = vdwg.mxu0
    %v4080 = vrot.slane %v4029, 4
    %v4081 = vrot.slane %v4031, 4
    %v4082 = vrot.slane %v4070, 4
    %v4083 = vrot.slane %v4072, 4
    %v4088 = vadd.f32 %v3140, %v4080
    %v4089 = vadd.f32 %v3142, %v4081
    %v4090 = vadd.f32 %v3183, %v4082
    %v4091 = vadd.f32 %v3185, %v4083
    %v4092 = vxor.u32 %v4088, 2147483648
    %v4093 = vxor.u32 %v4089, 2147483648
    %v4094 = vxor.u32 %v4090, 2147483648
    %v4095 = vmul.f32 %v4092, 1.442695
    %v4096 = vpow.pop %v4095
    %v4097 = vmul.f32 %v4093, 1.442695
    %v4098 = vpow.pop %v4097
    %v4099 = vmul.f32 %v4094, 1.442695
    %v4100 = vpow.pop %v4099
    %v4101 = vadd.f32 %v4096, 1.0
    %v4102 = vadd.f32 %v4098, 1.0
    %v4103 = vadd.f32 %v4100, 1.0
    %v4104 = vrcp.pop %v4101
    %v4105 = vmul.f32 1.0, %v4104
    %v4106 = vrcp.pop %v4102
    %v4107 = vmul.f32 1.0, %v4106
    %v4108 = vrcp.pop %v4103
    %v4109 = vmul.f32 1.0, %v4108
    %v4110 = vtanh.pop %v4091
    %v4112 = vrot.slane %v3987, 6
    %v4114 = vmul.f32 %v4107, %v4112
    %v4115 = vmul.f32 %v4105, %v4110
    %v4116 = vadd.f32 %v4114, %v4115
    %v4117 = vtanh.pop %v4116
    %v4118 = vmul.f32 %v4109, %v4117
    %v4119 = vpack.c.bf16 %v4118, %v4118
    %v4121 = vrot.slane %v4119, 2
    %4123 = vmatprep.subr.bf16.mxu0 %v3301
    %4124 = vmatpush1.bf16.msra.mxu0 %v3300
    %4125 = vmatprep.subr.bf16.mxu0 %v3305
    %4126 = vmatpush1.bf16.msra.mxu0 %v3304
    %4127 = vmatprep.subr.bf16.mxu0 %v3309
    %4128 = vmatpush1.bf16.msra.mxu0 %v3308
    %4129 = vmatprep.subr.bf16.mxu0 %v3313
    %4130 = vmatpush1.bf16.msra.mxu0 %v3312
    %4131 = vmatprep.subr.bf16.mxu0 %v3317
    %4132 = vmatpush1.bf16.msra.mxu0 %v3316
    %4133 = vmatprep.subr.bf16.mxu0 %v3321
    %4134 = vmatpush1.bf16.msra.mxu0 %v3320
    %4135 = vmatprep.subr.bf16.mxu0 %v3325
    %4136 = vmatpush1.bf16.msra.mxu0 %v3324
    %4137 = vmatprep.subr.bf16.mxu0 %v3329
    %4138 = vmatpush1.bf16.msra.mxu0 %v3328
    %4139 = vmatprep.subr.bf16.mxu0 0
    %4140 = vmatpush1.bf16.msra.mxu0 0
    %4141 = vmatprep.subr.bf16.mxu0 0
    %4142 = vmatpush1.bf16.msra.mxu0 0
    %4143 = vmatprep.subr.bf16.mxu0 0
    %4144 = vmatpush1.bf16.msra.mxu0 0
    %4145 = vmatprep.subr.bf16.mxu0 0
    %4146 = vmatpush1.bf16.msra.mxu0 0
    %4147 = vmatprep.subr.bf16.mxu0 0
    %4148 = vmatpush1.bf16.msra.mxu0 0
    %4149 = vmatprep.subr.bf16.mxu0 0
    %4150 = vmatpush1.bf16.msra.mxu0 0
    %4151 = vmatprep.subr.bf16.mxu0 0
    %4152 = vmatpush1.bf16.msra.mxu0 0
    %4153 = vmatprep.subr.bf16.mxu0 0
    %4154 = vmatpush1.bf16.msra.mxu0 0
    %4155 = vmatprep.mubr.bf16.mxu0 0
    %4156 = vmatmul.mubr.bf16.gmra.mrb[0].mxu0 %v4121
    %v4157 = vpop.f32.mrb[0].mxu0
    %v4158 = vadd.f32 0.0, %v4157
    %v4159 = vpop.f32.mrb[0].mxu0
    %v4160 = vadd.f32 0.0, %v4159
    %v4161 = vpop.f32.mrb[0].mxu0
    %v4162 = vpop.f32.mrb[0].mxu0
    %4163 = vdwg.mxu0
    %4164 = vmatprep.subr.bf16.mxu0 %v3303
    %4165 = vmatpush1.bf16.msra.mxu0 %v3302
    %4166 = vmatprep.subr.bf16.mxu0 %v3307
    %4167 = vmatpush1.bf16.msra.mxu0 %v3306
    %4168 = vmatprep.subr.bf16.mxu0 %v3311
    %4169 = vmatpush1.bf16.msra.mxu0 %v3310
    %4170 = vmatprep.subr.bf16.mxu0 %v3315
    %4171 = vmatpush1.bf16.msra.mxu0 %v3314
    %4172 = vmatprep.subr.bf16.mxu0 %v3319
    %4173 = vmatpush1.bf16.msra.mxu0 %v3318
    %4174 = vmatprep.subr.bf16.mxu0 %v3323
    %4175 = vmatpush1.bf16.msra.mxu0 %v3322
    %4176 = vmatprep.subr.bf16.mxu0 %v3327
    %4177 = vmatpush1.bf16.msra.mxu0 %v3326
    %4178 = vmatprep.subr.bf16.mxu0 %v3331
    %4179 = vmatpush1.bf16.msra.mxu0 %v3330
    %4180 = vmatprep.subr.bf16.mxu0 0
    %4181 = vmatpush1.bf16.msra.mxu0 0
    %4182 = vmatprep.subr.bf16.mxu0 0
    %4183 = vmatpush1.bf16.msra.mxu0 0
    %4184 = vmatprep.subr.bf16.mxu0 0
    %4185 = vmatpush1.bf16.msra.mxu0 0
    %4186 = vmatprep.subr.bf16.mxu0 0
    %4187 = vmatpush1.bf16.msra.mxu0 0
    %4188 = vmatprep.subr.bf16.mxu0 0
    %4189 = vmatpush1.bf16.msra.mxu0 0
    %4190 = vmatprep.subr.bf16.mxu0 0
    %4191 = vmatpush1.bf16.msra.mxu0 0
    %4192 = vmatprep.subr.bf16.mxu0 0
    %4193 = vmatpush1.bf16.msra.mxu0 0
    %4194 = vmatprep.subr.bf16.mxu0 0
    %4195 = vmatpush1.bf16.msra.mxu0 0
    %4196 = vmatprep.mubr.bf16.mxu0 0
    %4197 = vmatmul.mubr.bf16.gmra.mrb[0].mxu0 %v4121
    %v4198 = vpop.f32.mrb[0].mxu0
    %v4199 = vadd.f32 0.0, %v4198
    %v4200 = vpop.f32.mrb[0].mxu0
    %v4201 = vadd.f32 0.0, %v4200
    %v4202 = vpop.f32.mrb[0].mxu0
    %v4203 = vpop.f32.mrb[0].mxu0
    %4204 = vdwg.mxu0
    %v4209 = vrot.slane %v4158, 2
    %v4210 = vrot.slane %v4160, 2
    %v4211 = vrot.slane %v4199, 2
    %v4212 = vrot.slane %v4201, 2
    %v4217 = vadd.f32 %v3140, %v4209
    %v4218 = vadd.f32 %v3142, %v4210
    %v4219 = vadd.f32 %v3183, %v4211
    %v4220 = vadd.f32 %v3185, %v4212
    %v4221 = vxor.u32 %v4217, 2147483648
    %v4222 = vxor.u32 %v4218, 2147483648
    %v4223 = vxor.u32 %v4219, 2147483648
    %v4224 = vmul.f32 %v4221, 1.442695
    %v4225 = vpow.pop %v4224
    %v4226 = vmul.f32 %v4222, 1.442695
    %v4227 = vpow.pop %v4226
    %v4228 = vmul.f32 %v4223, 1.442695
    %v4229 = vpow.pop %v4228
    %v4230 = vadd.f32 %v4225, 1.0
    %v4231 = vadd.f32 %v4227, 1.0
    %v4232 = vadd.f32 %v4229, 1.0
    %v4233 = vrcp.pop %v4230
    %v4234 = vmul.f32 1.0, %v4233
    %v4235 = vrcp.pop %v4231
    %v4236 = vmul.f32 1.0, %v4235
    %v4237 = vrcp.pop %v4232
    %v4238 = vmul.f32 1.0, %v4237
    %v4239 = vtanh.pop %v4220
    %v4241 = vrot.slane %v4116, 6
    %v4243 = vmul.f32 %v4236, %v4241
    %v4244 = vmul.f32 %v4234, %v4239
    %v4245 = vadd.f32 %v4243, %v4244
    %v4246 = vtanh.pop %v4245
    %v4247 = vmul.f32 %v4238, %v4246
    %v4248 = vsel %vm1439, %v3202, %v3488
    %v4249 = vsel %vm1441, %v4248, %v3617
    %v4250 = vsel %vm1443, %v4249, %v3746
    %v4251 = vsel %vm1439, %v3863, %v3989
    %v4252 = vsel %vm1441, %v4251, %v4118
    %v4253 = vsel %vm1443, %v4252, %v4247
    %v4254 = vpack.c.bf16 %v4253, %v4250
    %s4255 = scalar_lea.vmem [#allocation2], 768
    %v4256 = vld [vmem:[%s4255] sm:$0xff]
    %v4257 = vld [vmem:[%s4255 + $0x8] sm:$0xff]
    %v4258 = vld [vmem:[%s4255 + $0x10] sm:$0xff]
    %v4259 = vld [vmem:[%s4255 + $0x18] sm:$0xff]
    %v4260 = vld [vmem:[%s4255 + $0x20] sm:$0xff]
    %v4261 = vld [vmem:[%s4255 + $0x28] sm:$0xff]
    %v4262 = vld [vmem:[%s4255 + $0x30] sm:$0xff]
    %v4263 = vld [vmem:[%s4255 + $0x38] sm:$0xff]
    %v4264 = vld [vmem:[%s4255 + $0x40] sm:$0xff]
    %v4265 = vld [vmem:[%s4255 + $0x48] sm:$0xff]
    %v4266 = vld [vmem:[%s4255 + $0x50] sm:$0xff]
    %v4267 = vld [vmem:[%s4255 + $0x58] sm:$0xff]
    %v4268 = vld [vmem:[%s4255 + $0x60] sm:$0xff]
    %v4269 = vld [vmem:[%s4255 + $0x68] sm:$0xff]
    %v4270 = vld [vmem:[%s4255 + $0x70] sm:$0xff]
    %v4271 = vld [vmem:[%s4255 + $0x78] sm:$0xff]
    %v4272 = vld [vmem:[%s4255 + $0x80] sm:$0xff]
    %v4273 = vld [vmem:[%s4255 + $0x88] sm:$0xff]
    %v4274 = vld [vmem:[%s4255 + $0x90] sm:$0xff]
    %v4275 = vld [vmem:[%s4255 + $0x98] sm:$0xff]
    %v4276 = vld [vmem:[%s4255 + $0xa0] sm:$0xff]
    %v4277 = vld [vmem:[%s4255 + $0xa8] sm:$0xff]
    %v4278 = vld [vmem:[%s4255 + $0xb0] sm:$0xff]
    %v4279 = vld [vmem:[%s4255 + $0xb8] sm:$0xff]
    %v4280 = vld [vmem:[%s4255 + $0xc0] sm:$0xff]
    %v4281 = vld [vmem:[%s4255 + $0xc8] sm:$0xff]
    %v4282 = vld [vmem:[%s4255 + $0xd0] sm:$0xff]
    %v4283 = vld [vmem:[%s4255 + $0xd8] sm:$0xff]
    %v4284 = vld [vmem:[%s4255 + $0xe0] sm:$0xff]
    %v4285 = vld [vmem:[%s4255 + $0xe8] sm:$0xff]
    %v4286 = vld [vmem:[%s4255 + $0xf0] sm:$0xff]
    %v4287 = vld [vmem:[%s4255 + $0xf8] sm:$0xff]
    %s4288 = scalar_lea.vmem %s1, 768
    %v4289 = vld [vmem:[%s4288] sm:$0xff]
    %v4290 = vld [vmem:[%s4288 + $0x8] sm:$0xff]
    %v4291 = vld [vmem:[%s4288 + $0x10] sm:$0xff]
    %v4292 = vld [vmem:[%s4288 + $0x18] sm:$0xff]
    %v4293 = vld [vmem:[%s4288 + $0x20] sm:$0xff]
    %v4294 = vld [vmem:[%s4288 + $0x28] sm:$0xff]
    %v4295 = vld [vmem:[%s4288 + $0x30] sm:$0xff]
    %v4296 = vld [vmem:[%s4288 + $0x38] sm:$0xff]
    %v4297 = vld [vmem:[%s4288 + $0x40] sm:$0xff]
    %v4298 = vld [vmem:[%s4288 + $0x48] sm:$0xff]
    %v4299 = vld [vmem:[%s4288 + $0x50] sm:$0xff]
    %v4300 = vld [vmem:[%s4288 + $0x58] sm:$0xff]
    %v4301 = vld [vmem:[%s4288 + $0x60] sm:$0xff]
    %v4302 = vld [vmem:[%s4288 + $0x68] sm:$0xff]
    %v4303 = vld [vmem:[%s4288 + $0x70] sm:$0xff]
    %v4304 = vld [vmem:[%s4288 + $0x78] sm:$0xff]
    %v4305 = vld [vmem:[%s4288 + $0x80] sm:$0xff]
    %v4306 = vld [vmem:[%s4288 + $0x88] sm:$0xff]
    %v4307 = vld [vmem:[%s4288 + $0x90] sm:$0xff]
    %v4308 = vld [vmem:[%s4288 + $0x98] sm:$0xff]
    %v4309 = vld [vmem:[%s4288 + $0xa0] sm:$0xff]
    %v4310 = vld [vmem:[%s4288 + $0xa8] sm:$0xff]
    %v4311 = vld [vmem:[%s4288 + $0xb0] sm:$0xff]
    %v4312 = vld [vmem:[%s4288 + $0xb8] sm:$0xff]
    %v4313 = vld [vmem:[%s4288 + $0xc0] sm:$0xff]
    %v4314 = vld [vmem:[%s4288 + $0xc8] sm:$0xff]
    %v4315 = vld [vmem:[%s4288 + $0xd0] sm:$0xff]
    %v4316 = vld [vmem:[%s4288 + $0xd8] sm:$0xff]
    %v4317 = vld [vmem:[%s4288 + $0xe0] sm:$0xff]
    %v4318 = vld [vmem:[%s4288 + $0xe8] sm:$0xff]
    %v4319 = vld [vmem:[%s4288 + $0xf0] sm:$0xff]
    %v4320 = vld [vmem:[%s4288 + $0xf8] sm:$0xff]
    %s4321 = scalar_lea.vmem %s3, 12
    %v4322 = vld [vmem:[%s4321] sm:$0xf]
    %v4324 = vlaneseq
    %v4325 = vshrl.u32 %v4324, 7
    %v4326 = vsub.s32 0, %v4325
    %v4327 = vrot.slane %v4322, %v4326
    %v4328 = vlaneseq
    %v4329 = vshrl.u32 %v4328, 7
    %v4330 = vsub.s32 1, %v4329
    %v4331 = vrot.slane %v4322, %v4330
    %v4332 = vlaneseq
    %v4333 = vshrl.u32 %v4332, 7
    %v4334 = vsub.s32 2, %v4333
    %v4335 = vrot.slane %v4322, %v4334
    %v4336 = vlaneseq
    %v4337 = vshrl.u32 %v4336, 7
    %v4338 = vsub.s32 3, %v4337
    %v4339 = vrot.slane %v4322, %v4338
    %v4376 = vunpack.c.l.b16 %v4289
    %v4377 = vunpack.c.h.b16 %v4289
    %v4378 = vunpack.c.l.b16 %v4290
    %v4379 = vunpack.c.h.b16 %v4290
    %v4380 = vunpack.c.l.b16 %v4291
    %v4381 = vunpack.c.h.b16 %v4291
    %v4382 = vunpack.c.l.b16 %v4292
    %v4383 = vunpack.c.h.b16 %v4292
    %v4384 = vunpack.c.l.b16 %v4293
    %v4385 = vunpack.c.h.b16 %v4293
    %v4386 = vunpack.c.l.b16 %v4294
    %v4387 = vunpack.c.h.b16 %v4294
    %v4388 = vunpack.c.l.b16 %v4295
    %v4389 = vunpack.c.h.b16 %v4295
    %v4390 = vunpack.c.l.b16 %v4296
    %v4391 = vunpack.c.h.b16 %v4296
    %v4392 = vunpack.c.l.b16 %v4297
    %v4393 = vunpack.c.h.b16 %v4297
    %v4394 = vunpack.c.l.b16 %v4298
    %v4395 = vunpack.c.h.b16 %v4298
    %v4396 = vunpack.c.l.b16 %v4299
    %v4397 = vunpack.c.h.b16 %v4299
    %v4398 = vunpack.c.l.b16 %v4300
    %v4399 = vunpack.c.h.b16 %v4300
    %v4400 = vunpack.c.l.b16 %v4301
    %v4401 = vunpack.c.h.b16 %v4301
    %v4402 = vunpack.c.l.b16 %v4302
    %v4403 = vunpack.c.h.b16 %v4302
    %v4404 = vunpack.c.l.b16 %v4303
    %v4405 = vunpack.c.h.b16 %v4303
    %v4406 = vunpack.c.l.b16 %v4304
    %v4407 = vunpack.c.h.b16 %v4304
    %v4408 = vunpack.c.l.b16 %v4305
    %v4409 = vunpack.c.h.b16 %v4305
    %v4410 = vunpack.c.l.b16 %v4306
    %v4411 = vunpack.c.h.b16 %v4306
    %v4412 = vunpack.c.l.b16 %v4307
    %v4413 = vunpack.c.h.b16 %v4307
    %v4414 = vunpack.c.l.b16 %v4308
    %v4415 = vunpack.c.h.b16 %v4308
    %v4416 = vunpack.c.l.b16 %v4309
    %v4417 = vunpack.c.h.b16 %v4309
    %v4418 = vunpack.c.l.b16 %v4310
    %v4419 = vunpack.c.h.b16 %v4310
    %v4420 = vunpack.c.l.b16 %v4311
    %v4421 = vunpack.c.h.b16 %v4311
    %v4422 = vunpack.c.l.b16 %v4312
    %v4423 = vunpack.c.h.b16 %v4312
    %v4424 = vunpack.c.l.b16 %v4313
    %v4425 = vunpack.c.h.b16 %v4313
    %v4426 = vunpack.c.l.b16 %v4314
    %v4427 = vunpack.c.h.b16 %v4314
    %v4428 = vunpack.c.l.b16 %v4315
    %v4429 = vunpack.c.h.b16 %v4315
    %v4430 = vunpack.c.l.b16 %v4316
    %v4431 = vunpack.c.h.b16 %v4316
    %v4432 = vunpack.c.l.b16 %v4317
    %v4433 = vunpack.c.h.b16 %v4317
    %v4434 = vunpack.c.l.b16 %v4318
    %v4435 = vunpack.c.h.b16 %v4318
    %v4436 = vunpack.c.l.b16 %v4319
    %v4437 = vunpack.c.h.b16 %v4319
    %v4438 = vunpack.c.l.b16 %v4320
    %v4439 = vunpack.c.h.b16 %v4320
    %v4440 = vpack.c.b16 %v4380, %v4376
    %v4441 = vpack.c.b16 %v4381, %v4377
    %v4442 = vpack.c.b16 %v4382, %v4378
    %v4443 = vpack.c.b16 %v4383, %v4379
    %v4444 = vpack.c.b16 %v4388, %v4384
    %v4445 = vpack.c.b16 %v4389, %v4385
    %v4446 = vpack.c.b16 %v4390, %v4386
    %v4447 = vpack.c.b16 %v4391, %v4387
    %v4448 = vpack.c.b16 %v4396, %v4392
    %v4449 = vpack.c.b16 %v4397, %v4393
    %v4450 = vpack.c.b16 %v4398, %v4394
    %v4451 = vpack.c.b16 %v4399, %v4395
    %v4452 = vpack.c.b16 %v4404, %v4400
    %v4453 = vpack.c.b16 %v4405, %v4401
    %v4454 = vpack.c.b16 %v4406, %v4402
    %v4455 = vpack.c.b16 %v4407, %v4403
    %v4456 = vpack.c.b16 %v4412, %v4408
    %v4457 = vpack.c.b16 %v4413, %v4409
    %v4458 = vpack.c.b16 %v4414, %v4410
    %v4459 = vpack.c.b16 %v4415, %v4411
    %v4460 = vpack.c.b16 %v4420, %v4416
    %v4461 = vpack.c.b16 %v4421, %v4417
    %v4462 = vpack.c.b16 %v4422, %v4418
    %v4463 = vpack.c.b16 %v4423, %v4419
    %v4464 = vpack.c.b16 %v4428, %v4424
    %v4465 = vpack.c.b16 %v4429, %v4425
    %v4466 = vpack.c.b16 %v4430, %v4426
    %v4467 = vpack.c.b16 %v4431, %v4427
    %v4468 = vpack.c.b16 %v4436, %v4432
    %v4469 = vpack.c.b16 %v4437, %v4433
    %v4470 = vpack.c.b16 %v4438, %v4434
    %v4471 = vpack.c.b16 %v4439, %v4435
    %4504 = vmatprep.subr.bf16.mxu0 %v4441
    %4505 = vmatpush1.bf16.msra.mxu0 %v4440
    %4506 = vmatprep.subr.bf16.mxu0 %v4445
    %4507 = vmatpush1.bf16.msra.mxu0 %v4444
    %4508 = vmatprep.subr.bf16.mxu0 %v4449
    %4509 = vmatpush1.bf16.msra.mxu0 %v4448
    %4510 = vmatprep.subr.bf16.mxu0 %v4453
    %4511 = vmatpush1.bf16.msra.mxu0 %v4452
    %4512 = vmatprep.subr.bf16.mxu0 %v4457
    %4513 = vmatpush1.bf16.msra.mxu0 %v4456
    %4514 = vmatprep.subr.bf16.mxu0 %v4461
    %4515 = vmatpush1.bf16.msra.mxu0 %v4460
    %4516 = vmatprep.subr.bf16.mxu0 %v4465
    %4517 = vmatpush1.bf16.msra.mxu0 %v4464
    %4518 = vmatprep.subr.bf16.mxu0 %v4469
    %4519 = vmatpush1.bf16.msra.mxu0 %v4468
    %4520 = vmatprep.subr.bf16.mxu0 0
    %4521 = vmatpush1.bf16.msra.mxu0 0
    %4522 = vmatprep.subr.bf16.mxu0 0
    %4523 = vmatpush1.bf16.msra.mxu0 0
    %4524 = vmatprep.subr.bf16.mxu0 0
    %4525 = vmatpush1.bf16.msra.mxu0 0
    %4526 = vmatprep.subr.bf16.mxu0 0
    %4527 = vmatpush1.bf16.msra.mxu0 0
    %4528 = vmatprep.subr.bf16.mxu0 0
    %4529 = vmatpush1.bf16.msra.mxu0 0
    %4530 = vmatprep.subr.bf16.mxu0 0
    %4531 = vmatpush1.bf16.msra.mxu0 0
    %4532 = vmatprep.subr.bf16.mxu0 0
    %4533 = vmatpush1.bf16.msra.mxu0 0
    %4534 = vmatprep.subr.bf16.mxu0 0
    %4535 = vmatpush1.bf16.msra.mxu0 0
    %4536 = vmatprep.mubr.bf16.mxu0 0
    %4537 = vmatmul.mubr.bf16.gmra.mrb[0].mxu0 %v4254
    %v4538 = vpop.f32.mrb[0].mxu0
    %v4539 = vadd.f32 %v4327, %v4538
    %v4540 = vpop.f32.mrb[0].mxu0
    %v4541 = vadd.f32 %v4331, %v4540
    %v4542 = vpop.f32.mrb[0].mxu0
    %v4543 = vadd.f32 %v4327, %v4542
    %v4544 = vpop.f32.mrb[0].mxu0
    %v4545 = vadd.f32 %v4331, %v4544
    %4546 = vdwg.mxu0
    %4547 = vmatprep.subr.bf16.mxu0 %v4443
    %4548 = vmatpush1.bf16.msra.mxu0 %v4442
    %4549 = vmatprep.subr.bf16.mxu0 %v4447
    %4550 = vmatpush1.bf16.msra.mxu0 %v4446
    %4551 = vmatprep.subr.bf16.mxu0 %v4451
    %4552 = vmatpush1.bf16.msra.mxu0 %v4450
    %4553 = vmatprep.subr.bf16.mxu0 %v4455
    %4554 = vmatpush1.bf16.msra.mxu0 %v4454
    %4555 = vmatprep.subr.bf16.mxu0 %v4459
    %4556 = vmatpush1.bf16.msra.mxu0 %v4458
    %4557 = vmatprep.subr.bf16.mxu0 %v4463
    %4558 = vmatpush1.bf16.msra.mxu0 %v4462
    %4559 = vmatprep.subr.bf16.mxu0 %v4467
    %4560 = vmatpush1.bf16.msra.mxu0 %v4466
    %4561 = vmatprep.subr.bf16.mxu0 %v4471
    %4562 = vmatpush1.bf16.msra.mxu0 %v4470
    %4563 = vmatprep.subr.bf16.mxu0 0
    %4564 = vmatpush1.bf16.msra.mxu0 0
    %4565 = vmatprep.subr.bf16.mxu0 0
    %4566 = vmatpush1.bf16.msra.mxu0 0
    %4567 = vmatprep.subr.bf16.mxu0 0
    %4568 = vmatpush1.bf16.msra.mxu0 0
    %4569 = vmatprep.subr.bf16.mxu0 0
    %4570 = vmatpush1.bf16.msra.mxu0 0
    %4571 = vmatprep.subr.bf16.mxu0 0
    %4572 = vmatpush1.bf16.msra.mxu0 0
    %4573 = vmatprep.subr.bf16.mxu0 0
    %4574 = vmatpush1.bf16.msra.mxu0 0
    %4575 = vmatprep.subr.bf16.mxu0 0
    %4576 = vmatpush1.bf16.msra.mxu0 0
    %4577 = vmatprep.subr.bf16.mxu0 0
    %4578 = vmatpush1.bf16.msra.mxu0 0
    %4579 = vmatprep.mubr.bf16.mxu0 0
    %4580 = vmatmul.mubr.bf16.gmra.mrb[0].mxu0 %v4254
    %v4581 = vpop.f32.mrb[0].mxu0
    %v4582 = vadd.f32 %v4335, %v4581
    %v4583 = vpop.f32.mrb[0].mxu0
    %v4584 = vadd.f32 %v4339, %v4583
    %v4585 = vpop.f32.mrb[0].mxu0
    %v4586 = vadd.f32 %v4335, %v4585
    %v4587 = vpop.f32.mrb[0].mxu0
    %v4588 = vadd.f32 %v4339, %v4587
    %4589 = vdwg.mxu0
    %v4590 = vxor.u32 %v4539, 2147483648
    %v4591 = vxor.u32 %v4582, 2147483648
    %v4592 = vmul.f32 %v4590, 1.442695
    %v4593 = vpow.pop %v4592
    %v4594 = vmul.f32 %v4591, 1.442695
    %v4595 = vpow.pop %v4594
    %v4596 = vadd.f32 %v4593, 1.0
    %v4597 = vadd.f32 %v4595, 1.0
    %v4598 = vrcp.pop %v4596
    %v4599 = vmul.f32 1.0, %v4598
    %v4600 = vrcp.pop %v4597
    %v4601 = vmul.f32 1.0, %v4600
    %v4602 = vtanh.pop %v4584
    %v4603 = vmul.f32 %v4599, %v4602
    %v4604 = vtanh.pop %v4603
    %v4605 = vmul.f32 %v4601, %v4604
    %v4606 = vpack.c.bf16 %v4605, %v4605
    %v4639 = vunpack.c.l.b16 %v4256
    %v4640 = vunpack.c.h.b16 %v4256
    %v4641 = vunpack.c.l.b16 %v4257
    %v4642 = vunpack.c.h.b16 %v4257
    %v4643 = vunpack.c.l.b16 %v4258
    %v4644 = vunpack.c.h.b16 %v4258
    %v4645 = vunpack.c.l.b16 %v4259
    %v4646 = vunpack.c.h.b16 %v4259
    %v4647 = vunpack.c.l.b16 %v4260
    %v4648 = vunpack.c.h.b16 %v4260
    %v4649 = vunpack.c.l.b16 %v4261
    %v4650 = vunpack.c.h.b16 %v4261
    %v4651 = vunpack.c.l.b16 %v4262
    %v4652 = vunpack.c.h.b16 %v4262
    %v4653 = vunpack.c.l.b16 %v4263
    %v4654 = vunpack.c.h.b16 %v4263
    %v4655 = vunpack.c.l.b16 %v4264
    %v4656 = vunpack.c.h.b16 %v4264
    %v4657 = vunpack.c.l.b16 %v4265
    %v4658 = vunpack.c.h.b16 %v4265
    %v4659 = vunpack.c.l.b16 %v4266
    %v4660 = vunpack.c.h.b16 %v4266
    %v4661 = vunpack.c.l.b16 %v4267
    %v4662 = vunpack.c.h.b16 %v4267
    %v4663 = vunpack.c.l.b16 %v4268
    %v4664 = vunpack.c.h.b16 %v4268
    %v4665 = vunpack.c.l.b16 %v4269
    %v4666 = vunpack.c.h.b16 %v4269
    %v4667 = vunpack.c.l.b16 %v4270
    %v4668 = vunpack.c.h.b16 %v4270
    %v4669 = vunpack.c.l.b16 %v4271
    %v4670 = vunpack.c.h.b16 %v4271
    %v4671 = vunpack.c.l.b16 %v4272
    %v4672 = vunpack.c.h.b16 %v4272
    %v4673 = vunpack.c.l.b16 %v4273
    %v4674 = vunpack.c.h.b16 %v4273
    %v4675 = vunpack.c.l.b16 %v4274
    %v4676 = vunpack.c.h.b16 %v4274
    %v4677 = vunpack.c.l.b16 %v4275
    %v4678 = vunpack.c.h.b16 %v4275
    %v4679 = vunpack.c.l.b16 %v4276
    %v4680 = vunpack.c.h.b16 %v4276
    %v4681 = vunpack.c.l.b16 %v4277
    %v4682 = vunpack.c.h.b16 %v4277
    %v4683 = vunpack.c.l.b16 %v4278
    %v4684 = vunpack.c.h.b16 %v4278
    %v4685 = vunpack.c.l.b16 %v4279
    %v4686 = vunpack.c.h.b16 %v4279
    %v4687 = vunpack.c.l.b16 %v4280
    %v4688 = vunpack.c.h.b16 %v4280
    %v4689 = vunpack.c.l.b16 %v4281
    %v4690 = vunpack.c.h.b16 %v4281
    %v4691 = vunpack.c.l.b16 %v4282
    %v4692 = vunpack.c.h.b16 %v4282
    %v4693 = vunpack.c.l.b16 %v4283
    %v4694 = vunpack.c.h.b16 %v4283
    %v4695 = vunpack.c.l.b16 %v4284
    %v4696 = vunpack.c.h.b16 %v4284
    %v4697 = vunpack.c.l.b16 %v4285
    %v4698 = vunpack.c.h.b16 %v4285
    %v4699 = vunpack.c.l.b16 %v4286
    %v4700 = vunpack.c.h.b16 %v4286
    %v4701 = vunpack.c.l.b16 %v4287
    %v4702 = vunpack.c.h.b16 %v4287
    %v4703 = vpack.c.b16 %v4643, %v4639
    %v4704 = vpack.c.b16 %v4644, %v4640
    %v4705 = vpack.c.b16 %v4645, %v4641
    %v4706 = vpack.c.b16 %v4646, %v4642
    %v4707 = vpack.c.b16 %v4651, %v4647
    %v4708 = vpack.c.b16 %v4652, %v4648
    %v4709 = vpack.c.b16 %v4653, %v4649
    %v4710 = vpack.c.b16 %v4654, %v4650
    %v4711 = vpack.c.b16 %v4659, %v4655
    %v4712 = vpack.c.b16 %v4660, %v4656
    %v4713 = vpack.c.b16 %v4661, %v4657
    %v4714 = vpack.c.b16 %v4662, %v4658
    %v4715 = vpack.c.b16 %v4667, %v4663
    %v4716 = vpack.c.b16 %v4668, %v4664
    %v4717 = vpack.c.b16 %v4669, %v4665
    %v4718 = vpack.c.b16 %v4670, %v4666
    %v4719 = vpack.c.b16 %v4675, %v4671
    %v4720 = vpack.c.b16 %v4676, %v4672
    %v4721 = vpack.c.b16 %v4677, %v4673
    %v4722 = vpack.c.b16 %v4678, %v4674
    %v4723 = vpack.c.b16 %v4683, %v4679
    %v4724 = vpack.c.b16 %v4684, %v4680
    %v4725 = vpack.c.b16 %v4685, %v4681
    %v4726 = vpack.c.b16 %v4686, %v4682
    %v4727 = vpack.c.b16 %v4691, %v4687
    %v4728 = vpack.c.b16 %v4692, %v4688
    %v4729 = vpack.c.b16 %v4693, %v4689
    %v4730 = vpack.c.b16 %v4694, %v4690
    %v4731 = vpack.c.b16 %v4699, %v4695
    %v4732 = vpack.c.b16 %v4700, %v4696
    %v4733 = vpack.c.b16 %v4701, %v4697
    %v4734 = vpack.c.b16 %v4702, %v4698
    %4767 = vmatprep.subr.bf16.mxu0 %v4704
    %4768 = vmatpush1.bf16.msra.mxu0 %v4703
    %4769 = vmatprep.subr.bf16.mxu0 %v4708
    %4770 = vmatpush1.bf16.msra.mxu0 %v4707
    %4771 = vmatprep.subr.bf16.mxu0 %v4712
    %4772 = vmatpush1.bf16.msra.mxu0 %v4711
    %4773 = vmatprep.subr.bf16.mxu0 %v4716
    %4774 = vmatpush1.bf16.msra.mxu0 %v4715
    %4775 = vmatprep.subr.bf16.mxu0 %v4720
    %4776 = vmatpush1.bf16.msra.mxu0 %v4719
    %4777 = vmatprep.subr.bf16.mxu0 %v4724
    %4778 = vmatpush1.bf16.msra.mxu0 %v4723
    %4779 = vmatprep.subr.bf16.mxu0 %v4728
    %4780 = vmatpush1.bf16.msra.mxu0 %v4727
    %4781 = vmatprep.subr.bf16.mxu0 %v4732
    %4782 = vmatpush1.bf16.msra.mxu0 %v4731
    %4783 = vmatprep.subr.bf16.mxu0 0
    %4784 = vmatpush1.bf16.msra.mxu0 0
    %4785 = vmatprep.subr.bf16.mxu0 0
    %4786 = vmatpush1.bf16.msra.mxu0 0
    %4787 = vmatprep.subr.bf16.mxu0 0
    %4788 = vmatpush1.bf16.msra.mxu0 0
    %4789 = vmatprep.subr.bf16.mxu0 0
    %4790 = vmatpush1.bf16.msra.mxu0 0
    %4791 = vmatprep.subr.bf16.mxu0 0
    %4792 = vmatpush1.bf16.msra.mxu0 0
    %4793 = vmatprep.subr.bf16.mxu0 0
    %4794 = vmatpush1.bf16.msra.mxu0 0
    %4795 = vmatprep.subr.bf16.mxu0 0
    %4796 = vmatpush1.bf16.msra.mxu0 0
    %4797 = vmatprep.subr.bf16.mxu0 0
    %4798 = vmatpush1.bf16.msra.mxu0 0
    %4799 = vmatprep.mubr.bf16.mxu0 0
    %4800 = vmatmul.mubr.bf16.gmra.mrb[0].mxu0 %v4606
    %v4801 = vpop.f32.mrb[0].mxu0
    %v4802 = vadd.f32 0.0, %v4801
    %v4803 = vpop.f32.mrb[0].mxu0
    %v4804 = vadd.f32 0.0, %v4803
    %v4805 = vpop.f32.mrb[0].mxu0
    %v4806 = vpop.f32.mrb[0].mxu0
    %4807 = vdwg.mxu0
    %4808 = vmatprep.subr.bf16.mxu0 %v4706
    %4809 = vmatpush1.bf16.msra.mxu0 %v4705
    %4810 = vmatprep.subr.bf16.mxu0 %v4710
    %4811 = vmatpush1.bf16.msra.mxu0 %v4709
    %4812 = vmatprep.subr.bf16.mxu0 %v4714
    %4813 = vmatpush1.bf16.msra.mxu0 %v4713
    %4814 = vmatprep.subr.bf16.mxu0 %v4718
    %4815 = vmatpush1.bf16.msra.mxu0 %v4717
    %4816 = vmatprep.subr.bf16.mxu0 %v4722
    %4817 = vmatpush1.bf16.msra.mxu0 %v4721
    %4818 = vmatprep.subr.bf16.mxu0 %v4726
    %4819 = vmatpush1.bf16.msra.mxu0 %v4725
    %4820 = vmatprep.subr.bf16.mxu0 %v4730
    %4821 = vmatpush1.bf16.msra.mxu0 %v4729
    %4822 = vmatprep.subr.bf16.mxu0 %v4734
    %4823 = vmatpush1.bf16.msra.mxu0 %v4733
    %4824 = vmatprep.subr.bf16.mxu0 0
    %4825 = vmatpush1.bf16.msra.mxu0 0
    %4826 = vmatprep.subr.bf16.mxu0 0
    %4827 = vmatpush1.bf16.msra.mxu0 0
    %4828 = vmatprep.subr.bf16.mxu0 0
    %4829 = vmatpush1.bf16.msra.mxu0 0
    %4830 = vmatprep.subr.bf16.mxu0 0
    %4831 = vmatpush1.bf16.msra.mxu0 0
    %4832 = vmatprep.subr.bf16.mxu0 0
    %4833 = vmatpush1.bf16.msra.mxu0 0
    %4834 = vmatprep.subr.bf16.mxu0 0
    %4835 = vmatpush1.bf16.msra.mxu0 0
    %4836 = vmatprep.subr.bf16.mxu0 0
    %4837 = vmatpush1.bf16.msra.mxu0 0
    %4838 = vmatprep.subr.bf16.mxu0 0
    %4839 = vmatpush1.bf16.msra.mxu0 0
    %4840 = vmatprep.mubr.bf16.mxu0 0
    %4841 = vmatmul.mubr.bf16.gmra.mrb[0].mxu0 %v4606
    %v4842 = vpop.f32.mrb[0].mxu0
    %v4843 = vadd.f32 0.0, %v4842
    %v4844 = vpop.f32.mrb[0].mxu0
    %v4845 = vadd.f32 0.0, %v4844
    %v4846 = vpop.f32.mrb[0].mxu0
    %v4847 = vpop.f32.mrb[0].mxu0
    %4848 = vdwg.mxu0
    %v4853 = vrot.slane %v4802, 6
    %v4854 = vrot.slane %v4804, 6
    %v4855 = vrot.slane %v4843, 6
    %v4856 = vrot.slane %v4845, 6
    %v4861 = vadd.f32 %v4539, %v4853
    %v4862 = vadd.f32 %v4541, %v4854
    %v4863 = vadd.f32 %v4582, %v4855
    %v4864 = vadd.f32 %v4584, %v4856
    %v4865 = vxor.u32 %v4861, 2147483648
    %v4866 = vxor.u32 %v4862, 2147483648
    %v4867 = vxor.u32 %v4863, 2147483648
    %v4868 = vmul.f32 %v4865, 1.442695
    %v4869 = vpow.pop %v4868
    %v4870 = vmul.f32 %v4866, 1.442695
    %v4871 = vpow.pop %v4870
    %v4872 = vmul.f32 %v4867, 1.442695
    %v4873 = vpow.pop %v4872
    %v4874 = vadd.f32 %v4869, 1.0
    %v4875 = vadd.f32 %v4871, 1.0
    %v4876 = vadd.f32 %v4873, 1.0
    %v4877 = vrcp.pop %v4874
    %v4878 = vmul.f32 1.0, %v4877
    %v4879 = vrcp.pop %v4875
    %v4880 = vmul.f32 1.0, %v4879
    %v4881 = vrcp.pop %v4876
    %v4882 = vmul.f32 1.0, %v4881
    %v4883 = vtanh.pop %v4864
    %v4885 = vrot.slane %v4603, 6
    %v4887 = vmul.f32 %v4880, %v4885
    %v4888 = vmul.f32 %v4878, %v4883
    %v4889 = vadd.f32 %v4887, %v4888
    %v4890 = vtanh.pop %v4889
    %v4891 = vmul.f32 %v4882, %v4890
    %v4892 = vpack.c.bf16 %v4891, %v4891
    %v4894 = vrot.slane %v4892, 1
    %4896 = vmatprep.subr.bf16.mxu0 %v4704
    %4897 = vmatpush1.bf16.msra.mxu0 %v4703
    %4898 = vmatprep.subr.bf16.mxu0 %v4708
    %4899 = vmatpush1.bf16.msra.mxu0 %v4707
    %4900 = vmatprep.subr.bf16.mxu0 %v4712
    %4901 = vmatpush1.bf16.msra.mxu0 %v4711
    %4902 = vmatprep.subr.bf16.mxu0 %v4716
    %4903 = vmatpush1.bf16.msra.mxu0 %v4715
    %4904 = vmatprep.subr.bf16.mxu0 %v4720
    %4905 = vmatpush1.bf16.msra.mxu0 %v4719
    %4906 = vmatprep.subr.bf16.mxu0 %v4724
    %4907 = vmatpush1.bf16.msra.mxu0 %v4723
    %4908 = vmatprep.subr.bf16.mxu0 %v4728
    %4909 = vmatpush1.bf16.msra.mxu0 %v4727
    %4910 = vmatprep.subr.bf16.mxu0 %v4732
    %4911 = vmatpush1.bf16.msra.mxu0 %v4731
    %4912 = vmatprep.subr.bf16.mxu0 0
    %4913 = vmatpush1.bf16.msra.mxu0 0
    %4914 = vmatprep.subr.bf16.mxu0 0
    %4915 = vmatpush1.bf16.msra.mxu0 0
    %4916 = vmatprep.subr.bf16.mxu0 0
    %4917 = vmatpush1.bf16.msra.mxu0 0
    %4918 = vmatprep.subr.bf16.mxu0 0
    %4919 = vmatpush1.bf16.msra.mxu0 0
    %4920 = vmatprep.subr.bf16.mxu0 0
    %4921 = vmatpush1.bf16.msra.mxu0 0
    %4922 = vmatprep.subr.bf16.mxu0 0
    %4923 = vmatpush1.bf16.msra.mxu0 0
    %4924 = vmatprep.subr.bf16.mxu0 0
    %4925 = vmatpush1.bf16.msra.mxu0 0
    %4926 = vmatprep.subr.bf16.mxu0 0
    %4927 = vmatpush1.bf16.msra.mxu0 0
    %4928 = vmatprep.mubr.bf16.mxu0 0
    %4929 = vmatmul.mubr.bf16.gmra.mrb[0].mxu0 %v4894
    %v4930 = vpop.f32.mrb[0].mxu0
    %v4931 = vadd.f32 0.0, %v4930
    %v4932 = vpop.f32.mrb[0].mxu0
    %v4933 = vadd.f32 0.0, %v4932
    %v4934 = vpop.f32.mrb[0].mxu0
    %v4935 = vpop.f32.mrb[0].mxu0
    %4936 = vdwg.mxu0
    %4937 = vmatprep.subr.bf16.mxu0 %v4706
    %4938 = vmatpush1.bf16.msra.mxu0 %v4705
    %4939 = vmatprep.subr.bf16.mxu0 %v4710
    %4940 = vmatpush1.bf16.msra.mxu0 %v4709
    %4941 = vmatprep.subr.bf16.mxu0 %v4714
    %4942 = vmatpush1.bf16.msra.mxu0 %v4713
    %4943 = vmatprep.subr.bf16.mxu0 %v4718
    %4944 = vmatpush1.bf16.msra.mxu0 %v4717
    %4945 = vmatprep.subr.bf16.mxu0 %v4722
    %4946 = vmatpush1.bf16.msra.mxu0 %v4721
    %4947 = vmatprep.subr.bf16.mxu0 %v4726
    %4948 = vmatpush1.bf16.msra.mxu0 %v4725
    %4949 = vmatprep.subr.bf16.mxu0 %v4730
    %4950 = vmatpush1.bf16.msra.mxu0 %v4729
    %4951 = vmatprep.subr.bf16.mxu0 %v4734
    %4952 = vmatpush1.bf16.msra.mxu0 %v4733
    %4953 = vmatprep.subr.bf16.mxu0 0
    %4954 = vmatpush1.bf16.msra.mxu0 0
    %4955 = vmatprep.subr.bf16.mxu0 0
    %4956 = vmatpush1.bf16.msra.mxu0 0
    %4957 = vmatprep.subr.bf16.mxu0 0
    %4958 = vmatpush1.bf16.msra.mxu0 0
    %4959 = vmatprep.subr.bf16.mxu0 0
    %4960 = vmatpush1.bf16.msra.mxu0 0
    %4961 = vmatprep.subr.bf16.mxu0 0
    %4962 = vmatpush1.bf16.msra.mxu0 0
    %4963 = vmatprep.subr.bf16.mxu0 0
    %4964 = vmatpush1.bf16.msra.mxu0 0
    %4965 = vmatprep.subr.bf16.mxu0 0
    %4966 = vmatpush1.bf16.msra.mxu0 0
    %4967 = vmatprep.subr.bf16.mxu0 0
    %4968 = vmatpush1.bf16.msra.mxu0 0
    %4969 = vmatprep.mubr.bf16.mxu0 0
    %4970 = vmatmul.mubr.bf16.gmra.mrb[0].mxu0 %v4894
    %v4971 = vpop.f32.mrb[0].mxu0
    %v4972 = vadd.f32 0.0, %v4971
    %v4973 = vpop.f32.mrb[0].mxu0
    %v4974 = vadd.f32 0.0, %v4973
    %v4975 = vpop.f32.mrb[0].mxu0
    %v4976 = vpop.f32.mrb[0].mxu0
    %4977 = vdwg.mxu0
    %v4982 = vrot.slane %v4931, 4
    %v4983 = vrot.slane %v4933, 4
    %v4984 = vrot.slane %v4972, 4
    %v4985 = vrot.slane %v4974, 4
    %v4990 = vadd.f32 %v4539, %v4982
    %v4991 = vadd.f32 %v4541, %v4983
    %v4992 = vadd.f32 %v4582, %v4984
    %v4993 = vadd.f32 %v4584, %v4985
    %v4994 = vxor.u32 %v4990, 2147483648
    %v4995 = vxor.u32 %v4991, 2147483648
    %v4996 = vxor.u32 %v4992, 2147483648
    %v4997 = vmul.f32 %v4994, 1.442695
    %v4998 = vpow.pop %v4997
    %v4999 = vmul.f32 %v4995, 1.442695
    %v5000 = vpow.pop %v4999
    %v5001 = vmul.f32 %v4996, 1.442695
    %v5002 = vpow.pop %v5001
    %v5003 = vadd.f32 %v4998, 1.0
    %v5004 = vadd.f32 %v5000, 1.0
    %v5005 = vadd.f32 %v5002, 1.0
    %v5006 = vrcp.pop %v5003
    %v5007 = vmul.f32 1.0, %v5006
    %v5008 = vrcp.pop %v5004
    %v5009 = vmul.f32 1.0, %v5008
    %v5010 = vrcp.pop %v5005
    %v5011 = vmul.f32 1.0, %v5010
    %v5012 = vtanh.pop %v4993
    %v5014 = vrot.slane %v4889, 6
    %v5016 = vmul.f32 %v5009, %v5014
    %v5017 = vmul.f32 %v5007, %v5012
    %v5018 = vadd.f32 %v5016, %v5017
    %v5019 = vtanh.pop %v5018
    %v5020 = vmul.f32 %v5011, %v5019
    %v5021 = vpack.c.bf16 %v5020, %v5020
    %v5023 = vrot.slane %v5021, 2
    %5025 = vmatprep.subr.bf16.mxu0 %v4704
    %5026 = vmatpush1.bf16.msra.mxu0 %v4703
    %5027 = vmatprep.subr.bf16.mxu0 %v4708
    %5028 = vmatpush1.bf16.msra.mxu0 %v4707
    %5029 = vmatprep.subr.bf16.mxu0 %v4712
    %5030 = vmatpush1.bf16.msra.mxu0 %v4711
    %5031 = vmatprep.subr.bf16.mxu0 %v4716
    %5032 = vmatpush1.bf16.msra.mxu0 %v4715
    %5033 = vmatprep.subr.bf16.mxu0 %v4720
    %5034 = vmatpush1.bf16.msra.mxu0 %v4719
    %5035 = vmatprep.subr.bf16.mxu0 %v4724
    %5036 = vmatpush1.bf16.msra.mxu0 %v4723
    %5037 = vmatprep.subr.bf16.mxu0 %v4728
    %5038 = vmatpush1.bf16.msra.mxu0 %v4727
    %5039 = vmatprep.subr.bf16.mxu0 %v4732
    %5040 = vmatpush1.bf16.msra.mxu0 %v4731
    %5041 = vmatprep.subr.bf16.mxu0 0
    %5042 = vmatpush1.bf16.msra.mxu0 0
    %5043 = vmatprep.subr.bf16.mxu0 0
    %5044 = vmatpush1.bf16.msra.mxu0 0
    %5045 = vmatprep.subr.bf16.mxu0 0
    %5046 = vmatpush1.bf16.msra.mxu0 0
    %5047 = vmatprep.subr.bf16.mxu0 0
    %5048 = vmatpush1.bf16.msra.mxu0 0
    %5049 = vmatprep.subr.bf16.mxu0 0
    %5050 = vmatpush1.bf16.msra.mxu0 0
    %5051 = vmatprep.subr.bf16.mxu0 0
    %5052 = vmatpush1.bf16.msra.mxu0 0
    %5053 = vmatprep.subr.bf16.mxu0 0
    %5054 = vmatpush1.bf16.msra.mxu0 0
    %5055 = vmatprep.subr.bf16.mxu0 0
    %5056 = vmatpush1.bf16.msra.mxu0 0
    %5057 = vmatprep.mubr.bf16.mxu0 0
    %5058 = vmatmul.mubr.bf16.gmra.mrb[0].mxu0 %v5023
    %v5059 = vpop.f32.mrb[0].mxu0
    %v5060 = vadd.f32 0.0, %v5059
    %v5061 = vpop.f32.mrb[0].mxu0
    %v5062 = vadd.f32 0.0, %v5061
    %v5063 = vpop.f32.mrb[0].mxu0
    %v5064 = vpop.f32.mrb[0].mxu0
    %5065 = vdwg.mxu0
    %5066 = vmatprep.subr.bf16.mxu0 %v4706
    %5067 = vmatpush1.bf16.msra.mxu0 %v4705
    %5068 = vmatprep.subr.bf16.mxu0 %v4710
    %5069 = vmatpush1.bf16.msra.mxu0 %v4709
    %5070 = vmatprep.subr.bf16.mxu0 %v4714
    %5071 = vmatpush1.bf16.msra.mxu0 %v4713
    %5072 = vmatprep.subr.bf16.mxu0 %v4718
    %5073 = vmatpush1.bf16.msra.mxu0 %v4717
    %5074 = vmatprep.subr.bf16.mxu0 %v4722
    %5075 = vmatpush1.bf16.msra.mxu0 %v4721
    %5076 = vmatprep.subr.bf16.mxu0 %v4726
    %5077 = vmatpush1.bf16.msra.mxu0 %v4725
    %5078 = vmatprep.subr.bf16.mxu0 %v4730
    %5079 = vmatpush1.bf16.msra.mxu0 %v4729
    %5080 = vmatprep.subr.bf16.mxu0 %v4734
    %5081 = vmatpush1.bf16.msra.mxu0 %v4733
    %5082 = vmatprep.subr.bf16.mxu0 0
    %5083 = vmatpush1.bf16.msra.mxu0 0
    %5084 = vmatprep.subr.bf16.mxu0 0
    %5085 = vmatpush1.bf16.msra.mxu0 0
    %5086 = vmatprep.subr.bf16.mxu0 0
    %5087 = vmatpush1.bf16.msra.mxu0 0
    %5088 = vmatprep.subr.bf16.mxu0 0
    %5089 = vmatpush1.bf16.msra.mxu0 0
    %5090 = vmatprep.subr.bf16.mxu0 0
    %5091 = vmatpush1.bf16.msra.mxu0 0
    %5092 = vmatprep.subr.bf16.mxu0 0
    %5093 = vmatpush1.bf16.msra.mxu0 0
    %5094 = vmatprep.subr.bf16.mxu0 0
    %5095 = vmatpush1.bf16.msra.mxu0 0
    %5096 = vmatprep.subr.bf16.mxu0 0
    %5097 = vmatpush1.bf16.msra.mxu0 0
    %5098 = vmatprep.mubr.bf16.mxu0 0
    %5099 = vmatmul.mubr.bf16.gmra.mrb[0].mxu0 %v5023
    %v5100 = vpop.f32.mrb[0].mxu0
    %v5101 = vadd.f32 0.0, %v5100
    %v5102 = vpop.f32.mrb[0].mxu0
    %v5103 = vadd.f32 0.0, %v5102
    %v5104 = vpop.f32.mrb[0].mxu0
    %v5105 = vpop.f32.mrb[0].mxu0
    %5106 = vdwg.mxu0
    %v5111 = vrot.slane %v5060, 2
    %v5112 = vrot.slane %v5062, 2
    %v5113 = vrot.slane %v5101, 2
    %v5114 = vrot.slane %v5103, 2
    %v5119 = vadd.f32 %v4539, %v5111
    %v5120 = vadd.f32 %v4541, %v5112
    %v5121 = vadd.f32 %v4582, %v5113
    %v5122 = vadd.f32 %v4584, %v5114
    %v5123 = vxor.u32 %v5119, 2147483648
    %v5124 = vxor.u32 %v5120, 2147483648
    %v5125 = vxor.u32 %v5121, 2147483648
    %v5126 = vmul.f32 %v5123, 1.442695
    %v5127 = vpow.pop %v5126
    %v5128 = vmul.f32 %v5124, 1.442695
    %v5129 = vpow.pop %v5128
    %v5130 = vmul.f32 %v5125, 1.442695
    %v5131 = vpow.pop %v5130
    %v5132 = vadd.f32 %v5127, 1.0
    %v5133 = vadd.f32 %v5129, 1.0
    %v5134 = vadd.f32 %v5131, 1.0
    %v5135 = vrcp.pop %v5132
    %v5136 = vmul.f32 1.0, %v5135
    %v5137 = vrcp.pop %v5133
    %v5138 = vmul.f32 1.0, %v5137
    %v5139 = vrcp.pop %v5134
    %v5140 = vmul.f32 1.0, %v5139
    %v5141 = vtanh.pop %v5122
    %v5143 = vrot.slane %v5018, 6
    %v5145 = vmul.f32 %v5138, %v5143
    %v5146 = vmul.f32 %v5136, %v5141
    %v5147 = vadd.f32 %v5145, %v5146
    %v5148 = vtanh.pop %v5147
    %v5149 = vmul.f32 %v5140, %v5148
    %v5150 = vpack.c.bf16 %v5149, %v5149
    %v5152 = vrot.slane %v5150, 3
    %5154 = vmatprep.subr.bf16.mxu0 %v4704
    %5155 = vmatpush1.bf16.msra.mxu0 %v4703
    %5156 = vmatprep.subr.bf16.mxu0 %v4708
    %5157 = vmatpush1.bf16.msra.mxu0 %v4707
    %5158 = vmatprep.subr.bf16.mxu0 %v4712
    %5159 = vmatpush1.bf16.msra.mxu0 %v4711
    %5160 = vmatprep.subr.bf16.mxu0 %v4716
    %5161 = vmatpush1.bf16.msra.mxu0 %v4715
    %5162 = vmatprep.subr.bf16.mxu0 %v4720
    %5163 = vmatpush1.bf16.msra.mxu0 %v4719
    %5164 = vmatprep.subr.bf16.mxu0 %v4724
    %5165 = vmatpush1.bf16.msra.mxu0 %v4723
    %5166 = vmatprep.subr.bf16.mxu0 %v4728
    %5167 = vmatpush1.bf16.msra.mxu0 %v4727
    %5168 = vmatprep.subr.bf16.mxu0 %v4732
    %5169 = vmatpush1.bf16.msra.mxu0 %v4731
    %5170 = vmatprep.subr.bf16.mxu0 0
    %5171 = vmatpush1.bf16.msra.mxu0 0
    %5172 = vmatprep.subr.bf16.mxu0 0
    %5173 = vmatpush1.bf16.msra.mxu0 0
    %5174 = vmatprep.subr.bf16.mxu0 0
    %5175 = vmatpush1.bf16.msra.mxu0 0
    %5176 = vmatprep.subr.bf16.mxu0 0
    %5177 = vmatpush1.bf16.msra.mxu0 0
    %5178 = vmatprep.subr.bf16.mxu0 0
    %5179 = vmatpush1.bf16.msra.mxu0 0
    %5180 = vmatprep.subr.bf16.mxu0 0
    %5181 = vmatpush1.bf16.msra.mxu0 0
    %5182 = vmatprep.subr.bf16.mxu0 0
    %5183 = vmatpush1.bf16.msra.mxu0 0
    %5184 = vmatprep.subr.bf16.mxu0 0
    %5185 = vmatpush1.bf16.msra.mxu0 0
    %5186 = vmatprep.mubr.bf16.mxu0 0
    %5187 = vmatmul.mubr.bf16.gmra.mrb[0].mxu0 %v5152
    %v5188 = vpop.f32.mrb[0].mxu0
    %v5189 = vadd.f32 0.0, %v5188
    %v5190 = vpop.f32.mrb[0].mxu0
    %v5191 = vadd.f32 0.0, %v5190
    %v5192 = vpop.f32.mrb[0].mxu0
    %v5193 = vpop.f32.mrb[0].mxu0
    %5194 = vdwg.mxu0
    %5195 = vmatprep.subr.bf16.mxu0 %v4706
    %5196 = vmatpush1.bf16.msra.mxu0 %v4705
    %5197 = vmatprep.subr.bf16.mxu0 %v4710
    %5198 = vmatpush1.bf16.msra.mxu0 %v4709
    %5199 = vmatprep.subr.bf16.mxu0 %v4714
    %5200 = vmatpush1.bf16.msra.mxu0 %v4713
    %5201 = vmatprep.subr.bf16.mxu0 %v4718
    %5202 = vmatpush1.bf16.msra.mxu0 %v4717
    %5203 = vmatprep.subr.bf16.mxu0 %v4722
    %5204 = vmatpush1.bf16.msra.mxu0 %v4721
    %5205 = vmatprep.subr.bf16.mxu0 %v4726
    %5206 = vmatpush1.bf16.msra.mxu0 %v4725
    %5207 = vmatprep.subr.bf16.mxu0 %v4730
    %5208 = vmatpush1.bf16.msra.mxu0 %v4729
    %5209 = vmatprep.subr.bf16.mxu0 %v4734
    %5210 = vmatpush1.bf16.msra.mxu0 %v4733
    %5211 = vmatprep.subr.bf16.mxu0 0
    %5212 = vmatpush1.bf16.msra.mxu0 0
    %5213 = vmatprep.subr.bf16.mxu0 0
    %5214 = vmatpush1.bf16.msra.mxu0 0
    %5215 = vmatprep.subr.bf16.mxu0 0
    %5216 = vmatpush1.bf16.msra.mxu0 0
    %5217 = vmatprep.subr.bf16.mxu0 0
    %5218 = vmatpush1.bf16.msra.mxu0 0
    %5219 = vmatprep.subr.bf16.mxu0 0
    %5220 = vmatpush1.bf16.msra.mxu0 0
    %5221 = vmatprep.subr.bf16.mxu0 0
    %5222 = vmatpush1.bf16.msra.mxu0 0
    %5223 = vmatprep.subr.bf16.mxu0 0
    %5224 = vmatpush1.bf16.msra.mxu0 0
    %5225 = vmatprep.subr.bf16.mxu0 0
    %5226 = vmatpush1.bf16.msra.mxu0 0
    %5227 = vmatprep.mubr.bf16.mxu0 0
    %5228 = vmatmul.mubr.bf16.gmra.mrb[0].mxu0 %v5152
    %v5229 = vpop.f32.mrb[0].mxu0
    %v5230 = vadd.f32 0.0, %v5229
    %v5231 = vpop.f32.mrb[0].mxu0
    %v5232 = vadd.f32 0.0, %v5231
    %v5233 = vpop.f32.mrb[0].mxu0
    %v5234 = vpop.f32.mrb[0].mxu0
    %5235 = vdwg.mxu0
    %v5236 = vadd.f32 %v4543, %v5189
    %v5237 = vadd.f32 %v4545, %v5191
    %v5238 = vadd.f32 %v4586, %v5230
    %v5239 = vadd.f32 %v4588, %v5232
    %v5240 = vxor.u32 %v5236, 2147483648
    %v5241 = vxor.u32 %v5237, 2147483648
    %v5242 = vxor.u32 %v5238, 2147483648
    %v5243 = vmul.f32 %v5240, 1.442695
    %v5244 = vpow.pop %v5243
    %v5245 = vmul.f32 %v5241, 1.442695
    %v5246 = vpow.pop %v5245
    %v5247 = vmul.f32 %v5242, 1.442695
    %v5248 = vpow.pop %v5247
    %v5249 = vadd.f32 %v5244, 1.0
    %v5250 = vadd.f32 %v5246, 1.0
    %v5251 = vadd.f32 %v5248, 1.0
    %v5252 = vrcp.pop %v5249
    %v5253 = vmul.f32 1.0, %v5252
    %v5254 = vrcp.pop %v5250
    %v5255 = vmul.f32 1.0, %v5254
    %v5256 = vrcp.pop %v5251
    %v5257 = vmul.f32 1.0, %v5256
    %v5258 = vtanh.pop %v5239
    %v5260 = vrot.slane %v5147, 6
    %v5262 = vmul.f32 %v5255, %v5260
    %v5263 = vmul.f32 %v5253, %v5258
    %v5264 = vadd.f32 %v5262, %v5263
    %v5265 = vtanh.pop %v5264
    %v5266 = vmul.f32 %v5257, %v5265
    %v5267 = vpack.c.bf16 %v5266, %v5266
    %5268 = vmatprep.subr.bf16.mxu0 %v4704
    %5269 = vmatpush1.bf16.msra.mxu0 %v4703
    %5270 = vmatprep.subr.bf16.mxu0 %v4708
    %5271 = vmatpush1.bf16.msra.mxu0 %v4707
    %5272 = vmatprep.subr.bf16.mxu0 %v4712
    %5273 = vmatpush1.bf16.msra.mxu0 %v4711
    %5274 = vmatprep.subr.bf16.mxu0 %v4716
    %5275 = vmatpush1.bf16.msra.mxu0 %v4715
    %5276 = vmatprep.subr.bf16.mxu0 %v4720
    %5277 = vmatpush1.bf16.msra.mxu0 %v4719
    %5278 = vmatprep.subr.bf16.mxu0 %v4724
    %5279 = vmatpush1.bf16.msra.mxu0 %v4723
    %5280 = vmatprep.subr.bf16.mxu0 %v4728
    %5281 = vmatpush1.bf16.msra.mxu0 %v4727
    %5282 = vmatprep.subr.bf16.mxu0 %v4732
    %5283 = vmatpush1.bf16.msra.mxu0 %v4731
    %5284 = vmatprep.subr.bf16.mxu0 0
    %5285 = vmatpush1.bf16.msra.mxu0 0
    %5286 = vmatprep.subr.bf16.mxu0 0
    %5287 = vmatpush1.bf16.msra.mxu0 0
    %5288 = vmatprep.subr.bf16.mxu0 0
    %5289 = vmatpush1.bf16.msra.mxu0 0
    %5290 = vmatprep.subr.bf16.mxu0 0
    %5291 = vmatpush1.bf16.msra.mxu0 0
    %5292 = vmatprep.subr.bf16.mxu0 0
    %5293 = vmatpush1.bf16.msra.mxu0 0
    %5294 = vmatprep.subr.bf16.mxu0 0
    %5295 = vmatpush1.bf16.msra.mxu0 0
    %5296 = vmatprep.subr.bf16.mxu0 0
    %5297 = vmatpush1.bf16.msra.mxu0 0
    %5298 = vmatprep.subr.bf16.mxu0 0
    %5299 = vmatpush1.bf16.msra.mxu0 0
    %5300 = vmatprep.mubr.bf16.mxu0 0
    %5301 = vmatmul.mubr.bf16.gmra.mrb[0].mxu0 %v5267
    %v5302 = vpop.f32.mrb[0].mxu0
    %v5303 = vadd.f32 0.0, %v5302
    %v5304 = vpop.f32.mrb[0].mxu0
    %v5305 = vadd.f32 0.0, %v5304
    %v5306 = vpop.f32.mrb[0].mxu0
    %v5307 = vpop.f32.mrb[0].mxu0
    %5308 = vdwg.mxu0
    %5309 = vmatprep.subr.bf16.mxu0 %v4706
    %5310 = vmatpush1.bf16.msra.mxu0 %v4705
    %5311 = vmatprep.subr.bf16.mxu0 %v4710
    %5312 = vmatpush1.bf16.msra.mxu0 %v4709
    %5313 = vmatprep.subr.bf16.mxu0 %v4714
    %5314 = vmatpush1.bf16.msra.mxu0 %v4713
    %5315 = vmatprep.subr.bf16.mxu0 %v4718
    %5316 = vmatpush1.bf16.msra.mxu0 %v4717
    %5317 = vmatprep.subr.bf16.mxu0 %v4722
    %5318 = vmatpush1.bf16.msra.mxu0 %v4721
    %5319 = vmatprep.subr.bf16.mxu0 %v4726
    %5320 = vmatpush1.bf16.msra.mxu0 %v4725
    %5321 = vmatprep.subr.bf16.mxu0 %v4730
    %5322 = vmatpush1.bf16.msra.mxu0 %v4729
    %5323 = vmatprep.subr.bf16.mxu0 %v4734
    %5324 = vmatpush1.bf16.msra.mxu0 %v4733
    %5325 = vmatprep.subr.bf16.mxu0 0
    %5326 = vmatpush1.bf16.msra.mxu0 0
    %5327 = vmatprep.subr.bf16.mxu0 0
    %5328 = vmatpush1.bf16.msra.mxu0 0
    %5329 = vmatprep.subr.bf16.mxu0 0
    %5330 = vmatpush1.bf16.msra.mxu0 0
    %5331 = vmatprep.subr.bf16.mxu0 0
    %5332 = vmatpush1.bf16.msra.mxu0 0
    %5333 = vmatprep.subr.bf16.mxu0 0
    %5334 = vmatpush1.bf16.msra.mxu0 0
    %5335 = vmatprep.subr.bf16.mxu0 0
    %5336 = vmatpush1.bf16.msra.mxu0 0
    %5337 = vmatprep.subr.bf16.mxu0 0
    %5338 = vmatpush1.bf16.msra.mxu0 0
    %5339 = vmatprep.subr.bf16.mxu0 0
    %5340 = vmatpush1.bf16.msra.mxu0 0
    %5341 = vmatprep.mubr.bf16.mxu0 0
    %5342 = vmatmul.mubr.bf16.gmra.mrb[0].mxu0 %v5267
    %v5343 = vpop.f32.mrb[0].mxu0
    %v5344 = vadd.f32 0.0, %v5343
    %v5345 = vpop.f32.mrb[0].mxu0
    %v5346 = vadd.f32 0.0, %v5345
    %v5347 = vpop.f32.mrb[0].mxu0
    %v5348 = vpop.f32.mrb[0].mxu0
    %5349 = vdwg.mxu0
    %v5354 = vrot.slane %v5303, 6
    %v5355 = vrot.slane %v5305, 6
    %v5356 = vrot.slane %v5344, 6
    %v5357 = vrot.slane %v5346, 6
    %v5362 = vadd.f32 %v4543, %v5354
    %v5363 = vadd.f32 %v4545, %v5355
    %v5364 = vadd.f32 %v4586, %v5356
    %v5365 = vadd.f32 %v4588, %v5357
    %v5366 = vxor.u32 %v5362, 2147483648
    %v5367 = vxor.u32 %v5363, 2147483648
    %v5368 = vxor.u32 %v5364, 2147483648
    %v5369 = vmul.f32 %v5366, 1.442695
    %v5370 = vpow.pop %v5369
    %v5371 = vmul.f32 %v5367, 1.442695
    %v5372 = vpow.pop %v5371
    %v5373 = vmul.f32 %v5368, 1.442695
    %v5374 = vpow.pop %v5373
    %v5375 = vadd.f32 %v5370, 1.0
    %v5376 = vadd.f32 %v5372, 1.0
    %v5377 = vadd.f32 %v5374, 1.0
    %v5378 = vrcp.pop %v5375
    %v5379 = vmul.f32 1.0, %v5378
    %v5380 = vrcp.pop %v5376
    %v5381 = vmul.f32 1.0, %v5380
    %v5382 = vrcp.pop %v5377
    %v5383 = vmul.f32 1.0, %v5382
    %v5384 = vtanh.pop %v5365
    %v5386 = vrot.slane %v5264, 6
    %v5388 = vmul.f32 %v5381, %v5386
    %v5389 = vmul.f32 %v5379, %v5384
    %v5390 = vadd.f32 %v5388, %v5389
    %v5391 = vtanh.pop %v5390
    %v5392 = vmul.f32 %v5383, %v5391
    %v5393 = vpack.c.bf16 %v5392, %v5392
    %v5395 = vrot.slane %v5393, 1
    %5397 = vmatprep.subr.bf16.mxu0 %v4704
    %5398 = vmatpush1.bf16.msra.mxu0 %v4703
    %5399 = vmatprep.subr.bf16.mxu0 %v4708
    %5400 = vmatpush1.bf16.msra.mxu0 %v4707
    %5401 = vmatprep.subr.bf16.mxu0 %v4712
    %5402 = vmatpush1.bf16.msra.mxu0 %v4711
    %5403 = vmatprep.subr.bf16.mxu0 %v4716
    %5404 = vmatpush1.bf16.msra.mxu0 %v4715
    %5405 = vmatprep.subr.bf16.mxu0 %v4720
    %5406 = vmatpush1.bf16.msra.mxu0 %v4719
    %5407 = vmatprep.subr.bf16.mxu0 %v4724
    %5408 = vmatpush1.bf16.msra.mxu0 %v4723
    %5409 = vmatprep.subr.bf16.mxu0 %v4728
    %5410 = vmatpush1.bf16.msra.mxu0 %v4727
    %5411 = vmatprep.subr.bf16.mxu0 %v4732
    %5412 = vmatpush1.bf16.msra.mxu0 %v4731
    %5413 = vmatprep.subr.bf16.mxu0 0
    %5414 = vmatpush1.bf16.msra.mxu0 0
    %5415 = vmatprep.subr.bf16.mxu0 0
    %5416 = vmatpush1.bf16.msra.mxu0 0
    %5417 = vmatprep.subr.bf16.mxu0 0
    %5418 = vmatpush1.bf16.msra.mxu0 0
    %5419 = vmatprep.subr.bf16.mxu0 0
    %5420 = vmatpush1.bf16.msra.mxu0 0
    %5421 = vmatprep.subr.bf16.mxu0 0
    %5422 = vmatpush1.bf16.msra.mxu0 0
    %5423 = vmatprep.subr.bf16.mxu0 0
    %5424 = vmatpush1.bf16.msra.mxu0 0
    %5425 = vmatprep.subr.bf16.mxu0 0
    %5426 = vmatpush1.bf16.msra.mxu0 0
    %5427 = vmatprep.subr.bf16.mxu0 0
    %5428 = vmatpush1.bf16.msra.mxu0 0
    %5429 = vmatprep.mubr.bf16.mxu0 0
    %5430 = vmatmul.mubr.bf16.gmra.mrb[0].mxu0 %v5395
    %v5431 = vpop.f32.mrb[0].mxu0
    %v5432 = vadd.f32 0.0, %v5431
    %v5433 = vpop.f32.mrb[0].mxu0
    %v5434 = vadd.f32 0.0, %v5433
    %v5435 = vpop.f32.mrb[0].mxu0
    %v5436 = vpop.f32.mrb[0].mxu0
    %5437 = vdwg.mxu0
    %5438 = vmatprep.subr.bf16.mxu0 %v4706
    %5439 = vmatpush1.bf16.msra.mxu0 %v4705
    %5440 = vmatprep.subr.bf16.mxu0 %v4710
    %5441 = vmatpush1.bf16.msra.mxu0 %v4709
    %5442 = vmatprep.subr.bf16.mxu0 %v4714
    %5443 = vmatpush1.bf16.msra.mxu0 %v4713
    %5444 = vmatprep.subr.bf16.mxu0 %v4718
    %5445 = vmatpush1.bf16.msra.mxu0 %v4717
    %5446 = vmatprep.subr.bf16.mxu0 %v4722
    %5447 = vmatpush1.bf16.msra.mxu0 %v4721
    %5448 = vmatprep.subr.bf16.mxu0 %v4726
    %5449 = vmatpush1.bf16.msra.mxu0 %v4725
    %5450 = vmatprep.subr.bf16.mxu0 %v4730
    %5451 = vmatpush1.bf16.msra.mxu0 %v4729
    %5452 = vmatprep.subr.bf16.mxu0 %v4734
    %5453 = vmatpush1.bf16.msra.mxu0 %v4733
    %5454 = vmatprep.subr.bf16.mxu0 0
    %5455 = vmatpush1.bf16.msra.mxu0 0
    %5456 = vmatprep.subr.bf16.mxu0 0
    %5457 = vmatpush1.bf16.msra.mxu0 0
    %5458 = vmatprep.subr.bf16.mxu0 0
    %5459 = vmatpush1.bf16.msra.mxu0 0
    %5460 = vmatprep.subr.bf16.mxu0 0
    %5461 = vmatpush1.bf16.msra.mxu0 0
    %5462 = vmatprep.subr.bf16.mxu0 0
    %5463 = vmatpush1.bf16.msra.mxu0 0
    %5464 = vmatprep.subr.bf16.mxu0 0
    %5465 = vmatpush1.bf16.msra.mxu0 0
    %5466 = vmatprep.subr.bf16.mxu0 0
    %5467 = vmatpush1.bf16.msra.mxu0 0
    %5468 = vmatprep.subr.bf16.mxu0 0
    %5469 = vmatpush1.bf16.msra.mxu0 0
    %5470 = vmatprep.mubr.bf16.mxu0 0
    %5471 = vmatmul.mubr.bf16.gmra.mrb[0].mxu0 %v5395
    %v5472 = vpop.f32.mrb[0].mxu0
    %v5473 = vadd.f32 0.0, %v5472
    %v5474 = vpop.f32.mrb[0].mxu0
    %v5475 = vadd.f32 0.0, %v5474
    %v5476 = vpop.f32.mrb[0].mxu0
    %v5477 = vpop.f32.mrb[0].mxu0
    %5478 = vdwg.mxu0
    %v5483 = vrot.slane %v5432, 4
    %v5484 = vrot.slane %v5434, 4
    %v5485 = vrot.slane %v5473, 4
    %v5486 = vrot.slane %v5475, 4
    %v5491 = vadd.f32 %v4543, %v5483
    %v5492 = vadd.f32 %v4545, %v5484
    %v5493 = vadd.f32 %v4586, %v5485
    %v5494 = vadd.f32 %v4588, %v5486
    %v5495 = vxor.u32 %v5491, 2147483648
    %v5496 = vxor.u32 %v5492, 2147483648
    %v5497 = vxor.u32 %v5493, 2147483648
    %v5498 = vmul.f32 %v5495, 1.442695
    %v5499 = vpow.pop %v5498
    %v5500 = vmul.f32 %v5496, 1.442695
    %v5501 = vpow.pop %v5500
    %v5502 = vmul.f32 %v5497, 1.442695
    %v5503 = vpow.pop %v5502
    %v5504 = vadd.f32 %v5499, 1.0
    %v5505 = vadd.f32 %v5501, 1.0
    %v5506 = vadd.f32 %v5503, 1.0
    %v5507 = vrcp.pop %v5504
    %v5508 = vmul.f32 1.0, %v5507
    %v5509 = vrcp.pop %v5505
    %v5510 = vmul.f32 1.0, %v5509
    %v5511 = vrcp.pop %v5506
    %v5512 = vmul.f32 1.0, %v5511
    %v5513 = vtanh.pop %v5494
    %v5515 = vrot.slane %v5390, 6
    %v5517 = vmul.f32 %v5510, %v5515
    %v5518 = vmul.f32 %v5508, %v5513
    %v5519 = vadd.f32 %v5517, %v5518
    %v5520 = vtanh.pop %v5519
    %v5521 = vmul.f32 %v5512, %v5520
    %v5522 = vpack.c.bf16 %v5521, %v5521
    %v5524 = vrot.slane %v5522, 2
    %5526 = vmatprep.subr.bf16.mxu0 %v4704
    %5527 = vmatpush1.bf16.msra.mxu0 %v4703
    %5528 = vmatprep.subr.bf16.mxu0 %v4708
    %5529 = vmatpush1.bf16.msra.mxu0 %v4707
    %5530 = vmatprep.subr.bf16.mxu0 %v4712
    %5531 = vmatpush1.bf16.msra.mxu0 %v4711
    %5532 = vmatprep.subr.bf16.mxu0 %v4716
    %5533 = vmatpush1.bf16.msra.mxu0 %v4715
    %5534 = vmatprep.subr.bf16.mxu0 %v4720
    %5535 = vmatpush1.bf16.msra.mxu0 %v4719
    %5536 = vmatprep.subr.bf16.mxu0 %v4724
    %5537 = vmatpush1.bf16.msra.mxu0 %v4723
    %5538 = vmatprep.subr.bf16.mxu0 %v4728
    %5539 = vmatpush1.bf16.msra.mxu0 %v4727
    %5540 = vmatprep.subr.bf16.mxu0 %v4732
    %5541 = vmatpush1.bf16.msra.mxu0 %v4731
    %5542 = vmatprep.subr.bf16.mxu0 0
    %5543 = vmatpush1.bf16.msra.mxu0 0
    %5544 = vmatprep.subr.bf16.mxu0 0
    %5545 = vmatpush1.bf16.msra.mxu0 0
    %5546 = vmatprep.subr.bf16.mxu0 0
    %5547 = vmatpush1.bf16.msra.mxu0 0
    %5548 = vmatprep.subr.bf16.mxu0 0
    %5549 = vmatpush1.bf16.msra.mxu0 0
    %5550 = vmatprep.subr.bf16.mxu0 0
    %5551 = vmatpush1.bf16.msra.mxu0 0
    %5552 = vmatprep.subr.bf16.mxu0 0
    %5553 = vmatpush1.bf16.msra.mxu0 0
    %5554 = vmatprep.subr.bf16.mxu0 0
    %5555 = vmatpush1.bf16.msra.mxu0 0
    %5556 = vmatprep.subr.bf16.mxu0 0
    %5557 = vmatpush1.bf16.msra.mxu0 0
    %5558 = vmatprep.mubr.bf16.mxu0 0
    %5559 = vmatmul.mubr.bf16.gmra.mrb[0].mxu0 %v5524
    %v5560 = vpop.f32.mrb[0].mxu0
    %v5561 = vadd.f32 0.0, %v5560
    %v5562 = vpop.f32.mrb[0].mxu0
    %v5563 = vadd.f32 0.0, %v5562
    %v5564 = vpop.f32.mrb[0].mxu0
    %v5565 = vpop.f32.mrb[0].mxu0
    %5566 = vdwg.mxu0
    %5567 = vmatprep.subr.bf16.mxu0 %v4706
    %5568 = vmatpush1.bf16.msra.mxu0 %v4705
    %5569 = vmatprep.subr.bf16.mxu0 %v4710
    %5570 = vmatpush1.bf16.msra.mxu0 %v4709
    %5571 = vmatprep.subr.bf16.mxu0 %v4714
    %5572 = vmatpush1.bf16.msra.mxu0 %v4713
    %5573 = vmatprep.subr.bf16.mxu0 %v4718
    %5574 = vmatpush1.bf16.msra.mxu0 %v4717
    %5575 = vmatprep.subr.bf16.mxu0 %v4722
    %5576 = vmatpush1.bf16.msra.mxu0 %v4721
    %5577 = vmatprep.subr.bf16.mxu0 %v4726
    %5578 = vmatpush1.bf16.msra.mxu0 %v4725
    %5579 = vmatprep.subr.bf16.mxu0 %v4730
    %5580 = vmatpush1.bf16.msra.mxu0 %v4729
    %5581 = vmatprep.subr.bf16.mxu0 %v4734
    %5582 = vmatpush1.bf16.msra.mxu0 %v4733
    %5583 = vmatprep.subr.bf16.mxu0 0
    %5584 = vmatpush1.bf16.msra.mxu0 0
    %5585 = vmatprep.subr.bf16.mxu0 0
    %5586 = vmatpush1.bf16.msra.mxu0 0
    %5587 = vmatprep.subr.bf16.mxu0 0
    %5588 = vmatpush1.bf16.msra.mxu0 0
    %5589 = vmatprep.subr.bf16.mxu0 0
    %5590 = vmatpush1.bf16.msra.mxu0 0
    %5591 = vmatprep.subr.bf16.mxu0 0
    %5592 = vmatpush1.bf16.msra.mxu0 0
    %5593 = vmatprep.subr.bf16.mxu0 0
    %5594 = vmatpush1.bf16.msra.mxu0 0
    %5595 = vmatprep.subr.bf16.mxu0 0
    %5596 = vmatpush1.bf16.msra.mxu0 0
    %5597 = vmatprep.subr.bf16.mxu0 0
    %5598 = vmatpush1.bf16.msra.mxu0 0
    %5599 = vmatprep.mubr.bf16.mxu0 0
    %5600 = vmatmul.mubr.bf16.gmra.mrb[0].mxu0 %v5524
    %v5601 = vpop.f32.mrb[0].mxu0
    %v5602 = vadd.f32 0.0, %v5601
    %v5603 = vpop.f32.mrb[0].mxu0
    %v5604 = vadd.f32 0.0, %v5603
    %v5605 = vpop.f32.mrb[0].mxu0
    %v5606 = vpop.f32.mrb[0].mxu0
    %5607 = vdwg.mxu0
    %v5612 = vrot.slane %v5561, 2
    %v5613 = vrot.slane %v5563, 2
    %v5614 = vrot.slane %v5602, 2
    %v5615 = vrot.slane %v5604, 2
    %v5620 = vadd.f32 %v4543, %v5612
    %v5621 = vadd.f32 %v4545, %v5613
    %v5622 = vadd.f32 %v4586, %v5614
    %v5623 = vadd.f32 %v4588, %v5615
    %v5624 = vxor.u32 %v5620, 2147483648
    %v5625 = vxor.u32 %v5621, 2147483648
    %v5626 = vxor.u32 %v5622, 2147483648
    %v5627 = vmul.f32 %v5624, 1.442695
    %v5628 = vpow.pop %v5627
    %v5629 = vmul.f32 %v5625, 1.442695
    %v5630 = vpow.pop %v5629
    %v5631 = vmul.f32 %v5626, 1.442695
    %v5632 = vpow.pop %v5631
    %v5633 = vadd.f32 %v5628, 1.0
    %v5634 = vadd.f32 %v5630, 1.0
    %v5635 = vadd.f32 %v5632, 1.0
    %v5636 = vrcp.pop %v5633
    %v5637 = vmul.f32 1.0, %v5636
    %v5638 = vrcp.pop %v5634
    %v5639 = vmul.f32 1.0, %v5638
    %v5640 = vrcp.pop %v5635
    %v5641 = vmul.f32 1.0, %v5640
    %v5642 = vtanh.pop %v5623
    %v5644 = vrot.slane %v5519, 6
    %v5646 = vmul.f32 %v5639, %v5644
    %v5647 = vmul.f32 %v5637, %v5642
    %v5648 = vadd.f32 %v5646, %v5647
    %v5649 = vtanh.pop %v5648
    %v5650 = vmul.f32 %v5641, %v5649
    %v5651 = vpack.c.bf16 %v5650, %v5650
    %v5652 = vld [vmem:[%s4] sm:$0xf]
    %v5653 = vld [vmem:[%s4 + $0x4] sm:$0xf]
    %v5654 = vld [vmem:[%s4 + $0x8] sm:$0xf]
    %v5655 = vld [vmem:[%s4 + $0xc] sm:$0xf]
    %v5656 = vld [vmem:[%s4 + $0x10] sm:$0xf]
    %v5657 = vld [vmem:[%s4 + $0x14] sm:$0xf]
    %v5658 = vld [vmem:[%s4 + $0x18] sm:$0xf]
    %v5659 = vld [vmem:[%s4 + $0x1c] sm:$0xf]
    %v5660 = vld [vmem:[%s4 + $0x20] sm:$0xf]
    %v5661 = vld [vmem:[%s4 + $0x24] sm:$0xf]
    %v5662 = vld [vmem:[%s4 + $0x28] sm:$0xf]
    %v5663 = vld [vmem:[%s4 + $0x2c] sm:$0xf]
    %v5664 = vld [vmem:[%s4 + $0x30] sm:$0xf]
    %v5665 = vld [vmem:[%s4 + $0x34] sm:$0xf]
    %v5666 = vld [vmem:[%s4 + $0x38] sm:$0xf]
    %v5667 = vld [vmem:[%s4 + $0x3c] sm:$0xf]
    %v5668 = vld [vmem:[%s5] sm:$0x1]
    %v5670 = vlaneseq
    %v5671 = vshrl.u32 %v5670, 7
    %v5672 = vsub.s32 0, %v5671
    %v5673 = vrot.slane %v5668, %v5672
    %v5676 = vrot.slane %v5651, 3
    %v5694 = vunpack.c.l.b16 %v5652
    %v5695 = vunpack.c.l.b16 %v5653
    %v5696 = vunpack.c.l.b16 %v5654
    %v5697 = vunpack.c.l.b16 %v5655
    %v5698 = vunpack.c.l.b16 %v5656
    %v5699 = vunpack.c.l.b16 %v5657
    %v5700 = vunpack.c.l.b16 %v5658
    %v5701 = vunpack.c.l.b16 %v5659
    %v5702 = vunpack.c.l.b16 %v5660
    %v5703 = vunpack.c.l.b16 %v5661
    %v5704 = vunpack.c.l.b16 %v5662
    %v5705 = vunpack.c.l.b16 %v5663
    %v5706 = vunpack.c.l.b16 %v5664
    %v5707 = vunpack.c.l.b16 %v5665
    %v5708 = vunpack.c.l.b16 %v5666
    %v5709 = vunpack.c.l.b16 %v5667
    %v5710 = vpack.c.b16 %v5695, %v5694
    %v5711 = vpack.c.b16 %v5697, %v5696
    %v5712 = vpack.c.b16 %v5699, %v5698
    %v5713 = vpack.c.b16 %v5701, %v5700
    %v5714 = vpack.c.b16 %v5703, %v5702
    %v5715 = vpack.c.b16 %v5705, %v5704
    %v5716 = vpack.c.b16 %v5707, %v5706
    %v5717 = vpack.c.b16 %v5709, %v5708
    %5726 = vmatprep.subr.bf16.mxu0 0
    %5727 = vmatpush1.bf16.msra.mxu0 %v5710
    %5728 = vmatprep.subr.bf16.mxu0 0
    %5729 = vmatpush1.bf16.msra.mxu0 %v5711
    %5730 = vmatprep.subr.bf16.mxu0 0
    %5731 = vmatpush1.bf16.msra.mxu0 %v5712
    %5732 = vmatprep.subr.bf16.mxu0 0
    %5733 = vmatpush1.bf16.msra.mxu0 %v5713
    %5734 = vmatprep.subr.bf16.mxu0 0
    %5735 = vmatpush1.bf16.msra.mxu0 %v5714
    %5736 = vmatprep.subr.bf16.mxu0 0
    %5737 = vmatpush1.bf16.msra.mxu0 %v5715
    %5738 = vmatprep.subr.bf16.mxu0 0
    %5739 = vmatpush1.bf16.msra.mxu0 %v5716
    %5740 = vmatprep.subr.bf16.mxu0 0
    %5741 = vmatpush1.bf16.msra.mxu0 %v5717
    %5742 = vmatprep.subr.bf16.mxu0 0
    %5743 = vmatpush1.bf16.msra.mxu0 0
    %5744 = vmatprep.subr.bf16.mxu0 0
    %5745 = vmatpush1.bf16.msra.mxu0 0
    %5746 = vmatprep.subr.bf16.mxu0 0
    %5747 = vmatpush1.bf16.msra.mxu0 0
    %5748 = vmatprep.subr.bf16.mxu0 0
    %5749 = vmatpush1.bf16.msra.mxu0 0
    %5750 = vmatprep.subr.bf16.mxu0 0
    %5751 = vmatpush1.bf16.msra.mxu0 0
    %5752 = vmatprep.subr.bf16.mxu0 0
    %5753 = vmatpush1.bf16.msra.mxu0 0
    %5754 = vmatprep.subr.bf16.mxu0 0
    %5755 = vmatpush1.bf16.msra.mxu0 0
    %5756 = vmatprep.subr.bf16.mxu0 0
    %5757 = vmatpush1.bf16.msra.mxu0 0
    %5758 = vmatprep.mubr.bf16.mxu0 0
    %5759 = vmatmul.mubr.bf16.gmra.mrb[0].mxu0 %v5676
    %v5760 = vpop.f32.mrb[0].mxu0
    %v5761 = vadd.f32 %v5673, %v5760
    %v5762 = vpop.f32.mrb[0].mxu0
    %v5763 = vpop.f32.mrb[0].mxu0
    %v5764 = vpop.f32.mrb[0].mxu0
    %5765 = vdwg.mxu0
    %v5766 = vlaneseq
    %v5767 = vand.u32 %v5766, 127
    %vm5768 = vcmp.lt.s32.totalorder %v5767, 64
    %v5769 = vmax.f32 %v5761, 0.0
    %vm5770 = vcmp.ne.f32.partialorder %v5761, %v5761
    %v5771 = vadd.f32 %v5761, 0.0
    %v5772 = vand.u32 2147483647, %v5761
    %v5773 = vsub.f32 0.0, %v5772
    %v5774 = vmul.f32 %v5773, 1.442695
    %v5775 = vpow.pop %v5774
    %v5776 = vadd.f32 %v5775, 1.0
    %v5777 = vlog2.pop %v5776
    %v5778 = vmul.f32 %v5777, 0.6931472
    %v5779 = vmul.f32 -0.5, %v5775
    %v5780 = vadd.f32 %v5779, 1.0
    %v5781 = vmul.f32 %v5780, %v5775
    %v5782 = vand.u32 2147483647, %v5775
    %vm5783 = vcmp.lt.f32.partialorder %v5782, 0.0004427343
    %v5784 = vsel %vm5783, %v5781, %v5778
    %v5785 = vadd.f32 %v5769, %v5784
    %v5786 = vsel %vm5770, %v5771, %v5785
    %v5787 = vsel %vm5768, %v5786, %v5761
    %5788 = vst [vmem:[%s6] sm:$0x3] %v5787
    // Predicated region
    $region30: #{forward.1} parent=1 // pred_check
      _
    $region31: #{forward.1} parent=1 // pred_check_branch
      %5790 = sbr.rel (0) target = $region33
    $region32: #{forward.1} parent=1 // pred_region
      _
    $region33: #{forward.1} parent=1 // pred_fallthru
      _
    // Predicated region
    $region34: #{forward.1} parent=1 // pred_check
      _
    $region35: #{forward.1} parent=1 // pred_check_branch
      %5792 = sbr.rel (0) target = $region37
    $region36: #{forward.1} parent=1 // pred_region
      _
    $region37: #{forward.1} parent=1 // pred_fallthru
      _
    %5793 = vsyncpa [#allocation3], 1

</llo_original>
